<compile_context>
chip_gen: v7x
topology: tpu7x:2x2x1
jax: 0.10.0
libtpu: 0.0.40
codegen_flags: <defaults>
</compile_context>

<pallas_src>
import functools
import math

import jax
import jax.numpy as jnp
from jax.experimental import pallas as pl
from jax.experimental.pallas import tpu as pltpu

# ----------------------------------------------------------------------------- config
CONFIG = dict(
    use_jitter=False,
    jitter_probability=0.12,
    use_kaiming_normal=False,
    quantize=16,             # WaveNet output / one-hot input channels
    n_layers=2,              # layers per loop (dilation cycle length)
    n_loop=2,                # number of dilation loops
    residual_channels=32,
    gate_channels=32,
    skip_out_channels=32,
    filter_size=2,           # dilated-conv kernel size
    local_condition_dim=768,  # == _conv_1 out channels
    global_condition_dim=16,
)
UPSAMPLE_SCALES = [2, 2, 2, 2, 2, 12]     # total x384
SPEAKER_DIC = {"spk0": 0, "spk1": 1, "spk2": 2}
SQRT_HALF = math.sqrt(0.5)


# ----------------------------------------------------------------------------- fused Pallas kernel
def _wavenet_fused_kernel(
    # per-batch-element inputs
    y_ref,        # (1, Q, T)        one-hot (or soft) waveform input
    lc_ref,       # (1, k*64, t_lat) tap-stacked raw local condition
    g_ref,        # (1, gin, 1)      speaker embedding, column vector
    # weights (whole-array blocks, broadcast across the grid)
    c1w_ref,      # (cin, k*64)           _conv_1, tap-stacked
    c1b_ref,      # (cin, 1)
    fw_ref,       # (R, Q)                first 1x1 conv
    fb_ref,       # (R, 1)
    condw_ref,    # (n_total*G, cin+gin)  all layers' local+global cond 1x1s
    convw_ref,    # (n_total, G, k*R)     dilated convs, tap-stacked
    convb_ref,    # (n_total, G, 1)
    sow_ref,      # (n_total, S+R, G//2)  merged skip / residual-out 1x1s
    skipb_ref,    # (n_total, S, 1)
    outb_ref,     # (n_total, R, 1)
    l1w_ref,      # (S, S)
    l1b_ref,      # (S, 1)
    l2w_ref,      # (Q, S)
    l2b_ref,      # (Q, 1)
    # output
    o_ref,        # (1, Q, T)
    # scratch
    cond_scr,     # (n_total*G, T)  VMEM
    *, n_layers):
    f32 = jnp.float32
    T = y_ref.shape[2]
    t_lat = lc_ref.shape[2]
    up = T // t_lat
    n_total, G, _ = convb_ref.shape
    half = G // 2
    S = skipb_ref.shape[1]
    gin = g_ref.shape[1]

    # --- conditioning, computed at LATENT rate, upsampled in VMEM ------------
    # _conv_1 (k=2, valid) as a channel matmul on stacked taps.
    c_lat = jnp.dot(c1w_ref[...], lc_ref[0], preferred_element_type=f32) + c1b_ref[...]
    g_lat = jnp.broadcast_to(g_ref[0], (gin, t_lat))
    # All layers' local+global conditioning 1x1s in one 128-row matmul.
    cg = jnp.dot(condw_ref[...], jnp.concatenate([c_lat, g_lat], axis=0),
                 preferred_element_type=f32)                       # (n_total*G, t_lat)
    # Nearest-neighbour x`up` upsample == matmul with a one-hot segment selector.
    t_io = jax.lax.broadcasted_iota(jnp.int32, (t_lat, T), 1)
    s_io = jax.lax.broadcasted_iota(jnp.int32, (t_lat, T), 0)
    sel = ((t_io >= s_io * up) & (t_io < (s_io + 1) * up)).astype(f32)
    cond_scr[...] = jnp.dot(cg, sel, preferred_element_type=f32)   # (n_total*G, T)

    # --- first 1x1 conv on the (one-hot) waveform input -----------------------
    x = jnp.dot(fw_ref[...], y_ref[0], preferred_element_type=f32) + fb_ref[...]  # (R, T)

    t_idx = jax.lax.broadcasted_iota(jnp.int32, x.shape, 1)
    skips = jnp.zeros((S, T), f32)

    # --- gated residual blocks, fully unrolled (dilation cycles w/ n_layers) ---
    for i in range(n_total):
        d = 2 ** (i % n_layers)
        residual = x
        # causal dilated tap x[t - d]: lane-roll right by d, zero first d steps
        x_prev = jnp.where(t_idx >= d, pltpu.roll(x, d, 1), 0.0)
        xx = jnp.concatenate([x_prev, x], axis=0)                                  # (2R, T)
        z = (jnp.dot(convw_ref[i], xx, preferred_element_type=f32)
             + convb_ref[i] + cond_scr[i * G:(i + 1) * G, :])                      # (G, T)
        gated = jnp.tanh(z[:half]) * jax.nn.sigmoid(z[half:])                      # (G/2, T)
        so = jnp.dot(sow_ref[i], gated, preferred_element_type=f32)                # (S+R, T)
        skips = skips + so[:S] + skipb_ref[i]
        x = (so[S:] + outb_ref[i] + residual) * SQRT_HALF

    # --- output head: relu -> 1x1 -> relu -> 1x1 ------------------------------
    h = jnp.maximum(skips * math.sqrt(1.0 / n_total), 0.0)
    h = jnp.maximum(jnp.dot(l1w_ref[...], h, preferred_element_type=f32) + l1b_ref[...], 0.0)
    o_ref[0] = (jnp.dot(l2w_ref[...], h, preferred_element_type=f32)
                + l2b_ref[...]).astype(o_ref.dtype)


def fused_wavenet_forward(packed, y, lc_taps, g_col, cfg):
    B, Q, T = y.shape
    n_total = cfg["n_loop"] * cfg["n_layers"]
    G = cfg["gate_channels"]

    def batch_spec(a):
        zeros = (0,) * (a.ndim - 1)
        return pl.BlockSpec((1,) + a.shape[1:], lambda i: (i,) + zeros)

    def weight_spec(a):
        zeros = (0,) * a.ndim
        return pl.BlockSpec(a.shape, lambda i: zeros)

    weight_keys = ("conv1_w", "conv1_b", "first_w", "first_b", "cond_w",
                   "conv_w", "conv_b", "so_w", "skip_b", "out_b",
                   "last1_w", "last1_b", "last2_w", "last2_b")
    weights = [packed[k] for k in weight_keys]

    kern = functools.partial(_wavenet_fused_kernel, n_layers=cfg["n_layers"])
    return pl.pallas_call(
        kern,
        out_shape=jax.ShapeDtypeStruct((B, Q, T), jnp.float32),
        grid=(B,),
        in_specs=[batch_spec(y), batch_spec(lc_taps), batch_spec(g_col)]
                 + [weight_spec(w) for w in weights],
        out_specs=pl.BlockSpec((1, Q, T), lambda i: (i, 0, 0)),
        scratch_shapes=[pltpu.VMEM((n_total * G, T), jnp.float32)],
        compiler_params=pltpu.CompilerParams(dimension_semantics=("parallel",)),
    )(y, lc_taps, g_col, *weights)


# ----------------------------------------------------------------------------- parameters
def init_params(cfg, n_speakers, seed=0):
    keys = jax.random.split(jax.random.PRNGKey(seed), 64)
    it = iter(range(64))

    def nrm(shape, scale=0.05):
        return (scale * jax.random.normal(keys[next(it)], shape)).astype(jnp.float32)

    Q, R = cfg["quantize"], cfg["residual_channels"]
    G, S = cfg["gate_channels"], cfg["skip_out_channels"]
    k = cfg["filter_size"]
    cin, gin = cfg["local_condition_dim"], cfg["global_condition_dim"]
    n_total = cfg["n_loop"] * cfg["n_layers"]

    params = {
        "conv1_w": nrm((768, 64, 2)), "conv1_b": nrm((768,)),
        "speaker_embed": nrm((n_speakers, gin)),
        "first_w": nrm((R, Q)), "first_b": nrm((R,)),
        "last1_w": nrm((S, S)), "last1_b": nrm((S,)),
        "last2_w": nrm((Q, S)), "last2_b": nrm((Q,)),
        "layers": [],
    }
    for _ in range(n_total):
        params["layers"].append({
            "conv_w": nrm((G, R, k)), "conv_b": nrm((G,)),
            "cw": nrm((G, cin)),                     # local-cond 1x1 (no bias)
            "gw": nrm((G, gin)),                     # global-cond 1x1 (no bias)
            "skip_w": nrm((S, G // 2)), "skip_b": nrm((S,)),
            "out_w": nrm((R, G // 2)), "out_b": nrm((R,)),
        })
    return params


def pack_params(params, cfg):
    """Re-layout module weights for the fused kernel (once, outside the hot path)."""
    assert cfg["filter_size"] == 2

    def stack_taps(w):  # (Cout, Cin, k) -> (Cout, k*Cin), tap-major
        return jnp.transpose(w, (0, 2, 1)).reshape(w.shape[0], -1)

    layers = params["layers"]
    return {
        "speaker_embed": params["speaker_embed"],
        "conv1_w": stack_taps(params["conv1_w"]),                      # (768, 128)
        "conv1_b": params["conv1_b"][:, None],
        "first_w": params["first_w"],
        "first_b": params["first_b"][:, None],
        # all layers' local + global conditioning 1x1s stacked into one matmul
        "cond_w": jnp.concatenate(
            [jnp.concatenate([lp["cw"] for lp in layers], axis=0),
             jnp.concatenate([lp["gw"] for lp in layers], axis=0)], axis=1),  # (n*G, cin+gin)
        "conv_w": jnp.stack([stack_taps(lp["conv_w"]) for lp in layers]),     # (n, G, 2R)
        "conv_b": jnp.stack([lp["conv_b"][:, None] for lp in layers]),        # (n, G, 1)
        # skip and residual-out 1x1s merged into one (S+R)-row matmul
        "so_w": jnp.stack([jnp.concatenate([lp["skip_w"], lp["out_w"]], axis=0)
                           for lp in layers]),                                 # (n, S+R, G/2)
        "skip_b": jnp.stack([lp["skip_b"][:, None] for lp in layers]),
        "out_b": jnp.stack([lp["out_b"][:, None] for lp in layers]),
        "last1_w": params["last1_w"], "last1_b": params["last1_b"][:, None],
        "last2_w": params["last2_w"], "last2_b": params["last2_b"][:, None],
    }


# ----------------------------------------------------------------------------- forward wrapper
def wavenet_decoder_forward(packed, y, local_condition, global_condition):
    """Eval mode.  y:(B,Q,T) one-hot audio, local_condition:(B,64,T_lc),
    global_condition:(B,) speaker ids.  Jitter is training-only -> skipped."""
    cfg = CONFIG
    B, Q, T = y.shape
    t_lat = local_condition.shape[-1] - 1       # k=2 "valid" _conv_1 output length
    up = int(math.prod(UPSAMPLE_SCALES))
    assert T == t_lat * up, (T, t_lat, up)
    # tap-stack the raw local condition for the k=2 valid conv (tiny XLA op).
    lc_taps = jnp.concatenate(
        [local_condition[:, :, :t_lat], local_condition[:, :, 1:t_lat + 1]], axis=1)
    # speaker embedding as a column vector (global condition).
    g_col = packed["speaker_embed"][global_condition][:, :, None]
    return fused_wavenet_forward(packed, y, lc_taps, g_col, cfg)


# ----------------------------------------------------------------------------- pure-JAX reference
def reference_forward(params, cfg, y, local_condition, global_condition):
    """Plain-XLA reference with identical semantics, for validation."""
    hi = jax.lax.Precision.HIGHEST
    B, Q, T = y.shape
    n_layers = cfg["n_layers"]
    n_total = cfg["n_loop"] * n_layers
    G = cfg["gate_channels"]
    up = int(math.prod(UPSAMPLE_SCALES))

    w, b = params["conv1_w"], params["conv1_b"]
    t_lat = local_condition.shape[-1] - 1
    c = (jnp.einsum("oc,bct->bot", w[:, :, 0], local_condition[:, :, :t_lat], precision=hi)
         + jnp.einsum("oc,bct->bot", w[:, :, 1], local_condition[:, :, 1:t_lat + 1], precision=hi)
         + b[None, :, None])
    c = jnp.repeat(c, up, axis=-1)
    g_emb = params["speaker_embed"][global_condition]

    x = (jnp.einsum("oq,bqt->bot", params["first_w"], y, precision=hi)
         + params["first_b"][None, :, None])
    skips = 0.0
    for i, lp in enumerate(params["layers"]):
        d = 2 ** (i % n_layers)
        residual = x
        x_prev = jnp.pad(x, ((0, 0), (0, 0), (d, 0)))[:, :, :T]
        z = (jnp.einsum("or,brt->bot", lp["conv_w"][:, :, 0], x_prev, precision=hi)
             + jnp.einsum("or,brt->bot", lp["conv_w"][:, :, 1], x, precision=hi)
             + lp["conv_b"][None, :, None]
             + jnp.einsum("oc,bct->bot", lp["cw"], c, precision=hi)
             + jnp.einsum("og,bg->bo", lp["gw"], g_emb, precision=hi)[:, :, None])
        gated = jnp.tanh(z[:, :G // 2]) * jax.nn.sigmoid(z[:, G // 2:])
        skip = (jnp.einsum("os,bst->bot", lp["skip_w"], gated, precision=hi)
                + lp["skip_b"][None, :, None])
        out = (jnp.einsum("or,brt->bot", lp["out_w"], gated, precision=hi)
               + lp["out_b"][None, :, None])
        x = (out + residual) * SQRT_HALF
        skips = skips + skip
    skips = skips * math.sqrt(1.0 / n_total)
    h = jnp.maximum(skips, 0.0)
    h = (jnp.einsum("os,bst->bot", params["last1_w"], h, precision=hi)
         + params["last1_b"][None, :, None])
    h = jnp.maximum(h, 0.0)
    return (jnp.einsum("qs,bst->bqt", params["last2_w"], h, precision=hi)
            + params["last2_b"][None, :, None])


# ----------------------------------------------------------------------------- main
if __name__ == "__main__":
    cfg = CONFIG
    params = init_params(cfg, len(SPEAKER_DIC), seed=0)
    packed = pack_params(params, cfg)

    key = jax.random.PRNGKey(0)
    k1, k2, k3 = jax.random.split(key, 3)

    B = 2
    T_lc = 3                                   # latent timesteps
    up = int(math.prod(UPSAMPLE_SCALES))       # 384
    T = (T_lc - 1) * up                        # audio timesteps after k=2 conv: 768

    local_condition = jax.random.normal(k1, (B, 64, T_lc), jnp.float32)
    ids = jax.random.randint(k2, (B, T), 0, cfg["quantize"])
    y = jax.nn.one_hot(ids, cfg["quantize"], axis=1, dtype=jnp.float32)   # (B,Q,T)
    global_condition = jax.random.randint(k3, (B,), 0, len(SPEAKER_DIC))  # (B,)

    fwd = jax.jit(wavenet_decoder_forward)
    out = jax.block_until_ready(fwd(packed, y, local_condition, global_condition))

    assert out.shape == (B, cfg["quantize"], T), out.shape
    assert bool(jnp.all(jnp.isfinite(out)))

    ref = reference_forward(params, cfg, y, local_condition, global_condition)
    assert bool(jnp.allclose(out, ref, rtol=2e-2, atol=2e-3)), \
        float(jnp.max(jnp.abs(out - ref)))

    print("KERNEL_OK")
</pallas_src>

<mosaic_0001>
module attributes {stable_mosaic.version = 11 : i64} {
  func.func @_wavenet_fused_kernel(%arg0: i32, %arg1: memref<1x16x768xf32, #tpu.memory_space<vmem>>, %arg2: memref<1x128x2xf32, #tpu.memory_space<vmem>>, %arg3: memref<1x16x1xf32, #tpu.memory_space<vmem>>, %arg4: memref<768x128xf32, #tpu.memory_space<vmem>>, %arg5: memref<768x1xf32, #tpu.memory_space<vmem>>, %arg6: memref<32x16xf32, #tpu.memory_space<vmem>>, %arg7: memref<32x1xf32, #tpu.memory_space<vmem>>, %arg8: memref<128x784xf32, #tpu.memory_space<vmem>>, %arg9: memref<4x32x64xf32, #tpu.memory_space<vmem>>, %arg10: memref<4x32x1xf32, #tpu.memory_space<vmem>>, %arg11: memref<4x64x16xf32, #tpu.memory_space<vmem>>, %arg12: memref<4x32x1xf32, #tpu.memory_space<vmem>>, %arg13: memref<4x32x1xf32, #tpu.memory_space<vmem>>, %arg14: memref<32x32xf32, #tpu.memory_space<vmem>>, %arg15: memref<32x1xf32, #tpu.memory_space<vmem>>, %arg16: memref<16x32xf32, #tpu.memory_space<vmem>>, %arg17: memref<16x1xf32, #tpu.memory_space<vmem>>, %arg18: memref<1x16x768xf32, #tpu.memory_space<vmem>>, %arg19: memref<128x768xf32, #tpu.memory_space<vmem>>) attributes {dimension_semantics = [#tpu.dimension_semantics<parallel>], iteration_bounds = array<i64: 2>, scalar_prefetch = 0 : i64, scratch_operands = 1 : i64, tpu.core_type = #tpu.core_type<tc>, window_params = [{transform_indices = @transform_0, window_bounds = array<i64: 1, 16, 768>}, {transform_indices = @transform_1, window_bounds = array<i64: 1, 128, 2>}, {transform_indices = @transform_2, window_bounds = array<i64: 1, 16, 1>}, {pipeline_mode = #tpu.pipeline_mode<synchronous>, transform_indices = @transform_3, window_bounds = array<i64: 768, 128>}, {pipeline_mode = #tpu.pipeline_mode<synchronous>, transform_indices = @transform_4, window_bounds = array<i64: 768, 1>}, {pipeline_mode = #tpu.pipeline_mode<synchronous>, transform_indices = @transform_5, window_bounds = array<i64: 32, 16>}, {pipeline_mode = #tpu.pipeline_mode<synchronous>, transform_indices = @transform_6, window_bounds = array<i64: 32, 1>}, {pipeline_mode = #tpu.pipeline_mode<synchronous>, transform_indices = @transform_7, window_bounds = array<i64: 128, 784>}, {pipeline_mode = #tpu.pipeline_mode<synchronous>, transform_indices = @transform_8, window_bounds = array<i64: 4, 32, 64>}, {pipeline_mode = #tpu.pipeline_mode<synchronous>, transform_indices = @transform_9, window_bounds = array<i64: 4, 32, 1>}, {pipeline_mode = #tpu.pipeline_mode<synchronous>, transform_indices = @transform_10, window_bounds = array<i64: 4, 64, 16>}, {pipeline_mode = #tpu.pipeline_mode<synchronous>, transform_indices = @transform_11, window_bounds = array<i64: 4, 32, 1>}, {pipeline_mode = #tpu.pipeline_mode<synchronous>, transform_indices = @transform_12, window_bounds = array<i64: 4, 32, 1>}, {pipeline_mode = #tpu.pipeline_mode<synchronous>, transform_indices = @transform_13, window_bounds = array<i64: 32, 32>}, {pipeline_mode = #tpu.pipeline_mode<synchronous>, transform_indices = @transform_14, window_bounds = array<i64: 32, 1>}, {pipeline_mode = #tpu.pipeline_mode<synchronous>, transform_indices = @transform_15, window_bounds = array<i64: 16, 32>}, {pipeline_mode = #tpu.pipeline_mode<synchronous>, transform_indices = @transform_16, window_bounds = array<i64: 16, 1>}, {transform_indices = @transform_17, window_bounds = array<i64: 1, 16, 768>}]} {
    %c0 = arith.constant 0 : index
    %c0_0 = arith.constant 0 : index
    %0 = vector.load %arg4[%c0, %c0_0] : memref<768x128xf32, #tpu.memory_space<vmem>>, vector<768x128xf32>
    %c0_1 = arith.constant 0 : index
    %c0_2 = arith.constant 0 : index
    %c0_3 = arith.constant 0 : index
    %1 = vector.load %arg2[%c0_1, %c0_2, %c0_3] : memref<1x128x2xf32, #tpu.memory_space<vmem>>, vector<1x128x2xf32>
    %2 = vector.shape_cast %1 : vector<1x128x2xf32> to vector<128x2xf32>
    %cst = arith.constant dense<0.000000e+00> : vector<768x2xf32>
    %3 = tpu.matmul %0, %2, %cst {dimension_numbers = #tpu.dot_dimension_numbers<[1], [0], [0], [1], [0, 0, 1, 1], [], []>} : vector<768x128xf32>, vector<128x2xf32>, vector<768x2xf32> -> vector<768x2xf32>
    %c0_4 = arith.constant 0 : index
    %c0_5 = arith.constant 0 : index
    %4 = vector.load %arg5[%c0_4, %c0_5] : memref<768x1xf32, #tpu.memory_space<vmem>>, vector<768x1xf32>
    %5 = vector.broadcast %4 : vector<768x1xf32> to vector<768x2xf32>
    %6 = arith.addf %3, %5 : vector<768x2xf32>
    %c0_6 = arith.constant 0 : index
    %c0_7 = arith.constant 0 : index
    %c0_8 = arith.constant 0 : index
    %7 = vector.load %arg3[%c0_6, %c0_7, %c0_8] : memref<1x16x1xf32, #tpu.memory_space<vmem>>, vector<1x16x1xf32>
    %8 = vector.shape_cast %7 : vector<1x16x1xf32> to vector<16x1xf32>
    %9 = vector.shape_cast %8 : vector<16x1xf32> to vector<16x1xf32>
    %10 = vector.broadcast %9 : vector<16x1xf32> to vector<16x2xf32>
    %c0_9 = arith.constant 0 : index
    %c0_10 = arith.constant 0 : index
    %11 = vector.load %arg8[%c0_9, %c0_10] : memref<128x784xf32, #tpu.memory_space<vmem>>, vector<128x784xf32>
    %12 = tpu.concatenate %6, %10 in 0 : vector<768x2xf32>, vector<16x2xf32> -> vector<784x2xf32>
    %cst_11 = arith.constant dense<0.000000e+00> : vector<128x2xf32>
    %13 = tpu.matmul %11, %12, %cst_11 {dimension_numbers = #tpu.dot_dimension_numbers<[1], [0], [0], [1], [0, 0, 1, 1], [], []>} : vector<128x784xf32>, vector<784x2xf32>, vector<128x2xf32> -> vector<128x2xf32>
    %14 = tpu.iota {dimensions = array<i32: 1>} : vector<2x768xi32>
    %15 = tpu.iota {dimensions = array<i32: 0>} : vector<2x768xi32>
    %c384_i32 = arith.constant 384 : i32
    %16 = vector.broadcast %c384_i32 : i32 to vector<2x768xi32>
    %17 = arith.muli %15, %16 : vector<2x768xi32>
    %18 = arith.cmpi sge, %14, %17 : vector<2x768xi32>
    %c1_i32 = arith.constant 1 : i32
    %19 = vector.broadcast %c1_i32 : i32 to vector<2x768xi32>
    %20 = arith.addi %15, %19 : vector<2x768xi32>
    %c384_i32_12 = arith.constant 384 : i32
    %21 = vector.broadcast %c384_i32_12 : i32 to vector<2x768xi32>
    %22 = arith.muli %20, %21 : vector<2x768xi32>
    %23 = arith.cmpi slt, %14, %22 : vector<2x768xi32>
    %24 = arith.andi %18, %23 : vector<2x768xi1>
    %25 = arith.extui %24 : vector<2x768xi1> to vector<2x768xi32>
    %26 = arith.sitofp %25 : vector<2x768xi32> to vector<2x768xf32>
    %cst_13 = arith.constant dense<0.000000e+00> : vector<128x768xf32>
    %27 = tpu.matmul %13, %26, %cst_13 {dimension_numbers = #tpu.dot_dimension_numbers<[1], [0], [0], [1], [0, 0, 1, 1], [], []>} : vector<128x2xf32>, vector<2x768xf32>, vector<128x768xf32> -> vector<128x768xf32>
    %c0_14 = arith.constant 0 : index
    %c0_15 = arith.constant 0 : index
    %28 = vector.load %arg19[%c0_14, %c0_15] : memref<128x768xf32, #tpu.memory_space<vmem>>, vector<128x768xf32>
    tpu.vector_store %arg19[%c0_14, %c0_15], %27 {strides = array<i32>} : memref<128x768xf32, #tpu.memory_space<vmem>>, vector<128x768xf32>,
    %c0_16 = arith.constant 0 : index
    %c0_17 = arith.constant 0 : index
    %29 = vector.load %arg6[%c0_16, %c0_17] : memref<32x16xf32, #tpu.memory_space<vmem>>, vector<32x16xf32>
    %c0_18 = arith.constant 0 : index
    %c0_19 = arith.constant 0 : index
    %c0_20 = arith.constant 0 : index
    %30 = vector.load %arg1[%c0_18, %c0_19, %c0_20] : memref<1x16x768xf32, #tpu.memory_space<vmem>>, vector<1x16x768xf32>
    %31 = vector.shape_cast %30 : vector<1x16x768xf32> to vector<16x768xf32>
    %cst_21 = arith.constant dense<0.000000e+00> : vector<32x768xf32>
    %32 = tpu.matmul %29, %31, %cst_21 {dimension_numbers = #tpu.dot_dimension_numbers<[1], [0], [0], [1], [0, 0, 1, 1], [], []>} : vector<32x16xf32>, vector<16x768xf32>, vector<32x768xf32> -> vector<32x768xf32>
    %c0_22 = arith.constant 0 : index
    %c0_23 = arith.constant 0 : index
    %33 = vector.load %arg7[%c0_22, %c0_23] : memref<32x1xf32, #tpu.memory_space<vmem>>, vector<32x1xf32>
    %34 = vector.broadcast %33 : vector<32x1xf32> to vector<32x768xf32>
    %35 = arith.addf %32, %34 : vector<32x768xf32>
    %36 = tpu.iota {dimensions = array<i32: 1>} : vector<32x768xi32>
    %cst_24 = arith.constant 0.000000e+00 : f32
    %37 = vector.broadcast %cst_24 : f32 to vector<32x768xf32>
    %c1_i32_25 = arith.constant 1 : i32
    %38 = vector.broadcast %c1_i32_25 : i32 to vector<32x768xi32>
    %39 = arith.cmpi sge, %36, %38 : vector<32x768xi32>
    %c1_i32_26 = arith.constant 1 : i32
    %40 = tpu.dynamic_rotate %35 by %c1_i32_26 dim 1 : vector<32x768xf32>, i32 -> vector<32x768xf32>
    %cst_27 = arith.constant 0.000000e+00 : f32
    %41 = vector.broadcast %cst_27 : f32 to vector<32x768xf32>
    %42 = arith.select %39, %40, %41 : vector<32x768xi1>, vector<32x768xf32>
    %43 = tpu.concatenate %42, %35 in 0 : vector<32x768xf32>, vector<32x768xf32> -> vector<64x768xf32>
    %c0_28 = arith.constant 0 : index
    %c0_29 = arith.constant 0 : index
    %c0_30 = arith.constant 0 : index
    %44 = vector.load %arg9[%c0_28, %c0_29, %c0_30] : memref<4x32x64xf32, #tpu.memory_space<vmem>>, vector<1x32x64xf32>
    %45 = vector.shape_cast %44 : vector<1x32x64xf32> to vector<32x64xf32>
    %cst_31 = arith.constant dense<0.000000e+00> : vector<32x768xf32>
    %46 = tpu.matmul %45, %43, %cst_31 {dimension_numbers = #tpu.dot_dimension_numbers<[1], [0], [0], [1], [0, 0, 1, 1], [], []>} : vector<32x64xf32>, vector<64x768xf32>, vector<32x768xf32> -> vector<32x768xf32>
    %c0_32 = arith.constant 0 : index
    %c0_33 = arith.constant 0 : index
    %c0_34 = arith.constant 0 : index
    %47 = vector.load %arg10[%c0_32, %c0_33, %c0_34] : memref<4x32x1xf32, #tpu.memory_space<vmem>>, vector<1x32x1xf32>
    %48 = vector.shape_cast %47 : vector<1x32x1xf32> to vector<32x1xf32>
    %49 = vector.broadcast %48 : vector<32x1xf32> to vector<32x768xf32>
    %50 = arith.addf %46, %49 : vector<32x768xf32>
    %c0_35 = arith.constant 0 : index
    %c0_36 = arith.constant 0 : index
    %51 = vector.load %arg19[%c0_35, %c0_36] : memref<128x768xf32, #tpu.memory_space<vmem>>, vector<32x768xf32>
    %52 = arith.addf %50, %51 : vector<32x768xf32>
    %53 = vector.extract_strided_slice %52 {offsets = [0, 0], sizes = [16, 768], strides = [1, 1]} : vector<32x768xf32> to vector<16x768xf32>
    %54 = math.tanh %53 : vector<16x768xf32>
    %55 = vector.extract_strided_slice %52 {offsets = [16, 0], sizes = [16, 768], strides = [1, 1]} : vector<32x768xf32> to vector<16x768xf32>
    %56 = arith.negf %55 : vector<16x768xf32>
    %57 = math.exp %56 : vector<16x768xf32>
    %cst_37 = arith.constant 1.000000e+00 : f32
    %58 = vector.broadcast %cst_37 : f32 to vector<16x768xf32>
    %59 = arith.addf %58, %57 : vector<16x768xf32>
    %60 = arith.divf %58, %59 : vector<16x768xf32>
    %61 = arith.mulf %54, %60 : vector<16x768xf32>
    %c0_38 = arith.constant 0 : index
    %c0_39 = arith.constant 0 : index
    %c0_40 = arith.constant 0 : index
    %62 = vector.load %arg11[%c0_38, %c0_39, %c0_40] : memref<4x64x16xf32, #tpu.memory_space<vmem>>, vector<1x64x16xf32>
    %63 = vector.shape_cast %62 : vector<1x64x16xf32> to vector<64x16xf32>
    %cst_41 = arith.constant dense<0.000000e+00> : vector<64x768xf32>
    %64 = tpu.matmul %63, %61, %cst_41 {dimension_numbers = #tpu.dot_dimension_numbers<[1], [0], [0], [1], [0, 0, 1, 1], [], []>} : vector<64x16xf32>, vector<16x768xf32>, vector<64x768xf32> -> vector<64x768xf32>
    %65 = vector.extract_strided_slice %64 {offsets = [0, 0], sizes = [32, 768], strides = [1, 1]} : vector<64x768xf32> to vector<32x768xf32>
    %66 = arith.addf %37, %65 : vector<32x768xf32>
    %c0_42 = arith.constant 0 : index
    %c0_43 = arith.constant 0 : index
    %c0_44 = arith.constant 0 : index
    %67 = vector.load %arg12[%c0_42, %c0_43, %c0_44] : memref<4x32x1xf32, #tpu.memory_space<vmem>>, vector<1x32x1xf32>
    %68 = vector.shape_cast %67 : vector<1x32x1xf32> to vector<32x1xf32>
    %69 = vector.broadcast %68 : vector<32x1xf32> to vector<32x768xf32>
    %70 = arith.addf %66, %69 : vector<32x768xf32>
    %71 = vector.extract_strided_slice %64 {offsets = [32, 0], sizes = [32, 768], strides = [1, 1]} : vector<64x768xf32> to vector<32x768xf32>
    %c0_45 = arith.constant 0 : index
    %c0_46 = arith.constant 0 : index
    %c0_47 = arith.constant 0 : index
    %72 = vector.load %arg13[%c0_45, %c0_46, %c0_47] : memref<4x32x1xf32, #tpu.memory_space<vmem>>, vector<1x32x1xf32>
    %73 = vector.shape_cast %72 : vector<1x32x1xf32> to vector<32x1xf32>
    %74 = vector.broadcast %73 : vector<32x1xf32> to vector<32x768xf32>
    %75 = arith.addf %71, %74 : vector<32x768xf32>
    %76 = arith.addf %75, %35 : vector<32x768xf32>
    %cst_48 = arith.constant 0.707106769 : f32
    %77 = vector.broadcast %cst_48 : f32 to vector<32x768xf32>
    %78 = arith.mulf %76, %77 : vector<32x768xf32>
    %c2_i32 = arith.constant 2 : i32
    %79 = vector.broadcast %c2_i32 : i32 to vector<32x768xi32>
    %80 = arith.cmpi sge, %36, %79 : vector<32x768xi32>
    %c2_i32_49 = arith.constant 2 : i32
    %81 = tpu.dynamic_rotate %78 by %c2_i32_49 dim 1 : vector<32x768xf32>, i32 -> vector<32x768xf32>
    %cst_50 = arith.constant 0.000000e+00 : f32
    %82 = vector.broadcast %cst_50 : f32 to vector<32x768xf32>
    %83 = arith.select %80, %81, %82 : vector<32x768xi1>, vector<32x768xf32>
    %84 = tpu.concatenate %83, %78 in 0 : vector<32x768xf32>, vector<32x768xf32> -> vector<64x768xf32>
    %c1 = arith.constant 1 : index
    %c0_51 = arith.constant 0 : index
    %c0_52 = arith.constant 0 : index
    %85 = vector.load %arg9[%c1, %c0_51, %c0_52] : memref<4x32x64xf32, #tpu.memory_space<vmem>>, vector<1x32x64xf32>
    %86 = vector.shape_cast %85 : vector<1x32x64xf32> to vector<32x64xf32>
    %cst_53 = arith.constant dense<0.000000e+00> : vector<32x768xf32>
    %87 = tpu.matmul %86, %84, %cst_53 {dimension_numbers = #tpu.dot_dimension_numbers<[1], [0], [0], [1], [0, 0, 1, 1], [], []>} : vector<32x64xf32>, vector<64x768xf32>, vector<32x768xf32> -> vector<32x768xf32>
    %c1_54 = arith.constant 1 : index
    %c0_55 = arith.constant 0 : index
    %c0_56 = arith.constant 0 : index
    %88 = vector.load %arg10[%c1_54, %c0_55, %c0_56] : memref<4x32x1xf32, #tpu.memory_space<vmem>>, vector<1x32x1xf32>
    %89 = vector.shape_cast %88 : vector<1x32x1xf32> to vector<32x1xf32>
    %90 = vector.broadcast %89 : vector<32x1xf32> to vector<32x768xf32>
    %91 = arith.addf %87, %90 : vector<32x768xf32>
    %c32 = arith.constant 32 : index
    %c0_57 = arith.constant 0 : index
    %92 = vector.load %arg19[%c32, %c0_57] : memref<128x768xf32, #tpu.memory_space<vmem>>, vector<32x768xf32>
    %93 = arith.addf %91, %92 : vector<32x768xf32>
    %94 = vector.extract_strided_slice %93 {offsets = [0, 0], sizes = [16, 768], strides = [1, 1]} : vector<32x768xf32> to vector<16x768xf32>
    %95 = math.tanh %94 : vector<16x768xf32>
    %96 = vector.extract_strided_slice %93 {offsets = [16, 0], sizes = [16, 768], strides = [1, 1]} : vector<32x768xf32> to vector<16x768xf32>
    %97 = arith.negf %96 : vector<16x768xf32>
    %98 = math.exp %97 : vector<16x768xf32>
    %cst_58 = arith.constant 1.000000e+00 : f32
    %99 = vector.broadcast %cst_58 : f32 to vector<16x768xf32>
    %100 = arith.addf %99, %98 : vector<16x768xf32>
    %101 = arith.divf %99, %100 : vector<16x768xf32>
    %102 = arith.mulf %95, %101 : vector<16x768xf32>
    %c1_59 = arith.constant 1 : index
    %c0_60 = arith.constant 0 : index
    %c0_61 = arith.constant 0 : index
    %103 = vector.load %arg11[%c1_59, %c0_60, %c0_61] : memref<4x64x16xf32, #tpu.memory_space<vmem>>, vector<1x64x16xf32>
    %104 = vector.shape_cast %103 : vector<1x64x16xf32> to vector<64x16xf32>
    %cst_62 = arith.constant dense<0.000000e+00> : vector<64x768xf32>
    %105 = tpu.matmul %104, %102, %cst_62 {dimension_numbers = #tpu.dot_dimension_numbers<[1], [0], [0], [1], [0, 0, 1, 1], [], []>} : vector<64x16xf32>, vector<16x768xf32>, vector<64x768xf32> -> vector<64x768xf32>
    %106 = vector.extract_strided_slice %105 {offsets = [0, 0], sizes = [32, 768], strides = [1, 1]} : vector<64x768xf32> to vector<32x768xf32>
    %107 = arith.addf %70, %106 : vector<32x768xf32>
    %c1_63 = arith.constant 1 : index
    %c0_64 = arith.constant 0 : index
    %c0_65 = arith.constant 0 : index
    %108 = vector.load %arg12[%c1_63, %c0_64, %c0_65] : memref<4x32x1xf32, #tpu.memory_space<vmem>>, vector<1x32x1xf32>
    %109 = vector.shape_cast %108 : vector<1x32x1xf32> to vector<32x1xf32>
    %110 = vector.broadcast %109 : vector<32x1xf32> to vector<32x768xf32>
    %111 = arith.addf %107, %110 : vector<32x768xf32>
    %112 = vector.extract_strided_slice %105 {offsets = [32, 0], sizes = [32, 768], strides = [1, 1]} : vector<64x768xf32> to vector<32x768xf32>
    %c1_66 = arith.constant 1 : index
    %c0_67 = arith.constant 0 : index
    %c0_68 = arith.constant 0 : index
    %113 = vector.load %arg13[%c1_66, %c0_67, %c0_68] : memref<4x32x1xf32, #tpu.memory_space<vmem>>, vector<1x32x1xf32>
    %114 = vector.shape_cast %113 : vector<1x32x1xf32> to vector<32x1xf32>
    %115 = vector.broadcast %114 : vector<32x1xf32> to vector<32x768xf32>
    %116 = arith.addf %112, %115 : vector<32x768xf32>
    %117 = arith.addf %116, %78 : vector<32x768xf32>
    %cst_69 = arith.constant 0.707106769 : f32
    %118 = vector.broadcast %cst_69 : f32 to vector<32x768xf32>
    %119 = arith.mulf %117, %118 : vector<32x768xf32>
    %c1_i32_70 = arith.constant 1 : i32
    %120 = vector.broadcast %c1_i32_70 : i32 to vector<32x768xi32>
    %121 = arith.cmpi sge, %36, %120 : vector<32x768xi32>
    %c1_i32_71 = arith.constant 1 : i32
    %122 = tpu.dynamic_rotate %119 by %c1_i32_71 dim 1 : vector<32x768xf32>, i32 -> vector<32x768xf32>
    %cst_72 = arith.constant 0.000000e+00 : f32
    %123 = vector.broadcast %cst_72 : f32 to vector<32x768xf32>
    %124 = arith.select %121, %122, %123 : vector<32x768xi1>, vector<32x768xf32>
    %125 = tpu.concatenate %124, %119 in 0 : vector<32x768xf32>, vector<32x768xf32> -> vector<64x768xf32>
    %c2 = arith.constant 2 : index
    %c0_73 = arith.constant 0 : index
    %c0_74 = arith.constant 0 : index
    %126 = vector.load %arg9[%c2, %c0_73, %c0_74] : memref<4x32x64xf32, #tpu.memory_space<vmem>>, vector<1x32x64xf32>
    %127 = vector.shape_cast %126 : vector<1x32x64xf32> to vector<32x64xf32>
    %cst_75 = arith.constant dense<0.000000e+00> : vector<32x768xf32>
    %128 = tpu.matmul %127, %125, %cst_75 {dimension_numbers = #tpu.dot_dimension_numbers<[1], [0], [0], [1], [0, 0, 1, 1], [], []>} : vector<32x64xf32>, vector<64x768xf32>, vector<32x768xf32> -> vector<32x768xf32>
    %c2_76 = arith.constant 2 : index
    %c0_77 = arith.constant 0 : index
    %c0_78 = arith.constant 0 : index
    %129 = vector.load %arg10[%c2_76, %c0_77, %c0_78] : memref<4x32x1xf32, #tpu.memory_space<vmem>>, vector<1x32x1xf32>
    %130 = vector.shape_cast %129 : vector<1x32x1xf32> to vector<32x1xf32>
    %131 = vector.broadcast %130 : vector<32x1xf32> to vector<32x768xf32>
    %132 = arith.addf %128, %131 : vector<32x768xf32>
    %c64 = arith.constant 64 : index
    %c0_79 = arith.constant 0 : index
    %133 = vector.load %arg19[%c64, %c0_79] : memref<128x768xf32, #tpu.memory_space<vmem>>, vector<32x768xf32>
    %134 = arith.addf %132, %133 : vector<32x768xf32>
    %135 = vector.extract_strided_slice %134 {offsets = [0, 0], sizes = [16, 768], strides = [1, 1]} : vector<32x768xf32> to vector<16x768xf32>
    %136 = math.tanh %135 : vector<16x768xf32>
    %137 = vector.extract_strided_slice %134 {offsets = [16, 0], sizes = [16, 768], strides = [1, 1]} : vector<32x768xf32> to vector<16x768xf32>
    %138 = arith.negf %137 : vector<16x768xf32>
    %139 = math.exp %138 : vector<16x768xf32>
    %cst_80 = arith.constant 1.000000e+00 : f32
    %140 = vector.broadcast %cst_80 : f32 to vector<16x768xf32>
    %141 = arith.addf %140, %139 : vector<16x768xf32>
    %142 = arith.divf %140, %141 : vector<16x768xf32>
    %143 = arith.mulf %136, %142 : vector<16x768xf32>
    %c2_81 = arith.constant 2 : index
    %c0_82 = arith.constant 0 : index
    %c0_83 = arith.constant 0 : index
    %144 = vector.load %arg11[%c2_81, %c0_82, %c0_83] : memref<4x64x16xf32, #tpu.memory_space<vmem>>, vector<1x64x16xf32>
    %145 = vector.shape_cast %144 : vector<1x64x16xf32> to vector<64x16xf32>
    %cst_84 = arith.constant dense<0.000000e+00> : vector<64x768xf32>
    %146 = tpu.matmul %145, %143, %cst_84 {dimension_numbers = #tpu.dot_dimension_numbers<[1], [0], [0], [1], [0, 0, 1, 1], [], []>} : vector<64x16xf32>, vector<16x768xf32>, vector<64x768xf32> -> vector<64x768xf32>
    %147 = vector.extract_strided_slice %146 {offsets = [0, 0], sizes = [32, 768], strides = [1, 1]} : vector<64x768xf32> to vector<32x768xf32>
    %148 = arith.addf %111, %147 : vector<32x768xf32>
    %c2_85 = arith.constant 2 : index
    %c0_86 = arith.constant 0 : index
    %c0_87 = arith.constant 0 : index
    %149 = vector.load %arg12[%c2_85, %c0_86, %c0_87] : memref<4x32x1xf32, #tpu.memory_space<vmem>>, vector<1x32x1xf32>
    %150 = vector.shape_cast %149 : vector<1x32x1xf32> to vector<32x1xf32>
    %151 = vector.broadcast %150 : vector<32x1xf32> to vector<32x768xf32>
    %152 = arith.addf %148, %151 : vector<32x768xf32>
    %153 = vector.extract_strided_slice %146 {offsets = [32, 0], sizes = [32, 768], strides = [1, 1]} : vector<64x768xf32> to vector<32x768xf32>
    %c2_88 = arith.constant 2 : index
    %c0_89 = arith.constant 0 : index
    %c0_90 = arith.constant 0 : index
    %154 = vector.load %arg13[%c2_88, %c0_89, %c0_90] : memref<4x32x1xf32, #tpu.memory_space<vmem>>, vector<1x32x1xf32>
    %155 = vector.shape_cast %154 : vector<1x32x1xf32> to vector<32x1xf32>
    %156 = vector.broadcast %155 : vector<32x1xf32> to vector<32x768xf32>
    %157 = arith.addf %153, %156 : vector<32x768xf32>
    %158 = arith.addf %157, %119 : vector<32x768xf32>
    %cst_91 = arith.constant 0.707106769 : f32
    %159 = vector.broadcast %cst_91 : f32 to vector<32x768xf32>
    %160 = arith.mulf %158, %159 : vector<32x768xf32>
    %c2_i32_92 = arith.constant 2 : i32
    %161 = vector.broadcast %c2_i32_92 : i32 to vector<32x768xi32>
    %162 = arith.cmpi sge, %36, %161 : vector<32x768xi32>
    %c2_i32_93 = arith.constant 2 : i32
    %163 = tpu.dynamic_rotate %160 by %c2_i32_93 dim 1 : vector<32x768xf32>, i32 -> vector<32x768xf32>
    %cst_94 = arith.constant 0.000000e+00 : f32
    %164 = vector.broadcast %cst_94 : f32 to vector<32x768xf32>
    %165 = arith.select %162, %163, %164 : vector<32x768xi1>, vector<32x768xf32>
    %166 = tpu.concatenate %165, %160 in 0 : vector<32x768xf32>, vector<32x768xf32> -> vector<64x768xf32>
    %c3 = arith.constant 3 : index
    %c0_95 = arith.constant 0 : index
    %c0_96 = arith.constant 0 : index
    %167 = vector.load %arg9[%c3, %c0_95, %c0_96] : memref<4x32x64xf32, #tpu.memory_space<vmem>>, vector<1x32x64xf32>
    %168 = vector.shape_cast %167 : vector<1x32x64xf32> to vector<32x64xf32>
    %cst_97 = arith.constant dense<0.000000e+00> : vector<32x768xf32>
    %169 = tpu.matmul %168, %166, %cst_97 {dimension_numbers = #tpu.dot_dimension_numbers<[1], [0], [0], [1], [0, 0, 1, 1], [], []>} : vector<32x64xf32>, vector<64x768xf32>, vector<32x768xf32> -> vector<32x768xf32>
    %c3_98 = arith.constant 3 : index
    %c0_99 = arith.constant 0 : index
    %c0_100 = arith.constant 0 : index
    %170 = vector.load %arg10[%c3_98, %c0_99, %c0_100] : memref<4x32x1xf32, #tpu.memory_space<vmem>>, vector<1x32x1xf32>
    %171 = vector.shape_cast %170 : vector<1x32x1xf32> to vector<32x1xf32>
    %172 = vector.broadcast %171 : vector<32x1xf32> to vector<32x768xf32>
    %173 = arith.addf %169, %172 : vector<32x768xf32>
    %c96 = arith.constant 96 : index
    %c0_101 = arith.constant 0 : index
    %174 = vector.load %arg19[%c96, %c0_101] : memref<128x768xf32, #tpu.memory_space<vmem>>, vector<32x768xf32>
    %175 = arith.addf %173, %174 : vector<32x768xf32>
    %176 = vector.extract_strided_slice %175 {offsets = [0, 0], sizes = [16, 768], strides = [1, 1]} : vector<32x768xf32> to vector<16x768xf32>
    %177 = math.tanh %176 : vector<16x768xf32>
    %178 = vector.extract_strided_slice %175 {offsets = [16, 0], sizes = [16, 768], strides = [1, 1]} : vector<32x768xf32> to vector<16x768xf32>
    %179 = arith.negf %178 : vector<16x768xf32>
    %180 = math.exp %179 : vector<16x768xf32>
    %cst_102 = arith.constant 1.000000e+00 : f32
    %181 = vector.broadcast %cst_102 : f32 to vector<16x768xf32>
    %182 = arith.addf %181, %180 : vector<16x768xf32>
    %183 = arith.divf %181, %182 : vector<16x768xf32>
    %184 = arith.mulf %177, %183 : vector<16x768xf32>
    %c3_103 = arith.constant 3 : index
    %c0_104 = arith.constant 0 : index
    %c0_105 = arith.constant 0 : index
    %185 = vector.load %arg11[%c3_103, %c0_104, %c0_105] : memref<4x64x16xf32, #tpu.memory_space<vmem>>, vector<1x64x16xf32>
    %186 = vector.shape_cast %185 : vector<1x64x16xf32> to vector<64x16xf32>
    %cst_106 = arith.constant dense<0.000000e+00> : vector<64x768xf32>
    %187 = tpu.matmul %186, %184, %cst_106 {dimension_numbers = #tpu.dot_dimension_numbers<[1], [0], [0], [1], [0, 0, 1, 1], [], []>} : vector<64x16xf32>, vector<16x768xf32>, vector<64x768xf32> -> vector<64x768xf32>
    %188 = vector.extract_strided_slice %187 {offsets = [0, 0], sizes = [32, 768], strides = [1, 1]} : vector<64x768xf32> to vector<32x768xf32>
    %189 = arith.addf %152, %188 : vector<32x768xf32>
    %c3_107 = arith.constant 3 : index
    %c0_108 = arith.constant 0 : index
    %c0_109 = arith.constant 0 : index
    %190 = vector.load %arg12[%c3_107, %c0_108, %c0_109] : memref<4x32x1xf32, #tpu.memory_space<vmem>>, vector<1x32x1xf32>
    %191 = vector.shape_cast %190 : vector<1x32x1xf32> to vector<32x1xf32>
    %192 = vector.broadcast %191 : vector<32x1xf32> to vector<32x768xf32>
    %193 = arith.addf %189, %192 : vector<32x768xf32>
    %cst_110 = arith.constant 5.000000e-01 : f32
    %194 = vector.broadcast %cst_110 : f32 to vector<32x768xf32>
    %195 = arith.mulf %193, %194 : vector<32x768xf32>
    %cst_111 = arith.constant 0.000000e+00 : f32
    %196 = vector.broadcast %cst_111 : f32 to vector<32x768xf32>
    %197 = arith.maximumf %195, %196 : vector<32x768xf32>
    %c0_112 = arith.constant 0 : index
    %c0_113 = arith.constant 0 : index
    %198 = vector.load %arg14[%c0_112, %c0_113] : memref<32x32xf32, #tpu.memory_space<vmem>>, vector<32x32xf32>
    %cst_114 = arith.constant dense<0.000000e+00> : vector<32x768xf32>
    %199 = tpu.matmul %198, %197, %cst_114 {dimension_numbers = #tpu.dot_dimension_numbers<[1], [0], [0], [1], [0, 0, 1, 1], [], []>} : vector<32x32xf32>, vector<32x768xf32>, vector<32x768xf32> -> vector<32x768xf32>
    %c0_115 = arith.constant 0 : index
    %c0_116 = arith.constant 0 : index
    %200 = vector.load %arg15[%c0_115, %c0_116] : memref<32x1xf32, #tpu.memory_space<vmem>>, vector<32x1xf32>
    %201 = vector.broadcast %200 : vector<32x1xf32> to vector<32x768xf32>
    %202 = arith.addf %199, %201 : vector<32x768xf32>
    %cst_117 = arith.constant 0.000000e+00 : f32
    %203 = vector.broadcast %cst_117 : f32 to vector<32x768xf32>
    %204 = arith.maximumf %202, %203 : vector<32x768xf32>
    %c0_118 = arith.constant 0 : index
    %c0_119 = arith.constant 0 : index
    %205 = vector.load %arg16[%c0_118, %c0_119] : memref<16x32xf32, #tpu.memory_space<vmem>>, vector<16x32xf32>
    %cst_120 = arith.constant dense<0.000000e+00> : vector<16x768xf32>
    %206 = tpu.matmul %205, %204, %cst_120 {dimension_numbers = #tpu.dot_dimension_numbers<[1], [0], [0], [1], [0, 0, 1, 1], [], []>} : vector<16x32xf32>, vector<32x768xf32>, vector<16x768xf32> -> vector<16x768xf32>
    %c0_121 = arith.constant 0 : index
    %c0_122 = arith.constant 0 : index
    %207 = vector.load %arg17[%c0_121, %c0_122] : memref<16x1xf32, #tpu.memory_space<vmem>>, vector<16x1xf32>
    %208 = vector.broadcast %207 : vector<16x1xf32> to vector<16x768xf32>
    %209 = arith.addf %206, %208 : vector<16x768xf32>
    %c0_123 = arith.constant 0 : index
    %c0_124 = arith.constant 0 : index
    %c0_125 = arith.constant 0 : index
    %210 = vector.load %arg18[%c0_123, %c0_124, %c0_125] : memref<1x16x768xf32, #tpu.memory_space<vmem>>, vector<1x16x768xf32>
    %211 = vector.shape_cast %210 : vector<1x16x768xf32> to vector<16x768xf32>
    %212 = vector.shape_cast %209 : vector<16x768xf32> to vector<1x16x768xf32>
    tpu.vector_store %arg18[%c0_123, %c0_124, %c0_125], %212 {strides = array<i32>} : memref<1x16x768xf32, #tpu.memory_space<vmem>>, vector<1x16x768xf32>,
    return
  }
  func.func @transform_0(%arg0: i32) -> (i32, i32, i32) {
    %c0_i32 = arith.constant 0 : i32
    %c0_i32_0 = arith.constant 0 : i32
    %c0_i32_1 = arith.constant 0 : i32
    return %arg0, %c0_i32, %c0_i32_0 : i32, i32, i32
  }
  func.func @transform_1(%arg0: i32) -> (i32, i32, i32) {
    %c0_i32 = arith.constant 0 : i32
    %c0_i32_0 = arith.constant 0 : i32
    %c0_i32_1 = arith.constant 0 : i32
    return %arg0, %c0_i32, %c0_i32_0 : i32, i32, i32
  }
  func.func @transform_2(%arg0: i32) -> (i32, i32, i32) {
    %c0_i32 = arith.constant 0 : i32
    %c0_i32_0 = arith.constant 0 : i32
    %c0_i32_1 = arith.constant 0 : i32
    return %arg0, %c0_i32, %c0_i32_0 : i32, i32, i32
  }
  func.func @transform_3(%arg0: i32) -> (i32, i32) {
    %c0_i32 = arith.constant 0 : i32
    %c0_i32_0 = arith.constant 0 : i32
    %c0_i32_1 = arith.constant 0 : i32
    return %c0_i32, %c0_i32_0 : i32, i32
  }
  func.func @transform_4(%arg0: i32) -> (i32, i32) {
    %c0_i32 = arith.constant 0 : i32
    %c0_i32_0 = arith.constant 0 : i32
    %c0_i32_1 = arith.constant 0 : i32
    return %c0_i32, %c0_i32_0 : i32, i32
  }
  func.func @transform_5(%arg0: i32) -> (i32, i32) {
    %c0_i32 = arith.constant 0 : i32
    %c0_i32_0 = arith.constant 0 : i32
    %c0_i32_1 = arith.constant 0 : i32
    return %c0_i32, %c0_i32_0 : i32, i32
  }
  func.func @transform_6(%arg0: i32) -> (i32, i32) {
    %c0_i32 = arith.constant 0 : i32
    %c0_i32_0 = arith.constant 0 : i32
    %c0_i32_1 = arith.constant 0 : i32
    return %c0_i32, %c0_i32_0 : i32, i32
  }
  func.func @transform_7(%arg0: i32) -> (i32, i32) {
    %c0_i32 = arith.constant 0 : i32
    %c0_i32_0 = arith.constant 0 : i32
    %c0_i32_1 = arith.constant 0 : i32
    return %c0_i32, %c0_i32_0 : i32, i32
  }
  func.func @transform_8(%arg0: i32) -> (i32, i32, i32) {
    %c0_i32 = arith.constant 0 : i32
    %c0_i32_0 = arith.constant 0 : i32
    %c0_i32_1 = arith.constant 0 : i32
    %c0_i32_2 = arith.constant 0 : i32
    return %c0_i32, %c0_i32_0, %c0_i32_1 : i32, i32, i32
  }
  func.func @transform_9(%arg0: i32) -> (i32, i32, i32) {
    %c0_i32 = arith.constant 0 : i32
    %c0_i32_0 = arith.constant 0 : i32
    %c0_i32_1 = arith.constant 0 : i32
    %c0_i32_2 = arith.constant 0 : i32
    return %c0_i32, %c0_i32_0, %c0_i32_1 : i32, i32, i32
  }
  func.func @transform_10(%arg0: i32) -> (i32, i32, i32) {
    %c0_i32 = arith.constant 0 : i32
    %c0_i32_0 = arith.constant 0 : i32
    %c0_i32_1 = arith.constant 0 : i32
    %c0_i32_2 = arith.constant 0 : i32
    return %c0_i32, %c0_i32_0, %c0_i32_1 : i32, i32, i32
  }
  func.func @transform_11(%arg0: i32) -> (i32, i32, i32) {
    %c0_i32 = arith.constant 0 : i32
    %c0_i32_0 = arith.constant 0 : i32
    %c0_i32_1 = arith.constant 0 : i32
    %c0_i32_2 = arith.constant 0 : i32
    return %c0_i32, %c0_i32_0, %c0_i32_1 : i32, i32, i32
  }
  func.func @transform_12(%arg0: i32) -> (i32, i32, i32) {
    %c0_i32 = arith.constant 0 : i32
    %c0_i32_0 = arith.constant 0 : i32
    %c0_i32_1 = arith.constant 0 : i32
    %c0_i32_2 = arith.constant 0 : i32
    return %c0_i32, %c0_i32_0, %c0_i32_1 : i32, i32, i32
  }
  func.func @transform_13(%arg0: i32) -> (i32, i32) {
    %c0_i32 = arith.constant 0 : i32
    %c0_i32_0 = arith.constant 0 : i32
    %c0_i32_1 = arith.constant 0 : i32
    return %c0_i32, %c0_i32_0 : i32, i32
  }
  func.func @transform_14(%arg0: i32) -> (i32, i32) {
    %c0_i32 = arith.constant 0 : i32
    %c0_i32_0 = arith.constant 0 : i32
    %c0_i32_1 = arith.constant 0 : i32
    return %c0_i32, %c0_i32_0 : i32, i32
  }
  func.func @transform_15(%arg0: i32) -> (i32, i32) {
    %c0_i32 = arith.constant 0 : i32
    %c0_i32_0 = arith.constant 0 : i32
    %c0_i32_1 = arith.constant 0 : i32
    return %c0_i32, %c0_i32_0 : i32, i32
  }
  func.func @transform_16(%arg0: i32) -> (i32, i32) {
    %c0_i32 = arith.constant 0 : i32
    %c0_i32_0 = arith.constant 0 : i32
    %c0_i32_1 = arith.constant 0 : i32
    return %c0_i32, %c0_i32_0 : i32, i32
  }
  func.func @transform_17(%arg0: i32) -> (i32, i32, i32) {
    %c0_i32 = arith.constant 0 : i32
    %c0_i32_0 = arith.constant 0 : i32
    %c0_i32_1 = arith.constant 0 : i32
    return %arg0, %c0_i32, %c0_i32_0 : i32, i32, i32
  }
}

</mosaic_0001>

<llo_original>
// kernel: wavenet_decoder_forward.1
$region0: #{wavenet_decoder_forward.1}
  #allocation0 [shape = 'u32[]', space=smem, size = 0x4, offset = 0x4, fixed_abs, tag = 'smem constant byte address 0x4 - core index']
  #allocation1 [shape = 'u32[144,128]{1,0:T(1,128)}', space=vmem, size = 0x12000, scoped, tag = 'internal scratch']
  #allocation2 [shape = 'f32[128,768]{1,0:T(8,128)}', space=vmem, size = 0x60000, scoped, tag = 'scratch operand']
  %s0 = inlined_call_operand.vmem [shape: f32[2,16,768], index: 0, kind: input, shape index: {}]
  %s1 = inlined_call_operand.vmem [shape: f32[2,128,2], index: 1, kind: input, shape index: {}]
  %s2 = inlined_call_operand.vmem [shape: f32[2,16,1], index: 2, kind: input, shape index: {}]
  %s3 = inlined_call_operand.vmem [shape: f32[768,128], index: 3, kind: input, shape index: {}]
  %s4 = inlined_call_operand.vmem [shape: f32[768,1], index: 4, kind: input, shape index: {}]
  %s5 = inlined_call_operand.vmem [shape: f32[32,16], index: 5, kind: input, shape index: {}]
  %s6 = inlined_call_operand.vmem [shape: f32[32,1], index: 6, kind: input, shape index: {}]
  %s7 = inlined_call_operand.vmem [shape: f32[128,784], index: 7, kind: input, shape index: {}]
  %s8 = inlined_call_operand.vmem [shape: f32[4,32,64], index: 8, kind: input, shape index: {}]
  %s9 = inlined_call_operand.vmem [shape: f32[4,32,1], index: 9, kind: input, shape index: {}]
  %s10 = inlined_call_operand.vmem [shape: f32[4,64,16], index: 10, kind: input, shape index: {}]
  %s11 = inlined_call_operand.vmem [shape: f32[4,32,1], index: 11, kind: input, shape index: {}]
  %s12 = inlined_call_operand.vmem [shape: f32[4,32,1], index: 12, kind: input, shape index: {}]
  %s13 = inlined_call_operand.vmem [shape: f32[32,32], index: 13, kind: input, shape index: {}]
  %s14 = inlined_call_operand.vmem [shape: f32[32,1], index: 14, kind: input, shape index: {}]
  %s15 = inlined_call_operand.vmem [shape: f32[16,32], index: 15, kind: input, shape index: {}]
  %s16 = inlined_call_operand.vmem [shape: f32[16,1], index: 16, kind: input, shape index: {}]
  %s17 = inlined_call_operand.hbm [shape: f32[2,16,768], index: 17, kind: output, shape index: {}]
  %s18 = sld [smem:[#allocation0]]
  $region101: #{wavenet_decoder_forward.1} parent=0
    _
  %s20 = ssub.s32 1, %s18
  %s21 = scalar_select 0, %s20, %s18
  $region1: #{wavenet_decoder_forward.1} parent=0
    #allocation3 [shape = 'u8[98304]{0}', space=vmem, size = 0x18000, scoped, tag = 'output window, operand 0']
    #allocation4 [shape = 's32[2]{0}', space=sflag, size = 0x8, scoped, tag = 'scoped memory for wavenet_decoder_forward.1']
    %22 = vsyncpa [#allocation4], 0
    %s23 = scalar_lea.sflag [#allocation4], 1
    %24 = vsyncpa %s23, 0
    loop: start=0, step=1, limit=4
    $region2: #{wavenet_decoder_forward.1} parent=1 // loop_pre_header
      _
    $region3: #{wavenet_decoder_forward.1} parent=1 // loop_header
      %s26 = sphi 0, %s30
      %p27 = scmp.ge.s32.totalorder %s26, 4
      %s36 = sphi 0, %s38
      %s39 = sphi 0, %s36
      %s40 = sphi 0, %s39
      %s56 = sphi 0, %s40
      %s62 = sphi 0, %s64
      %s65 = sphi 0, %s62
      %s66 = sphi 0, %s65
      %s82 = sphi 0, %s66
      %s88 = sphi 0, %s90
      %s91 = sphi 0, %s88
      %s92 = sphi 0, %s91
      %s108 = sphi 0, %s92
      %s112 = sphi 0, %s112
      %s114 = sphi 0, %s112
      %s115 = sphi 0, %s114
      %s129 = sphi 0, %s115
      %s133 = sphi 0, %s133
      %s135 = sphi 0, %s133
      %s136 = sphi 0, %s135
      %s150 = sphi 0, %s136
      %s154 = sphi 0, %s154
      %s156 = sphi 0, %s154
      %s157 = sphi 0, %s156
      %s171 = sphi 0, %s157
      %s175 = sphi 0, %s175
      %s177 = sphi 0, %s175
      %s178 = sphi 0, %s177
      %s192 = sphi 0, %s178
      %s196 = sphi 0, %s196
      %s198 = sphi 0, %s196
      %s199 = sphi 0, %s198
      %s213 = sphi 0, %s199
      %s217 = sphi 0, %s217
      %s219 = sphi 0, %s217
      %s220 = sphi 0, %s219
      %s234 = sphi 0, %s220
      %s238 = sphi 0, %s238
      %s240 = sphi 0, %s238
      %s241 = sphi 0, %s240
      %s255 = sphi 0, %s241
      %s259 = sphi 0, %s259
      %s261 = sphi 0, %s259
      %s262 = sphi 0, %s261
      %s276 = sphi 0, %s262
      %s280 = sphi 0, %s280
      %s282 = sphi 0, %s280
      %s283 = sphi 0, %s282
      %s297 = sphi 0, %s283
      %s301 = sphi 0, %s301
      %s303 = sphi 0, %s301
      %s304 = sphi 0, %s303
      %s318 = sphi 0, %s304
      %s322 = sphi 0, %s322
      %s324 = sphi 0, %s322
      %s325 = sphi 0, %s324
      %s339 = sphi 0, %s325
      %s343 = sphi 0, %s343
      %s345 = sphi 0, %s343
      %s346 = sphi 0, %s345
      %s360 = sphi 0, %s346
      %s364 = sphi 0, %s364
      %s366 = sphi 0, %s364
      %s367 = sphi 0, %s366
      %s381 = sphi 0, %s367
      %s385 = sphi 0, %s385
      %s387 = sphi 0, %s385
      %s388 = sphi 0, %s387
      %s402 = sphi 0, %s388
      %s408 = sphi 0, %s410
      %s411 = sphi 0, %s408
      %s412 = sphi 0, %s411
      %s428 = sphi 0, %s412
    $region4: #{wavenet_decoder_forward.1} parent=1 // loop_header_branch
      %29 = sbr.rel (%p27) target = $region8
    $region5: #{wavenet_decoder_forward.1} parent=1 // loop_body
      %s31 = ssub.s32 %s26, 1
      %s32 = ssub.s32 %s26, 2
      %s33 = sadd.s32 %s26, 1
      %s34 = ssub.s32 %s26, %s33
      %p35 = scmp.eq.s32.totalorder %s34, 0
      %s37 = sadd.s32 %s36, 1
      %s38 = scalar_select %p35, %s36, %s37
      %p41 = pneg %p35
      %p42 = scmp.eq.s32.totalorder %s26, 1
      %p43 = por %p41, %p42
      %p44 = scmp.ne.s32.totalorder %s36, %s39
      %p45 = scmp.eq.s32.totalorder %s26, 0
      %p46 = por %p44, %p45
      %p47 = scmp.ne.s32.totalorder %s36, %s39
      %p48 = scmp.eq.s32.totalorder %s31, 1
      %p49 = por %p47, %p48
      %p50 = scmp.ne.s32.totalorder %s39, %s40
      %p51 = scmp.eq.s32.totalorder %s31, 0
      %p52 = por %p50, %p51
      %p53 = scmp.ne.s32.totalorder %s39, %s40
      %p54 = scmp.eq.s32.totalorder %s32, 1
      %p55 = por %p53, %p54
      %p57 = scmp.ne.s32.totalorder %s40, %s56
      %p58 = scmp.eq.s32.totalorder %s32, 0
      %p59 = por %p57, %p58
      %s60 = ssub.s32 %s26, %s33
      %p61 = scmp.eq.s32.totalorder %s60, 0
      %s63 = sadd.s32 %s62, 1
      %s64 = scalar_select %p61, %s62, %s63
      %p67 = pneg %p61
      %p68 = scmp.eq.s32.totalorder %s26, 1
      %p69 = por %p67, %p68
      %p70 = scmp.ne.s32.totalorder %s62, %s65
      %p71 = scmp.eq.s32.totalorder %s26, 0
      %p72 = por %p70, %p71
      %p73 = scmp.ne.s32.totalorder %s62, %s65
      %p74 = scmp.eq.s32.totalorder %s31, 1
      %p75 = por %p73, %p74
      %p76 = scmp.ne.s32.totalorder %s65, %s66
      %p77 = scmp.eq.s32.totalorder %s31, 0
      %p78 = por %p76, %p77
      %p79 = scmp.ne.s32.totalorder %s65, %s66
      %p80 = scmp.eq.s32.totalorder %s32, 1
      %p81 = por %p79, %p80
      %p83 = scmp.ne.s32.totalorder %s66, %s82
      %p84 = scmp.eq.s32.totalorder %s32, 0
      %p85 = por %p83, %p84
      %s86 = ssub.s32 %s26, %s33
      %p87 = scmp.eq.s32.totalorder %s86, 0
      %s89 = sadd.s32 %s88, 1
      %s90 = scalar_select %p87, %s88, %s89
      %p93 = pneg %p87
      %p94 = scmp.eq.s32.totalorder %s26, 1
      %p95 = por %p93, %p94
      %p96 = scmp.ne.s32.totalorder %s88, %s91
      %p97 = scmp.eq.s32.totalorder %s26, 0
      %p98 = por %p96, %p97
      %p99 = scmp.ne.s32.totalorder %s88, %s91
      %p100 = scmp.eq.s32.totalorder %s31, 1
      %p101 = por %p99, %p100
      %p102 = scmp.ne.s32.totalorder %s91, %s92
      %p103 = scmp.eq.s32.totalorder %s31, 0
      %p104 = por %p102, %p103
      %p105 = scmp.ne.s32.totalorder %s91, %s92
      %p106 = scmp.eq.s32.totalorder %s32, 1
      %p107 = por %p105, %p106
      %p109 = scmp.ne.s32.totalorder %s92, %s108
      %p110 = scmp.eq.s32.totalorder %s32, 0
      %p111 = por %p109, %p110
      %s113 = sadd.s32 %s112, 1
      %p116 = scmp.eq.s32.totalorder %s26, 1
      %p117 = scmp.ne.s32.totalorder %s112, %s114
      %p118 = scmp.eq.s32.totalorder %s26, 0
      %p119 = por %p117, %p118
      %p120 = scmp.ne.s32.totalorder %s112, %s114
      %p121 = scmp.eq.s32.totalorder %s31, 1
      %p122 = por %p120, %p121
      %p123 = scmp.ne.s32.totalorder %s114, %s115
      %p124 = scmp.eq.s32.totalorder %s31, 0
      %p125 = por %p123, %p124
      %p126 = scmp.ne.s32.totalorder %s114, %s115
      %p127 = scmp.eq.s32.totalorder %s32, 1
      %p128 = por %p126, %p127
      %p130 = scmp.ne.s32.totalorder %s115, %s129
      %p131 = scmp.eq.s32.totalorder %s32, 0
      %p132 = por %p130, %p131
      %s134 = sadd.s32 %s133, 1
      %p137 = scmp.eq.s32.totalorder %s26, 1
      %p138 = scmp.ne.s32.totalorder %s133, %s135
      %p139 = scmp.eq.s32.totalorder %s26, 0
      %p140 = por %p138, %p139
      %p141 = scmp.ne.s32.totalorder %s133, %s135
      %p142 = scmp.eq.s32.totalorder %s31, 1
      %p143 = por %p141, %p142
      %p144 = scmp.ne.s32.totalorder %s135, %s136
      %p145 = scmp.eq.s32.totalorder %s31, 0
      %p146 = por %p144, %p145
      %p147 = scmp.ne.s32.totalorder %s135, %s136
      %p148 = scmp.eq.s32.totalorder %s32, 1
      %p149 = por %p147, %p148
      %p151 = scmp.ne.s32.totalorder %s136, %s150
      %p152 = scmp.eq.s32.totalorder %s32, 0
      %p153 = por %p151, %p152
      %s155 = sadd.s32 %s154, 1
      %p158 = scmp.eq.s32.totalorder %s26, 1
      %p159 = scmp.ne.s32.totalorder %s154, %s156
      %p160 = scmp.eq.s32.totalorder %s26, 0
      %p161 = por %p159, %p160
      %p162 = scmp.ne.s32.totalorder %s154, %s156
      %p163 = scmp.eq.s32.totalorder %s31, 1
      %p164 = por %p162, %p163
      %p165 = scmp.ne.s32.totalorder %s156, %s157
      %p166 = scmp.eq.s32.totalorder %s31, 0
      %p167 = por %p165, %p166
      %p168 = scmp.ne.s32.totalorder %s156, %s157
      %p169 = scmp.eq.s32.totalorder %s32, 1
      %p170 = por %p168, %p169
      %p172 = scmp.ne.s32.totalorder %s157, %s171
      %p173 = scmp.eq.s32.totalorder %s32, 0
      %p174 = por %p172, %p173
      %s176 = sadd.s32 %s175, 1
      %p179 = scmp.eq.s32.totalorder %s26, 1
      %p180 = scmp.ne.s32.totalorder %s175, %s177
      %p181 = scmp.eq.s32.totalorder %s26, 0
      %p182 = por %p180, %p181
      %p183 = scmp.ne.s32.totalorder %s175, %s177
      %p184 = scmp.eq.s32.totalorder %s31, 1
      %p185 = por %p183, %p184
      %p186 = scmp.ne.s32.totalorder %s177, %s178
      %p187 = scmp.eq.s32.totalorder %s31, 0
      %p188 = por %p186, %p187
      %p189 = scmp.ne.s32.totalorder %s177, %s178
      %p190 = scmp.eq.s32.totalorder %s32, 1
      %p191 = por %p189, %p190
      %p193 = scmp.ne.s32.totalorder %s178, %s192
      %p194 = scmp.eq.s32.totalorder %s32, 0
      %p195 = por %p193, %p194
      %s197 = sadd.s32 %s196, 1
      %p200 = scmp.eq.s32.totalorder %s26, 1
      %p201 = scmp.ne.s32.totalorder %s196, %s198
      %p202 = scmp.eq.s32.totalorder %s26, 0
      %p203 = por %p201, %p202
      %p204 = scmp.ne.s32.totalorder %s196, %s198
      %p205 = scmp.eq.s32.totalorder %s31, 1
      %p206 = por %p204, %p205
      %p207 = scmp.ne.s32.totalorder %s198, %s199
      %p208 = scmp.eq.s32.totalorder %s31, 0
      %p209 = por %p207, %p208
      %p210 = scmp.ne.s32.totalorder %s198, %s199
      %p211 = scmp.eq.s32.totalorder %s32, 1
      %p212 = por %p210, %p211
      %p214 = scmp.ne.s32.totalorder %s199, %s213
      %p215 = scmp.eq.s32.totalorder %s32, 0
      %p216 = por %p214, %p215
      %s218 = sadd.s32 %s217, 1
      %p221 = scmp.eq.s32.totalorder %s26, 1
      %p222 = scmp.ne.s32.totalorder %s217, %s219
      %p223 = scmp.eq.s32.totalorder %s26, 0
      %p224 = por %p222, %p223
      %p225 = scmp.ne.s32.totalorder %s217, %s219
      %p226 = scmp.eq.s32.totalorder %s31, 1
      %p227 = por %p225, %p226
      %p228 = scmp.ne.s32.totalorder %s219, %s220
      %p229 = scmp.eq.s32.totalorder %s31, 0
      %p230 = por %p228, %p229
      %p231 = scmp.ne.s32.totalorder %s219, %s220
      %p232 = scmp.eq.s32.totalorder %s32, 1
      %p233 = por %p231, %p232
      %p235 = scmp.ne.s32.totalorder %s220, %s234
      %p236 = scmp.eq.s32.totalorder %s32, 0
      %p237 = por %p235, %p236
      %s239 = sadd.s32 %s238, 1
      %p242 = scmp.eq.s32.totalorder %s26, 1
      %p243 = scmp.ne.s32.totalorder %s238, %s240
      %p244 = scmp.eq.s32.totalorder %s26, 0
      %p245 = por %p243, %p244
      %p246 = scmp.ne.s32.totalorder %s238, %s240
      %p247 = scmp.eq.s32.totalorder %s31, 1
      %p248 = por %p246, %p247
      %p249 = scmp.ne.s32.totalorder %s240, %s241
      %p250 = scmp.eq.s32.totalorder %s31, 0
      %p251 = por %p249, %p250
      %p252 = scmp.ne.s32.totalorder %s240, %s241
      %p253 = scmp.eq.s32.totalorder %s32, 1
      %p254 = por %p252, %p253
      %p256 = scmp.ne.s32.totalorder %s241, %s255
      %p257 = scmp.eq.s32.totalorder %s32, 0
      %p258 = por %p256, %p257
      %s260 = sadd.s32 %s259, 1
      %p263 = scmp.eq.s32.totalorder %s26, 1
      %p264 = scmp.ne.s32.totalorder %s259, %s261
      %p265 = scmp.eq.s32.totalorder %s26, 0
      %p266 = por %p264, %p265
      %p267 = scmp.ne.s32.totalorder %s259, %s261
      %p268 = scmp.eq.s32.totalorder %s31, 1
      %p269 = por %p267, %p268
      %p270 = scmp.ne.s32.totalorder %s261, %s262
      %p271 = scmp.eq.s32.totalorder %s31, 0
      %p272 = por %p270, %p271
      %p273 = scmp.ne.s32.totalorder %s261, %s262
      %p274 = scmp.eq.s32.totalorder %s32, 1
      %p275 = por %p273, %p274
      %p277 = scmp.ne.s32.totalorder %s262, %s276
      %p278 = scmp.eq.s32.totalorder %s32, 0
      %p279 = por %p277, %p278
      %s281 = sadd.s32 %s280, 1
      %p284 = scmp.eq.s32.totalorder %s26, 1
      %p285 = scmp.ne.s32.totalorder %s280, %s282
      %p286 = scmp.eq.s32.totalorder %s26, 0
      %p287 = por %p285, %p286
      %p288 = scmp.ne.s32.totalorder %s280, %s282
      %p289 = scmp.eq.s32.totalorder %s31, 1
      %p290 = por %p288, %p289
      %p291 = scmp.ne.s32.totalorder %s282, %s283
      %p292 = scmp.eq.s32.totalorder %s31, 0
      %p293 = por %p291, %p292
      %p294 = scmp.ne.s32.totalorder %s282, %s283
      %p295 = scmp.eq.s32.totalorder %s32, 1
      %p296 = por %p294, %p295
      %p298 = scmp.ne.s32.totalorder %s283, %s297
      %p299 = scmp.eq.s32.totalorder %s32, 0
      %p300 = por %p298, %p299
      %s302 = sadd.s32 %s301, 1
      %p305 = scmp.eq.s32.totalorder %s26, 1
      %p306 = scmp.ne.s32.totalorder %s301, %s303
      %p307 = scmp.eq.s32.totalorder %s26, 0
      %p308 = por %p306, %p307
      %p309 = scmp.ne.s32.totalorder %s301, %s303
      %p310 = scmp.eq.s32.totalorder %s31, 1
      %p311 = por %p309, %p310
      %p312 = scmp.ne.s32.totalorder %s303, %s304
      %p313 = scmp.eq.s32.totalorder %s31, 0
      %p314 = por %p312, %p313
      %p315 = scmp.ne.s32.totalorder %s303, %s304
      %p316 = scmp.eq.s32.totalorder %s32, 1
      %p317 = por %p315, %p316
      %p319 = scmp.ne.s32.totalorder %s304, %s318
      %p320 = scmp.eq.s32.totalorder %s32, 0
      %p321 = por %p319, %p320
      %s323 = sadd.s32 %s322, 1
      %p326 = scmp.eq.s32.totalorder %s26, 1
      %p327 = scmp.ne.s32.totalorder %s322, %s324
      %p328 = scmp.eq.s32.totalorder %s26, 0
      %p329 = por %p327, %p328
      %p330 = scmp.ne.s32.totalorder %s322, %s324
      %p331 = scmp.eq.s32.totalorder %s31, 1
      %p332 = por %p330, %p331
      %p333 = scmp.ne.s32.totalorder %s324, %s325
      %p334 = scmp.eq.s32.totalorder %s31, 0
      %p335 = por %p333, %p334
      %p336 = scmp.ne.s32.totalorder %s324, %s325
      %p337 = scmp.eq.s32.totalorder %s32, 1
      %p338 = por %p336, %p337
      %p340 = scmp.ne.s32.totalorder %s325, %s339
      %p341 = scmp.eq.s32.totalorder %s32, 0
      %p342 = por %p340, %p341
      %s344 = sadd.s32 %s343, 1
      %p347 = scmp.eq.s32.totalorder %s26, 1
      %p348 = scmp.ne.s32.totalorder %s343, %s345
      %p349 = scmp.eq.s32.totalorder %s26, 0
      %p350 = por %p348, %p349
      %p351 = scmp.ne.s32.totalorder %s343, %s345
      %p352 = scmp.eq.s32.totalorder %s31, 1
      %p353 = por %p351, %p352
      %p354 = scmp.ne.s32.totalorder %s345, %s346
      %p355 = scmp.eq.s32.totalorder %s31, 0
      %p356 = por %p354, %p355
      %p357 = scmp.ne.s32.totalorder %s345, %s346
      %p358 = scmp.eq.s32.totalorder %s32, 1
      %p359 = por %p357, %p358
      %p361 = scmp.ne.s32.totalorder %s346, %s360
      %p362 = scmp.eq.s32.totalorder %s32, 0
      %p363 = por %p361, %p362
      %s365 = sadd.s32 %s364, 1
      %p368 = scmp.eq.s32.totalorder %s26, 1
      %p369 = scmp.ne.s32.totalorder %s364, %s366
      %p370 = scmp.eq.s32.totalorder %s26, 0
      %p371 = por %p369, %p370
      %p372 = scmp.ne.s32.totalorder %s364, %s366
      %p373 = scmp.eq.s32.totalorder %s31, 1
      %p374 = por %p372, %p373
      %p375 = scmp.ne.s32.totalorder %s366, %s367
      %p376 = scmp.eq.s32.totalorder %s31, 0
      %p377 = por %p375, %p376
      %p378 = scmp.ne.s32.totalorder %s366, %s367
      %p379 = scmp.eq.s32.totalorder %s32, 1
      %p380 = por %p378, %p379
      %p382 = scmp.ne.s32.totalorder %s367, %s381
      %p383 = scmp.eq.s32.totalorder %s32, 0
      %p384 = por %p382, %p383
      %s386 = sadd.s32 %s385, 1
      %p389 = scmp.eq.s32.totalorder %s26, 1
      %p390 = scmp.ne.s32.totalorder %s385, %s387
      %p391 = scmp.eq.s32.totalorder %s26, 0
      %p392 = por %p390, %p391
      %p393 = scmp.ne.s32.totalorder %s385, %s387
      %p394 = scmp.eq.s32.totalorder %s31, 1
      %p395 = por %p393, %p394
      %p396 = scmp.ne.s32.totalorder %s387, %s388
      %p397 = scmp.eq.s32.totalorder %s31, 0
      %p398 = por %p396, %p397
      %p399 = scmp.ne.s32.totalorder %s387, %s388
      %p400 = scmp.eq.s32.totalorder %s32, 1
      %p401 = por %p399, %p400
      %p403 = scmp.ne.s32.totalorder %s388, %s402
      %p404 = scmp.eq.s32.totalorder %s32, 0
      %p405 = por %p403, %p404
      %s406 = ssub.s32 %s26, %s33
      %p407 = scmp.eq.s32.totalorder %s406, 0
      %s409 = sadd.s32 %s408, 1
      %s410 = scalar_select %p407, %s408, %s409
      %p413 = pneg %p407
      %p414 = scmp.eq.s32.totalorder %s26, 1
      %p415 = por %p413, %p414
      %p416 = scmp.ne.s32.totalorder %s408, %s411
      %p417 = scmp.eq.s32.totalorder %s26, 0
      %p418 = por %p416, %p417
      %p419 = scmp.ne.s32.totalorder %s408, %s411
      %p420 = scmp.eq.s32.totalorder %s31, 1
      %p421 = por %p419, %p420
      %p422 = scmp.ne.s32.totalorder %s411, %s412
      %p423 = scmp.eq.s32.totalorder %s31, 0
      %p424 = por %p422, %p423
      %p425 = scmp.ne.s32.totalorder %s411, %s412
      %p426 = scmp.eq.s32.totalorder %s32, 1
      %p427 = por %p425, %p426
      %p429 = scmp.ne.s32.totalorder %s412, %s428
      %p430 = scmp.eq.s32.totalorder %s32, 0
      %p431 = por %p429, %p430
      %p432 = scmp.le.s32.totalorder 1, %s26
      %p433 = scmp.lt.s32.totalorder %s26, 3
      %p434 = pnand %p432, %p433
      %p435 = pneg %p434
      // Predicated region
      $region9: #{wavenet_decoder_forward.1} parent=5 // pred_check
        _
      $region10: #{wavenet_decoder_forward.1} parent=5 // pred_check_branch
        %437 = sbr.rel (%p434) target = $region12
      $region11: #{wavenet_decoder_forward.1} parent=5 // pred_region
        %s438 = ssub.s32 %s26, 1
        // Predicated region
        $region13: #{wavenet_decoder_forward.1} parent=11 // pred_check
          %p439 = pneg %p125
        $region14: #{wavenet_decoder_forward.1} parent=11 // pred_check_branch
          %441 = sbr.rel (%p439) target = $region16
        $region15: #{wavenet_decoder_forward.1} parent=11 // pred_region
          _
        $region16: #{wavenet_decoder_forward.1} parent=11 // pred_fallthru
          _
        // Predicated region
        $region17: #{wavenet_decoder_forward.1} parent=11 // pred_check
          %p442 = pneg %p146
        $region18: #{wavenet_decoder_forward.1} parent=11 // pred_check_branch
          %444 = sbr.rel (%p442) target = $region20
        $region19: #{wavenet_decoder_forward.1} parent=11 // pred_region
          _
        $region20: #{wavenet_decoder_forward.1} parent=11 // pred_fallthru
          _
        // Predicated region
        $region21: #{wavenet_decoder_forward.1} parent=11 // pred_check
          %p445 = pneg %p167
        $region22: #{wavenet_decoder_forward.1} parent=11 // pred_check_branch
          %447 = sbr.rel (%p445) target = $region24
        $region23: #{wavenet_decoder_forward.1} parent=11 // pred_region
          _
        $region24: #{wavenet_decoder_forward.1} parent=11 // pred_fallthru
          _
        // Predicated region
        $region25: #{wavenet_decoder_forward.1} parent=11 // pred_check
          %p448 = pneg %p188
        $region26: #{wavenet_decoder_forward.1} parent=11 // pred_check_branch
          %450 = sbr.rel (%p448) target = $region28
        $region27: #{wavenet_decoder_forward.1} parent=11 // pred_region
          _
        $region28: #{wavenet_decoder_forward.1} parent=11 // pred_fallthru
          _
        // Predicated region
        $region29: #{wavenet_decoder_forward.1} parent=11 // pred_check
          %p451 = pneg %p209
        $region30: #{wavenet_decoder_forward.1} parent=11 // pred_check_branch
          %453 = sbr.rel (%p451) target = $region32
        $region31: #{wavenet_decoder_forward.1} parent=11 // pred_region
          _
        $region32: #{wavenet_decoder_forward.1} parent=11 // pred_fallthru
          _
        // Predicated region
        $region33: #{wavenet_decoder_forward.1} parent=11 // pred_check
          %p454 = pneg %p230
        $region34: #{wavenet_decoder_forward.1} parent=11 // pred_check_branch
          %456 = sbr.rel (%p454) target = $region36
        $region35: #{wavenet_decoder_forward.1} parent=11 // pred_region
          _
        $region36: #{wavenet_decoder_forward.1} parent=11 // pred_fallthru
          _
        // Predicated region
        $region37: #{wavenet_decoder_forward.1} parent=11 // pred_check
          %p457 = pneg %p251
        $region38: #{wavenet_decoder_forward.1} parent=11 // pred_check_branch
          %459 = sbr.rel (%p457) target = $region40
        $region39: #{wavenet_decoder_forward.1} parent=11 // pred_region
          _
        $region40: #{wavenet_decoder_forward.1} parent=11 // pred_fallthru
          _
        // Predicated region
        $region41: #{wavenet_decoder_forward.1} parent=11 // pred_check
          %p460 = pneg %p272
        $region42: #{wavenet_decoder_forward.1} parent=11 // pred_check_branch
          %462 = sbr.rel (%p460) target = $region44
        $region43: #{wavenet_decoder_forward.1} parent=11 // pred_region
          _
        $region44: #{wavenet_decoder_forward.1} parent=11 // pred_fallthru
          _
        // Predicated region
        $region45: #{wavenet_decoder_forward.1} parent=11 // pred_check
          %p463 = pneg %p293
        $region46: #{wavenet_decoder_forward.1} parent=11 // pred_check_branch
          %465 = sbr.rel (%p463) target = $region48
        $region47: #{wavenet_decoder_forward.1} parent=11 // pred_region
          _
        $region48: #{wavenet_decoder_forward.1} parent=11 // pred_fallthru
          _
        // Predicated region
        $region49: #{wavenet_decoder_forward.1} parent=11 // pred_check
          %p466 = pneg %p314
        $region50: #{wavenet_decoder_forward.1} parent=11 // pred_check_branch
          %468 = sbr.rel (%p466) target = $region52
        $region51: #{wavenet_decoder_forward.1} parent=11 // pred_region
          _
        $region52: #{wavenet_decoder_forward.1} parent=11 // pred_fallthru
          _
        // Predicated region
        $region53: #{wavenet_decoder_forward.1} parent=11 // pred_check
          %p469 = pneg %p335
        $region54: #{wavenet_decoder_forward.1} parent=11 // pred_check_branch
          %471 = sbr.rel (%p469) target = $region56
        $region55: #{wavenet_decoder_forward.1} parent=11 // pred_region
          _
        $region56: #{wavenet_decoder_forward.1} parent=11 // pred_fallthru
          _
        // Predicated region
        $region57: #{wavenet_decoder_forward.1} parent=11 // pred_check
          %p472 = pneg %p356
        $region58: #{wavenet_decoder_forward.1} parent=11 // pred_check_branch
          %474 = sbr.rel (%p472) target = $region60
        $region59: #{wavenet_decoder_forward.1} parent=11 // pred_region
          _
        $region60: #{wavenet_decoder_forward.1} parent=11 // pred_fallthru
          _
        // Predicated region
        $region61: #{wavenet_decoder_forward.1} parent=11 // pred_check
          %p475 = pneg %p377
        $region62: #{wavenet_decoder_forward.1} parent=11 // pred_check_branch
          %477 = sbr.rel (%p475) target = $region64
        $region63: #{wavenet_decoder_forward.1} parent=11 // pred_region
          _
        $region64: #{wavenet_decoder_forward.1} parent=11 // pred_fallthru
          _
        // Predicated region
        $region65: #{wavenet_decoder_forward.1} parent=11 // pred_check
          %p478 = pneg %p398
        $region66: #{wavenet_decoder_forward.1} parent=11 // pred_check_branch
          %480 = sbr.rel (%p478) target = $region68
        $region67: #{wavenet_decoder_forward.1} parent=11 // pred_region
          _
        $region68: #{wavenet_decoder_forward.1} parent=11 // pred_fallthru
          _
      $region12: #{wavenet_decoder_forward.1} parent=5 // pred_fallthru
        _
      %p481 = scmp.lt.s32.totalorder %s26, 2
      // Predicated region
      $region69: #{wavenet_decoder_forward.1} parent=5 // pred_check
        %p482 = pneg %p481
      $region70: #{wavenet_decoder_forward.1} parent=5 // pred_check_branch
        %484 = sbr.rel (%p482) target = $region72
      $region71: #{wavenet_decoder_forward.1} parent=5 // pred_region
        // Predicated region
        $region73: #{wavenet_decoder_forward.1} parent=71 // pred_check
          %p485 = pneg %p46
        $region74: #{wavenet_decoder_forward.1} parent=71 // pred_check_branch
          %487 = sbr.rel (%p485) target = $region76
        $region75: #{wavenet_decoder_forward.1} parent=71 // pred_region
          %p488 = scmp.lt.s32.totalorder %s26, 1
          %s489 = scalar_select %p488, %s26, 1
          %s490 = smul.addr %s489, 12
          %s491 = smul.addr %s490, 8
          %s492 = scalar_lea.vmem %s0, %s491
        $region76: #{wavenet_decoder_forward.1} parent=71 // pred_fallthru
          _
        // Predicated region
        $region77: #{wavenet_decoder_forward.1} parent=71 // pred_check
          %p493 = pneg %p72
        $region78: #{wavenet_decoder_forward.1} parent=71 // pred_check_branch
          %495 = sbr.rel (%p493) target = $region80
        $region79: #{wavenet_decoder_forward.1} parent=71 // pred_region
          %p496 = scmp.lt.s32.totalorder %s26, 1
          %s497 = scalar_select %p496, %s26, 1
          %s498 = smul.addr %s497, 16
          %s499 = smul.addr %s498, 8
          %s500 = scalar_lea.vmem %s1, %s499
        $region80: #{wavenet_decoder_forward.1} parent=71 // pred_fallthru
          _
        // Predicated region
        $region81: #{wavenet_decoder_forward.1} parent=71 // pred_check
          %p501 = pneg %p98
        $region82: #{wavenet_decoder_forward.1} parent=71 // pred_check_branch
          %503 = sbr.rel (%p501) target = $region84
        $region83: #{wavenet_decoder_forward.1} parent=71 // pred_region
          %p504 = scmp.lt.s32.totalorder %s26, 1
          %s505 = scalar_select %p504, %s26, 1
          %s506 = smul.addr %s505, 2
          %s507 = smul.addr %s506, 8
          %s508 = scalar_lea.vmem %s2, %s507
        $region84: #{wavenet_decoder_forward.1} parent=71 // pred_fallthru
          _
      $region72: #{wavenet_decoder_forward.1} parent=5 // pred_fallthru
        _
      %p509 = scmp.le.s32.totalorder 1, %s26
      %p510 = scmp.lt.s32.totalorder %s26, 3
      %p511 = pnand %p509, %p510
      %p512 = pneg %p511
      // Predicated region
      $region85: #{wavenet_decoder_forward.1} parent=5 // pred_check
        _
      $region86: #{wavenet_decoder_forward.1} parent=5 // pred_check_branch
        %514 = sbr.rel (%p511) target = $region88
      $region87: #{wavenet_decoder_forward.1} parent=5 // pred_region
        %s515 = ssub.s32 %s26, 1
        %p516 = scmp.lt.s32.totalorder %s31, 1
        %s517 = scalar_select %p516, %s31, 1
        %s518 = smul.addr %s517, 12
        %s519 = smul.addr %s518, 8
        %s520 = scalar_lea.vmem %s0, %s519
        %p521 = pneg %p52
        %p522 = pneg %p49
        %p523 = scmp.lt.s32.totalorder %s31, 1
        %s524 = scalar_select %p523, %s31, 1
        %s525 = smul.addr %s524, 16
        %s526 = smul.addr %s525, 8
        %s527 = scalar_lea.vmem %s1, %s526
        %p528 = pneg %p78
        %p529 = pneg %p75
        %p530 = scmp.lt.s32.totalorder %s31, 1
        %s531 = scalar_select %p530, %s31, 1
        %s532 = smul.addr %s531, 2
        %s533 = smul.addr %s532, 8
        %s534 = scalar_lea.vmem %s2, %s533
        %p535 = pneg %p104
        %p536 = pneg %p101
        %p537 = pneg %p125
        %p538 = pneg %p122
        %p539 = pneg %p146
        %p540 = pneg %p143
        %p541 = pneg %p167
        %p542 = pneg %p164
        %p543 = pneg %p188
        %p544 = pneg %p185
        %p545 = pneg %p209
        %p546 = pneg %p206
        %p547 = pneg %p230
        %p548 = pneg %p227
        %p549 = pneg %p251
        %p550 = pneg %p248
        %p551 = pneg %p272
        %p552 = pneg %p269
        %p553 = pneg %p293
        %p554 = pneg %p290
        %p555 = pneg %p314
        %p556 = pneg %p311
        %p557 = pneg %p335
        %p558 = pneg %p332
        %p559 = pneg %p356
        %p560 = pneg %p353
        %p561 = pneg %p377
        %p562 = pneg %p374
        %p563 = pneg %p398
        %p564 = pneg %p395
        %p565 = pneg %p424
        %p566 = pneg %p421
        %s567 = sand.u32 %s411, 1
        %s568 = scalar_lea.sflag [#allocation4], %s567
        %s569 = sand.u32 %s411, 1
        %s570 = smul.addr %s569, 96
        %s571 = scalar_lea.vmem [#allocation3], %s570
        %p572 = scmp.lt.s32.totalorder %s31, 1
        %s573 = scalar_select %p572, %s31, 1
        %s574 = smul.addr %s573, 12
        %s575 = smul.addr %s574, 8
        %s576 = scalar_lea.vmem %s0, %s575
        %p577 = scmp.lt.s32.totalorder %s31, 1
        %s578 = scalar_select %p577, %s31, 1
        %s579 = smul.addr %s578, 16
        %s580 = smul.addr %s579, 8
        %s581 = scalar_lea.vmem %s1, %s580
        %p582 = scmp.lt.s32.totalorder %s31, 1
        %s583 = scalar_select %p582, %s31, 1
        %s584 = smul.addr %s583, 2
        %s585 = smul.addr %s584, 8
        %s586 = scalar_lea.vmem %s2, %s585
        %v587 = vld [vmem:[%s3] sm:$0xff]
        %v588 = vld [vmem:[%s3 + $0x8] sm:$0xff]
        %v589 = vld [vmem:[%s3 + $0x10] sm:$0xff]
        %v590 = vld [vmem:[%s3 + $0x18] sm:$0xff]
        %v591 = vld [vmem:[%s3 + $0x20] sm:$0xff]
        %v592 = vld [vmem:[%s3 + $0x28] sm:$0xff]
        %v593 = vld [vmem:[%s3 + $0x30] sm:$0xff]
        %v594 = vld [vmem:[%s3 + $0x38] sm:$0xff]
        %v595 = vld [vmem:[%s3 + $0x40] sm:$0xff]
        %v596 = vld [vmem:[%s3 + $0x48] sm:$0xff]
        %v597 = vld [vmem:[%s3 + $0x50] sm:$0xff]
        %v598 = vld [vmem:[%s3 + $0x58] sm:$0xff]
        %v599 = vld [vmem:[%s3 + $0x60] sm:$0xff]
        %v600 = vld [vmem:[%s3 + $0x68] sm:$0xff]
        %v601 = vld [vmem:[%s3 + $0x70] sm:$0xff]
        %v602 = vld [vmem:[%s3 + $0x78] sm:$0xff]
        %v603 = vld [vmem:[%s3 + $0x80] sm:$0xff]
        %v604 = vld [vmem:[%s3 + $0x88] sm:$0xff]
        %v605 = vld [vmem:[%s3 + $0x90] sm:$0xff]
        %v606 = vld [vmem:[%s3 + $0x98] sm:$0xff]
        %v607 = vld [vmem:[%s3 + $0xa0] sm:$0xff]
        %v608 = vld [vmem:[%s3 + $0xa8] sm:$0xff]
        %v609 = vld [vmem:[%s3 + $0xb0] sm:$0xff]
        %v610 = vld [vmem:[%s3 + $0xb8] sm:$0xff]
        %v611 = vld [vmem:[%s3 + $0xc0] sm:$0xff]
        %v612 = vld [vmem:[%s3 + $0xc8] sm:$0xff]
        %v613 = vld [vmem:[%s3 + $0xd0] sm:$0xff]
        %v614 = vld [vmem:[%s3 + $0xd8] sm:$0xff]
        %v615 = vld [vmem:[%s3 + $0xe0] sm:$0xff]
        %v616 = vld [vmem:[%s3 + $0xe8] sm:$0xff]
        %v617 = vld [vmem:[%s3 + $0xf0] sm:$0xff]
        %v618 = vld [vmem:[%s3 + $0xf8] sm:$0xff]
        %v619 = vld [vmem:[%s3 + $0x100] sm:$0xff]
        %v620 = vld [vmem:[%s3 + $0x108] sm:$0xff]
        %v621 = vld [vmem:[%s3 + $0x110] sm:$0xff]
        %v622 = vld [vmem:[%s3 + $0x118] sm:$0xff]
        %v623 = vld [vmem:[%s3 + $0x120] sm:$0xff]
        %v624 = vld [vmem:[%s3 + $0x128] sm:$0xff]
        %v625 = vld [vmem:[%s3 + $0x130] sm:$0xff]
        %v626 = vld [vmem:[%s3 + $0x138] sm:$0xff]
        %v627 = vld [vmem:[%s3 + $0x140] sm:$0xff]
        %v628 = vld [vmem:[%s3 + $0x148] sm:$0xff]
        %v629 = vld [vmem:[%s3 + $0x150] sm:$0xff]
        %v630 = vld [vmem:[%s3 + $0x158] sm:$0xff]
        %v631 = vld [vmem:[%s3 + $0x160] sm:$0xff]
        %v632 = vld [vmem:[%s3 + $0x168] sm:$0xff]
        %v633 = vld [vmem:[%s3 + $0x170] sm:$0xff]
        %v634 = vld [vmem:[%s3 + $0x178] sm:$0xff]
        %v635 = vld [vmem:[%s3 + $0x180] sm:$0xff]
        %v636 = vld [vmem:[%s3 + $0x188] sm:$0xff]
        %v637 = vld [vmem:[%s3 + $0x190] sm:$0xff]
        %v638 = vld [vmem:[%s3 + $0x198] sm:$0xff]
        %v639 = vld [vmem:[%s3 + $0x1a0] sm:$0xff]
        %v640 = vld [vmem:[%s3 + $0x1a8] sm:$0xff]
        %v641 = vld [vmem:[%s3 + $0x1b0] sm:$0xff]
        %v642 = vld [vmem:[%s3 + $0x1b8] sm:$0xff]
        %v643 = vld [vmem:[%s3 + $0x1c0] sm:$0xff]
        %v644 = vld [vmem:[%s3 + $0x1c8] sm:$0xff]
        %v645 = vld [vmem:[%s3 + $0x1d0] sm:$0xff]
        %v646 = vld [vmem:[%s3 + $0x1d8] sm:$0xff]
        %v647 = vld [vmem:[%s3 + $0x1e0] sm:$0xff]
        %v648 = vld [vmem:[%s3 + $0x1e8] sm:$0xff]
        %v649 = vld [vmem:[%s3 + $0x1f0] sm:$0xff]
        %v650 = vld [vmem:[%s3 + $0x1f8] sm:$0xff]
        %v651 = vld [vmem:[%s3 + $0x200] sm:$0xff]
        %v652 = vld [vmem:[%s3 + $0x208] sm:$0xff]
        %v653 = vld [vmem:[%s3 + $0x210] sm:$0xff]
        %v654 = vld [vmem:[%s3 + $0x218] sm:$0xff]
        %v655 = vld [vmem:[%s3 + $0x220] sm:$0xff]
        %v656 = vld [vmem:[%s3 + $0x228] sm:$0xff]
        %v657 = vld [vmem:[%s3 + $0x230] sm:$0xff]
        %v658 = vld [vmem:[%s3 + $0x238] sm:$0xff]
        %v659 = vld [vmem:[%s3 + $0x240] sm:$0xff]
        %v660 = vld [vmem:[%s3 + $0x248] sm:$0xff]
        %v661 = vld [vmem:[%s3 + $0x250] sm:$0xff]
        %v662 = vld [vmem:[%s3 + $0x258] sm:$0xff]
        %v663 = vld [vmem:[%s3 + $0x260] sm:$0xff]
        %v664 = vld [vmem:[%s3 + $0x268] sm:$0xff]
        %v665 = vld [vmem:[%s3 + $0x270] sm:$0xff]
        %v666 = vld [vmem:[%s3 + $0x278] sm:$0xff]
        %v667 = vld [vmem:[%s3 + $0x280] sm:$0xff]
        %v668 = vld [vmem:[%s3 + $0x288] sm:$0xff]
        %v669 = vld [vmem:[%s3 + $0x290] sm:$0xff]
        %v670 = vld [vmem:[%s3 + $0x298] sm:$0xff]
        %v671 = vld [vmem:[%s3 + $0x2a0] sm:$0xff]
        %v672 = vld [vmem:[%s3 + $0x2a8] sm:$0xff]
        %v673 = vld [vmem:[%s3 + $0x2b0] sm:$0xff]
        %v674 = vld [vmem:[%s3 + $0x2b8] sm:$0xff]
        %v675 = vld [vmem:[%s3 + $0x2c0] sm:$0xff]
        %v676 = vld [vmem:[%s3 + $0x2c8] sm:$0xff]
        %v677 = vld [vmem:[%s3 + $0x2d0] sm:$0xff]
        %v678 = vld [vmem:[%s3 + $0x2d8] sm:$0xff]
        %v679 = vld [vmem:[%s3 + $0x2e0] sm:$0xff]
        %v680 = vld [vmem:[%s3 + $0x2e8] sm:$0xff]
        %v681 = vld [vmem:[%s3 + $0x2f0] sm:$0xff]
        %v682 = vld [vmem:[%s3 + $0x2f8] sm:$0xff]
        %v683 = vld [vmem:[%s581] sm:$0xff]
        %v684 = vld [vmem:[%s581 + $0x8] sm:$0xff]
        %v685 = vld [vmem:[%s581 + $0x10] sm:$0xff]
        %v686 = vld [vmem:[%s581 + $0x18] sm:$0xff]
        %v687 = vld [vmem:[%s581 + $0x20] sm:$0xff]
        %v688 = vld [vmem:[%s581 + $0x28] sm:$0xff]
        %v689 = vld [vmem:[%s581 + $0x30] sm:$0xff]
        %v690 = vld [vmem:[%s581 + $0x38] sm:$0xff]
        %v691 = vld [vmem:[%s581 + $0x40] sm:$0xff]
        %v692 = vld [vmem:[%s581 + $0x48] sm:$0xff]
        %v693 = vld [vmem:[%s581 + $0x50] sm:$0xff]
        %v694 = vld [vmem:[%s581 + $0x58] sm:$0xff]
        %v695 = vld [vmem:[%s581 + $0x60] sm:$0xff]
        %v696 = vld [vmem:[%s581 + $0x68] sm:$0xff]
        %v697 = vld [vmem:[%s581 + $0x70] sm:$0xff]
        %v698 = vld [vmem:[%s581 + $0x78] sm:$0xff]
        %v699 = vld [vmem:[%s4] sm:$0xff]
        %v700 = vld [vmem:[%s4 + $0x8] sm:$0xff]
        %v701 = vld [vmem:[%s4 + $0x10] sm:$0xff]
        %v702 = vld [vmem:[%s4 + $0x18] sm:$0xff]
        %v703 = vld [vmem:[%s4 + $0x20] sm:$0xff]
        %v704 = vld [vmem:[%s4 + $0x28] sm:$0xff]
        %v705 = vld [vmem:[%s4 + $0x30] sm:$0xff]
        %v706 = vld [vmem:[%s4 + $0x38] sm:$0xff]
        %v707 = vld [vmem:[%s4 + $0x40] sm:$0xff]
        %v708 = vld [vmem:[%s4 + $0x48] sm:$0xff]
        %v709 = vld [vmem:[%s4 + $0x50] sm:$0xff]
        %v710 = vld [vmem:[%s4 + $0x58] sm:$0xff]
        %v711 = vld [vmem:[%s4 + $0x60] sm:$0xff]
        %v712 = vld [vmem:[%s4 + $0x68] sm:$0xff]
        %v713 = vld [vmem:[%s4 + $0x70] sm:$0xff]
        %v714 = vld [vmem:[%s4 + $0x78] sm:$0xff]
        %v715 = vld [vmem:[%s4 + $0x80] sm:$0xff]
        %v716 = vld [vmem:[%s4 + $0x88] sm:$0xff]
        %v717 = vld [vmem:[%s4 + $0x90] sm:$0xff]
        %v718 = vld [vmem:[%s4 + $0x98] sm:$0xff]
        %v719 = vld [vmem:[%s4 + $0xa0] sm:$0xff]
        %v720 = vld [vmem:[%s4 + $0xa8] sm:$0xff]
        %v721 = vld [vmem:[%s4 + $0xb0] sm:$0xff]
        %v722 = vld [vmem:[%s4 + $0xb8] sm:$0xff]
        %v723 = vld [vmem:[%s4 + $0xc0] sm:$0xff]
        %v724 = vld [vmem:[%s4 + $0xc8] sm:$0xff]
        %v725 = vld [vmem:[%s4 + $0xd0] sm:$0xff]
        %v726 = vld [vmem:[%s4 + $0xd8] sm:$0xff]
        %v727 = vld [vmem:[%s4 + $0xe0] sm:$0xff]
        %v728 = vld [vmem:[%s4 + $0xe8] sm:$0xff]
        %v729 = vld [vmem:[%s4 + $0xf0] sm:$0xff]
        %v730 = vld [vmem:[%s4 + $0xf8] sm:$0xff]
        %v731 = vld [vmem:[%s4 + $0x100] sm:$0xff]
        %v732 = vld [vmem:[%s4 + $0x108] sm:$0xff]
        %v733 = vld [vmem:[%s4 + $0x110] sm:$0xff]
        %v734 = vld [vmem:[%s4 + $0x118] sm:$0xff]
        %v735 = vld [vmem:[%s4 + $0x120] sm:$0xff]
        %v736 = vld [vmem:[%s4 + $0x128] sm:$0xff]
        %v737 = vld [vmem:[%s4 + $0x130] sm:$0xff]
        %v738 = vld [vmem:[%s4 + $0x138] sm:$0xff]
        %v739 = vld [vmem:[%s4 + $0x140] sm:$0xff]
        %v740 = vld [vmem:[%s4 + $0x148] sm:$0xff]
        %v741 = vld [vmem:[%s4 + $0x150] sm:$0xff]
        %v742 = vld [vmem:[%s4 + $0x158] sm:$0xff]
        %v743 = vld [vmem:[%s4 + $0x160] sm:$0xff]
        %v744 = vld [vmem:[%s4 + $0x168] sm:$0xff]
        %v745 = vld [vmem:[%s4 + $0x170] sm:$0xff]
        %v746 = vld [vmem:[%s4 + $0x178] sm:$0xff]
        %v747 = vld [vmem:[%s4 + $0x180] sm:$0xff]
        %v748 = vld [vmem:[%s4 + $0x188] sm:$0xff]
        %v749 = vld [vmem:[%s4 + $0x190] sm:$0xff]
        %v750 = vld [vmem:[%s4 + $0x198] sm:$0xff]
        %v751 = vld [vmem:[%s4 + $0x1a0] sm:$0xff]
        %v752 = vld [vmem:[%s4 + $0x1a8] sm:$0xff]
        %v753 = vld [vmem:[%s4 + $0x1b0] sm:$0xff]
        %v754 = vld [vmem:[%s4 + $0x1b8] sm:$0xff]
        %v755 = vld [vmem:[%s4 + $0x1c0] sm:$0xff]
        %v756 = vld [vmem:[%s4 + $0x1c8] sm:$0xff]
        %v757 = vld [vmem:[%s4 + $0x1d0] sm:$0xff]
        %v758 = vld [vmem:[%s4 + $0x1d8] sm:$0xff]
        %v759 = vld [vmem:[%s4 + $0x1e0] sm:$0xff]
        %v760 = vld [vmem:[%s4 + $0x1e8] sm:$0xff]
        %v761 = vld [vmem:[%s4 + $0x1f0] sm:$0xff]
        %v762 = vld [vmem:[%s4 + $0x1f8] sm:$0xff]
        %v763 = vld [vmem:[%s4 + $0x200] sm:$0xff]
        %v764 = vld [vmem:[%s4 + $0x208] sm:$0xff]
        %v765 = vld [vmem:[%s4 + $0x210] sm:$0xff]
        %v766 = vld [vmem:[%s4 + $0x218] sm:$0xff]
        %v767 = vld [vmem:[%s4 + $0x220] sm:$0xff]
        %v768 = vld [vmem:[%s4 + $0x228] sm:$0xff]
        %v769 = vld [vmem:[%s4 + $0x230] sm:$0xff]
        %v770 = vld [vmem:[%s4 + $0x238] sm:$0xff]
        %v771 = vld [vmem:[%s4 + $0x240] sm:$0xff]
        %v772 = vld [vmem:[%s4 + $0x248] sm:$0xff]
        %v773 = vld [vmem:[%s4 + $0x250] sm:$0xff]
        %v774 = vld [vmem:[%s4 + $0x258] sm:$0xff]
        %v775 = vld [vmem:[%s4 + $0x260] sm:$0xff]
        %v776 = vld [vmem:[%s4 + $0x268] sm:$0xff]
        %v777 = vld [vmem:[%s4 + $0x270] sm:$0xff]
        %v778 = vld [vmem:[%s4 + $0x278] sm:$0xff]
        %v779 = vld [vmem:[%s4 + $0x280] sm:$0xff]
        %v780 = vld [vmem:[%s4 + $0x288] sm:$0xff]
        %v781 = vld [vmem:[%s4 + $0x290] sm:$0xff]
        %v782 = vld [vmem:[%s4 + $0x298] sm:$0xff]
        %v783 = vld [vmem:[%s4 + $0x2a0] sm:$0xff]
        %v784 = vld [vmem:[%s4 + $0x2a8] sm:$0xff]
        %v785 = vld [vmem:[%s4 + $0x2b0] sm:$0xff]
        %v786 = vld [vmem:[%s4 + $0x2b8] sm:$0xff]
        %v787 = vld [vmem:[%s4 + $0x2c0] sm:$0xff]
        %v788 = vld [vmem:[%s4 + $0x2c8] sm:$0xff]
        %v789 = vld [vmem:[%s4 + $0x2d0] sm:$0xff]
        %v790 = vld [vmem:[%s4 + $0x2d8] sm:$0xff]
        %v791 = vld [vmem:[%s4 + $0x2e0] sm:$0xff]
        %v792 = vld [vmem:[%s4 + $0x2e8] sm:$0xff]
        %v793 = vld [vmem:[%s4 + $0x2f0] sm:$0xff]
        %v794 = vld [vmem:[%s4 + $0x2f8] sm:$0xff]
        %796 = vset.pattern.permute.xlu0 0
        %797 = vperm.xlu0 %796, %v699
        %v798 = vpop.permute.xlu0 %797
        %801 = vset.pattern.permute.xlu0 0
        %802 = vperm.xlu0 %801, %v700
        %v803 = vpop.permute.xlu0 %802
        %806 = vset.pattern.permute.xlu0 0
        %807 = vperm.xlu0 %806, %v701
        %v808 = vpop.permute.xlu0 %807
        %811 = vset.pattern.permute.xlu0 0
        %812 = vperm.xlu0 %811, %v702
        %v813 = vpop.permute.xlu0 %812
        %816 = vset.pattern.permute.xlu0 0
        %817 = vperm.xlu0 %816, %v703
        %v818 = vpop.permute.xlu0 %817
        %821 = vset.pattern.permute.xlu0 0
        %822 = vperm.xlu0 %821, %v704
        %v823 = vpop.permute.xlu0 %822
        %826 = vset.pattern.permute.xlu0 0
        %827 = vperm.xlu0 %826, %v705
        %v828 = vpop.permute.xlu0 %827
        %831 = vset.pattern.permute.xlu0 0
        %832 = vperm.xlu0 %831, %v706
        %v833 = vpop.permute.xlu0 %832
        %836 = vset.pattern.permute.xlu0 0
        %837 = vperm.xlu0 %836, %v707
        %v838 = vpop.permute.xlu0 %837
        %841 = vset.pattern.permute.xlu0 0
        %842 = vperm.xlu0 %841, %v708
        %v843 = vpop.permute.xlu0 %842
        %846 = vset.pattern.permute.xlu0 0
        %847 = vperm.xlu0 %846, %v709
        %v848 = vpop.permute.xlu0 %847
        %851 = vset.pattern.permute.xlu0 0
        %852 = vperm.xlu0 %851, %v710
        %v853 = vpop.permute.xlu0 %852
        %856 = vset.pattern.permute.xlu0 0
        %857 = vperm.xlu0 %856, %v711
        %v858 = vpop.permute.xlu0 %857
        %861 = vset.pattern.permute.xlu0 0
        %862 = vperm.xlu0 %861, %v712
        %v863 = vpop.permute.xlu0 %862
        %866 = vset.pattern.permute.xlu0 0
        %867 = vperm.xlu0 %866, %v713
        %v868 = vpop.permute.xlu0 %867
        %871 = vset.pattern.permute.xlu0 0
        %872 = vperm.xlu0 %871, %v714
        %v873 = vpop.permute.xlu0 %872
        %876 = vset.pattern.permute.xlu0 0
        %877 = vperm.xlu0 %876, %v715
        %v878 = vpop.permute.xlu0 %877
        %881 = vset.pattern.permute.xlu0 0
        %882 = vperm.xlu0 %881, %v716
        %v883 = vpop.permute.xlu0 %882
        %886 = vset.pattern.permute.xlu0 0
        %887 = vperm.xlu0 %886, %v717
        %v888 = vpop.permute.xlu0 %887
        %891 = vset.pattern.permute.xlu0 0
        %892 = vperm.xlu0 %891, %v718
        %v893 = vpop.permute.xlu0 %892
        %896 = vset.pattern.permute.xlu0 0
        %897 = vperm.xlu0 %896, %v719
        %v898 = vpop.permute.xlu0 %897
        %901 = vset.pattern.permute.xlu0 0
        %902 = vperm.xlu0 %901, %v720
        %v903 = vpop.permute.xlu0 %902
        %906 = vset.pattern.permute.xlu0 0
        %907 = vperm.xlu0 %906, %v721
        %v908 = vpop.permute.xlu0 %907
        %911 = vset.pattern.permute.xlu0 0
        %912 = vperm.xlu0 %911, %v722
        %v913 = vpop.permute.xlu0 %912
        %916 = vset.pattern.permute.xlu0 0
        %917 = vperm.xlu0 %916, %v723
        %v918 = vpop.permute.xlu0 %917
        %921 = vset.pattern.permute.xlu0 0
        %922 = vperm.xlu0 %921, %v724
        %v923 = vpop.permute.xlu0 %922
        %926 = vset.pattern.permute.xlu0 0
        %927 = vperm.xlu0 %926, %v725
        %v928 = vpop.permute.xlu0 %927
        %931 = vset.pattern.permute.xlu0 0
        %932 = vperm.xlu0 %931, %v726
        %v933 = vpop.permute.xlu0 %932
        %936 = vset.pattern.permute.xlu0 0
        %937 = vperm.xlu0 %936, %v727
        %v938 = vpop.permute.xlu0 %937
        %941 = vset.pattern.permute.xlu0 0
        %942 = vperm.xlu0 %941, %v728
        %v943 = vpop.permute.xlu0 %942
        %946 = vset.pattern.permute.xlu0 0
        %947 = vperm.xlu0 %946, %v729
        %v948 = vpop.permute.xlu0 %947
        %951 = vset.pattern.permute.xlu0 0
        %952 = vperm.xlu0 %951, %v730
        %v953 = vpop.permute.xlu0 %952
        %956 = vset.pattern.permute.xlu0 0
        %957 = vperm.xlu0 %956, %v731
        %v958 = vpop.permute.xlu0 %957
        %961 = vset.pattern.permute.xlu0 0
        %962 = vperm.xlu0 %961, %v732
        %v963 = vpop.permute.xlu0 %962
        %966 = vset.pattern.permute.xlu0 0
        %967 = vperm.xlu0 %966, %v733
        %v968 = vpop.permute.xlu0 %967
        %971 = vset.pattern.permute.xlu0 0
        %972 = vperm.xlu0 %971, %v734
        %v973 = vpop.permute.xlu0 %972
        %976 = vset.pattern.permute.xlu0 0
        %977 = vperm.xlu0 %976, %v735
        %v978 = vpop.permute.xlu0 %977
        %981 = vset.pattern.permute.xlu0 0
        %982 = vperm.xlu0 %981, %v736
        %v983 = vpop.permute.xlu0 %982
        %986 = vset.pattern.permute.xlu0 0
        %987 = vperm.xlu0 %986, %v737
        %v988 = vpop.permute.xlu0 %987
        %991 = vset.pattern.permute.xlu0 0
        %992 = vperm.xlu0 %991, %v738
        %v993 = vpop.permute.xlu0 %992
        %996 = vset.pattern.permute.xlu0 0
        %997 = vperm.xlu0 %996, %v739
        %v998 = vpop.permute.xlu0 %997
        %1001 = vset.pattern.permute.xlu0 0
        %1002 = vperm.xlu0 %1001, %v740
        %v1003 = vpop.permute.xlu0 %1002
        %1006 = vset.pattern.permute.xlu0 0
        %1007 = vperm.xlu0 %1006, %v741
        %v1008 = vpop.permute.xlu0 %1007
        %1011 = vset.pattern.permute.xlu0 0
        %1012 = vperm.xlu0 %1011, %v742
        %v1013 = vpop.permute.xlu0 %1012
        %1016 = vset.pattern.permute.xlu0 0
        %1017 = vperm.xlu0 %1016, %v743
        %v1018 = vpop.permute.xlu0 %1017
        %1021 = vset.pattern.permute.xlu0 0
        %1022 = vperm.xlu0 %1021, %v744
        %v1023 = vpop.permute.xlu0 %1022
        %1026 = vset.pattern.permute.xlu0 0
        %1027 = vperm.xlu0 %1026, %v745
        %v1028 = vpop.permute.xlu0 %1027
        %1031 = vset.pattern.permute.xlu0 0
        %1032 = vperm.xlu0 %1031, %v746
        %v1033 = vpop.permute.xlu0 %1032
        %1036 = vset.pattern.permute.xlu0 0
        %1037 = vperm.xlu0 %1036, %v747
        %v1038 = vpop.permute.xlu0 %1037
        %1041 = vset.pattern.permute.xlu0 0
        %1042 = vperm.xlu0 %1041, %v748
        %v1043 = vpop.permute.xlu0 %1042
        %1046 = vset.pattern.permute.xlu0 0
        %1047 = vperm.xlu0 %1046, %v749
        %v1048 = vpop.permute.xlu0 %1047
        %1051 = vset.pattern.permute.xlu0 0
        %1052 = vperm.xlu0 %1051, %v750
        %v1053 = vpop.permute.xlu0 %1052
        %1056 = vset.pattern.permute.xlu0 0
        %1057 = vperm.xlu0 %1056, %v751
        %v1058 = vpop.permute.xlu0 %1057
        %1061 = vset.pattern.permute.xlu0 0
        %1062 = vperm.xlu0 %1061, %v752
        %v1063 = vpop.permute.xlu0 %1062
        %1066 = vset.pattern.permute.xlu0 0
        %1067 = vperm.xlu0 %1066, %v753
        %v1068 = vpop.permute.xlu0 %1067
        %1071 = vset.pattern.permute.xlu0 0
        %1072 = vperm.xlu0 %1071, %v754
        %v1073 = vpop.permute.xlu0 %1072
        %1076 = vset.pattern.permute.xlu0 0
        %1077 = vperm.xlu0 %1076, %v755
        %v1078 = vpop.permute.xlu0 %1077
        %1081 = vset.pattern.permute.xlu0 0
        %1082 = vperm.xlu0 %1081, %v756
        %v1083 = vpop.permute.xlu0 %1082
        %1086 = vset.pattern.permute.xlu0 0
        %1087 = vperm.xlu0 %1086, %v757
        %v1088 = vpop.permute.xlu0 %1087
        %1091 = vset.pattern.permute.xlu0 0
        %1092 = vperm.xlu0 %1091, %v758
        %v1093 = vpop.permute.xlu0 %1092
        %1096 = vset.pattern.permute.xlu0 0
        %1097 = vperm.xlu0 %1096, %v759
        %v1098 = vpop.permute.xlu0 %1097
        %1101 = vset.pattern.permute.xlu0 0
        %1102 = vperm.xlu0 %1101, %v760
        %v1103 = vpop.permute.xlu0 %1102
        %1106 = vset.pattern.permute.xlu0 0
        %1107 = vperm.xlu0 %1106, %v761
        %v1108 = vpop.permute.xlu0 %1107
        %1111 = vset.pattern.permute.xlu0 0
        %1112 = vperm.xlu0 %1111, %v762
        %v1113 = vpop.permute.xlu0 %1112
        %1116 = vset.pattern.permute.xlu0 0
        %1117 = vperm.xlu0 %1116, %v763
        %v1118 = vpop.permute.xlu0 %1117
        %1121 = vset.pattern.permute.xlu0 0
        %1122 = vperm.xlu0 %1121, %v764
        %v1123 = vpop.permute.xlu0 %1122
        %1126 = vset.pattern.permute.xlu0 0
        %1127 = vperm.xlu0 %1126, %v765
        %v1128 = vpop.permute.xlu0 %1127
        %1131 = vset.pattern.permute.xlu0 0
        %1132 = vperm.xlu0 %1131, %v766
        %v1133 = vpop.permute.xlu0 %1132
        %1136 = vset.pattern.permute.xlu0 0
        %1137 = vperm.xlu0 %1136, %v767
        %v1138 = vpop.permute.xlu0 %1137
        %1141 = vset.pattern.permute.xlu0 0
        %1142 = vperm.xlu0 %1141, %v768
        %v1143 = vpop.permute.xlu0 %1142
        %1146 = vset.pattern.permute.xlu0 0
        %1147 = vperm.xlu0 %1146, %v769
        %v1148 = vpop.permute.xlu0 %1147
        %1151 = vset.pattern.permute.xlu0 0
        %1152 = vperm.xlu0 %1151, %v770
        %v1153 = vpop.permute.xlu0 %1152
        %1156 = vset.pattern.permute.xlu0 0
        %1157 = vperm.xlu0 %1156, %v771
        %v1158 = vpop.permute.xlu0 %1157
        %1161 = vset.pattern.permute.xlu0 0
        %1162 = vperm.xlu0 %1161, %v772
        %v1163 = vpop.permute.xlu0 %1162
        %1166 = vset.pattern.permute.xlu0 0
        %1167 = vperm.xlu0 %1166, %v773
        %v1168 = vpop.permute.xlu0 %1167
        %1171 = vset.pattern.permute.xlu0 0
        %1172 = vperm.xlu0 %1171, %v774
        %v1173 = vpop.permute.xlu0 %1172
        %1176 = vset.pattern.permute.xlu0 0
        %1177 = vperm.xlu0 %1176, %v775
        %v1178 = vpop.permute.xlu0 %1177
        %1181 = vset.pattern.permute.xlu0 0
        %1182 = vperm.xlu0 %1181, %v776
        %v1183 = vpop.permute.xlu0 %1182
        %1186 = vset.pattern.permute.xlu0 0
        %1187 = vperm.xlu0 %1186, %v777
        %v1188 = vpop.permute.xlu0 %1187
        %1191 = vset.pattern.permute.xlu0 0
        %1192 = vperm.xlu0 %1191, %v778
        %v1193 = vpop.permute.xlu0 %1192
        %1196 = vset.pattern.permute.xlu0 0
        %1197 = vperm.xlu0 %1196, %v779
        %v1198 = vpop.permute.xlu0 %1197
        %1201 = vset.pattern.permute.xlu0 0
        %1202 = vperm.xlu0 %1201, %v780
        %v1203 = vpop.permute.xlu0 %1202
        %1206 = vset.pattern.permute.xlu0 0
        %1207 = vperm.xlu0 %1206, %v781
        %v1208 = vpop.permute.xlu0 %1207
        %1211 = vset.pattern.permute.xlu0 0
        %1212 = vperm.xlu0 %1211, %v782
        %v1213 = vpop.permute.xlu0 %1212
        %1216 = vset.pattern.permute.xlu0 0
        %1217 = vperm.xlu0 %1216, %v783
        %v1218 = vpop.permute.xlu0 %1217
        %1221 = vset.pattern.permute.xlu0 0
        %1222 = vperm.xlu0 %1221, %v784
        %v1223 = vpop.permute.xlu0 %1222
        %1226 = vset.pattern.permute.xlu0 0
        %1227 = vperm.xlu0 %1226, %v785
        %v1228 = vpop.permute.xlu0 %1227
        %1231 = vset.pattern.permute.xlu0 0
        %1232 = vperm.xlu0 %1231, %v786
        %v1233 = vpop.permute.xlu0 %1232
        %1236 = vset.pattern.permute.xlu0 0
        %1237 = vperm.xlu0 %1236, %v787
        %v1238 = vpop.permute.xlu0 %1237
        %1241 = vset.pattern.permute.xlu0 0
        %1242 = vperm.xlu0 %1241, %v788
        %v1243 = vpop.permute.xlu0 %1242
        %1246 = vset.pattern.permute.xlu0 0
        %1247 = vperm.xlu0 %1246, %v789
        %v1248 = vpop.permute.xlu0 %1247
        %1251 = vset.pattern.permute.xlu0 0
        %1252 = vperm.xlu0 %1251, %v790
        %v1253 = vpop.permute.xlu0 %1252
        %1256 = vset.pattern.permute.xlu0 0
        %1257 = vperm.xlu0 %1256, %v791
        %v1258 = vpop.permute.xlu0 %1257
        %1261 = vset.pattern.permute.xlu0 0
        %1262 = vperm.xlu0 %1261, %v792
        %v1263 = vpop.permute.xlu0 %1262
        %1266 = vset.pattern.permute.xlu0 0
        %1267 = vperm.xlu0 %1266, %v793
        %v1268 = vpop.permute.xlu0 %1267
        %1271 = vset.pattern.permute.xlu0 0
        %1272 = vperm.xlu0 %1271, %v794
        %v1273 = vpop.permute.xlu0 %1272
        %1275 = vmatprep.subr.mxu0 0.0
        %1276 = vmatpush1.msra.mxu0 %v683
        %1277 = vmatprep.subr.mxu0 0.0
        %1278 = vmatpush1.msra.mxu0 %v684
        %1279 = vmatprep.subr.mxu0 0.0
        %1280 = vmatpush1.msra.mxu0 %v685
        %1281 = vmatprep.subr.mxu0 0.0
        %1282 = vmatpush1.msra.mxu0 %v686
        %1283 = vmatprep.subr.mxu0 0.0
        %1284 = vmatpush1.msra.mxu0 %v687
        %1285 = vmatprep.subr.mxu0 0.0
        %1286 = vmatpush1.msra.mxu0 %v688
        %1287 = vmatprep.subr.mxu0 0.0
        %1288 = vmatpush1.msra.mxu0 %v689
        %1289 = vmatprep.subr.mxu0 0.0
        %1290 = vmatpush1.msra.mxu0 %v690
        %1291 = vmatprep.subr.mxu0 0.0
        %1292 = vmatpush1.msra.mxu0 %v691
        %1293 = vmatprep.subr.mxu0 0.0
        %1294 = vmatpush1.msra.mxu0 %v692
        %1295 = vmatprep.subr.mxu0 0.0
        %1296 = vmatpush1.msra.mxu0 %v693
        %1297 = vmatprep.subr.mxu0 0.0
        %1298 = vmatpush1.msra.mxu0 %v694
        %1299 = vmatprep.subr.mxu0 0.0
        %1300 = vmatpush1.msra.mxu0 %v695
        %1301 = vmatprep.subr.mxu0 0.0
        %1302 = vmatpush1.msra.mxu0 %v696
        %1303 = vmatprep.subr.mxu0 0.0
        %1304 = vmatpush1.msra.mxu0 %v697
        %1305 = vmatprep.subr.mxu0 0.0
        %1306 = vmatpush1.msra.mxu0 %v698
        %1307 = vmatprep.subr.mxu0 0.0
        %1308 = vmatpush1.msra.mxu0 0.0
        %1309 = vmatprep.subr.mxu0 0.0
        %1310 = vmatpush1.msra.mxu0 0.0
        %1311 = vmatprep.subr.mxu0 0.0
        %1312 = vmatpush1.msra.mxu0 0.0
        %1313 = vmatprep.subr.mxu0 0.0
        %1314 = vmatpush1.msra.mxu0 0.0
        %1315 = vmatprep.subr.mxu0 0.0
        %1316 = vmatpush1.msra.mxu0 0.0
        %1317 = vmatprep.subr.mxu0 0.0
        %1318 = vmatpush1.msra.mxu0 0.0
        %1319 = vmatprep.subr.mxu0 0.0
        %1320 = vmatpush1.msra.mxu0 0.0
        %1321 = vmatprep.subr.mxu0 0.0
        %1322 = vmatpush1.msra.mxu0 0.0
        %1323 = vmatprep.subr.mxu0 0.0
        %1324 = vmatpush1.msra.mxu0 0.0
        %1325 = vmatprep.subr.mxu0 0.0
        %1326 = vmatpush1.msra.mxu0 0.0
        %1327 = vmatprep.subr.mxu0 0.0
        %1328 = vmatpush1.msra.mxu0 0.0
        %1329 = vmatprep.subr.mxu0 0.0
        %1330 = vmatpush1.msra.mxu0 0.0
        %1331 = vmatprep.subr.mxu0 0.0
        %1332 = vmatpush1.msra.mxu0 0.0
        %1333 = vmatprep.subr.mxu0 0.0
        %1334 = vmatpush1.msra.mxu0 0.0
        %1335 = vmatprep.subr.mxu0 0.0
        %1336 = vmatpush1.msra.mxu0 0.0
        %1337 = vmatprep.subr.mxu0 0.0
        %1338 = vmatpush1.msra.mxu0 0.0
        %1339 = vmatprep.mubr.f32.mxu0 0.0
        %1340 = vmatmul.mubr.f32.gmra.mrb[0].mxu0 %v587
        %v1341 = vpop.f32.mrb[0].mxu0
        %v1342 = vadd.f32 %v798, %v1341
        %v1343 = vpop.f32.mrb[0].mxu0
        %1344 = vmatprep.mubr.f32.mxu0 0.0
        %1345 = vmatmul.mubr.f32.gmra.mrb[0].mxu0 %v588
        %v1346 = vpop.f32.mrb[0].mxu0
        %v1347 = vadd.f32 %v803, %v1346
        %v1348 = vpop.f32.mrb[0].mxu0
        %1349 = vmatprep.mubr.f32.mxu0 0.0
        %1350 = vmatmul.mubr.f32.gmra.mrb[0].mxu0 %v589
        %v1351 = vpop.f32.mrb[0].mxu0
        %v1352 = vadd.f32 %v808, %v1351
        %v1353 = vpop.f32.mrb[0].mxu0
        %1354 = vmatprep.mubr.f32.mxu0 0.0
        %1355 = vmatmul.mubr.f32.gmra.mrb[0].mxu0 %v590
        %v1356 = vpop.f32.mrb[0].mxu0
        %v1357 = vadd.f32 %v813, %v1356
        %v1358 = vpop.f32.mrb[0].mxu0
        %1359 = vmatprep.mubr.f32.mxu0 0.0
        %1360 = vmatmul.mubr.f32.gmra.mrb[0].mxu0 %v591
        %v1361 = vpop.f32.mrb[0].mxu0
        %v1362 = vadd.f32 %v818, %v1361
        %v1363 = vpop.f32.mrb[0].mxu0
        %1364 = vmatprep.mubr.f32.mxu0 0.0
        %1365 = vmatmul.mubr.f32.gmra.mrb[0].mxu0 %v592
        %v1366 = vpop.f32.mrb[0].mxu0
        %v1367 = vadd.f32 %v823, %v1366
        %v1368 = vpop.f32.mrb[0].mxu0
        %1369 = vmatprep.mubr.f32.mxu0 0.0
        %1370 = vmatmul.mubr.f32.gmra.mrb[0].mxu0 %v593
        %v1371 = vpop.f32.mrb[0].mxu0
        %v1372 = vadd.f32 %v828, %v1371
        %v1373 = vpop.f32.mrb[0].mxu0
        %1374 = vmatprep.mubr.f32.mxu0 0.0
        %1375 = vmatmul.mubr.f32.gmra.mrb[0].mxu0 %v594
        %v1376 = vpop.f32.mrb[0].mxu0
        %v1377 = vadd.f32 %v833, %v1376
        %v1378 = vpop.f32.mrb[0].mxu0
        %1379 = vmatprep.mubr.f32.mxu0 0.0
        %1380 = vmatmul.mubr.f32.gmra.mrb[0].mxu0 %v595
        %v1381 = vpop.f32.mrb[0].mxu0
        %v1382 = vadd.f32 %v838, %v1381
        %v1383 = vpop.f32.mrb[0].mxu0
        %1384 = vmatprep.mubr.f32.mxu0 0.0
        %1385 = vmatmul.mubr.f32.gmra.mrb[0].mxu0 %v596
        %v1386 = vpop.f32.mrb[0].mxu0
        %v1387 = vadd.f32 %v843, %v1386
        %v1388 = vpop.f32.mrb[0].mxu0
        %1389 = vmatprep.mubr.f32.mxu0 0.0
        %1390 = vmatmul.mubr.f32.gmra.mrb[0].mxu0 %v597
        %v1391 = vpop.f32.mrb[0].mxu0
        %v1392 = vadd.f32 %v848, %v1391
        %v1393 = vpop.f32.mrb[0].mxu0
        %1394 = vmatprep.mubr.f32.mxu0 0.0
        %1395 = vmatmul.mubr.f32.gmra.mrb[0].mxu0 %v598
        %v1396 = vpop.f32.mrb[0].mxu0
        %v1397 = vadd.f32 %v853, %v1396
        %v1398 = vpop.f32.mrb[0].mxu0
        %1399 = vmatprep.mubr.f32.mxu0 0.0
        %1400 = vmatmul.mubr.f32.gmra.mrb[0].mxu0 %v599
        %v1401 = vpop.f32.mrb[0].mxu0
        %v1402 = vadd.f32 %v858, %v1401
        %v1403 = vpop.f32.mrb[0].mxu0
        %1404 = vmatprep.mubr.f32.mxu0 0.0
        %1405 = vmatmul.mubr.f32.gmra.mrb[0].mxu0 %v600
        %v1406 = vpop.f32.mrb[0].mxu0
        %v1407 = vadd.f32 %v863, %v1406
        %v1408 = vpop.f32.mrb[0].mxu0
        %1409 = vmatprep.mubr.f32.mxu0 0.0
        %1410 = vmatmul.mubr.f32.gmra.mrb[0].mxu0 %v601
        %v1411 = vpop.f32.mrb[0].mxu0
        %v1412 = vadd.f32 %v868, %v1411
        %v1413 = vpop.f32.mrb[0].mxu0
        %1414 = vmatprep.mubr.f32.mxu0 0.0
        %1415 = vmatmul.mubr.f32.gmra.mrb[0].mxu0 %v602
        %v1416 = vpop.f32.mrb[0].mxu0
        %v1417 = vadd.f32 %v873, %v1416
        %v1418 = vpop.f32.mrb[0].mxu0
        %1419 = vmatprep.mubr.f32.mxu0 0.0
        %1420 = vmatmul.mubr.f32.gmra.mrb[0].mxu0 %v603
        %v1421 = vpop.f32.mrb[0].mxu0
        %v1422 = vadd.f32 %v878, %v1421
        %v1423 = vpop.f32.mrb[0].mxu0
        %1424 = vmatprep.mubr.f32.mxu0 0.0
        %1425 = vmatmul.mubr.f32.gmra.mrb[0].mxu0 %v604
        %v1426 = vpop.f32.mrb[0].mxu0
        %v1427 = vadd.f32 %v883, %v1426
        %v1428 = vpop.f32.mrb[0].mxu0
        %1429 = vmatprep.mubr.f32.mxu0 0.0
        %1430 = vmatmul.mubr.f32.gmra.mrb[0].mxu0 %v605
        %v1431 = vpop.f32.mrb[0].mxu0
        %v1432 = vadd.f32 %v888, %v1431
        %v1433 = vpop.f32.mrb[0].mxu0
        %1434 = vmatprep.mubr.f32.mxu0 0.0
        %1435 = vmatmul.mubr.f32.gmra.mrb[0].mxu0 %v606
        %v1436 = vpop.f32.mrb[0].mxu0
        %v1437 = vadd.f32 %v893, %v1436
        %v1438 = vpop.f32.mrb[0].mxu0
        %1439 = vmatprep.mubr.f32.mxu0 0.0
        %1440 = vmatmul.mubr.f32.gmra.mrb[0].mxu0 %v607
        %v1441 = vpop.f32.mrb[0].mxu0
        %v1442 = vadd.f32 %v898, %v1441
        %v1443 = vpop.f32.mrb[0].mxu0
        %1444 = vmatprep.mubr.f32.mxu0 0.0
        %1445 = vmatmul.mubr.f32.gmra.mrb[0].mxu0 %v608
        %v1446 = vpop.f32.mrb[0].mxu0
        %v1447 = vadd.f32 %v903, %v1446
        %v1448 = vpop.f32.mrb[0].mxu0
        %1449 = vmatprep.mubr.f32.mxu0 0.0
        %1450 = vmatmul.mubr.f32.gmra.mrb[0].mxu0 %v609
        %v1451 = vpop.f32.mrb[0].mxu0
        %v1452 = vadd.f32 %v908, %v1451
        %v1453 = vpop.f32.mrb[0].mxu0
        %1454 = vmatprep.mubr.f32.mxu0 0.0
        %1455 = vmatmul.mubr.f32.gmra.mrb[0].mxu0 %v610
        %v1456 = vpop.f32.mrb[0].mxu0
        %v1457 = vadd.f32 %v913, %v1456
        %v1458 = vpop.f32.mrb[0].mxu0
        %1459 = vmatprep.mubr.f32.mxu0 0.0
        %1460 = vmatmul.mubr.f32.gmra.mrb[0].mxu0 %v611
        %v1461 = vpop.f32.mrb[0].mxu0
        %v1462 = vadd.f32 %v918, %v1461
        %v1463 = vpop.f32.mrb[0].mxu0
        %1464 = vmatprep.mubr.f32.mxu0 0.0
        %1465 = vmatmul.mubr.f32.gmra.mrb[0].mxu0 %v612
        %v1466 = vpop.f32.mrb[0].mxu0
        %v1467 = vadd.f32 %v923, %v1466
        %v1468 = vpop.f32.mrb[0].mxu0
        %1469 = vmatprep.mubr.f32.mxu0 0.0
        %1470 = vmatmul.mubr.f32.gmra.mrb[0].mxu0 %v613
        %v1471 = vpop.f32.mrb[0].mxu0
        %v1472 = vadd.f32 %v928, %v1471
        %v1473 = vpop.f32.mrb[0].mxu0
        %1474 = vmatprep.mubr.f32.mxu0 0.0
        %1475 = vmatmul.mubr.f32.gmra.mrb[0].mxu0 %v614
        %v1476 = vpop.f32.mrb[0].mxu0
        %v1477 = vadd.f32 %v933, %v1476
        %v1478 = vpop.f32.mrb[0].mxu0
        %1479 = vmatprep.mubr.f32.mxu0 0.0
        %1480 = vmatmul.mubr.f32.gmra.mrb[0].mxu0 %v615
        %v1481 = vpop.f32.mrb[0].mxu0
        %v1482 = vadd.f32 %v938, %v1481
        %v1483 = vpop.f32.mrb[0].mxu0
        %1484 = vmatprep.mubr.f32.mxu0 0.0
        %1485 = vmatmul.mubr.f32.gmra.mrb[0].mxu0 %v616
        %v1486 = vpop.f32.mrb[0].mxu0
        %v1487 = vadd.f32 %v943, %v1486
        %v1488 = vpop.f32.mrb[0].mxu0
        %1489 = vmatprep.mubr.f32.mxu0 0.0
        %1490 = vmatmul.mubr.f32.gmra.mrb[0].mxu0 %v617
        %v1491 = vpop.f32.mrb[0].mxu0
        %v1492 = vadd.f32 %v948, %v1491
        %v1493 = vpop.f32.mrb[0].mxu0
        %1494 = vmatprep.mubr.f32.mxu0 0.0
        %1495 = vmatmul.mubr.f32.gmra.mrb[0].mxu0 %v618
        %v1496 = vpop.f32.mrb[0].mxu0
        %v1497 = vadd.f32 %v953, %v1496
        %v1498 = vpop.f32.mrb[0].mxu0
        %1499 = vmatprep.mubr.f32.mxu0 0.0
        %1500 = vmatmul.mubr.f32.gmra.mrb[0].mxu0 %v619
        %v1501 = vpop.f32.mrb[0].mxu0
        %v1502 = vadd.f32 %v958, %v1501
        %v1503 = vpop.f32.mrb[0].mxu0
        %1504 = vmatprep.mubr.f32.mxu0 0.0
        %1505 = vmatmul.mubr.f32.gmra.mrb[0].mxu0 %v620
        %v1506 = vpop.f32.mrb[0].mxu0
        %v1507 = vadd.f32 %v963, %v1506
        %v1508 = vpop.f32.mrb[0].mxu0
        %1509 = vmatprep.mubr.f32.mxu0 0.0
        %1510 = vmatmul.mubr.f32.gmra.mrb[0].mxu0 %v621
        %v1511 = vpop.f32.mrb[0].mxu0
        %v1512 = vadd.f32 %v968, %v1511
        %v1513 = vpop.f32.mrb[0].mxu0
        %1514 = vmatprep.mubr.f32.mxu0 0.0
        %1515 = vmatmul.mubr.f32.gmra.mrb[0].mxu0 %v622
        %v1516 = vpop.f32.mrb[0].mxu0
        %v1517 = vadd.f32 %v973, %v1516
        %v1518 = vpop.f32.mrb[0].mxu0
        %1519 = vmatprep.mubr.f32.mxu0 0.0
        %1520 = vmatmul.mubr.f32.gmra.mrb[0].mxu0 %v623
        %v1521 = vpop.f32.mrb[0].mxu0
        %v1522 = vadd.f32 %v978, %v1521
        %v1523 = vpop.f32.mrb[0].mxu0
        %1524 = vmatprep.mubr.f32.mxu0 0.0
        %1525 = vmatmul.mubr.f32.gmra.mrb[0].mxu0 %v624
        %v1526 = vpop.f32.mrb[0].mxu0
        %v1527 = vadd.f32 %v983, %v1526
        %v1528 = vpop.f32.mrb[0].mxu0
        %1529 = vmatprep.mubr.f32.mxu0 0.0
        %1530 = vmatmul.mubr.f32.gmra.mrb[0].mxu0 %v625
        %v1531 = vpop.f32.mrb[0].mxu0
        %v1532 = vadd.f32 %v988, %v1531
        %v1533 = vpop.f32.mrb[0].mxu0
        %1534 = vmatprep.mubr.f32.mxu0 0.0
        %1535 = vmatmul.mubr.f32.gmra.mrb[0].mxu0 %v626
        %v1536 = vpop.f32.mrb[0].mxu0
        %v1537 = vadd.f32 %v993, %v1536
        %v1538 = vpop.f32.mrb[0].mxu0
        %1539 = vmatprep.mubr.f32.mxu0 0.0
        %1540 = vmatmul.mubr.f32.gmra.mrb[0].mxu0 %v627
        %v1541 = vpop.f32.mrb[0].mxu0
        %v1542 = vadd.f32 %v998, %v1541
        %v1543 = vpop.f32.mrb[0].mxu0
        %1544 = vmatprep.mubr.f32.mxu0 0.0
        %1545 = vmatmul.mubr.f32.gmra.mrb[0].mxu0 %v628
        %v1546 = vpop.f32.mrb[0].mxu0
        %v1547 = vadd.f32 %v1003, %v1546
        %v1548 = vpop.f32.mrb[0].mxu0
        %1549 = vmatprep.mubr.f32.mxu0 0.0
        %1550 = vmatmul.mubr.f32.gmra.mrb[0].mxu0 %v629
        %v1551 = vpop.f32.mrb[0].mxu0
        %v1552 = vadd.f32 %v1008, %v1551
        %v1553 = vpop.f32.mrb[0].mxu0
        %1554 = vmatprep.mubr.f32.mxu0 0.0
        %1555 = vmatmul.mubr.f32.gmra.mrb[0].mxu0 %v630
        %v1556 = vpop.f32.mrb[0].mxu0
        %v1557 = vadd.f32 %v1013, %v1556
        %v1558 = vpop.f32.mrb[0].mxu0
        %1559 = vmatprep.mubr.f32.mxu0 0.0
        %1560 = vmatmul.mubr.f32.gmra.mrb[0].mxu0 %v631
        %v1561 = vpop.f32.mrb[0].mxu0
        %v1562 = vadd.f32 %v1018, %v1561
        %v1563 = vpop.f32.mrb[0].mxu0
        %1564 = vmatprep.mubr.f32.mxu0 0.0
        %1565 = vmatmul.mubr.f32.gmra.mrb[0].mxu0 %v632
        %v1566 = vpop.f32.mrb[0].mxu0
        %v1567 = vadd.f32 %v1023, %v1566
        %v1568 = vpop.f32.mrb[0].mxu0
        %1569 = vmatprep.mubr.f32.mxu0 0.0
        %1570 = vmatmul.mubr.f32.gmra.mrb[0].mxu0 %v633
        %v1571 = vpop.f32.mrb[0].mxu0
        %v1572 = vadd.f32 %v1028, %v1571
        %v1573 = vpop.f32.mrb[0].mxu0
        %1574 = vmatprep.mubr.f32.mxu0 0.0
        %1575 = vmatmul.mubr.f32.gmra.mrb[0].mxu0 %v634
        %v1576 = vpop.f32.mrb[0].mxu0
        %v1577 = vadd.f32 %v1033, %v1576
        %v1578 = vpop.f32.mrb[0].mxu0
        %1579 = vmatprep.mubr.f32.mxu0 0.0
        %1580 = vmatmul.mubr.f32.gmra.mrb[0].mxu0 %v635
        %v1581 = vpop.f32.mrb[0].mxu0
        %v1582 = vadd.f32 %v1038, %v1581
        %v1583 = vpop.f32.mrb[0].mxu0
        %1584 = vmatprep.mubr.f32.mxu0 0.0
        %1585 = vmatmul.mubr.f32.gmra.mrb[0].mxu0 %v636
        %v1586 = vpop.f32.mrb[0].mxu0
        %v1587 = vadd.f32 %v1043, %v1586
        %v1588 = vpop.f32.mrb[0].mxu0
        %1589 = vmatprep.mubr.f32.mxu0 0.0
        %1590 = vmatmul.mubr.f32.gmra.mrb[0].mxu0 %v637
        %v1591 = vpop.f32.mrb[0].mxu0
        %v1592 = vadd.f32 %v1048, %v1591
        %v1593 = vpop.f32.mrb[0].mxu0
        %1594 = vmatprep.mubr.f32.mxu0 0.0
        %1595 = vmatmul.mubr.f32.gmra.mrb[0].mxu0 %v638
        %v1596 = vpop.f32.mrb[0].mxu0
        %v1597 = vadd.f32 %v1053, %v1596
        %v1598 = vpop.f32.mrb[0].mxu0
        %1599 = vmatprep.mubr.f32.mxu0 0.0
        %1600 = vmatmul.mubr.f32.gmra.mrb[0].mxu0 %v639
        %v1601 = vpop.f32.mrb[0].mxu0
        %v1602 = vadd.f32 %v1058, %v1601
        %v1603 = vpop.f32.mrb[0].mxu0
        %1604 = vmatprep.mubr.f32.mxu0 0.0
        %1605 = vmatmul.mubr.f32.gmra.mrb[0].mxu0 %v640
        %v1606 = vpop.f32.mrb[0].mxu0
        %v1607 = vadd.f32 %v1063, %v1606
        %v1608 = vpop.f32.mrb[0].mxu0
        %1609 = vmatprep.mubr.f32.mxu0 0.0
        %1610 = vmatmul.mubr.f32.gmra.mrb[0].mxu0 %v641
        %v1611 = vpop.f32.mrb[0].mxu0
        %v1612 = vadd.f32 %v1068, %v1611
        %v1613 = vpop.f32.mrb[0].mxu0
        %1614 = vmatprep.mubr.f32.mxu0 0.0
        %1615 = vmatmul.mubr.f32.gmra.mrb[0].mxu0 %v642
        %v1616 = vpop.f32.mrb[0].mxu0
        %v1617 = vadd.f32 %v1073, %v1616
        %v1618 = vpop.f32.mrb[0].mxu0
        %1619 = vmatprep.mubr.f32.mxu0 0.0
        %1620 = vmatmul.mubr.f32.gmra.mrb[0].mxu0 %v643
        %v1621 = vpop.f32.mrb[0].mxu0
        %v1622 = vadd.f32 %v1078, %v1621
        %v1623 = vpop.f32.mrb[0].mxu0
        %1624 = vmatprep.mubr.f32.mxu0 0.0
        %1625 = vmatmul.mubr.f32.gmra.mrb[0].mxu0 %v644
        %v1626 = vpop.f32.mrb[0].mxu0
        %v1627 = vadd.f32 %v1083, %v1626
        %v1628 = vpop.f32.mrb[0].mxu0
        %1629 = vmatprep.mubr.f32.mxu0 0.0
        %1630 = vmatmul.mubr.f32.gmra.mrb[0].mxu0 %v645
        %v1631 = vpop.f32.mrb[0].mxu0
        %v1632 = vadd.f32 %v1088, %v1631
        %v1633 = vpop.f32.mrb[0].mxu0
        %1634 = vmatprep.mubr.f32.mxu0 0.0
        %1635 = vmatmul.mubr.f32.gmra.mrb[0].mxu0 %v646
        %v1636 = vpop.f32.mrb[0].mxu0
        %v1637 = vadd.f32 %v1093, %v1636
        %v1638 = vpop.f32.mrb[0].mxu0
        %1639 = vmatprep.mubr.f32.mxu0 0.0
        %1640 = vmatmul.mubr.f32.gmra.mrb[0].mxu0 %v647
        %v1641 = vpop.f32.mrb[0].mxu0
        %v1642 = vadd.f32 %v1098, %v1641
        %v1643 = vpop.f32.mrb[0].mxu0
        %1644 = vmatprep.mubr.f32.mxu0 0.0
        %1645 = vmatmul.mubr.f32.gmra.mrb[0].mxu0 %v648
        %v1646 = vpop.f32.mrb[0].mxu0
        %v1647 = vadd.f32 %v1103, %v1646
        %v1648 = vpop.f32.mrb[0].mxu0
        %1649 = vmatprep.mubr.f32.mxu0 0.0
        %1650 = vmatmul.mubr.f32.gmra.mrb[0].mxu0 %v649
        %v1651 = vpop.f32.mrb[0].mxu0
        %v1652 = vadd.f32 %v1108, %v1651
        %v1653 = vpop.f32.mrb[0].mxu0
        %1654 = vmatprep.mubr.f32.mxu0 0.0
        %1655 = vmatmul.mubr.f32.gmra.mrb[0].mxu0 %v650
        %v1656 = vpop.f32.mrb[0].mxu0
        %v1657 = vadd.f32 %v1113, %v1656
        %v1658 = vpop.f32.mrb[0].mxu0
        %1659 = vmatprep.mubr.f32.mxu0 0.0
        %1660 = vmatmul.mubr.f32.gmra.mrb[0].mxu0 %v651
        %v1661 = vpop.f32.mrb[0].mxu0
        %v1662 = vadd.f32 %v1118, %v1661
        %v1663 = vpop.f32.mrb[0].mxu0
        %1664 = vmatprep.mubr.f32.mxu0 0.0
        %1665 = vmatmul.mubr.f32.gmra.mrb[0].mxu0 %v652
        %v1666 = vpop.f32.mrb[0].mxu0
        %v1667 = vadd.f32 %v1123, %v1666
        %v1668 = vpop.f32.mrb[0].mxu0
        %1669 = vmatprep.mubr.f32.mxu0 0.0
        %1670 = vmatmul.mubr.f32.gmra.mrb[0].mxu0 %v653
        %v1671 = vpop.f32.mrb[0].mxu0
        %v1672 = vadd.f32 %v1128, %v1671
        %v1673 = vpop.f32.mrb[0].mxu0
        %1674 = vmatprep.mubr.f32.mxu0 0.0
        %1675 = vmatmul.mubr.f32.gmra.mrb[0].mxu0 %v654
        %v1676 = vpop.f32.mrb[0].mxu0
        %v1677 = vadd.f32 %v1133, %v1676
        %v1678 = vpop.f32.mrb[0].mxu0
        %1679 = vmatprep.mubr.f32.mxu0 0.0
        %1680 = vmatmul.mubr.f32.gmra.mrb[0].mxu0 %v655
        %v1681 = vpop.f32.mrb[0].mxu0
        %v1682 = vadd.f32 %v1138, %v1681
        %v1683 = vpop.f32.mrb[0].mxu0
        %1684 = vmatprep.mubr.f32.mxu0 0.0
        %1685 = vmatmul.mubr.f32.gmra.mrb[0].mxu0 %v656
        %v1686 = vpop.f32.mrb[0].mxu0
        %v1687 = vadd.f32 %v1143, %v1686
        %v1688 = vpop.f32.mrb[0].mxu0
        %1689 = vmatprep.mubr.f32.mxu0 0.0
        %1690 = vmatmul.mubr.f32.gmra.mrb[0].mxu0 %v657
        %v1691 = vpop.f32.mrb[0].mxu0
        %v1692 = vadd.f32 %v1148, %v1691
        %v1693 = vpop.f32.mrb[0].mxu0
        %1694 = vmatprep.mubr.f32.mxu0 0.0
        %1695 = vmatmul.mubr.f32.gmra.mrb[0].mxu0 %v658
        %v1696 = vpop.f32.mrb[0].mxu0
        %v1697 = vadd.f32 %v1153, %v1696
        %v1698 = vpop.f32.mrb[0].mxu0
        %1699 = vmatprep.mubr.f32.mxu0 0.0
        %1700 = vmatmul.mubr.f32.gmra.mrb[0].mxu0 %v659
        %v1701 = vpop.f32.mrb[0].mxu0
        %v1702 = vadd.f32 %v1158, %v1701
        %v1703 = vpop.f32.mrb[0].mxu0
        %1704 = vmatprep.mubr.f32.mxu0 0.0
        %1705 = vmatmul.mubr.f32.gmra.mrb[0].mxu0 %v660
        %v1706 = vpop.f32.mrb[0].mxu0
        %v1707 = vadd.f32 %v1163, %v1706
        %v1708 = vpop.f32.mrb[0].mxu0
        %1709 = vmatprep.mubr.f32.mxu0 0.0
        %1710 = vmatmul.mubr.f32.gmra.mrb[0].mxu0 %v661
        %v1711 = vpop.f32.mrb[0].mxu0
        %v1712 = vadd.f32 %v1168, %v1711
        %v1713 = vpop.f32.mrb[0].mxu0
        %1714 = vmatprep.mubr.f32.mxu0 0.0
        %1715 = vmatmul.mubr.f32.gmra.mrb[0].mxu0 %v662
        %v1716 = vpop.f32.mrb[0].mxu0
        %v1717 = vadd.f32 %v1173, %v1716
        %v1718 = vpop.f32.mrb[0].mxu0
        %1719 = vmatprep.mubr.f32.mxu0 0.0
        %1720 = vmatmul.mubr.f32.gmra.mrb[0].mxu0 %v663
        %v1721 = vpop.f32.mrb[0].mxu0
        %v1722 = vadd.f32 %v1178, %v1721
        %v1723 = vpop.f32.mrb[0].mxu0
        %1724 = vmatprep.mubr.f32.mxu0 0.0
        %1725 = vmatmul.mubr.f32.gmra.mrb[0].mxu0 %v664
        %v1726 = vpop.f32.mrb[0].mxu0
        %v1727 = vadd.f32 %v1183, %v1726
        %v1728 = vpop.f32.mrb[0].mxu0
        %1729 = vmatprep.mubr.f32.mxu0 0.0
        %1730 = vmatmul.mubr.f32.gmra.mrb[0].mxu0 %v665
        %v1731 = vpop.f32.mrb[0].mxu0
        %v1732 = vadd.f32 %v1188, %v1731
        %v1733 = vpop.f32.mrb[0].mxu0
        %1734 = vmatprep.mubr.f32.mxu0 0.0
        %1735 = vmatmul.mubr.f32.gmra.mrb[0].mxu0 %v666
        %v1736 = vpop.f32.mrb[0].mxu0
        %v1737 = vadd.f32 %v1193, %v1736
        %v1738 = vpop.f32.mrb[0].mxu0
        %1739 = vmatprep.mubr.f32.mxu0 0.0
        %1740 = vmatmul.mubr.f32.gmra.mrb[0].mxu0 %v667
        %v1741 = vpop.f32.mrb[0].mxu0
        %v1742 = vadd.f32 %v1198, %v1741
        %v1743 = vpop.f32.mrb[0].mxu0
        %1744 = vmatprep.mubr.f32.mxu0 0.0
        %1745 = vmatmul.mubr.f32.gmra.mrb[0].mxu0 %v668
        %v1746 = vpop.f32.mrb[0].mxu0
        %v1747 = vadd.f32 %v1203, %v1746
        %v1748 = vpop.f32.mrb[0].mxu0
        %1749 = vmatprep.mubr.f32.mxu0 0.0
        %1750 = vmatmul.mubr.f32.gmra.mrb[0].mxu0 %v669
        %v1751 = vpop.f32.mrb[0].mxu0
        %v1752 = vadd.f32 %v1208, %v1751
        %v1753 = vpop.f32.mrb[0].mxu0
        %1754 = vmatprep.mubr.f32.mxu0 0.0
        %1755 = vmatmul.mubr.f32.gmra.mrb[0].mxu0 %v670
        %v1756 = vpop.f32.mrb[0].mxu0
        %v1757 = vadd.f32 %v1213, %v1756
        %v1758 = vpop.f32.mrb[0].mxu0
        %1759 = vmatprep.mubr.f32.mxu0 0.0
        %1760 = vmatmul.mubr.f32.gmra.mrb[0].mxu0 %v671
        %v1761 = vpop.f32.mrb[0].mxu0
        %v1762 = vadd.f32 %v1218, %v1761
        %v1763 = vpop.f32.mrb[0].mxu0
        %1764 = vmatprep.mubr.f32.mxu0 0.0
        %1765 = vmatmul.mubr.f32.gmra.mrb[0].mxu0 %v672
        %v1766 = vpop.f32.mrb[0].mxu0
        %v1767 = vadd.f32 %v1223, %v1766
        %v1768 = vpop.f32.mrb[0].mxu0
        %1769 = vmatprep.mubr.f32.mxu0 0.0
        %1770 = vmatmul.mubr.f32.gmra.mrb[0].mxu0 %v673
        %v1771 = vpop.f32.mrb[0].mxu0
        %v1772 = vadd.f32 %v1228, %v1771
        %v1773 = vpop.f32.mrb[0].mxu0
        %1774 = vmatprep.mubr.f32.mxu0 0.0
        %1775 = vmatmul.mubr.f32.gmra.mrb[0].mxu0 %v674
        %v1776 = vpop.f32.mrb[0].mxu0
        %v1777 = vadd.f32 %v1233, %v1776
        %v1778 = vpop.f32.mrb[0].mxu0
        %1779 = vmatprep.mubr.f32.mxu0 0.0
        %1780 = vmatmul.mubr.f32.gmra.mrb[0].mxu0 %v675
        %v1781 = vpop.f32.mrb[0].mxu0
        %v1782 = vadd.f32 %v1238, %v1781
        %v1783 = vpop.f32.mrb[0].mxu0
        %1784 = vmatprep.mubr.f32.mxu0 0.0
        %1785 = vmatmul.mubr.f32.gmra.mrb[0].mxu0 %v676
        %v1786 = vpop.f32.mrb[0].mxu0
        %v1787 = vadd.f32 %v1243, %v1786
        %v1788 = vpop.f32.mrb[0].mxu0
        %1789 = vmatprep.mubr.f32.mxu0 0.0
        %1790 = vmatmul.mubr.f32.gmra.mrb[0].mxu0 %v677
        %v1791 = vpop.f32.mrb[0].mxu0
        %v1792 = vadd.f32 %v1248, %v1791
        %v1793 = vpop.f32.mrb[0].mxu0
        %1794 = vmatprep.mubr.f32.mxu0 0.0
        %1795 = vmatmul.mubr.f32.gmra.mrb[0].mxu0 %v678
        %v1796 = vpop.f32.mrb[0].mxu0
        %v1797 = vadd.f32 %v1253, %v1796
        %v1798 = vpop.f32.mrb[0].mxu0
        %1799 = vmatprep.mubr.f32.mxu0 0.0
        %1800 = vmatmul.mubr.f32.gmra.mrb[0].mxu0 %v679
        %v1801 = vpop.f32.mrb[0].mxu0
        %v1802 = vadd.f32 %v1258, %v1801
        %v1803 = vpop.f32.mrb[0].mxu0
        %1804 = vmatprep.mubr.f32.mxu0 0.0
        %1805 = vmatmul.mubr.f32.gmra.mrb[0].mxu0 %v680
        %v1806 = vpop.f32.mrb[0].mxu0
        %v1807 = vadd.f32 %v1263, %v1806
        %v1808 = vpop.f32.mrb[0].mxu0
        %1809 = vmatprep.mubr.f32.mxu0 0.0
        %1810 = vmatmul.mubr.f32.gmra.mrb[0].mxu0 %v681
        %v1811 = vpop.f32.mrb[0].mxu0
        %v1812 = vadd.f32 %v1268, %v1811
        %v1813 = vpop.f32.mrb[0].mxu0
        %1814 = vmatprep.mubr.f32.mxu0 0.0
        %1815 = vmatmul.mubr.f32.gmra.mrb[0].mxu0 %v682
        %v1816 = vpop.f32.mrb[0].mxu0
        %v1817 = vadd.f32 %v1273, %v1816
        %v1818 = vpop.f32.mrb[0].mxu0
        %1819 = vdwg.mxu0
        %v1820 = vld [vmem:[%s586] sm:$0xff]
        %v1821 = vld [vmem:[%s586 + $0x8] sm:$0xff]
        %1823 = vset.pattern.permute.xlu0 0
        %1824 = vperm.xlu0 %1823, %v1820
        %v1825 = vpop.permute.xlu0 %1824
        %1828 = vset.pattern.permute.xlu0 0
        %1829 = vperm.xlu0 %1828, %v1821
        %v1830 = vpop.permute.xlu0 %1829
        %v1832 = vld [vmem:[%s7] sm:$0xff]
        %v1833 = vld [vmem:[%s7 + $0x8] sm:$0xff]
        %v1834 = vld [vmem:[%s7 + $0x10] sm:$0xff]
        %v1835 = vld [vmem:[%s7 + $0x18] sm:$0xff]
        %v1836 = vld [vmem:[%s7 + $0x20] sm:$0xff]
        %v1837 = vld [vmem:[%s7 + $0x28] sm:$0xff]
        %v1838 = vld [vmem:[%s7 + $0x30] sm:$0xff]
        %v1839 = vld [vmem:[%s7 + $0x38] sm:$0xff]
        %v1840 = vld [vmem:[%s7 + $0x40] sm:$0xff]
        %v1841 = vld [vmem:[%s7 + $0x48] sm:$0xff]
        %v1842 = vld [vmem:[%s7 + $0x50] sm:$0xff]
        %v1843 = vld [vmem:[%s7 + $0x58] sm:$0xff]
        %v1844 = vld [vmem:[%s7 + $0x60] sm:$0xff]
        %v1845 = vld [vmem:[%s7 + $0x68] sm:$0xff]
        %v1846 = vld [vmem:[%s7 + $0x70] sm:$0xff]
        %v1847 = vld [vmem:[%s7 + $0x78] sm:$0xff]
        %v1848 = vld [vmem:[%s7 + $0x80] sm:$0xff]
        %v1849 = vld [vmem:[%s7 + $0x88] sm:$0xff]
        %v1850 = vld [vmem:[%s7 + $0x90] sm:$0xff]
        %v1851 = vld [vmem:[%s7 + $0x98] sm:$0xff]
        %v1852 = vld [vmem:[%s7 + $0xa0] sm:$0xff]
        %v1853 = vld [vmem:[%s7 + $0xa8] sm:$0xff]
        %v1854 = vld [vmem:[%s7 + $0xb0] sm:$0xff]
        %v1855 = vld [vmem:[%s7 + $0xb8] sm:$0xff]
        %v1856 = vld [vmem:[%s7 + $0xc0] sm:$0xff]
        %v1857 = vld [vmem:[%s7 + $0xc8] sm:$0xff]
        %v1858 = vld [vmem:[%s7 + $0xd0] sm:$0xff]
        %v1859 = vld [vmem:[%s7 + $0xd8] sm:$0xff]
        %v1860 = vld [vmem:[%s7 + $0xe0] sm:$0xff]
        %v1861 = vld [vmem:[%s7 + $0xe8] sm:$0xff]
        %v1862 = vld [vmem:[%s7 + $0xf0] sm:$0xff]
        %v1863 = vld [vmem:[%s7 + $0xf8] sm:$0xff]
        %v1864 = vld [vmem:[%s7 + $0x100] sm:$0xff]
        %v1865 = vld [vmem:[%s7 + $0x108] sm:$0xff]
        %v1866 = vld [vmem:[%s7 + $0x110] sm:$0xff]
        %v1867 = vld [vmem:[%s7 + $0x118] sm:$0xff]
        %v1868 = vld [vmem:[%s7 + $0x120] sm:$0xff]
        %v1869 = vld [vmem:[%s7 + $0x128] sm:$0xff]
        %v1870 = vld [vmem:[%s7 + $0x130] sm:$0xff]
        %v1871 = vld [vmem:[%s7 + $0x138] sm:$0xff]
        %v1872 = vld [vmem:[%s7 + $0x140] sm:$0xff]
        %v1873 = vld [vmem:[%s7 + $0x148] sm:$0xff]
        %v1874 = vld [vmem:[%s7 + $0x150] sm:$0xff]
        %v1875 = vld [vmem:[%s7 + $0x158] sm:$0xff]
        %v1876 = vld [vmem:[%s7 + $0x160] sm:$0xff]
        %v1877 = vld [vmem:[%s7 + $0x168] sm:$0xff]
        %v1878 = vld [vmem:[%s7 + $0x170] sm:$0xff]
        %v1879 = vld [vmem:[%s7 + $0x178] sm:$0xff]
        %v1880 = vld [vmem:[%s7 + $0x180] sm:$0xff]
        %v1881 = vld [vmem:[%s7 + $0x188] sm:$0xff]
        %v1882 = vld [vmem:[%s7 + $0x190] sm:$0xff]
        %v1883 = vld [vmem:[%s7 + $0x198] sm:$0xff]
        %v1884 = vld [vmem:[%s7 + $0x1a0] sm:$0xff]
        %v1885 = vld [vmem:[%s7 + $0x1a8] sm:$0xff]
        %v1886 = vld [vmem:[%s7 + $0x1b0] sm:$0xff]
        %v1887 = vld [vmem:[%s7 + $0x1b8] sm:$0xff]
        %v1888 = vld [vmem:[%s7 + $0x1c0] sm:$0xff]
        %v1889 = vld [vmem:[%s7 + $0x1c8] sm:$0xff]
        %v1890 = vld [vmem:[%s7 + $0x1d0] sm:$0xff]
        %v1891 = vld [vmem:[%s7 + $0x1d8] sm:$0xff]
        %v1892 = vld [vmem:[%s7 + $0x1e0] sm:$0xff]
        %v1893 = vld [vmem:[%s7 + $0x1e8] sm:$0xff]
        %v1894 = vld [vmem:[%s7 + $0x1f0] sm:$0xff]
        %v1895 = vld [vmem:[%s7 + $0x1f8] sm:$0xff]
        %v1896 = vld [vmem:[%s7 + $0x200] sm:$0xff]
        %v1897 = vld [vmem:[%s7 + $0x208] sm:$0xff]
        %v1898 = vld [vmem:[%s7 + $0x210] sm:$0xff]
        %v1899 = vld [vmem:[%s7 + $0x218] sm:$0xff]
        %v1900 = vld [vmem:[%s7 + $0x220] sm:$0xff]
        %v1901 = vld [vmem:[%s7 + $0x228] sm:$0xff]
        %v1902 = vld [vmem:[%s7 + $0x230] sm:$0xff]
        %v1903 = vld [vmem:[%s7 + $0x238] sm:$0xff]
        %v1904 = vld [vmem:[%s7 + $0x240] sm:$0xff]
        %v1905 = vld [vmem:[%s7 + $0x248] sm:$0xff]
        %v1906 = vld [vmem:[%s7 + $0x250] sm:$0xff]
        %v1907 = vld [vmem:[%s7 + $0x258] sm:$0xff]
        %v1908 = vld [vmem:[%s7 + $0x260] sm:$0xff]
        %v1909 = vld [vmem:[%s7 + $0x268] sm:$0xff]
        %v1910 = vld [vmem:[%s7 + $0x270] sm:$0xff]
        %v1911 = vld [vmem:[%s7 + $0x278] sm:$0xff]
        %v1912 = vld [vmem:[%s7 + $0x280] sm:$0xff]
        %v1913 = vld [vmem:[%s7 + $0x288] sm:$0xff]
        %v1914 = vld [vmem:[%s7 + $0x290] sm:$0xff]
        %v1915 = vld [vmem:[%s7 + $0x298] sm:$0xff]
        %v1916 = vld [vmem:[%s7 + $0x2a0] sm:$0xff]
        %v1917 = vld [vmem:[%s7 + $0x2a8] sm:$0xff]
        %v1918 = vld [vmem:[%s7 + $0x2b0] sm:$0xff]
        %v1919 = vld [vmem:[%s7 + $0x2b8] sm:$0xff]
        %v1920 = vld [vmem:[%s7 + $0x2c0] sm:$0xff]
        %v1921 = vld [vmem:[%s7 + $0x2c8] sm:$0xff]
        %v1922 = vld [vmem:[%s7 + $0x2d0] sm:$0xff]
        %v1923 = vld [vmem:[%s7 + $0x2d8] sm:$0xff]
        %v1924 = vld [vmem:[%s7 + $0x2e0] sm:$0xff]
        %v1925 = vld [vmem:[%s7 + $0x2e8] sm:$0xff]
        %v1926 = vld [vmem:[%s7 + $0x2f0] sm:$0xff]
        %v1927 = vld [vmem:[%s7 + $0x2f8] sm:$0xff]
        %v1928 = vld [vmem:[%s7 + $0x300] sm:$0xff]
        %v1929 = vld [vmem:[%s7 + $0x308] sm:$0xff]
        %v1930 = vld [vmem:[%s7 + $0x310] sm:$0xff]
        %v1931 = vld [vmem:[%s7 + $0x318] sm:$0xff]
        %v1932 = vld [vmem:[%s7 + $0x320] sm:$0xff]
        %v1933 = vld [vmem:[%s7 + $0x328] sm:$0xff]
        %v1934 = vld [vmem:[%s7 + $0x330] sm:$0xff]
        %v1935 = vld [vmem:[%s7 + $0x338] sm:$0xff]
        %v1936 = vld [vmem:[%s7 + $0x340] sm:$0xff]
        %v1937 = vld [vmem:[%s7 + $0x348] sm:$0xff]
        %v1938 = vld [vmem:[%s7 + $0x350] sm:$0xff]
        %v1939 = vld [vmem:[%s7 + $0x358] sm:$0xff]
        %v1940 = vld [vmem:[%s7 + $0x360] sm:$0xff]
        %v1941 = vld [vmem:[%s7 + $0x368] sm:$0xff]
        %v1942 = vld [vmem:[%s7 + $0x370] sm:$0xff]
        %v1943 = vld [vmem:[%s7 + $0x378] sm:$0xff]
        %vm1944 = vcmask 130048
        %v1946 = vsel %vm1944, %v1838, 0
        %v1949 = vsel %vm1944, %v1845, 0
        %v1952 = vsel %vm1944, %v1852, 0
        %v1955 = vsel %vm1944, %v1859, 0
        %v1958 = vsel %vm1944, %v1866, 0
        %v1961 = vsel %vm1944, %v1873, 0
        %v1964 = vsel %vm1944, %v1880, 0
        %v1967 = vsel %vm1944, %v1887, 0
        %v1970 = vsel %vm1944, %v1894, 0
        %v1973 = vsel %vm1944, %v1901, 0
        %v1976 = vsel %vm1944, %v1908, 0
        %v1979 = vsel %vm1944, %v1915, 0
        %v1982 = vsel %vm1944, %v1922, 0
        %v1985 = vsel %vm1944, %v1929, 0
        %v1988 = vsel %vm1944, %v1936, 0
        %v1991 = vsel %vm1944, %v1943, 0
        %1993 = vmatprep.subr.mxu0 0.0
        %1994 = vmatpush1.msra.mxu0 %v1342
        %1995 = vmatprep.subr.mxu0 0.0
        %1996 = vmatpush1.msra.mxu0 %v1347
        %1997 = vmatprep.subr.mxu0 0.0
        %1998 = vmatpush1.msra.mxu0 %v1352
        %1999 = vmatprep.subr.mxu0 0.0
        %2000 = vmatpush1.msra.mxu0 %v1357
        %2001 = vmatprep.subr.mxu0 0.0
        %2002 = vmatpush1.msra.mxu0 %v1362
        %2003 = vmatprep.subr.mxu0 0.0
        %2004 = vmatpush1.msra.mxu0 %v1367
        %2005 = vmatprep.subr.mxu0 0.0
        %2006 = vmatpush1.msra.mxu0 %v1372
        %2007 = vmatprep.subr.mxu0 0.0
        %2008 = vmatpush1.msra.mxu0 %v1377
        %2009 = vmatprep.subr.mxu0 0.0
        %2010 = vmatpush1.msra.mxu0 %v1382
        %2011 = vmatprep.subr.mxu0 0.0
        %2012 = vmatpush1.msra.mxu0 %v1387
        %2013 = vmatprep.subr.mxu0 0.0
        %2014 = vmatpush1.msra.mxu0 %v1392
        %2015 = vmatprep.subr.mxu0 0.0
        %2016 = vmatpush1.msra.mxu0 %v1397
        %2017 = vmatprep.subr.mxu0 0.0
        %2018 = vmatpush1.msra.mxu0 %v1402
        %2019 = vmatprep.subr.mxu0 0.0
        %2020 = vmatpush1.msra.mxu0 %v1407
        %2021 = vmatprep.subr.mxu0 0.0
        %2022 = vmatpush1.msra.mxu0 %v1412
        %2023 = vmatprep.subr.mxu0 0.0
        %2024 = vmatpush1.msra.mxu0 %v1417
        %2025 = vmatprep.subr.mxu0 0.0
        %2026 = vmatpush1.msra.mxu0 %v1422
        %2027 = vmatprep.subr.mxu0 0.0
        %2028 = vmatpush1.msra.mxu0 %v1427
        %2029 = vmatprep.subr.mxu0 0.0
        %2030 = vmatpush1.msra.mxu0 %v1432
        %2031 = vmatprep.subr.mxu0 0.0
        %2032 = vmatpush1.msra.mxu0 %v1437
        %2033 = vmatprep.subr.mxu0 0.0
        %2034 = vmatpush1.msra.mxu0 %v1442
        %2035 = vmatprep.subr.mxu0 0.0
        %2036 = vmatpush1.msra.mxu0 %v1447
        %2037 = vmatprep.subr.mxu0 0.0
        %2038 = vmatpush1.msra.mxu0 %v1452
        %2039 = vmatprep.subr.mxu0 0.0
        %2040 = vmatpush1.msra.mxu0 %v1457
        %2041 = vmatprep.subr.mxu0 0.0
        %2042 = vmatpush1.msra.mxu0 %v1462
        %2043 = vmatprep.subr.mxu0 0.0
        %2044 = vmatpush1.msra.mxu0 %v1467
        %2045 = vmatprep.subr.mxu0 0.0
        %2046 = vmatpush1.msra.mxu0 %v1472
        %2047 = vmatprep.subr.mxu0 0.0
        %2048 = vmatpush1.msra.mxu0 %v1477
        %2049 = vmatprep.subr.mxu0 0.0
        %2050 = vmatpush1.msra.mxu0 %v1482
        %2051 = vmatprep.subr.mxu0 0.0
        %2052 = vmatpush1.msra.mxu0 %v1487
        %2053 = vmatprep.subr.mxu0 0.0
        %2054 = vmatpush1.msra.mxu0 %v1492
        %2055 = vmatprep.subr.mxu0 0.0
        %2056 = vmatpush1.msra.mxu0 %v1497
        %2057 = vmatprep.mubr.f32.mxu0 %v1833
        %2058 = vmatmul.mubr.f32.gmra.mrb[0].mxu0 %v1832
        %v2059 = vpop.f32.mrb[0].mxu0
        %v2060 = vadd.f32 0.0, %v2059
        %v2061 = vpop.f32.mrb[0].mxu0
        %2062 = vmatprep.mubr.f32.mxu0 %v1840
        %2063 = vmatmul.mubr.f32.gmra.mrb[0].mxu0 %v1839
        %v2064 = vpop.f32.mrb[0].mxu0
        %v2065 = vadd.f32 0.0, %v2064
        %v2066 = vpop.f32.mrb[0].mxu0
        %2067 = vmatprep.mubr.f32.mxu0 %v1847
        %2068 = vmatmul.mubr.f32.gmra.mrb[0].mxu0 %v1846
        %v2069 = vpop.f32.mrb[0].mxu0
        %v2070 = vadd.f32 0.0, %v2069
        %v2071 = vpop.f32.mrb[0].mxu0
        %2072 = vmatprep.mubr.f32.mxu0 %v1854
        %2073 = vmatmul.mubr.f32.gmra.mrb[0].mxu0 %v1853
        %v2074 = vpop.f32.mrb[0].mxu0
        %v2075 = vadd.f32 0.0, %v2074
        %v2076 = vpop.f32.mrb[0].mxu0
        %2077 = vmatprep.mubr.f32.mxu0 %v1861
        %2078 = vmatmul.mubr.f32.gmra.mrb[0].mxu0 %v1860
        %v2079 = vpop.f32.mrb[0].mxu0
        %v2080 = vadd.f32 0.0, %v2079
        %v2081 = vpop.f32.mrb[0].mxu0
        %2082 = vmatprep.mubr.f32.mxu0 %v1868
        %2083 = vmatmul.mubr.f32.gmra.mrb[0].mxu0 %v1867
        %v2084 = vpop.f32.mrb[0].mxu0
        %v2085 = vadd.f32 0.0, %v2084
        %v2086 = vpop.f32.mrb[0].mxu0
        %2087 = vmatprep.mubr.f32.mxu0 %v1875
        %2088 = vmatmul.mubr.f32.gmra.mrb[0].mxu0 %v1874
        %v2089 = vpop.f32.mrb[0].mxu0
        %v2090 = vadd.f32 0.0, %v2089
        %v2091 = vpop.f32.mrb[0].mxu0
        %2092 = vmatprep.mubr.f32.mxu0 %v1882
        %2093 = vmatmul.mubr.f32.gmra.mrb[0].mxu0 %v1881
        %v2094 = vpop.f32.mrb[0].mxu0
        %v2095 = vadd.f32 0.0, %v2094
        %v2096 = vpop.f32.mrb[0].mxu0
        %2097 = vmatprep.mubr.f32.mxu0 %v1889
        %2098 = vmatmul.mubr.f32.gmra.mrb[0].mxu0 %v1888
        %v2099 = vpop.f32.mrb[0].mxu0
        %v2100 = vadd.f32 0.0, %v2099
        %v2101 = vpop.f32.mrb[0].mxu0
        %2102 = vmatprep.mubr.f32.mxu0 %v1896
        %2103 = vmatmul.mubr.f32.gmra.mrb[0].mxu0 %v1895
        %v2104 = vpop.f32.mrb[0].mxu0
        %v2105 = vadd.f32 0.0, %v2104
        %v2106 = vpop.f32.mrb[0].mxu0
        %2107 = vmatprep.mubr.f32.mxu0 %v1903
        %2108 = vmatmul.mubr.f32.gmra.mrb[0].mxu0 %v1902
        %v2109 = vpop.f32.mrb[0].mxu0
        %v2110 = vadd.f32 0.0, %v2109
        %v2111 = vpop.f32.mrb[0].mxu0
        %2112 = vmatprep.mubr.f32.mxu0 %v1910
        %2113 = vmatmul.mubr.f32.gmra.mrb[0].mxu0 %v1909
        %v2114 = vpop.f32.mrb[0].mxu0
        %v2115 = vadd.f32 0.0, %v2114
        %v2116 = vpop.f32.mrb[0].mxu0
        %2117 = vmatprep.mubr.f32.mxu0 %v1917
        %2118 = vmatmul.mubr.f32.gmra.mrb[0].mxu0 %v1916
        %v2119 = vpop.f32.mrb[0].mxu0
        %v2120 = vadd.f32 0.0, %v2119
        %v2121 = vpop.f32.mrb[0].mxu0
        %2122 = vmatprep.mubr.f32.mxu0 %v1924
        %2123 = vmatmul.mubr.f32.gmra.mrb[0].mxu0 %v1923
        %v2124 = vpop.f32.mrb[0].mxu0
        %v2125 = vadd.f32 0.0, %v2124
        %v2126 = vpop.f32.mrb[0].mxu0
        %2127 = vmatprep.mubr.f32.mxu0 %v1931
        %2128 = vmatmul.mubr.f32.gmra.mrb[0].mxu0 %v1930
        %v2129 = vpop.f32.mrb[0].mxu0
        %v2130 = vadd.f32 0.0, %v2129
        %v2131 = vpop.f32.mrb[0].mxu0
        %2132 = vmatprep.mubr.f32.mxu0 %v1938
        %2133 = vmatmul.mubr.f32.gmra.mrb[0].mxu0 %v1937
        %v2134 = vpop.f32.mrb[0].mxu0
        %v2135 = vadd.f32 0.0, %v2134
        %v2136 = vpop.f32.mrb[0].mxu0
        %2137 = vdwg.mxu0
        %2138 = vmatprep.subr.mxu0 0.0
        %2139 = vmatpush1.msra.mxu0 %v1502
        %2140 = vmatprep.subr.mxu0 0.0
        %2141 = vmatpush1.msra.mxu0 %v1507
        %2142 = vmatprep.subr.mxu0 0.0
        %2143 = vmatpush1.msra.mxu0 %v1512
        %2144 = vmatprep.subr.mxu0 0.0
        %2145 = vmatpush1.msra.mxu0 %v1517
        %2146 = vmatprep.subr.mxu0 0.0
        %2147 = vmatpush1.msra.mxu0 %v1522
        %2148 = vmatprep.subr.mxu0 0.0
        %2149 = vmatpush1.msra.mxu0 %v1527
        %2150 = vmatprep.subr.mxu0 0.0
        %2151 = vmatpush1.msra.mxu0 %v1532
        %2152 = vmatprep.subr.mxu0 0.0
        %2153 = vmatpush1.msra.mxu0 %v1537
        %2154 = vmatprep.subr.mxu0 0.0
        %2155 = vmatpush1.msra.mxu0 %v1542
        %2156 = vmatprep.subr.mxu0 0.0
        %2157 = vmatpush1.msra.mxu0 %v1547
        %2158 = vmatprep.subr.mxu0 0.0
        %2159 = vmatpush1.msra.mxu0 %v1552
        %2160 = vmatprep.subr.mxu0 0.0
        %2161 = vmatpush1.msra.mxu0 %v1557
        %2162 = vmatprep.subr.mxu0 0.0
        %2163 = vmatpush1.msra.mxu0 %v1562
        %2164 = vmatprep.subr.mxu0 0.0
        %2165 = vmatpush1.msra.mxu0 %v1567
        %2166 = vmatprep.subr.mxu0 0.0
        %2167 = vmatpush1.msra.mxu0 %v1572
        %2168 = vmatprep.subr.mxu0 0.0
        %2169 = vmatpush1.msra.mxu0 %v1577
        %2170 = vmatprep.subr.mxu0 0.0
        %2171 = vmatpush1.msra.mxu0 %v1582
        %2172 = vmatprep.subr.mxu0 0.0
        %2173 = vmatpush1.msra.mxu0 %v1587
        %2174 = vmatprep.subr.mxu0 0.0
        %2175 = vmatpush1.msra.mxu0 %v1592
        %2176 = vmatprep.subr.mxu0 0.0
        %2177 = vmatpush1.msra.mxu0 %v1597
        %2178 = vmatprep.subr.mxu0 0.0
        %2179 = vmatpush1.msra.mxu0 %v1602
        %2180 = vmatprep.subr.mxu0 0.0
        %2181 = vmatpush1.msra.mxu0 %v1607
        %2182 = vmatprep.subr.mxu0 0.0
        %2183 = vmatpush1.msra.mxu0 %v1612
        %2184 = vmatprep.subr.mxu0 0.0
        %2185 = vmatpush1.msra.mxu0 %v1617
        %2186 = vmatprep.subr.mxu0 0.0
        %2187 = vmatpush1.msra.mxu0 %v1622
        %2188 = vmatprep.subr.mxu0 0.0
        %2189 = vmatpush1.msra.mxu0 %v1627
        %2190 = vmatprep.subr.mxu0 0.0
        %2191 = vmatpush1.msra.mxu0 %v1632
        %2192 = vmatprep.subr.mxu0 0.0
        %2193 = vmatpush1.msra.mxu0 %v1637
        %2194 = vmatprep.subr.mxu0 0.0
        %2195 = vmatpush1.msra.mxu0 %v1642
        %2196 = vmatprep.subr.mxu0 0.0
        %2197 = vmatpush1.msra.mxu0 %v1647
        %2198 = vmatprep.subr.mxu0 0.0
        %2199 = vmatpush1.msra.mxu0 %v1652
        %2200 = vmatprep.subr.mxu0 0.0
        %2201 = vmatpush1.msra.mxu0 %v1657
        %2202 = vmatprep.mubr.f32.mxu0 %v1835
        %2203 = vmatmul.mubr.f32.gmra.mrb[0].mxu0 %v1834
        %v2204 = vpop.f32.mrb[0].mxu0
        %v2205 = vadd.f32 %v2060, %v2204
        %v2206 = vpop.f32.mrb[0].mxu0
        %2207 = vmatprep.mubr.f32.mxu0 %v1842
        %2208 = vmatmul.mubr.f32.gmra.mrb[0].mxu0 %v1841
        %v2209 = vpop.f32.mrb[0].mxu0
        %v2210 = vadd.f32 %v2065, %v2209
        %v2211 = vpop.f32.mrb[0].mxu0
        %2212 = vmatprep.mubr.f32.mxu0 %v1849
        %2213 = vmatmul.mubr.f32.gmra.mrb[0].mxu0 %v1848
        %v2214 = vpop.f32.mrb[0].mxu0
        %v2215 = vadd.f32 %v2070, %v2214
        %v2216 = vpop.f32.mrb[0].mxu0
        %2217 = vmatprep.mubr.f32.mxu0 %v1856
        %2218 = vmatmul.mubr.f32.gmra.mrb[0].mxu0 %v1855
        %v2219 = vpop.f32.mrb[0].mxu0
        %v2220 = vadd.f32 %v2075, %v2219
        %v2221 = vpop.f32.mrb[0].mxu0
        %2222 = vmatprep.mubr.f32.mxu0 %v1863
        %2223 = vmatmul.mubr.f32.gmra.mrb[0].mxu0 %v1862
        %v2224 = vpop.f32.mrb[0].mxu0
        %v2225 = vadd.f32 %v2080, %v2224
        %v2226 = vpop.f32.mrb[0].mxu0
        %2227 = vmatprep.mubr.f32.mxu0 %v1870
        %2228 = vmatmul.mubr.f32.gmra.mrb[0].mxu0 %v1869
        %v2229 = vpop.f32.mrb[0].mxu0
        %v2230 = vadd.f32 %v2085, %v2229
        %v2231 = vpop.f32.mrb[0].mxu0
        %2232 = vmatprep.mubr.f32.mxu0 %v1877
        %2233 = vmatmul.mubr.f32.gmra.mrb[0].mxu0 %v1876
        %v2234 = vpop.f32.mrb[0].mxu0
        %v2235 = vadd.f32 %v2090, %v2234
        %v2236 = vpop.f32.mrb[0].mxu0
        %2237 = vmatprep.mubr.f32.mxu0 %v1884
        %2238 = vmatmul.mubr.f32.gmra.mrb[0].mxu0 %v1883
        %v2239 = vpop.f32.mrb[0].mxu0
        %v2240 = vadd.f32 %v2095, %v2239
        %v2241 = vpop.f32.mrb[0].mxu0
        %2242 = vmatprep.mubr.f32.mxu0 %v1891
        %2243 = vmatmul.mubr.f32.gmra.mrb[0].mxu0 %v1890
        %v2244 = vpop.f32.mrb[0].mxu0
        %v2245 = vadd.f32 %v2100, %v2244
        %v2246 = vpop.f32.mrb[0].mxu0
        %2247 = vmatprep.mubr.f32.mxu0 %v1898
        %2248 = vmatmul.mubr.f32.gmra.mrb[0].mxu0 %v1897
        %v2249 = vpop.f32.mrb[0].mxu0
        %v2250 = vadd.f32 %v2105, %v2249
        %v2251 = vpop.f32.mrb[0].mxu0
        %2252 = vmatprep.mubr.f32.mxu0 %v1905
        %2253 = vmatmul.mubr.f32.gmra.mrb[0].mxu0 %v1904
        %v2254 = vpop.f32.mrb[0].mxu0
        %v2255 = vadd.f32 %v2110, %v2254
        %v2256 = vpop.f32.mrb[0].mxu0
        %2257 = vmatprep.mubr.f32.mxu0 %v1912
        %2258 = vmatmul.mubr.f32.gmra.mrb[0].mxu0 %v1911
        %v2259 = vpop.f32.mrb[0].mxu0
        %v2260 = vadd.f32 %v2115, %v2259
        %v2261 = vpop.f32.mrb[0].mxu0
        %2262 = vmatprep.mubr.f32.mxu0 %v1919
        %2263 = vmatmul.mubr.f32.gmra.mrb[0].mxu0 %v1918
        %v2264 = vpop.f32.mrb[0].mxu0
        %v2265 = vadd.f32 %v2120, %v2264
        %v2266 = vpop.f32.mrb[0].mxu0
        %2267 = vmatprep.mubr.f32.mxu0 %v1926
        %2268 = vmatmul.mubr.f32.gmra.mrb[0].mxu0 %v1925
        %v2269 = vpop.f32.mrb[0].mxu0
        %v2270 = vadd.f32 %v2125, %v2269
        %v2271 = vpop.f32.mrb[0].mxu0
        %2272 = vmatprep.mubr.f32.mxu0 %v1933
        %2273 = vmatmul.mubr.f32.gmra.mrb[0].mxu0 %v1932
        %v2274 = vpop.f32.mrb[0].mxu0
        %v2275 = vadd.f32 %v2130, %v2274
        %v2276 = vpop.f32.mrb[0].mxu0
        %2277 = vmatprep.mubr.f32.mxu0 %v1940
        %2278 = vmatmul.mubr.f32.gmra.mrb[0].mxu0 %v1939
        %v2279 = vpop.f32.mrb[0].mxu0
        %v2280 = vadd.f32 %v2135, %v2279
        %v2281 = vpop.f32.mrb[0].mxu0
        %2282 = vdwg.mxu0
        %2283 = vmatprep.subr.mxu0 0.0
        %2284 = vmatpush1.msra.mxu0 %v1662
        %2285 = vmatprep.subr.mxu0 0.0
        %2286 = vmatpush1.msra.mxu0 %v1667
        %2287 = vmatprep.subr.mxu0 0.0
        %2288 = vmatpush1.msra.mxu0 %v1672
        %2289 = vmatprep.subr.mxu0 0.0
        %2290 = vmatpush1.msra.mxu0 %v1677
        %2291 = vmatprep.subr.mxu0 0.0
        %2292 = vmatpush1.msra.mxu0 %v1682
        %2293 = vmatprep.subr.mxu0 0.0
        %2294 = vmatpush1.msra.mxu0 %v1687
        %2295 = vmatprep.subr.mxu0 0.0
        %2296 = vmatpush1.msra.mxu0 %v1692
        %2297 = vmatprep.subr.mxu0 0.0
        %2298 = vmatpush1.msra.mxu0 %v1697
        %2299 = vmatprep.subr.mxu0 0.0
        %2300 = vmatpush1.msra.mxu0 %v1702
        %2301 = vmatprep.subr.mxu0 0.0
        %2302 = vmatpush1.msra.mxu0 %v1707
        %2303 = vmatprep.subr.mxu0 0.0
        %2304 = vmatpush1.msra.mxu0 %v1712
        %2305 = vmatprep.subr.mxu0 0.0
        %2306 = vmatpush1.msra.mxu0 %v1717
        %2307 = vmatprep.subr.mxu0 0.0
        %2308 = vmatpush1.msra.mxu0 %v1722
        %2309 = vmatprep.subr.mxu0 0.0
        %2310 = vmatpush1.msra.mxu0 %v1727
        %2311 = vmatprep.subr.mxu0 0.0
        %2312 = vmatpush1.msra.mxu0 %v1732
        %2313 = vmatprep.subr.mxu0 0.0
        %2314 = vmatpush1.msra.mxu0 %v1737
        %2315 = vmatprep.subr.mxu0 0.0
        %2316 = vmatpush1.msra.mxu0 %v1742
        %2317 = vmatprep.subr.mxu0 0.0
        %2318 = vmatpush1.msra.mxu0 %v1747
        %2319 = vmatprep.subr.mxu0 0.0
        %2320 = vmatpush1.msra.mxu0 %v1752
        %2321 = vmatprep.subr.mxu0 0.0
        %2322 = vmatpush1.msra.mxu0 %v1757
        %2323 = vmatprep.subr.mxu0 0.0
        %2324 = vmatpush1.msra.mxu0 %v1762
        %2325 = vmatprep.subr.mxu0 0.0
        %2326 = vmatpush1.msra.mxu0 %v1767
        %2327 = vmatprep.subr.mxu0 0.0
        %2328 = vmatpush1.msra.mxu0 %v1772
        %2329 = vmatprep.subr.mxu0 0.0
        %2330 = vmatpush1.msra.mxu0 %v1777
        %2331 = vmatprep.subr.mxu0 0.0
        %2332 = vmatpush1.msra.mxu0 %v1782
        %2333 = vmatprep.subr.mxu0 0.0
        %2334 = vmatpush1.msra.mxu0 %v1787
        %2335 = vmatprep.subr.mxu0 0.0
        %2336 = vmatpush1.msra.mxu0 %v1792
        %2337 = vmatprep.subr.mxu0 0.0
        %2338 = vmatpush1.msra.mxu0 %v1797
        %2339 = vmatprep.subr.mxu0 0.0
        %2340 = vmatpush1.msra.mxu0 %v1802
        %2341 = vmatprep.subr.mxu0 0.0
        %2342 = vmatpush1.msra.mxu0 %v1807
        %2343 = vmatprep.subr.mxu0 0.0
        %2344 = vmatpush1.msra.mxu0 %v1812
        %2345 = vmatprep.subr.mxu0 0.0
        %2346 = vmatpush1.msra.mxu0 %v1817
        %2347 = vmatprep.mubr.f32.mxu0 %v1837
        %2348 = vmatmul.mubr.f32.gmra.mrb[0].mxu0 %v1836
        %v2349 = vpop.f32.mrb[0].mxu0
        %v2350 = vadd.f32 %v2205, %v2349
        %v2351 = vpop.f32.mrb[0].mxu0
        %2352 = vmatprep.mubr.f32.mxu0 %v1844
        %2353 = vmatmul.mubr.f32.gmra.mrb[0].mxu0 %v1843
        %v2354 = vpop.f32.mrb[0].mxu0
        %v2355 = vadd.f32 %v2210, %v2354
        %v2356 = vpop.f32.mrb[0].mxu0
        %2357 = vmatprep.mubr.f32.mxu0 %v1851
        %2358 = vmatmul.mubr.f32.gmra.mrb[0].mxu0 %v1850
        %v2359 = vpop.f32.mrb[0].mxu0
        %v2360 = vadd.f32 %v2215, %v2359
        %v2361 = vpop.f32.mrb[0].mxu0
        %2362 = vmatprep.mubr.f32.mxu0 %v1858
        %2363 = vmatmul.mubr.f32.gmra.mrb[0].mxu0 %v1857
        %v2364 = vpop.f32.mrb[0].mxu0
        %v2365 = vadd.f32 %v2220, %v2364
        %v2366 = vpop.f32.mrb[0].mxu0
        %2367 = vmatprep.mubr.f32.mxu0 %v1865
        %2368 = vmatmul.mubr.f32.gmra.mrb[0].mxu0 %v1864
        %v2369 = vpop.f32.mrb[0].mxu0
        %v2370 = vadd.f32 %v2225, %v2369
        %v2371 = vpop.f32.mrb[0].mxu0
        %2372 = vmatprep.mubr.f32.mxu0 %v1872
        %2373 = vmatmul.mubr.f32.gmra.mrb[0].mxu0 %v1871
        %v2374 = vpop.f32.mrb[0].mxu0
        %v2375 = vadd.f32 %v2230, %v2374
        %v2376 = vpop.f32.mrb[0].mxu0
        %2377 = vmatprep.mubr.f32.mxu0 %v1879
        %2378 = vmatmul.mubr.f32.gmra.mrb[0].mxu0 %v1878
        %v2379 = vpop.f32.mrb[0].mxu0
        %v2380 = vadd.f32 %v2235, %v2379
        %v2381 = vpop.f32.mrb[0].mxu0
        %2382 = vmatprep.mubr.f32.mxu0 %v1886
        %2383 = vmatmul.mubr.f32.gmra.mrb[0].mxu0 %v1885
        %v2384 = vpop.f32.mrb[0].mxu0
        %v2385 = vadd.f32 %v2240, %v2384
        %v2386 = vpop.f32.mrb[0].mxu0
        %2387 = vmatprep.mubr.f32.mxu0 %v1893
        %2388 = vmatmul.mubr.f32.gmra.mrb[0].mxu0 %v1892
        %v2389 = vpop.f32.mrb[0].mxu0
        %v2390 = vadd.f32 %v2245, %v2389
        %v2391 = vpop.f32.mrb[0].mxu0
        %2392 = vmatprep.mubr.f32.mxu0 %v1900
        %2393 = vmatmul.mubr.f32.gmra.mrb[0].mxu0 %v1899
        %v2394 = vpop.f32.mrb[0].mxu0
        %v2395 = vadd.f32 %v2250, %v2394
        %v2396 = vpop.f32.mrb[0].mxu0
        %2397 = vmatprep.mubr.f32.mxu0 %v1907
        %2398 = vmatmul.mubr.f32.gmra.mrb[0].mxu0 %v1906
        %v2399 = vpop.f32.mrb[0].mxu0
        %v2400 = vadd.f32 %v2255, %v2399
        %v2401 = vpop.f32.mrb[0].mxu0
        %2402 = vmatprep.mubr.f32.mxu0 %v1914
        %2403 = vmatmul.mubr.f32.gmra.mrb[0].mxu0 %v1913
        %v2404 = vpop.f32.mrb[0].mxu0
        %v2405 = vadd.f32 %v2260, %v2404
        %v2406 = vpop.f32.mrb[0].mxu0
        %2407 = vmatprep.mubr.f32.mxu0 %v1921
        %2408 = vmatmul.mubr.f32.gmra.mrb[0].mxu0 %v1920
        %v2409 = vpop.f32.mrb[0].mxu0
        %v2410 = vadd.f32 %v2265, %v2409
        %v2411 = vpop.f32.mrb[0].mxu0
        %2412 = vmatprep.mubr.f32.mxu0 %v1928
        %2413 = vmatmul.mubr.f32.gmra.mrb[0].mxu0 %v1927
        %v2414 = vpop.f32.mrb[0].mxu0
        %v2415 = vadd.f32 %v2270, %v2414
        %v2416 = vpop.f32.mrb[0].mxu0
        %2417 = vmatprep.mubr.f32.mxu0 %v1935
        %2418 = vmatmul.mubr.f32.gmra.mrb[0].mxu0 %v1934
        %v2419 = vpop.f32.mrb[0].mxu0
        %v2420 = vadd.f32 %v2275, %v2419
        %v2421 = vpop.f32.mrb[0].mxu0
        %2422 = vmatprep.mubr.f32.mxu0 %v1942
        %2423 = vmatmul.mubr.f32.gmra.mrb[0].mxu0 %v1941
        %v2424 = vpop.f32.mrb[0].mxu0
        %v2425 = vadd.f32 %v2280, %v2424
        %v2426 = vpop.f32.mrb[0].mxu0
        %2427 = vdwg.mxu0
        %2428 = vmatprep.subr.mxu0 0.0
        %2429 = vmatpush1.msra.mxu0 %v1825
        %2430 = vmatprep.subr.mxu0 0.0
        %2431 = vmatpush1.msra.mxu0 %v1830
        %2432 = vmatprep.subr.mxu0 0.0
        %2433 = vmatpush1.msra.mxu0 0.0
        %2434 = vmatprep.subr.mxu0 0.0
        %2435 = vmatpush1.msra.mxu0 0.0
        %2436 = vmatprep.subr.mxu0 0.0
        %2437 = vmatpush1.msra.mxu0 0.0
        %2438 = vmatprep.subr.mxu0 0.0
        %2439 = vmatpush1.msra.mxu0 0.0
        %2440 = vmatprep.subr.mxu0 0.0
        %2441 = vmatpush1.msra.mxu0 0.0
        %2442 = vmatprep.subr.mxu0 0.0
        %2443 = vmatpush1.msra.mxu0 0.0
        %2444 = vmatprep.subr.mxu0 0.0
        %2445 = vmatpush1.msra.mxu0 0.0
        %2446 = vmatprep.subr.mxu0 0.0
        %2447 = vmatpush1.msra.mxu0 0.0
        %2448 = vmatprep.subr.mxu0 0.0
        %2449 = vmatpush1.msra.mxu0 0.0
        %2450 = vmatprep.subr.mxu0 0.0
        %2451 = vmatpush1.msra.mxu0 0.0
        %2452 = vmatprep.subr.mxu0 0.0
        %2453 = vmatpush1.msra.mxu0 0.0
        %2454 = vmatprep.subr.mxu0 0.0
        %2455 = vmatpush1.msra.mxu0 0.0
        %2456 = vmatprep.subr.mxu0 0.0
        %2457 = vmatpush1.msra.mxu0 0.0
        %2458 = vmatprep.subr.mxu0 0.0
        %2459 = vmatpush1.msra.mxu0 0.0
        %2460 = vmatprep.subr.mxu0 0.0
        %2461 = vmatpush1.msra.mxu0 0.0
        %2462 = vmatprep.subr.mxu0 0.0
        %2463 = vmatpush1.msra.mxu0 0.0
        %2464 = vmatprep.subr.mxu0 0.0
        %2465 = vmatpush1.msra.mxu0 0.0
        %2466 = vmatprep.subr.mxu0 0.0
        %2467 = vmatpush1.msra.mxu0 0.0
        %2468 = vmatprep.subr.mxu0 0.0
        %2469 = vmatpush1.msra.mxu0 0.0
        %2470 = vmatprep.subr.mxu0 0.0
        %2471 = vmatpush1.msra.mxu0 0.0
        %2472 = vmatprep.subr.mxu0 0.0
        %2473 = vmatpush1.msra.mxu0 0.0
        %2474 = vmatprep.subr.mxu0 0.0
        %2475 = vmatpush1.msra.mxu0 0.0
        %2476 = vmatprep.subr.mxu0 0.0
        %2477 = vmatpush1.msra.mxu0 0.0
        %2478 = vmatprep.subr.mxu0 0.0
        %2479 = vmatpush1.msra.mxu0 0.0
        %2480 = vmatprep.subr.mxu0 0.0
        %2481 = vmatpush1.msra.mxu0 0.0
        %2482 = vmatprep.subr.mxu0 0.0
        %2483 = vmatpush1.msra.mxu0 0.0
        %2484 = vmatprep.subr.mxu0 0.0
        %2485 = vmatpush1.msra.mxu0 0.0
        %2486 = vmatprep.subr.mxu0 0.0
        %2487 = vmatpush1.msra.mxu0 0.0
        %2488 = vmatprep.subr.mxu0 0.0
        %2489 = vmatpush1.msra.mxu0 0.0
        %2490 = vmatprep.subr.mxu0 0.0
        %2491 = vmatpush1.msra.mxu0 0.0
        %2492 = vmatprep.mubr.f32.mxu0 0.0
        %2493 = vmatmul.mubr.f32.gmra.mrb[0].mxu0 %v1946
        %v2494 = vpop.f32.mrb[0].mxu0
        %v2495 = vadd.f32 %v2350, %v2494
        %v2496 = vpop.f32.mrb[0].mxu0
        %2497 = vmatprep.mubr.f32.mxu0 0.0
        %2498 = vmatmul.mubr.f32.gmra.mrb[0].mxu0 %v1949
        %v2499 = vpop.f32.mrb[0].mxu0
        %v2500 = vadd.f32 %v2355, %v2499
        %v2501 = vpop.f32.mrb[0].mxu0
        %2502 = vmatprep.mubr.f32.mxu0 0.0
        %2503 = vmatmul.mubr.f32.gmra.mrb[0].mxu0 %v1952
        %v2504 = vpop.f32.mrb[0].mxu0
        %v2505 = vadd.f32 %v2360, %v2504
        %v2506 = vpop.f32.mrb[0].mxu0
        %2507 = vmatprep.mubr.f32.mxu0 0.0
        %2508 = vmatmul.mubr.f32.gmra.mrb[0].mxu0 %v1955
        %v2509 = vpop.f32.mrb[0].mxu0
        %v2510 = vadd.f32 %v2365, %v2509
        %v2511 = vpop.f32.mrb[0].mxu0
        %2512 = vmatprep.mubr.f32.mxu0 0.0
        %2513 = vmatmul.mubr.f32.gmra.mrb[0].mxu0 %v1958
        %v2514 = vpop.f32.mrb[0].mxu0
        %v2515 = vadd.f32 %v2370, %v2514
        %v2516 = vpop.f32.mrb[0].mxu0
        %2517 = vmatprep.mubr.f32.mxu0 0.0
        %2518 = vmatmul.mubr.f32.gmra.mrb[0].mxu0 %v1961
        %v2519 = vpop.f32.mrb[0].mxu0
        %v2520 = vadd.f32 %v2375, %v2519
        %v2521 = vpop.f32.mrb[0].mxu0
        %2522 = vmatprep.mubr.f32.mxu0 0.0
        %2523 = vmatmul.mubr.f32.gmra.mrb[0].mxu0 %v1964
        %v2524 = vpop.f32.mrb[0].mxu0
        %v2525 = vadd.f32 %v2380, %v2524
        %v2526 = vpop.f32.mrb[0].mxu0
        %2527 = vmatprep.mubr.f32.mxu0 0.0
        %2528 = vmatmul.mubr.f32.gmra.mrb[0].mxu0 %v1967
        %v2529 = vpop.f32.mrb[0].mxu0
        %v2530 = vadd.f32 %v2385, %v2529
        %v2531 = vpop.f32.mrb[0].mxu0
        %2532 = vmatprep.mubr.f32.mxu0 0.0
        %2533 = vmatmul.mubr.f32.gmra.mrb[0].mxu0 %v1970
        %v2534 = vpop.f32.mrb[0].mxu0
        %v2535 = vadd.f32 %v2390, %v2534
        %v2536 = vpop.f32.mrb[0].mxu0
        %2537 = vmatprep.mubr.f32.mxu0 0.0
        %2538 = vmatmul.mubr.f32.gmra.mrb[0].mxu0 %v1973
        %v2539 = vpop.f32.mrb[0].mxu0
        %v2540 = vadd.f32 %v2395, %v2539
        %v2541 = vpop.f32.mrb[0].mxu0
        %2542 = vmatprep.mubr.f32.mxu0 0.0
        %2543 = vmatmul.mubr.f32.gmra.mrb[0].mxu0 %v1976
        %v2544 = vpop.f32.mrb[0].mxu0
        %v2545 = vadd.f32 %v2400, %v2544
        %v2546 = vpop.f32.mrb[0].mxu0
        %2547 = vmatprep.mubr.f32.mxu0 0.0
        %2548 = vmatmul.mubr.f32.gmra.mrb[0].mxu0 %v1979
        %v2549 = vpop.f32.mrb[0].mxu0
        %v2550 = vadd.f32 %v2405, %v2549
        %v2551 = vpop.f32.mrb[0].mxu0
        %2552 = vmatprep.mubr.f32.mxu0 0.0
        %2553 = vmatmul.mubr.f32.gmra.mrb[0].mxu0 %v1982
        %v2554 = vpop.f32.mrb[0].mxu0
        %v2555 = vadd.f32 %v2410, %v2554
        %v2556 = vpop.f32.mrb[0].mxu0
        %2557 = vmatprep.mubr.f32.mxu0 0.0
        %2558 = vmatmul.mubr.f32.gmra.mrb[0].mxu0 %v1985
        %v2559 = vpop.f32.mrb[0].mxu0
        %v2560 = vadd.f32 %v2415, %v2559
        %v2561 = vpop.f32.mrb[0].mxu0
        %2562 = vmatprep.mubr.f32.mxu0 0.0
        %2563 = vmatmul.mubr.f32.gmra.mrb[0].mxu0 %v1988
        %v2564 = vpop.f32.mrb[0].mxu0
        %v2565 = vadd.f32 %v2420, %v2564
        %v2566 = vpop.f32.mrb[0].mxu0
        %2567 = vmatprep.mubr.f32.mxu0 0.0
        %2568 = vmatmul.mubr.f32.gmra.mrb[0].mxu0 %v1991
        %v2569 = vpop.f32.mrb[0].mxu0
        %v2570 = vadd.f32 %v2425, %v2569
        %v2571 = vpop.f32.mrb[0].mxu0
        %2572 = vdwg.mxu0
        %v2573 = vlaneseq
        %v2574 = vand.u32 %v2573, 127
        %v2575 = vadd.s32 %v2574, 128
        %v2576 = vadd.s32 %v2574, 256
        %v2577 = vadd.s32 %v2574, 384
        %v2578 = vadd.s32 %v2574, 512
        %v2579 = vadd.s32 %v2574, 640
        %v2580 = vlaneseq
        %v2581 = vshrl.u32 %v2580, 7
        %v2582 = vmul.u32 %v2581, 384
        %vm2583 = vcmp.ge.s32.totalorder %v2574, %v2582
        %vm2584 = vcmp.ge.s32.totalorder %v2575, %v2582
        %vm2585 = vcmp.ge.s32.totalorder %v2576, %v2582
        %vm2586 = vcmp.ge.s32.totalorder %v2577, %v2582
        %vm2587 = vcmp.ge.s32.totalorder %v2578, %v2582
        %vm2588 = vcmp.ge.s32.totalorder %v2579, %v2582
        %v2589 = vadd.s32 %v2581, 1
        %v2590 = vmul.u32 %v2589, 384
        %vm2591 = vcmp.lt.s32.totalorder %v2574, %v2590
        %vm2592 = vcmp.lt.s32.totalorder %v2575, %v2590
        %vm2593 = vcmp.lt.s32.totalorder %v2576, %v2590
        %vm2594 = vcmp.lt.s32.totalorder %v2577, %v2590
        %vm2595 = vcmp.lt.s32.totalorder %v2578, %v2590
        %vm2596 = vcmp.lt.s32.totalorder %v2579, %v2590
        %vm2597 = vmand %vm2583, %vm2591
        %vm2598 = vmand %vm2584, %vm2592
        %vm2599 = vmand %vm2585, %vm2593
        %vm2600 = vmand %vm2586, %vm2594
        %vm2601 = vmand %vm2587, %vm2595
        %vm2602 = vmand %vm2588, %vm2596
        %v2603 = vsel %vm2597, 1, 0
        %v2604 = vsel %vm2598, 1, 0
        %v2605 = vsel %vm2599, 1, 0
        %v2606 = vsel %vm2600, 1, 0
        %v2607 = vsel %vm2601, 1, 0
        %v2608 = vsel %vm2602, 1, 0
        %v2609 = vcvt.s32.f32 %v2603
        %v2610 = vcvt.s32.f32 %v2604
        %v2611 = vcvt.s32.f32 %v2605
        %v2612 = vcvt.s32.f32 %v2606
        %v2613 = vcvt.s32.f32 %v2607
        %v2614 = vcvt.s32.f32 %v2608
        %vm2615 = vcmask 15360
        %v2617 = vsel %vm2615, %v2495, 0
        %v2620 = vsel %vm2615, %v2500, 0
        %v2623 = vsel %vm2615, %v2505, 0
        %v2626 = vsel %vm2615, %v2510, 0
        %v2629 = vsel %vm2615, %v2515, 0
        %v2632 = vsel %vm2615, %v2520, 0
        %v2635 = vsel %vm2615, %v2525, 0
        %v2638 = vsel %vm2615, %v2530, 0
        %v2641 = vsel %vm2615, %v2535, 0
        %v2644 = vsel %vm2615, %v2540, 0
        %v2647 = vsel %vm2615, %v2545, 0
        %v2650 = vsel %vm2615, %v2550, 0
        %v2653 = vsel %vm2615, %v2555, 0
        %v2656 = vsel %vm2615, %v2560, 0
        %v2659 = vsel %vm2615, %v2565, 0
        %v2662 = vsel %vm2615, %v2570, 0
        %vm2664 = vcmask 1041408
        %v2666 = vsel %vm2664, %v2609, 0
        %v2669 = vsel %vm2664, %v2610, 0
        %v2672 = vsel %vm2664, %v2611, 0
        %v2675 = vsel %vm2664, %v2612, 0
        %v2678 = vsel %vm2664, %v2613, 0
        %v2681 = vsel %vm2664, %v2614, 0
        %2683 = vmatprep.subr.mxu0 %v2669
        %2684 = vmatpush1.msra.mxu0 %v2666
        %2685 = vmatprep.subr.mxu0 0.0
        %2686 = vmatpush1.msra.mxu0 0.0
        %2687 = vmatprep.subr.mxu0 0.0
        %2688 = vmatpush1.msra.mxu0 0.0
        %2689 = vmatprep.subr.mxu0 0.0
        %2690 = vmatpush1.msra.mxu0 0.0
        %2691 = vmatprep.subr.mxu0 0.0
        %2692 = vmatpush1.msra.mxu0 0.0
        %2693 = vmatprep.subr.mxu0 0.0
        %2694 = vmatpush1.msra.mxu0 0.0
        %2695 = vmatprep.subr.mxu0 0.0
        %2696 = vmatpush1.msra.mxu0 0.0
        %2697 = vmatprep.subr.mxu0 0.0
        %2698 = vmatpush1.msra.mxu0 0.0
        %2699 = vmatprep.subr.mxu0 0.0
        %2700 = vmatpush1.msra.mxu0 0.0
        %2701 = vmatprep.subr.mxu0 0.0
        %2702 = vmatpush1.msra.mxu0 0.0
        %2703 = vmatprep.subr.mxu0 0.0
        %2704 = vmatpush1.msra.mxu0 0.0
        %2705 = vmatprep.subr.mxu0 0.0
        %2706 = vmatpush1.msra.mxu0 0.0
        %2707 = vmatprep.subr.mxu0 0.0
        %2708 = vmatpush1.msra.mxu0 0.0
        %2709 = vmatprep.subr.mxu0 0.0
        %2710 = vmatpush1.msra.mxu0 0.0
        %2711 = vmatprep.subr.mxu0 0.0
        %2712 = vmatpush1.msra.mxu0 0.0
        %2713 = vmatprep.subr.mxu0 0.0
        %2714 = vmatpush1.msra.mxu0 0.0
        %2715 = vmatprep.subr.mxu0 0.0
        %2716 = vmatpush1.msra.mxu0 0.0
        %2717 = vmatprep.subr.mxu0 0.0
        %2718 = vmatpush1.msra.mxu0 0.0
        %2719 = vmatprep.subr.mxu0 0.0
        %2720 = vmatpush1.msra.mxu0 0.0
        %2721 = vmatprep.subr.mxu0 0.0
        %2722 = vmatpush1.msra.mxu0 0.0
        %2723 = vmatprep.subr.mxu0 0.0
        %2724 = vmatpush1.msra.mxu0 0.0
        %2725 = vmatprep.subr.mxu0 0.0
        %2726 = vmatpush1.msra.mxu0 0.0
        %2727 = vmatprep.subr.mxu0 0.0
        %2728 = vmatpush1.msra.mxu0 0.0
        %2729 = vmatprep.subr.mxu0 0.0
        %2730 = vmatpush1.msra.mxu0 0.0
        %2731 = vmatprep.subr.mxu0 0.0
        %2732 = vmatpush1.msra.mxu0 0.0
        %2733 = vmatprep.subr.mxu0 0.0
        %2734 = vmatpush1.msra.mxu0 0.0
        %2735 = vmatprep.subr.mxu0 0.0
        %2736 = vmatpush1.msra.mxu0 0.0
        %2737 = vmatprep.subr.mxu0 0.0
        %2738 = vmatpush1.msra.mxu0 0.0
        %2739 = vmatprep.subr.mxu0 0.0
        %2740 = vmatpush1.msra.mxu0 0.0
        %2741 = vmatprep.subr.mxu0 0.0
        %2742 = vmatpush1.msra.mxu0 0.0
        %2743 = vmatprep.subr.mxu0 0.0
        %2744 = vmatpush1.msra.mxu0 0.0
        %2745 = vmatprep.subr.mxu0 0.0
        %2746 = vmatpush1.msra.mxu0 0.0
        %2747 = vmatprep.mubr.f32.mxu0 0.0
        %2748 = vmatmul.mubr.f32.gmra.mrb[0].mxu0 %v2617
        %v2749 = vpop.f32.mrb[0].mxu0
        %v2750 = vadd.f32 0.0, %v2749
        %v2751 = vpop.f32.mrb[0].mxu0
        %v2752 = vadd.f32 0.0, %v2751
        %2753 = vmatprep.mubr.f32.mxu0 0.0
        %2754 = vmatmul.mubr.f32.gmra.mrb[0].mxu0 %v2620
        %v2755 = vpop.f32.mrb[0].mxu0
        %v2756 = vadd.f32 0.0, %v2755
        %v2757 = vpop.f32.mrb[0].mxu0
        %v2758 = vadd.f32 0.0, %v2757
        %2759 = vmatprep.mubr.f32.mxu0 0.0
        %2760 = vmatmul.mubr.f32.gmra.mrb[0].mxu0 %v2623
        %v2761 = vpop.f32.mrb[0].mxu0
        %v2762 = vadd.f32 0.0, %v2761
        %v2763 = vpop.f32.mrb[0].mxu0
        %v2764 = vadd.f32 0.0, %v2763
        %2765 = vmatprep.mubr.f32.mxu0 0.0
        %2766 = vmatmul.mubr.f32.gmra.mrb[0].mxu0 %v2626
        %v2767 = vpop.f32.mrb[0].mxu0
        %v2768 = vadd.f32 0.0, %v2767
        %v2769 = vpop.f32.mrb[0].mxu0
        %v2770 = vadd.f32 0.0, %v2769
        %2771 = vmatprep.mubr.f32.mxu0 0.0
        %2772 = vmatmul.mubr.f32.gmra.mrb[0].mxu0 %v2629
        %v2773 = vpop.f32.mrb[0].mxu0
        %v2774 = vadd.f32 0.0, %v2773
        %v2775 = vpop.f32.mrb[0].mxu0
        %v2776 = vadd.f32 0.0, %v2775
        %2777 = vmatprep.mubr.f32.mxu0 0.0
        %2778 = vmatmul.mubr.f32.gmra.mrb[0].mxu0 %v2632
        %v2779 = vpop.f32.mrb[0].mxu0
        %v2780 = vadd.f32 0.0, %v2779
        %v2781 = vpop.f32.mrb[0].mxu0
        %v2782 = vadd.f32 0.0, %v2781
        %2783 = vmatprep.mubr.f32.mxu0 0.0
        %2784 = vmatmul.mubr.f32.gmra.mrb[0].mxu0 %v2635
        %v2785 = vpop.f32.mrb[0].mxu0
        %v2786 = vadd.f32 0.0, %v2785
        %v2787 = vpop.f32.mrb[0].mxu0
        %v2788 = vadd.f32 0.0, %v2787
        %2789 = vmatprep.mubr.f32.mxu0 0.0
        %2790 = vmatmul.mubr.f32.gmra.mrb[0].mxu0 %v2638
        %v2791 = vpop.f32.mrb[0].mxu0
        %v2792 = vadd.f32 0.0, %v2791
        %v2793 = vpop.f32.mrb[0].mxu0
        %v2794 = vadd.f32 0.0, %v2793
        %2795 = vmatprep.mubr.f32.mxu0 0.0
        %2796 = vmatmul.mubr.f32.gmra.mrb[0].mxu0 %v2641
        %v2797 = vpop.f32.mrb[0].mxu0
        %v2798 = vadd.f32 0.0, %v2797
        %v2799 = vpop.f32.mrb[0].mxu0
        %v2800 = vadd.f32 0.0, %v2799
        %2801 = vmatprep.mubr.f32.mxu0 0.0
        %2802 = vmatmul.mubr.f32.gmra.mrb[0].mxu0 %v2644
        %v2803 = vpop.f32.mrb[0].mxu0
        %v2804 = vadd.f32 0.0, %v2803
        %v2805 = vpop.f32.mrb[0].mxu0
        %v2806 = vadd.f32 0.0, %v2805
        %2807 = vmatprep.mubr.f32.mxu0 0.0
        %2808 = vmatmul.mubr.f32.gmra.mrb[0].mxu0 %v2647
        %v2809 = vpop.f32.mrb[0].mxu0
        %v2810 = vadd.f32 0.0, %v2809
        %v2811 = vpop.f32.mrb[0].mxu0
        %v2812 = vadd.f32 0.0, %v2811
        %2813 = vmatprep.mubr.f32.mxu0 0.0
        %2814 = vmatmul.mubr.f32.gmra.mrb[0].mxu0 %v2650
        %v2815 = vpop.f32.mrb[0].mxu0
        %v2816 = vadd.f32 0.0, %v2815
        %v2817 = vpop.f32.mrb[0].mxu0
        %v2818 = vadd.f32 0.0, %v2817
        %2819 = vmatprep.mubr.f32.mxu0 0.0
        %2820 = vmatmul.mubr.f32.gmra.mrb[0].mxu0 %v2653
        %v2821 = vpop.f32.mrb[0].mxu0
        %v2822 = vadd.f32 0.0, %v2821
        %v2823 = vpop.f32.mrb[0].mxu0
        %v2824 = vadd.f32 0.0, %v2823
        %2825 = vmatprep.mubr.f32.mxu0 0.0
        %2826 = vmatmul.mubr.f32.gmra.mrb[0].mxu0 %v2656
        %v2827 = vpop.f32.mrb[0].mxu0
        %v2828 = vadd.f32 0.0, %v2827
        %v2829 = vpop.f32.mrb[0].mxu0
        %v2830 = vadd.f32 0.0, %v2829
        %2831 = vmatprep.mubr.f32.mxu0 0.0
        %2832 = vmatmul.mubr.f32.gmra.mrb[0].mxu0 %v2659
        %v2833 = vpop.f32.mrb[0].mxu0
        %v2834 = vadd.f32 0.0, %v2833
        %v2835 = vpop.f32.mrb[0].mxu0
        %v2836 = vadd.f32 0.0, %v2835
        %2837 = vmatprep.mubr.f32.mxu0 0.0
        %2838 = vmatmul.mubr.f32.gmra.mrb[0].mxu0 %v2662
        %v2839 = vpop.f32.mrb[0].mxu0
        %v2840 = vadd.f32 0.0, %v2839
        %v2841 = vpop.f32.mrb[0].mxu0
        %v2842 = vadd.f32 0.0, %v2841
        %2843 = vdwg.mxu0
        %2844 = vmatprep.subr.mxu0 %v2675
        %2845 = vmatpush1.msra.mxu0 %v2672
        %2846 = vmatprep.subr.mxu0 0.0
        %2847 = vmatpush1.msra.mxu0 0.0
        %2848 = vmatprep.subr.mxu0 0.0
        %2849 = vmatpush1.msra.mxu0 0.0
        %2850 = vmatprep.subr.mxu0 0.0
        %2851 = vmatpush1.msra.mxu0 0.0
        %2852 = vmatprep.subr.mxu0 0.0
        %2853 = vmatpush1.msra.mxu0 0.0
        %2854 = vmatprep.subr.mxu0 0.0
        %2855 = vmatpush1.msra.mxu0 0.0
        %2856 = vmatprep.subr.mxu0 0.0
        %2857 = vmatpush1.msra.mxu0 0.0
        %2858 = vmatprep.subr.mxu0 0.0
        %2859 = vmatpush1.msra.mxu0 0.0
        %2860 = vmatprep.subr.mxu0 0.0
        %2861 = vmatpush1.msra.mxu0 0.0
        %2862 = vmatprep.subr.mxu0 0.0
        %2863 = vmatpush1.msra.mxu0 0.0
        %2864 = vmatprep.subr.mxu0 0.0
        %2865 = vmatpush1.msra.mxu0 0.0
        %2866 = vmatprep.subr.mxu0 0.0
        %2867 = vmatpush1.msra.mxu0 0.0
        %2868 = vmatprep.subr.mxu0 0.0
        %2869 = vmatpush1.msra.mxu0 0.0
        %2870 = vmatprep.subr.mxu0 0.0
        %2871 = vmatpush1.msra.mxu0 0.0
        %2872 = vmatprep.subr.mxu0 0.0
        %2873 = vmatpush1.msra.mxu0 0.0
        %2874 = vmatprep.subr.mxu0 0.0
        %2875 = vmatpush1.msra.mxu0 0.0
        %2876 = vmatprep.subr.mxu0 0.0
        %2877 = vmatpush1.msra.mxu0 0.0
        %2878 = vmatprep.subr.mxu0 0.0
        %2879 = vmatpush1.msra.mxu0 0.0
        %2880 = vmatprep.subr.mxu0 0.0
        %2881 = vmatpush1.msra.mxu0 0.0
        %2882 = vmatprep.subr.mxu0 0.0
        %2883 = vmatpush1.msra.mxu0 0.0
        %2884 = vmatprep.subr.mxu0 0.0
        %2885 = vmatpush1.msra.mxu0 0.0
        %2886 = vmatprep.subr.mxu0 0.0
        %2887 = vmatpush1.msra.mxu0 0.0
        %2888 = vmatprep.subr.mxu0 0.0
        %2889 = vmatpush1.msra.mxu0 0.0
        %2890 = vmatprep.subr.mxu0 0.0
        %2891 = vmatpush1.msra.mxu0 0.0
        %2892 = vmatprep.subr.mxu0 0.0
        %2893 = vmatpush1.msra.mxu0 0.0
        %2894 = vmatprep.subr.mxu0 0.0
        %2895 = vmatpush1.msra.mxu0 0.0
        %2896 = vmatprep.subr.mxu0 0.0
        %2897 = vmatpush1.msra.mxu0 0.0
        %2898 = vmatprep.subr.mxu0 0.0
        %2899 = vmatpush1.msra.mxu0 0.0
        %2900 = vmatprep.subr.mxu0 0.0
        %2901 = vmatpush1.msra.mxu0 0.0
        %2902 = vmatprep.subr.mxu0 0.0
        %2903 = vmatpush1.msra.mxu0 0.0
        %2904 = vmatprep.subr.mxu0 0.0
        %2905 = vmatpush1.msra.mxu0 0.0
        %2906 = vmatprep.subr.mxu0 0.0
        %2907 = vmatpush1.msra.mxu0 0.0
        %2908 = vmatprep.mubr.f32.mxu0 0.0
        %2909 = vmatmul.mubr.f32.gmra.mrb[0].mxu0 %v2617
        %v2910 = vpop.f32.mrb[0].mxu0
        %v2911 = vadd.f32 0.0, %v2910
        %v2912 = vpop.f32.mrb[0].mxu0
        %v2913 = vadd.f32 0.0, %v2912
        %2914 = vmatprep.mubr.f32.mxu0 0.0
        %2915 = vmatmul.mubr.f32.gmra.mrb[0].mxu0 %v2620
        %v2916 = vpop.f32.mrb[0].mxu0
        %v2917 = vadd.f32 0.0, %v2916
        %v2918 = vpop.f32.mrb[0].mxu0
        %v2919 = vadd.f32 0.0, %v2918
        %2920 = vmatprep.mubr.f32.mxu0 0.0
        %2921 = vmatmul.mubr.f32.gmra.mrb[0].mxu0 %v2623
        %v2922 = vpop.f32.mrb[0].mxu0
        %v2923 = vadd.f32 0.0, %v2922
        %v2924 = vpop.f32.mrb[0].mxu0
        %v2925 = vadd.f32 0.0, %v2924
        %2926 = vmatprep.mubr.f32.mxu0 0.0
        %2927 = vmatmul.mubr.f32.gmra.mrb[0].mxu0 %v2626
        %v2928 = vpop.f32.mrb[0].mxu0
        %v2929 = vadd.f32 0.0, %v2928
        %v2930 = vpop.f32.mrb[0].mxu0
        %v2931 = vadd.f32 0.0, %v2930
        %2932 = vmatprep.mubr.f32.mxu0 0.0
        %2933 = vmatmul.mubr.f32.gmra.mrb[0].mxu0 %v2629
        %v2934 = vpop.f32.mrb[0].mxu0
        %v2935 = vadd.f32 0.0, %v2934
        %v2936 = vpop.f32.mrb[0].mxu0
        %v2937 = vadd.f32 0.0, %v2936
        %2938 = vmatprep.mubr.f32.mxu0 0.0
        %2939 = vmatmul.mubr.f32.gmra.mrb[0].mxu0 %v2632
        %v2940 = vpop.f32.mrb[0].mxu0
        %v2941 = vadd.f32 0.0, %v2940
        %v2942 = vpop.f32.mrb[0].mxu0
        %v2943 = vadd.f32 0.0, %v2942
        %2944 = vmatprep.mubr.f32.mxu0 0.0
        %2945 = vmatmul.mubr.f32.gmra.mrb[0].mxu0 %v2635
        %v2946 = vpop.f32.mrb[0].mxu0
        %v2947 = vadd.f32 0.0, %v2946
        %v2948 = vpop.f32.mrb[0].mxu0
        %v2949 = vadd.f32 0.0, %v2948
        %2950 = vmatprep.mubr.f32.mxu0 0.0
        %2951 = vmatmul.mubr.f32.gmra.mrb[0].mxu0 %v2638
        %v2952 = vpop.f32.mrb[0].mxu0
        %v2953 = vadd.f32 0.0, %v2952
        %v2954 = vpop.f32.mrb[0].mxu0
        %v2955 = vadd.f32 0.0, %v2954
        %2956 = vmatprep.mubr.f32.mxu0 0.0
        %2957 = vmatmul.mubr.f32.gmra.mrb[0].mxu0 %v2641
        %v2958 = vpop.f32.mrb[0].mxu0
        %v2959 = vadd.f32 0.0, %v2958
        %v2960 = vpop.f32.mrb[0].mxu0
        %v2961 = vadd.f32 0.0, %v2960
        %2962 = vmatprep.mubr.f32.mxu0 0.0
        %2963 = vmatmul.mubr.f32.gmra.mrb[0].mxu0 %v2644
        %v2964 = vpop.f32.mrb[0].mxu0
        %v2965 = vadd.f32 0.0, %v2964
        %v2966 = vpop.f32.mrb[0].mxu0
        %v2967 = vadd.f32 0.0, %v2966
        %2968 = vmatprep.mubr.f32.mxu0 0.0
        %2969 = vmatmul.mubr.f32.gmra.mrb[0].mxu0 %v2647
        %v2970 = vpop.f32.mrb[0].mxu0
        %v2971 = vadd.f32 0.0, %v2970
        %v2972 = vpop.f32.mrb[0].mxu0
        %v2973 = vadd.f32 0.0, %v2972
        %2974 = vmatprep.mubr.f32.mxu0 0.0
        %2975 = vmatmul.mubr.f32.gmra.mrb[0].mxu0 %v2650
        %v2976 = vpop.f32.mrb[0].mxu0
        %v2977 = vadd.f32 0.0, %v2976
        %v2978 = vpop.f32.mrb[0].mxu0
        %v2979 = vadd.f32 0.0, %v2978
        %2980 = vmatprep.mubr.f32.mxu0 0.0
        %2981 = vmatmul.mubr.f32.gmra.mrb[0].mxu0 %v2653
        %v2982 = vpop.f32.mrb[0].mxu0
        %v2983 = vadd.f32 0.0, %v2982
        %v2984 = vpop.f32.mrb[0].mxu0
        %v2985 = vadd.f32 0.0, %v2984
        %2986 = vmatprep.mubr.f32.mxu0 0.0
        %2987 = vmatmul.mubr.f32.gmra.mrb[0].mxu0 %v2656
        %v2988 = vpop.f32.mrb[0].mxu0
        %v2989 = vadd.f32 0.0, %v2988
        %v2990 = vpop.f32.mrb[0].mxu0
        %v2991 = vadd.f32 0.0, %v2990
        %2992 = vmatprep.mubr.f32.mxu0 0.0
        %2993 = vmatmul.mubr.f32.gmra.mrb[0].mxu0 %v2659
        %v2994 = vpop.f32.mrb[0].mxu0
        %v2995 = vadd.f32 0.0, %v2994
        %v2996 = vpop.f32.mrb[0].mxu0
        %v2997 = vadd.f32 0.0, %v2996
        %2998 = vmatprep.mubr.f32.mxu0 0.0
        %2999 = vmatmul.mubr.f32.gmra.mrb[0].mxu0 %v2662
        %v3000 = vpop.f32.mrb[0].mxu0
        %v3001 = vadd.f32 0.0, %v3000
        %v3002 = vpop.f32.mrb[0].mxu0
        %v3003 = vadd.f32 0.0, %v3002
        %3004 = vdwg.mxu0
        %3005 = vmatprep.subr.mxu0 %v2681
        %3006 = vmatpush1.msra.mxu0 %v2678
        %3007 = vmatprep.subr.mxu0 0.0
        %3008 = vmatpush1.msra.mxu0 0.0
        %3009 = vmatprep.subr.mxu0 0.0
        %3010 = vmatpush1.msra.mxu0 0.0
        %3011 = vmatprep.subr.mxu0 0.0
        %3012 = vmatpush1.msra.mxu0 0.0
        %3013 = vmatprep.subr.mxu0 0.0
        %3014 = vmatpush1.msra.mxu0 0.0
        %3015 = vmatprep.subr.mxu0 0.0
        %3016 = vmatpush1.msra.mxu0 0.0
        %3017 = vmatprep.subr.mxu0 0.0
        %3018 = vmatpush1.msra.mxu0 0.0
        %3019 = vmatprep.subr.mxu0 0.0
        %3020 = vmatpush1.msra.mxu0 0.0
        %3021 = vmatprep.subr.mxu0 0.0
        %3022 = vmatpush1.msra.mxu0 0.0
        %3023 = vmatprep.subr.mxu0 0.0
        %3024 = vmatpush1.msra.mxu0 0.0
        %3025 = vmatprep.subr.mxu0 0.0
        %3026 = vmatpush1.msra.mxu0 0.0
        %3027 = vmatprep.subr.mxu0 0.0
        %3028 = vmatpush1.msra.mxu0 0.0
        %3029 = vmatprep.subr.mxu0 0.0
        %3030 = vmatpush1.msra.mxu0 0.0
        %3031 = vmatprep.subr.mxu0 0.0
        %3032 = vmatpush1.msra.mxu0 0.0
        %3033 = vmatprep.subr.mxu0 0.0
        %3034 = vmatpush1.msra.mxu0 0.0
        %3035 = vmatprep.subr.mxu0 0.0
        %3036 = vmatpush1.msra.mxu0 0.0
        %3037 = vmatprep.subr.mxu0 0.0
        %3038 = vmatpush1.msra.mxu0 0.0
        %3039 = vmatprep.subr.mxu0 0.0
        %3040 = vmatpush1.msra.mxu0 0.0
        %3041 = vmatprep.subr.mxu0 0.0
        %3042 = vmatpush1.msra.mxu0 0.0
        %3043 = vmatprep.subr.mxu0 0.0
        %3044 = vmatpush1.msra.mxu0 0.0
        %3045 = vmatprep.subr.mxu0 0.0
        %3046 = vmatpush1.msra.mxu0 0.0
        %3047 = vmatprep.subr.mxu0 0.0
        %3048 = vmatpush1.msra.mxu0 0.0
        %3049 = vmatprep.subr.mxu0 0.0
        %3050 = vmatpush1.msra.mxu0 0.0
        %3051 = vmatprep.subr.mxu0 0.0
        %3052 = vmatpush1.msra.mxu0 0.0
        %3053 = vmatprep.subr.mxu0 0.0
        %3054 = vmatpush1.msra.mxu0 0.0
        %3055 = vmatprep.subr.mxu0 0.0
        %3056 = vmatpush1.msra.mxu0 0.0
        %3057 = vmatprep.subr.mxu0 0.0
        %3058 = vmatpush1.msra.mxu0 0.0
        %3059 = vmatprep.subr.mxu0 0.0
        %3060 = vmatpush1.msra.mxu0 0.0
        %3061 = vmatprep.subr.mxu0 0.0
        %3062 = vmatpush1.msra.mxu0 0.0
        %3063 = vmatprep.subr.mxu0 0.0
        %3064 = vmatpush1.msra.mxu0 0.0
        %3065 = vmatprep.subr.mxu0 0.0
        %3066 = vmatpush1.msra.mxu0 0.0
        %3067 = vmatprep.subr.mxu0 0.0
        %3068 = vmatpush1.msra.mxu0 0.0
        %3069 = vmatprep.mubr.f32.mxu0 0.0
        %3070 = vmatmul.mubr.f32.gmra.mrb[0].mxu0 %v2617
        %v3071 = vpop.f32.mrb[0].mxu0
        %v3072 = vadd.f32 0.0, %v3071
        %v3073 = vpop.f32.mrb[0].mxu0
        %v3074 = vadd.f32 0.0, %v3073
        %3075 = vmatprep.mubr.f32.mxu0 0.0
        %3076 = vmatmul.mubr.f32.gmra.mrb[0].mxu0 %v2620
        %v3077 = vpop.f32.mrb[0].mxu0
        %v3078 = vadd.f32 0.0, %v3077
        %v3079 = vpop.f32.mrb[0].mxu0
        %v3080 = vadd.f32 0.0, %v3079
        %3081 = vmatprep.mubr.f32.mxu0 0.0
        %3082 = vmatmul.mubr.f32.gmra.mrb[0].mxu0 %v2623
        %v3083 = vpop.f32.mrb[0].mxu0
        %v3084 = vadd.f32 0.0, %v3083
        %v3085 = vpop.f32.mrb[0].mxu0
        %v3086 = vadd.f32 0.0, %v3085
        %3087 = vmatprep.mubr.f32.mxu0 0.0
        %3088 = vmatmul.mubr.f32.gmra.mrb[0].mxu0 %v2626
        %v3089 = vpop.f32.mrb[0].mxu0
        %v3090 = vadd.f32 0.0, %v3089
        %v3091 = vpop.f32.mrb[0].mxu0
        %v3092 = vadd.f32 0.0, %v3091
        %3093 = vmatprep.mubr.f32.mxu0 0.0
        %3094 = vmatmul.mubr.f32.gmra.mrb[0].mxu0 %v2629
        %v3095 = vpop.f32.mrb[0].mxu0
        %v3096 = vadd.f32 0.0, %v3095
        %v3097 = vpop.f32.mrb[0].mxu0
        %v3098 = vadd.f32 0.0, %v3097
        %3099 = vmatprep.mubr.f32.mxu0 0.0
        %3100 = vmatmul.mubr.f32.gmra.mrb[0].mxu0 %v2632
        %v3101 = vpop.f32.mrb[0].mxu0
        %v3102 = vadd.f32 0.0, %v3101
        %v3103 = vpop.f32.mrb[0].mxu0
        %v3104 = vadd.f32 0.0, %v3103
        %3105 = vmatprep.mubr.f32.mxu0 0.0
        %3106 = vmatmul.mubr.f32.gmra.mrb[0].mxu0 %v2635
        %v3107 = vpop.f32.mrb[0].mxu0
        %v3108 = vadd.f32 0.0, %v3107
        %v3109 = vpop.f32.mrb[0].mxu0
        %v3110 = vadd.f32 0.0, %v3109
        %3111 = vmatprep.mubr.f32.mxu0 0.0
        %3112 = vmatmul.mubr.f32.gmra.mrb[0].mxu0 %v2638
        %v3113 = vpop.f32.mrb[0].mxu0
        %v3114 = vadd.f32 0.0, %v3113
        %v3115 = vpop.f32.mrb[0].mxu0
        %v3116 = vadd.f32 0.0, %v3115
        %3117 = vmatprep.mubr.f32.mxu0 0.0
        %3118 = vmatmul.mubr.f32.gmra.mrb[0].mxu0 %v2641
        %v3119 = vpop.f32.mrb[0].mxu0
        %v3120 = vadd.f32 0.0, %v3119
        %v3121 = vpop.f32.mrb[0].mxu0
        %v3122 = vadd.f32 0.0, %v3121
        %3123 = vmatprep.mubr.f32.mxu0 0.0
        %3124 = vmatmul.mubr.f32.gmra.mrb[0].mxu0 %v2644
        %v3125 = vpop.f32.mrb[0].mxu0
        %v3126 = vadd.f32 0.0, %v3125
        %v3127 = vpop.f32.mrb[0].mxu0
        %v3128 = vadd.f32 0.0, %v3127
        %3129 = vmatprep.mubr.f32.mxu0 0.0
        %3130 = vmatmul.mubr.f32.gmra.mrb[0].mxu0 %v2647
        %v3131 = vpop.f32.mrb[0].mxu0
        %v3132 = vadd.f32 0.0, %v3131
        %v3133 = vpop.f32.mrb[0].mxu0
        %v3134 = vadd.f32 0.0, %v3133
        %3135 = vmatprep.mubr.f32.mxu0 0.0
        %3136 = vmatmul.mubr.f32.gmra.mrb[0].mxu0 %v2650
        %v3137 = vpop.f32.mrb[0].mxu0
        %v3138 = vadd.f32 0.0, %v3137
        %v3139 = vpop.f32.mrb[0].mxu0
        %v3140 = vadd.f32 0.0, %v3139
        %3141 = vmatprep.mubr.f32.mxu0 0.0
        %3142 = vmatmul.mubr.f32.gmra.mrb[0].mxu0 %v2653
        %v3143 = vpop.f32.mrb[0].mxu0
        %v3144 = vadd.f32 0.0, %v3143
        %v3145 = vpop.f32.mrb[0].mxu0
        %v3146 = vadd.f32 0.0, %v3145
        %3147 = vmatprep.mubr.f32.mxu0 0.0
        %3148 = vmatmul.mubr.f32.gmra.mrb[0].mxu0 %v2656
        %v3149 = vpop.f32.mrb[0].mxu0
        %v3150 = vadd.f32 0.0, %v3149
        %v3151 = vpop.f32.mrb[0].mxu0
        %v3152 = vadd.f32 0.0, %v3151
        %3153 = vmatprep.mubr.f32.mxu0 0.0
        %3154 = vmatmul.mubr.f32.gmra.mrb[0].mxu0 %v2659
        %v3155 = vpop.f32.mrb[0].mxu0
        %v3156 = vadd.f32 0.0, %v3155
        %v3157 = vpop.f32.mrb[0].mxu0
        %v3158 = vadd.f32 0.0, %v3157
        %3159 = vmatprep.mubr.f32.mxu0 0.0
        %3160 = vmatmul.mubr.f32.gmra.mrb[0].mxu0 %v2662
        %v3161 = vpop.f32.mrb[0].mxu0
        %v3162 = vadd.f32 0.0, %v3161
        %v3163 = vpop.f32.mrb[0].mxu0
        %v3164 = vadd.f32 0.0, %v3163
        %3165 = vdwg.mxu0
        %3166 = vst [vmem:[#allocation2] sm:$0xff] %v2750
        %3167 = vst [vmem:[#allocation2 + $0x8] sm:$0xff] %v2752
        %3168 = vst [vmem:[#allocation2 + $0x10] sm:$0xff] %v2911
        %3169 = vst [vmem:[#allocation2 + $0x18] sm:$0xff] %v2913
        %3170 = vst [vmem:[#allocation2 + $0x20] sm:$0xff] %v3072
        %3171 = vst [vmem:[#allocation2 + $0x28] sm:$0xff] %v3074
        %3172 = vst [vmem:[#allocation2 + $0x30] sm:$0xff] %v2756
        %3173 = vst [vmem:[#allocation2 + $0x38] sm:$0xff] %v2758
        %3174 = vst [vmem:[#allocation2 + $0x40] sm:$0xff] %v2917
        %3175 = vst [vmem:[#allocation2 + $0x48] sm:$0xff] %v2919
        %3176 = vst [vmem:[#allocation2 + $0x50] sm:$0xff] %v3078
        %3177 = vst [vmem:[#allocation2 + $0x58] sm:$0xff] %v3080
        %3178 = vst [vmem:[#allocation2 + $0x60] sm:$0xff] %v2762
        %3179 = vst [vmem:[#allocation2 + $0x68] sm:$0xff] %v2764
        %3180 = vst [vmem:[#allocation2 + $0x70] sm:$0xff] %v2923
        %3181 = vst [vmem:[#allocation2 + $0x78] sm:$0xff] %v2925
        %3182 = vst [vmem:[#allocation2 + $0x80] sm:$0xff] %v3084
        %3183 = vst [vmem:[#allocation2 + $0x88] sm:$0xff] %v3086
        %3184 = vst [vmem:[#allocation2 + $0x90] sm:$0xff] %v2768
        %3185 = vst [vmem:[#allocation2 + $0x98] sm:$0xff] %v2770
        %3186 = vst [vmem:[#allocation2 + $0xa0] sm:$0xff] %v2929
        %3187 = vst [vmem:[#allocation2 + $0xa8] sm:$0xff] %v2931
        %3188 = vst [vmem:[#allocation2 + $0xb0] sm:$0xff] %v3090
        %3189 = vst [vmem:[#allocation2 + $0xb8] sm:$0xff] %v3092
        %3190 = vst [vmem:[#allocation2 + $0xc0] sm:$0xff] %v2774
        %3191 = vst [vmem:[#allocation2 + $0xc8] sm:$0xff] %v2776
        %3192 = vst [vmem:[#allocation2 + $0xd0] sm:$0xff] %v2935
        %3193 = vst [vmem:[#allocation2 + $0xd8] sm:$0xff] %v2937
        %3194 = vst [vmem:[#allocation2 + $0xe0] sm:$0xff] %v3096
        %3195 = vst [vmem:[#allocation2 + $0xe8] sm:$0xff] %v3098
        %3196 = vst [vmem:[#allocation2 + $0xf0] sm:$0xff] %v2780
        %3197 = vst [vmem:[#allocation2 + $0xf8] sm:$0xff] %v2782
        %3198 = vst [vmem:[#allocation2 + $0x100] sm:$0xff] %v2941
        %3199 = vst [vmem:[#allocation2 + $0x108] sm:$0xff] %v2943
        %3200 = vst [vmem:[#allocation2 + $0x110] sm:$0xff] %v3102
        %3201 = vst [vmem:[#allocation2 + $0x118] sm:$0xff] %v3104
        %3202 = vst [vmem:[#allocation2 + $0x120] sm:$0xff] %v2786
        %3203 = vst [vmem:[#allocation2 + $0x128] sm:$0xff] %v2788
        %3204 = vst [vmem:[#allocation2 + $0x130] sm:$0xff] %v2947
        %3205 = vst [vmem:[#allocation2 + $0x138] sm:$0xff] %v2949
        %3206 = vst [vmem:[#allocation2 + $0x140] sm:$0xff] %v3108
        %3207 = vst [vmem:[#allocation2 + $0x148] sm:$0xff] %v3110
        %3208 = vst [vmem:[#allocation2 + $0x150] sm:$0xff] %v2792
        %3209 = vst [vmem:[#allocation2 + $0x158] sm:$0xff] %v2794
        %3210 = vst [vmem:[#allocation2 + $0x160] sm:$0xff] %v2953
        %3211 = vst [vmem:[#allocation2 + $0x168] sm:$0xff] %v2955
        %3212 = vst [vmem:[#allocation2 + $0x170] sm:$0xff] %v3114
        %3213 = vst [vmem:[#allocation2 + $0x178] sm:$0xff] %v3116
        %3214 = vst [vmem:[#allocation2 + $0x180] sm:$0xff] %v2798
        %3215 = vst [vmem:[#allocation2 + $0x188] sm:$0xff] %v2800
        %3216 = vst [vmem:[#allocation2 + $0x190] sm:$0xff] %v2959
        %3217 = vst [vmem:[#allocation2 + $0x198] sm:$0xff] %v2961
        %3218 = vst [vmem:[#allocation2 + $0x1a0] sm:$0xff] %v3120
        %3219 = vst [vmem:[#allocation2 + $0x1a8] sm:$0xff] %v3122
        %3220 = vst [vmem:[#allocation2 + $0x1b0] sm:$0xff] %v2804
        %3221 = vst [vmem:[#allocation2 + $0x1b8] sm:$0xff] %v2806
        %3222 = vst [vmem:[#allocation2 + $0x1c0] sm:$0xff] %v2965
        %3223 = vst [vmem:[#allocation2 + $0x1c8] sm:$0xff] %v2967
        %3224 = vst [vmem:[#allocation2 + $0x1d0] sm:$0xff] %v3126
        %3225 = vst [vmem:[#allocation2 + $0x1d8] sm:$0xff] %v3128
        %3226 = vst [vmem:[#allocation2 + $0x1e0] sm:$0xff] %v2810
        %3227 = vst [vmem:[#allocation2 + $0x1e8] sm:$0xff] %v2812
        %3228 = vst [vmem:[#allocation2 + $0x1f0] sm:$0xff] %v2971
        %3229 = vst [vmem:[#allocation2 + $0x1f8] sm:$0xff] %v2973
        %3230 = vst [vmem:[#allocation2 + $0x200] sm:$0xff] %v3132
        %3231 = vst [vmem:[#allocation2 + $0x208] sm:$0xff] %v3134
        %3232 = vst [vmem:[#allocation2 + $0x210] sm:$0xff] %v2816
        %3233 = vst [vmem:[#allocation2 + $0x218] sm:$0xff] %v2818
        %3234 = vst [vmem:[#allocation2 + $0x220] sm:$0xff] %v2977
        %3235 = vst [vmem:[#allocation2 + $0x228] sm:$0xff] %v2979
        %3236 = vst [vmem:[#allocation2 + $0x230] sm:$0xff] %v3138
        %3237 = vst [vmem:[#allocation2 + $0x238] sm:$0xff] %v3140
        %3238 = vst [vmem:[#allocation2 + $0x240] sm:$0xff] %v2822
        %3239 = vst [vmem:[#allocation2 + $0x248] sm:$0xff] %v2824
        %3240 = vst [vmem:[#allocation2 + $0x250] sm:$0xff] %v2983
        %3241 = vst [vmem:[#allocation2 + $0x258] sm:$0xff] %v2985
        %3242 = vst [vmem:[#allocation2 + $0x260] sm:$0xff] %v3144
        %3243 = vst [vmem:[#allocation2 + $0x268] sm:$0xff] %v3146
        %3244 = vst [vmem:[#allocation2 + $0x270] sm:$0xff] %v2828
        %3245 = vst [vmem:[#allocation2 + $0x278] sm:$0xff] %v2830
        %3246 = vst [vmem:[#allocation2 + $0x280] sm:$0xff] %v2989
        %3247 = vst [vmem:[#allocation2 + $0x288] sm:$0xff] %v2991
        %3248 = vst [vmem:[#allocation2 + $0x290] sm:$0xff] %v3150
        %3249 = vst [vmem:[#allocation2 + $0x298] sm:$0xff] %v3152
        %3250 = vst [vmem:[#allocation2 + $0x2a0] sm:$0xff] %v2834
        %3251 = vst [vmem:[#allocation2 + $0x2a8] sm:$0xff] %v2836
        %3252 = vst [vmem:[#allocation2 + $0x2b0] sm:$0xff] %v2995
        %3253 = vst [vmem:[#allocation2 + $0x2b8] sm:$0xff] %v2997
        %3254 = vst [vmem:[#allocation2 + $0x2c0] sm:$0xff] %v3156
        %3255 = vst [vmem:[#allocation2 + $0x2c8] sm:$0xff] %v3158
        %3256 = vst [vmem:[#allocation2 + $0x2d0] sm:$0xff] %v2840
        %3257 = vst [vmem:[#allocation2 + $0x2d8] sm:$0xff] %v2842
        %3258 = vst [vmem:[#allocation2 + $0x2e0] sm:$0xff] %v3001
        %3259 = vst [vmem:[#allocation2 + $0x2e8] sm:$0xff] %v3003
        %3260 = vst [vmem:[#allocation2 + $0x2f0] sm:$0xff] %v3162
        %3261 = vst [vmem:[#allocation2 + $0x2f8] sm:$0xff] %v3164
        %v3262 = vld [vmem:[%s5] sm:$0xff]
        %v3263 = vld [vmem:[%s5 + $0x8] sm:$0xff]
        %v3264 = vld [vmem:[%s5 + $0x10] sm:$0xff]
        %v3265 = vld [vmem:[%s5 + $0x18] sm:$0xff]
        %v3266 = vld [vmem:[%s576] sm:$0xff]
        %v3267 = vld [vmem:[%s576 + $0x8] sm:$0xff]
        %v3268 = vld [vmem:[%s576 + $0x10] sm:$0xff]
        %v3269 = vld [vmem:[%s576 + $0x18] sm:$0xff]
        %v3270 = vld [vmem:[%s576 + $0x20] sm:$0xff]
        %v3271 = vld [vmem:[%s576 + $0x28] sm:$0xff]
        %v3272 = vld [vmem:[%s576 + $0x30] sm:$0xff]
        %v3273 = vld [vmem:[%s576 + $0x38] sm:$0xff]
        %v3274 = vld [vmem:[%s576 + $0x40] sm:$0xff]
        %v3275 = vld [vmem:[%s576 + $0x48] sm:$0xff]
        %v3276 = vld [vmem:[%s576 + $0x50] sm:$0xff]
        %v3277 = vld [vmem:[%s576 + $0x58] sm:$0xff]
        %v3278 = vld [vmem:[%s6] sm:$0xff]
        %v3279 = vld [vmem:[%s6 + $0x8] sm:$0xff]
        %v3280 = vld [vmem:[%s6 + $0x10] sm:$0xff]
        %v3281 = vld [vmem:[%s6 + $0x18] sm:$0xff]
        %3283 = vset.pattern.permute.xlu0 0
        %3284 = vperm.xlu0 %3283, %v3278
        %v3285 = vpop.permute.xlu0 %3284
        %3288 = vset.pattern.permute.xlu0 0
        %3289 = vperm.xlu0 %3288, %v3279
        %v3290 = vpop.permute.xlu0 %3289
        %3293 = vset.pattern.permute.xlu0 0
        %3294 = vperm.xlu0 %3293, %v3280
        %v3295 = vpop.permute.xlu0 %3294
        %3298 = vset.pattern.permute.xlu0 0
        %3299 = vperm.xlu0 %3298, %v3281
        %v3300 = vpop.permute.xlu0 %3299
        %v3303 = vsel %vm1944, %v3262, 0
        %v3306 = vsel %vm1944, %v3263, 0
        %v3309 = vsel %vm1944, %v3264, 0
        %v3312 = vsel %vm1944, %v3265, 0
        %3314 = vmatprep.subr.mxu0 %v3267
        %3315 = vmatpush1.msra.mxu0 %v3266
        %3316 = vmatprep.subr.mxu0 %v3273
        %3317 = vmatpush1.msra.mxu0 %v3272
        %3318 = vmatprep.subr.mxu0 0.0
        %3319 = vmatpush1.msra.mxu0 0.0
        %3320 = vmatprep.subr.mxu0 0.0
        %3321 = vmatpush1.msra.mxu0 0.0
        %3322 = vmatprep.subr.mxu0 0.0
        %3323 = vmatpush1.msra.mxu0 0.0
        %3324 = vmatprep.subr.mxu0 0.0
        %3325 = vmatpush1.msra.mxu0 0.0
        %3326 = vmatprep.subr.mxu0 0.0
        %3327 = vmatpush1.msra.mxu0 0.0
        %3328 = vmatprep.subr.mxu0 0.0
        %3329 = vmatpush1.msra.mxu0 0.0
        %3330 = vmatprep.subr.mxu0 0.0
        %3331 = vmatpush1.msra.mxu0 0.0
        %3332 = vmatprep.subr.mxu0 0.0
        %3333 = vmatpush1.msra.mxu0 0.0
        %3334 = vmatprep.subr.mxu0 0.0
        %3335 = vmatpush1.msra.mxu0 0.0
        %3336 = vmatprep.subr.mxu0 0.0
        %3337 = vmatpush1.msra.mxu0 0.0
        %3338 = vmatprep.subr.mxu0 0.0
        %3339 = vmatpush1.msra.mxu0 0.0
        %3340 = vmatprep.subr.mxu0 0.0
        %3341 = vmatpush1.msra.mxu0 0.0
        %3342 = vmatprep.subr.mxu0 0.0
        %3343 = vmatpush1.msra.mxu0 0.0
        %3344 = vmatprep.subr.mxu0 0.0
        %3345 = vmatpush1.msra.mxu0 0.0
        %3346 = vmatprep.subr.mxu0 0.0
        %3347 = vmatpush1.msra.mxu0 0.0
        %3348 = vmatprep.subr.mxu0 0.0
        %3349 = vmatpush1.msra.mxu0 0.0
        %3350 = vmatprep.subr.mxu0 0.0
        %3351 = vmatpush1.msra.mxu0 0.0
        %3352 = vmatprep.subr.mxu0 0.0
        %3353 = vmatpush1.msra.mxu0 0.0
        %3354 = vmatprep.subr.mxu0 0.0
        %3355 = vmatpush1.msra.mxu0 0.0
        %3356 = vmatprep.subr.mxu0 0.0
        %3357 = vmatpush1.msra.mxu0 0.0
        %3358 = vmatprep.subr.mxu0 0.0
        %3359 = vmatpush1.msra.mxu0 0.0
        %3360 = vmatprep.subr.mxu0 0.0
        %3361 = vmatpush1.msra.mxu0 0.0
        %3362 = vmatprep.subr.mxu0 0.0
        %3363 = vmatpush1.msra.mxu0 0.0
        %3364 = vmatprep.subr.mxu0 0.0
        %3365 = vmatpush1.msra.mxu0 0.0
        %3366 = vmatprep.subr.mxu0 0.0
        %3367 = vmatpush1.msra.mxu0 0.0
        %3368 = vmatprep.subr.mxu0 0.0
        %3369 = vmatpush1.msra.mxu0 0.0
        %3370 = vmatprep.subr.mxu0 0.0
        %3371 = vmatpush1.msra.mxu0 0.0
        %3372 = vmatprep.subr.mxu0 0.0
        %3373 = vmatpush1.msra.mxu0 0.0
        %3374 = vmatprep.subr.mxu0 0.0
        %3375 = vmatpush1.msra.mxu0 0.0
        %3376 = vmatprep.subr.mxu0 0.0
        %3377 = vmatpush1.msra.mxu0 0.0
        %3378 = vmatprep.mubr.f32.mxu0 0.0
        %3379 = vmatmul.mubr.f32.gmra.mrb[0].mxu0 %v3303
        %v3380 = vpop.f32.mrb[0].mxu0
        %v3381 = vadd.f32 %v3285, %v3380
        %v3382 = vpop.f32.mrb[0].mxu0
        %v3383 = vadd.f32 %v3285, %v3382
        %3384 = vmatprep.mubr.f32.mxu0 0.0
        %3385 = vmatmul.mubr.f32.gmra.mrb[0].mxu0 %v3306
        %v3386 = vpop.f32.mrb[0].mxu0
        %v3387 = vadd.f32 %v3290, %v3386
        %v3388 = vpop.f32.mrb[0].mxu0
        %v3389 = vadd.f32 %v3290, %v3388
        %3390 = vmatprep.mubr.f32.mxu0 0.0
        %3391 = vmatmul.mubr.f32.gmra.mrb[0].mxu0 %v3309
        %v3392 = vpop.f32.mrb[0].mxu0
        %v3393 = vadd.f32 %v3295, %v3392
        %v3394 = vpop.f32.mrb[0].mxu0
        %v3395 = vadd.f32 %v3295, %v3394
        %3396 = vmatprep.mubr.f32.mxu0 0.0
        %3397 = vmatmul.mubr.f32.gmra.mrb[0].mxu0 %v3312
        %v3398 = vpop.f32.mrb[0].mxu0
        %v3399 = vadd.f32 %v3300, %v3398
        %v3400 = vpop.f32.mrb[0].mxu0
        %v3401 = vadd.f32 %v3300, %v3400
        %3402 = vdwg.mxu0
        %3403 = vmatprep.subr.mxu0 %v3269
        %3404 = vmatpush1.msra.mxu0 %v3268
        %3405 = vmatprep.subr.mxu0 %v3275
        %3406 = vmatpush1.msra.mxu0 %v3274
        %3407 = vmatprep.subr.mxu0 0.0
        %3408 = vmatpush1.msra.mxu0 0.0
        %3409 = vmatprep.subr.mxu0 0.0
        %3410 = vmatpush1.msra.mxu0 0.0
        %3411 = vmatprep.subr.mxu0 0.0
        %3412 = vmatpush1.msra.mxu0 0.0
        %3413 = vmatprep.subr.mxu0 0.0
        %3414 = vmatpush1.msra.mxu0 0.0
        %3415 = vmatprep.subr.mxu0 0.0
        %3416 = vmatpush1.msra.mxu0 0.0
        %3417 = vmatprep.subr.mxu0 0.0
        %3418 = vmatpush1.msra.mxu0 0.0
        %3419 = vmatprep.subr.mxu0 0.0
        %3420 = vmatpush1.msra.mxu0 0.0
        %3421 = vmatprep.subr.mxu0 0.0
        %3422 = vmatpush1.msra.mxu0 0.0
        %3423 = vmatprep.subr.mxu0 0.0
        %3424 = vmatpush1.msra.mxu0 0.0
        %3425 = vmatprep.subr.mxu0 0.0
        %3426 = vmatpush1.msra.mxu0 0.0
        %3427 = vmatprep.subr.mxu0 0.0
        %3428 = vmatpush1.msra.mxu0 0.0
        %3429 = vmatprep.subr.mxu0 0.0
        %3430 = vmatpush1.msra.mxu0 0.0
        %3431 = vmatprep.subr.mxu0 0.0
        %3432 = vmatpush1.msra.mxu0 0.0
        %3433 = vmatprep.subr.mxu0 0.0
        %3434 = vmatpush1.msra.mxu0 0.0
        %3435 = vmatprep.subr.mxu0 0.0
        %3436 = vmatpush1.msra.mxu0 0.0
        %3437 = vmatprep.subr.mxu0 0.0
        %3438 = vmatpush1.msra.mxu0 0.0
        %3439 = vmatprep.subr.mxu0 0.0
        %3440 = vmatpush1.msra.mxu0 0.0
        %3441 = vmatprep.subr.mxu0 0.0
        %3442 = vmatpush1.msra.mxu0 0.0
        %3443 = vmatprep.subr.mxu0 0.0
        %3444 = vmatpush1.msra.mxu0 0.0
        %3445 = vmatprep.subr.mxu0 0.0
        %3446 = vmatpush1.msra.mxu0 0.0
        %3447 = vmatprep.subr.mxu0 0.0
        %3448 = vmatpush1.msra.mxu0 0.0
        %3449 = vmatprep.subr.mxu0 0.0
        %3450 = vmatpush1.msra.mxu0 0.0
        %3451 = vmatprep.subr.mxu0 0.0
        %3452 = vmatpush1.msra.mxu0 0.0
        %3453 = vmatprep.subr.mxu0 0.0
        %3454 = vmatpush1.msra.mxu0 0.0
        %3455 = vmatprep.subr.mxu0 0.0
        %3456 = vmatpush1.msra.mxu0 0.0
        %3457 = vmatprep.subr.mxu0 0.0
        %3458 = vmatpush1.msra.mxu0 0.0
        %3459 = vmatprep.subr.mxu0 0.0
        %3460 = vmatpush1.msra.mxu0 0.0
        %3461 = vmatprep.subr.mxu0 0.0
        %3462 = vmatpush1.msra.mxu0 0.0
        %3463 = vmatprep.subr.mxu0 0.0
        %3464 = vmatpush1.msra.mxu0 0.0
        %3465 = vmatprep.subr.mxu0 0.0
        %3466 = vmatpush1.msra.mxu0 0.0
        %3467 = vmatprep.mubr.f32.mxu0 0.0
        %3468 = vmatmul.mubr.f32.gmra.mrb[0].mxu0 %v3303
        %v3469 = vpop.f32.mrb[0].mxu0
        %v3470 = vadd.f32 %v3285, %v3469
        %v3471 = vpop.f32.mrb[0].mxu0
        %v3472 = vadd.f32 %v3285, %v3471
        %3473 = vmatprep.mubr.f32.mxu0 0.0
        %3474 = vmatmul.mubr.f32.gmra.mrb[0].mxu0 %v3306
        %v3475 = vpop.f32.mrb[0].mxu0
        %v3476 = vadd.f32 %v3290, %v3475
        %v3477 = vpop.f32.mrb[0].mxu0
        %v3478 = vadd.f32 %v3290, %v3477
        %3479 = vmatprep.mubr.f32.mxu0 0.0
        %3480 = vmatmul.mubr.f32.gmra.mrb[0].mxu0 %v3309
        %v3481 = vpop.f32.mrb[0].mxu0
        %v3482 = vadd.f32 %v3295, %v3481
        %v3483 = vpop.f32.mrb[0].mxu0
        %v3484 = vadd.f32 %v3295, %v3483
        %3485 = vmatprep.mubr.f32.mxu0 0.0
        %3486 = vmatmul.mubr.f32.gmra.mrb[0].mxu0 %v3312
        %v3487 = vpop.f32.mrb[0].mxu0
        %v3488 = vadd.f32 %v3300, %v3487
        %v3489 = vpop.f32.mrb[0].mxu0
        %v3490 = vadd.f32 %v3300, %v3489
        %3491 = vdwg.mxu0
        %3492 = vmatprep.subr.mxu0 %v3271
        %3493 = vmatpush1.msra.mxu0 %v3270
        %3494 = vmatprep.subr.mxu0 %v3277
        %3495 = vmatpush1.msra.mxu0 %v3276
        %3496 = vmatprep.subr.mxu0 0.0
        %3497 = vmatpush1.msra.mxu0 0.0
        %3498 = vmatprep.subr.mxu0 0.0
        %3499 = vmatpush1.msra.mxu0 0.0
        %3500 = vmatprep.subr.mxu0 0.0
        %3501 = vmatpush1.msra.mxu0 0.0
        %3502 = vmatprep.subr.mxu0 0.0
        %3503 = vmatpush1.msra.mxu0 0.0
        %3504 = vmatprep.subr.mxu0 0.0
        %3505 = vmatpush1.msra.mxu0 0.0
        %3506 = vmatprep.subr.mxu0 0.0
        %3507 = vmatpush1.msra.mxu0 0.0
        %3508 = vmatprep.subr.mxu0 0.0
        %3509 = vmatpush1.msra.mxu0 0.0
        %3510 = vmatprep.subr.mxu0 0.0
        %3511 = vmatpush1.msra.mxu0 0.0
        %3512 = vmatprep.subr.mxu0 0.0
        %3513 = vmatpush1.msra.mxu0 0.0
        %3514 = vmatprep.subr.mxu0 0.0
        %3515 = vmatpush1.msra.mxu0 0.0
        %3516 = vmatprep.subr.mxu0 0.0
        %3517 = vmatpush1.msra.mxu0 0.0
        %3518 = vmatprep.subr.mxu0 0.0
        %3519 = vmatpush1.msra.mxu0 0.0
        %3520 = vmatprep.subr.mxu0 0.0
        %3521 = vmatpush1.msra.mxu0 0.0
        %3522 = vmatprep.subr.mxu0 0.0
        %3523 = vmatpush1.msra.mxu0 0.0
        %3524 = vmatprep.subr.mxu0 0.0
        %3525 = vmatpush1.msra.mxu0 0.0
        %3526 = vmatprep.subr.mxu0 0.0
        %3527 = vmatpush1.msra.mxu0 0.0
        %3528 = vmatprep.subr.mxu0 0.0
        %3529 = vmatpush1.msra.mxu0 0.0
        %3530 = vmatprep.subr.mxu0 0.0
        %3531 = vmatpush1.msra.mxu0 0.0
        %3532 = vmatprep.subr.mxu0 0.0
        %3533 = vmatpush1.msra.mxu0 0.0
        %3534 = vmatprep.subr.mxu0 0.0
        %3535 = vmatpush1.msra.mxu0 0.0
        %3536 = vmatprep.subr.mxu0 0.0
        %3537 = vmatpush1.msra.mxu0 0.0
        %3538 = vmatprep.subr.mxu0 0.0
        %3539 = vmatpush1.msra.mxu0 0.0
        %3540 = vmatprep.subr.mxu0 0.0
        %3541 = vmatpush1.msra.mxu0 0.0
        %3542 = vmatprep.subr.mxu0 0.0
        %3543 = vmatpush1.msra.mxu0 0.0
        %3544 = vmatprep.subr.mxu0 0.0
        %3545 = vmatpush1.msra.mxu0 0.0
        %3546 = vmatprep.subr.mxu0 0.0
        %3547 = vmatpush1.msra.mxu0 0.0
        %3548 = vmatprep.subr.mxu0 0.0
        %3549 = vmatpush1.msra.mxu0 0.0
        %3550 = vmatprep.subr.mxu0 0.0
        %3551 = vmatpush1.msra.mxu0 0.0
        %3552 = vmatprep.subr.mxu0 0.0
        %3553 = vmatpush1.msra.mxu0 0.0
        %3554 = vmatprep.subr.mxu0 0.0
        %3555 = vmatpush1.msra.mxu0 0.0
        %3556 = vmatprep.mubr.f32.mxu0 0.0
        %3557 = vmatmul.mubr.f32.gmra.mrb[0].mxu0 %v3303
        %v3558 = vpop.f32.mrb[0].mxu0
        %v3559 = vadd.f32 %v3285, %v3558
        %v3560 = vpop.f32.mrb[0].mxu0
        %v3561 = vadd.f32 %v3285, %v3560
        %3562 = vmatprep.mubr.f32.mxu0 0.0
        %3563 = vmatmul.mubr.f32.gmra.mrb[0].mxu0 %v3306
        %v3564 = vpop.f32.mrb[0].mxu0
        %v3565 = vadd.f32 %v3290, %v3564
        %v3566 = vpop.f32.mrb[0].mxu0
        %v3567 = vadd.f32 %v3290, %v3566
        %3568 = vmatprep.mubr.f32.mxu0 0.0
        %3569 = vmatmul.mubr.f32.gmra.mrb[0].mxu0 %v3309
        %v3570 = vpop.f32.mrb[0].mxu0
        %v3571 = vadd.f32 %v3295, %v3570
        %v3572 = vpop.f32.mrb[0].mxu0
        %v3573 = vadd.f32 %v3295, %v3572
        %3574 = vmatprep.mubr.f32.mxu0 0.0
        %3575 = vmatmul.mubr.f32.gmra.mrb[0].mxu0 %v3312
        %v3576 = vpop.f32.mrb[0].mxu0
        %v3577 = vadd.f32 %v3300, %v3576
        %v3578 = vpop.f32.mrb[0].mxu0
        %v3579 = vadd.f32 %v3300, %v3578
        %3580 = vdwg.mxu0
        %vm3581 = vcmp.ge.s32.totalorder %v2574, 1
        %vm3582 = vcmp.ge.s32.totalorder %v2575, 1
        %vm3583 = vcmp.ge.s32.totalorder %v2576, 1
        %vm3584 = vcmp.ge.s32.totalorder %v2577, 1
        %vm3585 = vcmp.ge.s32.totalorder %v2578, 1
        %vm3586 = vcmp.ge.s32.totalorder %v2579, 1
        %3587 = vrot.lane.b32.xlu0 %v3381, 1
        %v3588 = vpop.permute.xlu0 %3587
        %3589 = vrot.lane.b32.xlu0 %v3387, 1
        %v3590 = vpop.permute.xlu0 %3589
        %3591 = vrot.lane.b32.xlu0 %v3393, 1
        %v3592 = vpop.permute.xlu0 %3591
        %3593 = vrot.lane.b32.xlu0 %v3399, 1
        %v3594 = vpop.permute.xlu0 %3593
        %3595 = vrot.lane.b32.xlu0 %v3383, 1
        %v3596 = vpop.permute.xlu0 %3595
        %3597 = vrot.lane.b32.xlu0 %v3389, 1
        %v3598 = vpop.permute.xlu0 %3597
        %3599 = vrot.lane.b32.xlu0 %v3395, 1
        %v3600 = vpop.permute.xlu0 %3599
        %3601 = vrot.lane.b32.xlu0 %v3401, 1
        %v3602 = vpop.permute.xlu0 %3601
        %3603 = vrot.lane.b32.xlu0 %v3470, 1
        %v3604 = vpop.permute.xlu0 %3603
        %3605 = vrot.lane.b32.xlu0 %v3476, 1
        %v3606 = vpop.permute.xlu0 %3605
        %3607 = vrot.lane.b32.xlu0 %v3482, 1
        %v3608 = vpop.permute.xlu0 %3607
        %3609 = vrot.lane.b32.xlu0 %v3488, 1
        %v3610 = vpop.permute.xlu0 %3609
        %3611 = vrot.lane.b32.xlu0 %v3472, 1
        %v3612 = vpop.permute.xlu0 %3611
        %3613 = vrot.lane.b32.xlu0 %v3478, 1
        %v3614 = vpop.permute.xlu0 %3613
        %3615 = vrot.lane.b32.xlu0 %v3484, 1
        %v3616 = vpop.permute.xlu0 %3615
        %3617 = vrot.lane.b32.xlu0 %v3490, 1
        %v3618 = vpop.permute.xlu0 %3617
        %3619 = vrot.lane.b32.xlu0 %v3559, 1
        %v3620 = vpop.permute.xlu0 %3619
        %3621 = vrot.lane.b32.xlu0 %v3565, 1
        %v3622 = vpop.permute.xlu0 %3621
        %3623 = vrot.lane.b32.xlu0 %v3571, 1
        %v3624 = vpop.permute.xlu0 %3623
        %3625 = vrot.lane.b32.xlu0 %v3577, 1
        %v3626 = vpop.permute.xlu0 %3625
        %3627 = vrot.lane.b32.xlu0 %v3561, 1
        %v3628 = vpop.permute.xlu0 %3627
        %3629 = vrot.lane.b32.xlu0 %v3567, 1
        %v3630 = vpop.permute.xlu0 %3629
        %3631 = vrot.lane.b32.xlu0 %v3573, 1
        %v3632 = vpop.permute.xlu0 %3631
        %3633 = vrot.lane.b32.xlu0 %v3579, 1
        %v3634 = vpop.permute.xlu0 %3633
        %vm3635 = vcmp.lt.s32.totalorder %v2574, 1
        %v3636 = vsel %vm3635, %v3620, %v3628
        %v3637 = vsel %vm3635, %v3622, %v3630
        %v3638 = vsel %vm3635, %v3624, %v3632
        %v3639 = vsel %vm3635, %v3626, %v3634
        %v3640 = vsel %vm3635, %v3612, %v3620
        %v3641 = vsel %vm3635, %v3614, %v3622
        %v3642 = vsel %vm3635, %v3616, %v3624
        %v3643 = vsel %vm3635, %v3618, %v3626
        %v3644 = vsel %vm3635, %v3604, %v3612
        %v3645 = vsel %vm3635, %v3606, %v3614
        %v3646 = vsel %vm3635, %v3608, %v3616
        %v3647 = vsel %vm3635, %v3610, %v3618
        %v3648 = vsel %vm3635, %v3596, %v3604
        %v3649 = vsel %vm3635, %v3598, %v3606
        %v3650 = vsel %vm3635, %v3600, %v3608
        %v3651 = vsel %vm3635, %v3602, %v3610
        %v3652 = vsel %vm3635, %v3588, %v3596
        %v3653 = vsel %vm3635, %v3590, %v3598
        %v3654 = vsel %vm3635, %v3592, %v3600
        %v3655 = vsel %vm3635, %v3594, %v3602
        %v3656 = vsel %vm3635, %v3628, %v3588
        %v3657 = vsel %vm3635, %v3630, %v3590
        %v3658 = vsel %vm3635, %v3632, %v3592
        %v3659 = vsel %vm3635, %v3634, %v3594
        %v3660 = vsel %vm3581, %v3656, 0.0
        %v3661 = vsel %vm3582, %v3652, 0.0
        %v3662 = vsel %vm3583, %v3648, 0.0
        %v3663 = vsel %vm3584, %v3644, 0.0
        %v3664 = vsel %vm3585, %v3640, 0.0
        %v3665 = vsel %vm3586, %v3636, 0.0
        %v3666 = vsel %vm3581, %v3657, 0.0
        %v3667 = vsel %vm3582, %v3653, 0.0
        %v3668 = vsel %vm3583, %v3649, 0.0
        %v3669 = vsel %vm3584, %v3645, 0.0
        %v3670 = vsel %vm3585, %v3641, 0.0
        %v3671 = vsel %vm3586, %v3637, 0.0
        %v3672 = vsel %vm3581, %v3658, 0.0
        %v3673 = vsel %vm3582, %v3654, 0.0
        %v3674 = vsel %vm3583, %v3650, 0.0
        %v3675 = vsel %vm3584, %v3646, 0.0
        %v3676 = vsel %vm3585, %v3642, 0.0
        %v3677 = vsel %vm3586, %v3638, 0.0
        %v3678 = vsel %vm3581, %v3659, 0.0
        %v3679 = vsel %vm3582, %v3655, 0.0
        %v3680 = vsel %vm3583, %v3651, 0.0
        %v3681 = vsel %vm3584, %v3647, 0.0
        %v3682 = vsel %vm3585, %v3643, 0.0
        %v3683 = vsel %vm3586, %v3639, 0.0
        %v3684 = vld [vmem:[%s8] sm:$0xff]
        %v3685 = vld [vmem:[%s8 + $0x8] sm:$0xff]
        %v3686 = vld [vmem:[%s8 + $0x10] sm:$0xff]
        %v3687 = vld [vmem:[%s8 + $0x18] sm:$0xff]
        %v3688 = vld [vmem:[%s9] sm:$0xff]
        %v3689 = vld [vmem:[%s9 + $0x8] sm:$0xff]
        %v3690 = vld [vmem:[%s9 + $0x10] sm:$0xff]
        %v3691 = vld [vmem:[%s9 + $0x18] sm:$0xff]
        %3693 = vset.pattern.permute.xlu0 0
        %3694 = vperm.xlu0 %3693, %v3688
        %v3695 = vpop.permute.xlu0 %3694
        %3698 = vset.pattern.permute.xlu0 0
        %3699 = vperm.xlu0 %3698, %v3689
        %v3700 = vpop.permute.xlu0 %3699
        %3703 = vset.pattern.permute.xlu0 0
        %3704 = vperm.xlu0 %3703, %v3690
        %v3705 = vpop.permute.xlu0 %3704
        %3708 = vset.pattern.permute.xlu0 0
        %3709 = vperm.xlu0 %3708, %v3691
        %v3710 = vpop.permute.xlu0 %3709
        %vm3712 = vcmask 523264
        %v3714 = vsel %vm3712, %v3684, 0
        %v3717 = vsel %vm3712, %v3685, 0
        %v3720 = vsel %vm3712, %v3686, 0
        %v3723 = vsel %vm3712, %v3687, 0
        %3725 = vmatprep.subr.mxu0 %v3661
        %3726 = vmatpush1.msra.mxu0 %v3660
        %3727 = vmatprep.subr.mxu0 %v3667
        %3728 = vmatpush1.msra.mxu0 %v3666
        %3729 = vmatprep.subr.mxu0 %v3673
        %3730 = vmatpush1.msra.mxu0 %v3672
        %3731 = vmatprep.subr.mxu0 %v3679
        %3732 = vmatpush1.msra.mxu0 %v3678
        %3733 = vmatprep.subr.mxu0 %v3383
        %3734 = vmatpush1.msra.mxu0 %v3381
        %3735 = vmatprep.subr.mxu0 %v3389
        %3736 = vmatpush1.msra.mxu0 %v3387
        %3737 = vmatprep.subr.mxu0 %v3395
        %3738 = vmatpush1.msra.mxu0 %v3393
        %3739 = vmatprep.subr.mxu0 %v3401
        %3740 = vmatpush1.msra.mxu0 %v3399
        %3741 = vmatprep.subr.mxu0 0.0
        %3742 = vmatpush1.msra.mxu0 0.0
        %3743 = vmatprep.subr.mxu0 0.0
        %3744 = vmatpush1.msra.mxu0 0.0
        %3745 = vmatprep.subr.mxu0 0.0
        %3746 = vmatpush1.msra.mxu0 0.0
        %3747 = vmatprep.subr.mxu0 0.0
        %3748 = vmatpush1.msra.mxu0 0.0
        %3749 = vmatprep.subr.mxu0 0.0
        %3750 = vmatpush1.msra.mxu0 0.0
        %3751 = vmatprep.subr.mxu0 0.0
        %3752 = vmatpush1.msra.mxu0 0.0
        %3753 = vmatprep.subr.mxu0 0.0
        %3754 = vmatpush1.msra.mxu0 0.0
        %3755 = vmatprep.subr.mxu0 0.0
        %3756 = vmatpush1.msra.mxu0 0.0
        %3757 = vmatprep.subr.mxu0 0.0
        %3758 = vmatpush1.msra.mxu0 0.0
        %3759 = vmatprep.subr.mxu0 0.0
        %3760 = vmatpush1.msra.mxu0 0.0
        %3761 = vmatprep.subr.mxu0 0.0
        %3762 = vmatpush1.msra.mxu0 0.0
        %3763 = vmatprep.subr.mxu0 0.0
        %3764 = vmatpush1.msra.mxu0 0.0
        %3765 = vmatprep.subr.mxu0 0.0
        %3766 = vmatpush1.msra.mxu0 0.0
        %3767 = vmatprep.subr.mxu0 0.0
        %3768 = vmatpush1.msra.mxu0 0.0
        %3769 = vmatprep.subr.mxu0 0.0
        %3770 = vmatpush1.msra.mxu0 0.0
        %3771 = vmatprep.subr.mxu0 0.0
        %3772 = vmatpush1.msra.mxu0 0.0
        %3773 = vmatprep.subr.mxu0 0.0
        %3774 = vmatpush1.msra.mxu0 0.0
        %3775 = vmatprep.subr.mxu0 0.0
        %3776 = vmatpush1.msra.mxu0 0.0
        %3777 = vmatprep.subr.mxu0 0.0
        %3778 = vmatpush1.msra.mxu0 0.0
        %3779 = vmatprep.subr.mxu0 0.0
        %3780 = vmatpush1.msra.mxu0 0.0
        %3781 = vmatprep.subr.mxu0 0.0
        %3782 = vmatpush1.msra.mxu0 0.0
        %3783 = vmatprep.subr.mxu0 0.0
        %3784 = vmatpush1.msra.mxu0 0.0
        %3785 = vmatprep.subr.mxu0 0.0
        %3786 = vmatpush1.msra.mxu0 0.0
        %3787 = vmatprep.subr.mxu0 0.0
        %3788 = vmatpush1.msra.mxu0 0.0
        %3789 = vmatprep.mubr.f32.mxu0 0.0
        %3790 = vmatmul.mubr.f32.gmra.mrb[0].mxu0 %v3714
        %v3791 = vpop.f32.mrb[0].mxu0
        %v3792 = vadd.f32 %v3695, %v3791
        %v3793 = vpop.f32.mrb[0].mxu0
        %v3794 = vadd.f32 %v3695, %v3793
        %3795 = vmatprep.mubr.f32.mxu0 0.0
        %3796 = vmatmul.mubr.f32.gmra.mrb[0].mxu0 %v3717
        %v3797 = vpop.f32.mrb[0].mxu0
        %v3798 = vadd.f32 %v3700, %v3797
        %v3799 = vpop.f32.mrb[0].mxu0
        %v3800 = vadd.f32 %v3700, %v3799
        %3801 = vmatprep.mubr.f32.mxu0 0.0
        %3802 = vmatmul.mubr.f32.gmra.mrb[0].mxu0 %v3720
        %v3803 = vpop.f32.mrb[0].mxu0
        %v3804 = vadd.f32 %v3705, %v3803
        %v3805 = vpop.f32.mrb[0].mxu0
        %v3806 = vadd.f32 %v3705, %v3805
        %3807 = vmatprep.mubr.f32.mxu0 0.0
        %3808 = vmatmul.mubr.f32.gmra.mrb[0].mxu0 %v3723
        %v3809 = vpop.f32.mrb[0].mxu0
        %v3810 = vadd.f32 %v3710, %v3809
        %v3811 = vpop.f32.mrb[0].mxu0
        %v3812 = vadd.f32 %v3710, %v3811
        %3813 = vdwg.mxu0
        %3814 = vmatprep.subr.mxu0 %v3663
        %3815 = vmatpush1.msra.mxu0 %v3662
        %3816 = vmatprep.subr.mxu0 %v3669
        %3817 = vmatpush1.msra.mxu0 %v3668
        %3818 = vmatprep.subr.mxu0 %v3675
        %3819 = vmatpush1.msra.mxu0 %v3674
        %3820 = vmatprep.subr.mxu0 %v3681
        %3821 = vmatpush1.msra.mxu0 %v3680
        %3822 = vmatprep.subr.mxu0 %v3472
        %3823 = vmatpush1.msra.mxu0 %v3470
        %3824 = vmatprep.subr.mxu0 %v3478
        %3825 = vmatpush1.msra.mxu0 %v3476
        %3826 = vmatprep.subr.mxu0 %v3484
        %3827 = vmatpush1.msra.mxu0 %v3482
        %3828 = vmatprep.subr.mxu0 %v3490
        %3829 = vmatpush1.msra.mxu0 %v3488
        %3830 = vmatprep.subr.mxu0 0.0
        %3831 = vmatpush1.msra.mxu0 0.0
        %3832 = vmatprep.subr.mxu0 0.0
        %3833 = vmatpush1.msra.mxu0 0.0
        %3834 = vmatprep.subr.mxu0 0.0
        %3835 = vmatpush1.msra.mxu0 0.0
        %3836 = vmatprep.subr.mxu0 0.0
        %3837 = vmatpush1.msra.mxu0 0.0
        %3838 = vmatprep.subr.mxu0 0.0
        %3839 = vmatpush1.msra.mxu0 0.0
        %3840 = vmatprep.subr.mxu0 0.0
        %3841 = vmatpush1.msra.mxu0 0.0
        %3842 = vmatprep.subr.mxu0 0.0
        %3843 = vmatpush1.msra.mxu0 0.0
        %3844 = vmatprep.subr.mxu0 0.0
        %3845 = vmatpush1.msra.mxu0 0.0
        %3846 = vmatprep.subr.mxu0 0.0
        %3847 = vmatpush1.msra.mxu0 0.0
        %3848 = vmatprep.subr.mxu0 0.0
        %3849 = vmatpush1.msra.mxu0 0.0
        %3850 = vmatprep.subr.mxu0 0.0
        %3851 = vmatpush1.msra.mxu0 0.0
        %3852 = vmatprep.subr.mxu0 0.0
        %3853 = vmatpush1.msra.mxu0 0.0
        %3854 = vmatprep.subr.mxu0 0.0
        %3855 = vmatpush1.msra.mxu0 0.0
        %3856 = vmatprep.subr.mxu0 0.0
        %3857 = vmatpush1.msra.mxu0 0.0
        %3858 = vmatprep.subr.mxu0 0.0
        %3859 = vmatpush1.msra.mxu0 0.0
        %3860 = vmatprep.subr.mxu0 0.0
        %3861 = vmatpush1.msra.mxu0 0.0
        %3862 = vmatprep.subr.mxu0 0.0
        %3863 = vmatpush1.msra.mxu0 0.0
        %3864 = vmatprep.subr.mxu0 0.0
        %3865 = vmatpush1.msra.mxu0 0.0
        %3866 = vmatprep.subr.mxu0 0.0
        %3867 = vmatpush1.msra.mxu0 0.0
        %3868 = vmatprep.subr.mxu0 0.0
        %3869 = vmatpush1.msra.mxu0 0.0
        %3870 = vmatprep.subr.mxu0 0.0
        %3871 = vmatpush1.msra.mxu0 0.0
        %3872 = vmatprep.subr.mxu0 0.0
        %3873 = vmatpush1.msra.mxu0 0.0
        %3874 = vmatprep.subr.mxu0 0.0
        %3875 = vmatpush1.msra.mxu0 0.0
        %3876 = vmatprep.subr.mxu0 0.0
        %3877 = vmatpush1.msra.mxu0 0.0
        %3878 = vmatprep.mubr.f32.mxu0 0.0
        %3879 = vmatmul.mubr.f32.gmra.mrb[0].mxu0 %v3714
        %v3880 = vpop.f32.mrb[0].mxu0
        %v3881 = vadd.f32 %v3695, %v3880
        %v3882 = vpop.f32.mrb[0].mxu0
        %v3883 = vadd.f32 %v3695, %v3882
        %3884 = vmatprep.mubr.f32.mxu0 0.0
        %3885 = vmatmul.mubr.f32.gmra.mrb[0].mxu0 %v3717
        %v3886 = vpop.f32.mrb[0].mxu0
        %v3887 = vadd.f32 %v3700, %v3886
        %v3888 = vpop.f32.mrb[0].mxu0
        %v3889 = vadd.f32 %v3700, %v3888
        %3890 = vmatprep.mubr.f32.mxu0 0.0
        %3891 = vmatmul.mubr.f32.gmra.mrb[0].mxu0 %v3720
        %v3892 = vpop.f32.mrb[0].mxu0
        %v3893 = vadd.f32 %v3705, %v3892
        %v3894 = vpop.f32.mrb[0].mxu0
        %v3895 = vadd.f32 %v3705, %v3894
        %3896 = vmatprep.mubr.f32.mxu0 0.0
        %3897 = vmatmul.mubr.f32.gmra.mrb[0].mxu0 %v3723
        %v3898 = vpop.f32.mrb[0].mxu0
        %v3899 = vadd.f32 %v3710, %v3898
        %v3900 = vpop.f32.mrb[0].mxu0
        %v3901 = vadd.f32 %v3710, %v3900
        %3902 = vdwg.mxu0
        %3903 = vmatprep.subr.mxu0 %v3665
        %3904 = vmatpush1.msra.mxu0 %v3664
        %3905 = vmatprep.subr.mxu0 %v3671
        %3906 = vmatpush1.msra.mxu0 %v3670
        %3907 = vmatprep.subr.mxu0 %v3677
        %3908 = vmatpush1.msra.mxu0 %v3676
        %3909 = vmatprep.subr.mxu0 %v3683
        %3910 = vmatpush1.msra.mxu0 %v3682
        %3911 = vmatprep.subr.mxu0 %v3561
        %3912 = vmatpush1.msra.mxu0 %v3559
        %3913 = vmatprep.subr.mxu0 %v3567
        %3914 = vmatpush1.msra.mxu0 %v3565
        %3915 = vmatprep.subr.mxu0 %v3573
        %3916 = vmatpush1.msra.mxu0 %v3571
        %3917 = vmatprep.subr.mxu0 %v3579
        %3918 = vmatpush1.msra.mxu0 %v3577
        %3919 = vmatprep.subr.mxu0 0.0
        %3920 = vmatpush1.msra.mxu0 0.0
        %3921 = vmatprep.subr.mxu0 0.0
        %3922 = vmatpush1.msra.mxu0 0.0
        %3923 = vmatprep.subr.mxu0 0.0
        %3924 = vmatpush1.msra.mxu0 0.0
        %3925 = vmatprep.subr.mxu0 0.0
        %3926 = vmatpush1.msra.mxu0 0.0
        %3927 = vmatprep.subr.mxu0 0.0
        %3928 = vmatpush1.msra.mxu0 0.0
        %3929 = vmatprep.subr.mxu0 0.0
        %3930 = vmatpush1.msra.mxu0 0.0
        %3931 = vmatprep.subr.mxu0 0.0
        %3932 = vmatpush1.msra.mxu0 0.0
        %3933 = vmatprep.subr.mxu0 0.0
        %3934 = vmatpush1.msra.mxu0 0.0
        %3935 = vmatprep.subr.mxu0 0.0
        %3936 = vmatpush1.msra.mxu0 0.0
        %3937 = vmatprep.subr.mxu0 0.0
        %3938 = vmatpush1.msra.mxu0 0.0
        %3939 = vmatprep.subr.mxu0 0.0
        %3940 = vmatpush1.msra.mxu0 0.0
        %3941 = vmatprep.subr.mxu0 0.0
        %3942 = vmatpush1.msra.mxu0 0.0
        %3943 = vmatprep.subr.mxu0 0.0
        %3944 = vmatpush1.msra.mxu0 0.0
        %3945 = vmatprep.subr.mxu0 0.0
        %3946 = vmatpush1.msra.mxu0 0.0
        %3947 = vmatprep.subr.mxu0 0.0
        %3948 = vmatpush1.msra.mxu0 0.0
        %3949 = vmatprep.subr.mxu0 0.0
        %3950 = vmatpush1.msra.mxu0 0.0
        %3951 = vmatprep.subr.mxu0 0.0
        %3952 = vmatpush1.msra.mxu0 0.0
        %3953 = vmatprep.subr.mxu0 0.0
        %3954 = vmatpush1.msra.mxu0 0.0
        %3955 = vmatprep.subr.mxu0 0.0
        %3956 = vmatpush1.msra.mxu0 0.0
        %3957 = vmatprep.subr.mxu0 0.0
        %3958 = vmatpush1.msra.mxu0 0.0
        %3959 = vmatprep.subr.mxu0 0.0
        %3960 = vmatpush1.msra.mxu0 0.0
        %3961 = vmatprep.subr.mxu0 0.0
        %3962 = vmatpush1.msra.mxu0 0.0
        %3963 = vmatprep.subr.mxu0 0.0
        %3964 = vmatpush1.msra.mxu0 0.0
        %3965 = vmatprep.subr.mxu0 0.0
        %3966 = vmatpush1.msra.mxu0 0.0
        %3967 = vmatprep.mubr.f32.mxu0 0.0
        %3968 = vmatmul.mubr.f32.gmra.mrb[0].mxu0 %v3714
        %v3969 = vpop.f32.mrb[0].mxu0
        %v3970 = vadd.f32 %v3695, %v3969
        %v3971 = vpop.f32.mrb[0].mxu0
        %v3972 = vadd.f32 %v3695, %v3971
        %3973 = vmatprep.mubr.f32.mxu0 0.0
        %3974 = vmatmul.mubr.f32.gmra.mrb[0].mxu0 %v3717
        %v3975 = vpop.f32.mrb[0].mxu0
        %v3976 = vadd.f32 %v3700, %v3975
        %v3977 = vpop.f32.mrb[0].mxu0
        %v3978 = vadd.f32 %v3700, %v3977
        %3979 = vmatprep.mubr.f32.mxu0 0.0
        %3980 = vmatmul.mubr.f32.gmra.mrb[0].mxu0 %v3720
        %v3981 = vpop.f32.mrb[0].mxu0
        %v3982 = vadd.f32 %v3705, %v3981
        %v3983 = vpop.f32.mrb[0].mxu0
        %v3984 = vadd.f32 %v3705, %v3983
        %3985 = vmatprep.mubr.f32.mxu0 0.0
        %3986 = vmatmul.mubr.f32.gmra.mrb[0].mxu0 %v3723
        %v3987 = vpop.f32.mrb[0].mxu0
        %v3988 = vadd.f32 %v3710, %v3987
        %v3989 = vpop.f32.mrb[0].mxu0
        %v3990 = vadd.f32 %v3710, %v3989
        %3991 = vdwg.mxu0
        %v3992 = vld [vmem:[#allocation2] sm:$0xff]
        %v3993 = vld [vmem:[#allocation2 + $0x8] sm:$0xff]
        %v3994 = vld [vmem:[#allocation2 + $0x10] sm:$0xff]
        %v3995 = vld [vmem:[#allocation2 + $0x18] sm:$0xff]
        %v3996 = vld [vmem:[#allocation2 + $0x20] sm:$0xff]
        %v3997 = vld [vmem:[#allocation2 + $0x28] sm:$0xff]
        %v3998 = vld [vmem:[#allocation2 + $0x30] sm:$0xff]
        %v3999 = vld [vmem:[#allocation2 + $0x38] sm:$0xff]
        %v4000 = vld [vmem:[#allocation2 + $0x40] sm:$0xff]
        %v4001 = vld [vmem:[#allocation2 + $0x48] sm:$0xff]
        %v4002 = vld [vmem:[#allocation2 + $0x50] sm:$0xff]
        %v4003 = vld [vmem:[#allocation2 + $0x58] sm:$0xff]
        %v4004 = vld [vmem:[#allocation2 + $0x60] sm:$0xff]
        %v4005 = vld [vmem:[#allocation2 + $0x68] sm:$0xff]
        %v4006 = vld [vmem:[#allocation2 + $0x70] sm:$0xff]
        %v4007 = vld [vmem:[#allocation2 + $0x78] sm:$0xff]
        %v4008 = vld [vmem:[#allocation2 + $0x80] sm:$0xff]
        %v4009 = vld [vmem:[#allocation2 + $0x88] sm:$0xff]
        %v4010 = vld [vmem:[#allocation2 + $0x90] sm:$0xff]
        %v4011 = vld [vmem:[#allocation2 + $0x98] sm:$0xff]
        %v4012 = vld [vmem:[#allocation2 + $0xa0] sm:$0xff]
        %v4013 = vld [vmem:[#allocation2 + $0xa8] sm:$0xff]
        %v4014 = vld [vmem:[#allocation2 + $0xb0] sm:$0xff]
        %v4015 = vld [vmem:[#allocation2 + $0xb8] sm:$0xff]
        %v4016 = vadd.f32 %v3792, %v3992
        %v4017 = vadd.f32 %v3794, %v3993
        %v4018 = vadd.f32 %v3881, %v3994
        %v4019 = vadd.f32 %v3883, %v3995
        %v4020 = vadd.f32 %v3970, %v3996
        %v4021 = vadd.f32 %v3972, %v3997
        %v4022 = vadd.f32 %v3798, %v3998
        %v4023 = vadd.f32 %v3800, %v3999
        %v4024 = vadd.f32 %v3887, %v4000
        %v4025 = vadd.f32 %v3889, %v4001
        %v4026 = vadd.f32 %v3976, %v4002
        %v4027 = vadd.f32 %v3978, %v4003
        %v4028 = vadd.f32 %v3804, %v4004
        %v4029 = vadd.f32 %v3806, %v4005
        %v4030 = vadd.f32 %v3893, %v4006
        %v4031 = vadd.f32 %v3895, %v4007
        %v4032 = vadd.f32 %v3982, %v4008
        %v4033 = vadd.f32 %v3984, %v4009
        %v4034 = vadd.f32 %v3810, %v4010
        %v4035 = vadd.f32 %v3812, %v4011
        %v4036 = vadd.f32 %v3899, %v4012
        %v4037 = vadd.f32 %v3901, %v4013
        %v4038 = vadd.f32 %v3988, %v4014
        %v4039 = vadd.f32 %v3990, %v4015
        %v4040 = vtanh.pop %v4016
        %v4041 = vtanh.pop %v4017
        %v4042 = vtanh.pop %v4018
        %v4043 = vtanh.pop %v4019
        %v4044 = vtanh.pop %v4020
        %v4045 = vtanh.pop %v4021
        %v4046 = vtanh.pop %v4022
        %v4047 = vtanh.pop %v4023
        %v4048 = vtanh.pop %v4024
        %v4049 = vtanh.pop %v4025
        %v4050 = vtanh.pop %v4026
        %v4051 = vtanh.pop %v4027
        %v4052 = vxor.u32 %v4028, 2147483648
        %v4053 = vxor.u32 %v4029, 2147483648
        %v4054 = vxor.u32 %v4030, 2147483648
        %v4055 = vxor.u32 %v4031, 2147483648
        %v4056 = vxor.u32 %v4032, 2147483648
        %v4057 = vxor.u32 %v4033, 2147483648
        %v4058 = vxor.u32 %v4034, 2147483648
        %v4059 = vxor.u32 %v4035, 2147483648
        %v4060 = vxor.u32 %v4036, 2147483648
        %v4061 = vxor.u32 %v4037, 2147483648
        %v4062 = vxor.u32 %v4038, 2147483648
        %v4063 = vxor.u32 %v4039, 2147483648
        %v4064 = vmul.f32 %v4052, 1.442695
        %v4065 = vpow.pop %v4064
        %v4066 = vmul.f32 %v4053, 1.442695
        %v4067 = vpow.pop %v4066
        %v4068 = vmul.f32 %v4054, 1.442695
        %v4069 = vpow.pop %v4068
        %v4070 = vmul.f32 %v4055, 1.442695
        %v4071 = vpow.pop %v4070
        %v4072 = vmul.f32 %v4056, 1.442695
        %v4073 = vpow.pop %v4072
        %v4074 = vmul.f32 %v4057, 1.442695
        %v4075 = vpow.pop %v4074
        %v4076 = vmul.f32 %v4058, 1.442695
        %v4077 = vpow.pop %v4076
        %v4078 = vmul.f32 %v4059, 1.442695
        %v4079 = vpow.pop %v4078
        %v4080 = vmul.f32 %v4060, 1.442695
        %v4081 = vpow.pop %v4080
        %v4082 = vmul.f32 %v4061, 1.442695
        %v4083 = vpow.pop %v4082
        %v4084 = vmul.f32 %v4062, 1.442695
        %v4085 = vpow.pop %v4084
        %v4086 = vmul.f32 %v4063, 1.442695
        %v4087 = vpow.pop %v4086
        %v4088 = vadd.f32 %v4065, 1.0
        %v4089 = vadd.f32 %v4067, 1.0
        %v4090 = vadd.f32 %v4069, 1.0
        %v4091 = vadd.f32 %v4071, 1.0
        %v4092 = vadd.f32 %v4073, 1.0
        %v4093 = vadd.f32 %v4075, 1.0
        %v4094 = vadd.f32 %v4077, 1.0
        %v4095 = vadd.f32 %v4079, 1.0
        %v4096 = vadd.f32 %v4081, 1.0
        %v4097 = vadd.f32 %v4083, 1.0
        %v4098 = vadd.f32 %v4085, 1.0
        %v4099 = vadd.f32 %v4087, 1.0
        %v4100 = vrcp.pop %v4088
        %v4101 = vmul.f32 1.0, %v4100
        %v4102 = vrcp.pop %v4089
        %v4103 = vmul.f32 1.0, %v4102
        %v4104 = vrcp.pop %v4090
        %v4105 = vmul.f32 1.0, %v4104
        %v4106 = vrcp.pop %v4091
        %v4107 = vmul.f32 1.0, %v4106
        %v4108 = vrcp.pop %v4092
        %v4109 = vmul.f32 1.0, %v4108
        %v4110 = vrcp.pop %v4093
        %v4111 = vmul.f32 1.0, %v4110
        %v4112 = vrcp.pop %v4094
        %v4113 = vmul.f32 1.0, %v4112
        %v4114 = vrcp.pop %v4095
        %v4115 = vmul.f32 1.0, %v4114
        %v4116 = vrcp.pop %v4096
        %v4117 = vmul.f32 1.0, %v4116
        %v4118 = vrcp.pop %v4097
        %v4119 = vmul.f32 1.0, %v4118
        %v4120 = vrcp.pop %v4098
        %v4121 = vmul.f32 1.0, %v4120
        %v4122 = vrcp.pop %v4099
        %v4123 = vmul.f32 1.0, %v4122
        %v4124 = vmul.f32 %v4040, %v4101
        %v4125 = vmul.f32 %v4041, %v4103
        %v4126 = vmul.f32 %v4042, %v4105
        %v4127 = vmul.f32 %v4043, %v4107
        %v4128 = vmul.f32 %v4044, %v4109
        %v4129 = vmul.f32 %v4045, %v4111
        %v4130 = vmul.f32 %v4046, %v4113
        %v4131 = vmul.f32 %v4047, %v4115
        %v4132 = vmul.f32 %v4048, %v4117
        %v4133 = vmul.f32 %v4049, %v4119
        %v4134 = vmul.f32 %v4050, %v4121
        %v4135 = vmul.f32 %v4051, %v4123
        %v4136 = vld [vmem:[%s10] sm:$0xff]
        %v4137 = vld [vmem:[%s10 + $0x8] sm:$0xff]
        %v4138 = vld [vmem:[%s10 + $0x10] sm:$0xff]
        %v4139 = vld [vmem:[%s10 + $0x18] sm:$0xff]
        %v4140 = vld [vmem:[%s10 + $0x20] sm:$0xff]
        %v4141 = vld [vmem:[%s10 + $0x28] sm:$0xff]
        %v4142 = vld [vmem:[%s10 + $0x30] sm:$0xff]
        %v4143 = vld [vmem:[%s10 + $0x38] sm:$0xff]
        %v4145 = vsel %vm1944, %v4136, 0
        %v4148 = vsel %vm1944, %v4137, 0
        %v4151 = vsel %vm1944, %v4138, 0
        %v4154 = vsel %vm1944, %v4139, 0
        %v4157 = vsel %vm1944, %v4140, 0
        %v4160 = vsel %vm1944, %v4141, 0
        %v4163 = vsel %vm1944, %v4142, 0
        %v4166 = vsel %vm1944, %v4143, 0
        %4168 = vmatprep.subr.mxu0 %v4125
        %4169 = vmatpush1.msra.mxu0 %v4124
        %4170 = vmatprep.subr.mxu0 %v4131
        %4171 = vmatpush1.msra.mxu0 %v4130
        %4172 = vmatprep.subr.mxu0 0.0
        %4173 = vmatpush1.msra.mxu0 0.0
        %4174 = vmatprep.subr.mxu0 0.0
        %4175 = vmatpush1.msra.mxu0 0.0
        %4176 = vmatprep.subr.mxu0 0.0
        %4177 = vmatpush1.msra.mxu0 0.0
        %4178 = vmatprep.subr.mxu0 0.0
        %4179 = vmatpush1.msra.mxu0 0.0
        %4180 = vmatprep.subr.mxu0 0.0
        %4181 = vmatpush1.msra.mxu0 0.0
        %4182 = vmatprep.subr.mxu0 0.0
        %4183 = vmatpush1.msra.mxu0 0.0
        %4184 = vmatprep.subr.mxu0 0.0
        %4185 = vmatpush1.msra.mxu0 0.0
        %4186 = vmatprep.subr.mxu0 0.0
        %4187 = vmatpush1.msra.mxu0 0.0
        %4188 = vmatprep.subr.mxu0 0.0
        %4189 = vmatpush1.msra.mxu0 0.0
        %4190 = vmatprep.subr.mxu0 0.0
        %4191 = vmatpush1.msra.mxu0 0.0
        %4192 = vmatprep.subr.mxu0 0.0
        %4193 = vmatpush1.msra.mxu0 0.0
        %4194 = vmatprep.subr.mxu0 0.0
        %4195 = vmatpush1.msra.mxu0 0.0
        %4196 = vmatprep.subr.mxu0 0.0
        %4197 = vmatpush1.msra.mxu0 0.0
        %4198 = vmatprep.subr.mxu0 0.0
        %4199 = vmatpush1.msra.mxu0 0.0
        %4200 = vmatprep.subr.mxu0 0.0
        %4201 = vmatpush1.msra.mxu0 0.0
        %4202 = vmatprep.subr.mxu0 0.0
        %4203 = vmatpush1.msra.mxu0 0.0
        %4204 = vmatprep.subr.mxu0 0.0
        %4205 = vmatpush1.msra.mxu0 0.0
        %4206 = vmatprep.subr.mxu0 0.0
        %4207 = vmatpush1.msra.mxu0 0.0
        %4208 = vmatprep.subr.mxu0 0.0
        %4209 = vmatpush1.msra.mxu0 0.0
        %4210 = vmatprep.subr.mxu0 0.0
        %4211 = vmatpush1.msra.mxu0 0.0
        %4212 = vmatprep.subr.mxu0 0.0
        %4213 = vmatpush1.msra.mxu0 0.0
        %4214 = vmatprep.subr.mxu0 0.0
        %4215 = vmatpush1.msra.mxu0 0.0
        %4216 = vmatprep.subr.mxu0 0.0
        %4217 = vmatpush1.msra.mxu0 0.0
        %4218 = vmatprep.subr.mxu0 0.0
        %4219 = vmatpush1.msra.mxu0 0.0
        %4220 = vmatprep.subr.mxu0 0.0
        %4221 = vmatpush1.msra.mxu0 0.0
        %4222 = vmatprep.subr.mxu0 0.0
        %4223 = vmatpush1.msra.mxu0 0.0
        %4224 = vmatprep.subr.mxu0 0.0
        %4225 = vmatpush1.msra.mxu0 0.0
        %4226 = vmatprep.subr.mxu0 0.0
        %4227 = vmatpush1.msra.mxu0 0.0
        %4228 = vmatprep.subr.mxu0 0.0
        %4229 = vmatpush1.msra.mxu0 0.0
        %4230 = vmatprep.subr.mxu0 0.0
        %4231 = vmatpush1.msra.mxu0 0.0
        %4232 = vmatprep.mubr.f32.mxu0 0.0
        %4233 = vmatmul.mubr.f32.gmra.mrb[0].mxu0 %v4145
        %v4234 = vpop.f32.mrb[0].mxu0
        %v4235 = vadd.f32 0.0, %v4234
        %v4236 = vpop.f32.mrb[0].mxu0
        %v4237 = vadd.f32 0.0, %v4236
        %4238 = vmatprep.mubr.f32.mxu0 0.0
        %4239 = vmatmul.mubr.f32.gmra.mrb[0].mxu0 %v4148
        %v4240 = vpop.f32.mrb[0].mxu0
        %v4241 = vadd.f32 0.0, %v4240
        %v4242 = vpop.f32.mrb[0].mxu0
        %v4243 = vadd.f32 0.0, %v4242
        %4244 = vmatprep.mubr.f32.mxu0 0.0
        %4245 = vmatmul.mubr.f32.gmra.mrb[0].mxu0 %v4151
        %v4246 = vpop.f32.mrb[0].mxu0
        %v4247 = vadd.f32 0.0, %v4246
        %v4248 = vpop.f32.mrb[0].mxu0
        %v4249 = vadd.f32 0.0, %v4248
        %4250 = vmatprep.mubr.f32.mxu0 0.0
        %4251 = vmatmul.mubr.f32.gmra.mrb[0].mxu0 %v4154
        %v4252 = vpop.f32.mrb[0].mxu0
        %v4253 = vadd.f32 0.0, %v4252
        %v4254 = vpop.f32.mrb[0].mxu0
        %v4255 = vadd.f32 0.0, %v4254
        %4256 = vmatprep.mubr.f32.mxu0 0.0
        %4257 = vmatmul.mubr.f32.gmra.mrb[0].mxu0 %v4157
        %v4258 = vpop.f32.mrb[0].mxu0
        %v4259 = vadd.f32 0.0, %v4258
        %v4260 = vpop.f32.mrb[0].mxu0
        %v4261 = vadd.f32 0.0, %v4260
        %4262 = vmatprep.mubr.f32.mxu0 0.0
        %4263 = vmatmul.mubr.f32.gmra.mrb[0].mxu0 %v4160
        %v4264 = vpop.f32.mrb[0].mxu0
        %v4265 = vadd.f32 0.0, %v4264
        %v4266 = vpop.f32.mrb[0].mxu0
        %v4267 = vadd.f32 0.0, %v4266
        %4268 = vmatprep.mubr.f32.mxu0 0.0
        %4269 = vmatmul.mubr.f32.gmra.mrb[0].mxu0 %v4163
        %v4270 = vpop.f32.mrb[0].mxu0
        %v4271 = vadd.f32 0.0, %v4270
        %v4272 = vpop.f32.mrb[0].mxu0
        %v4273 = vadd.f32 0.0, %v4272
        %4274 = vmatprep.mubr.f32.mxu0 0.0
        %4275 = vmatmul.mubr.f32.gmra.mrb[0].mxu0 %v4166
        %v4276 = vpop.f32.mrb[0].mxu0
        %v4277 = vadd.f32 0.0, %v4276
        %v4278 = vpop.f32.mrb[0].mxu0
        %v4279 = vadd.f32 0.0, %v4278
        %4280 = vdwg.mxu0
        %4281 = vmatprep.subr.mxu0 %v4127
        %4282 = vmatpush1.msra.mxu0 %v4126
        %4283 = vmatprep.subr.mxu0 %v4133
        %4284 = vmatpush1.msra.mxu0 %v4132
        %4285 = vmatprep.subr.mxu0 0.0
        %4286 = vmatpush1.msra.mxu0 0.0
        %4287 = vmatprep.subr.mxu0 0.0
        %4288 = vmatpush1.msra.mxu0 0.0
        %4289 = vmatprep.subr.mxu0 0.0
        %4290 = vmatpush1.msra.mxu0 0.0
        %4291 = vmatprep.subr.mxu0 0.0
        %4292 = vmatpush1.msra.mxu0 0.0
        %4293 = vmatprep.subr.mxu0 0.0
        %4294 = vmatpush1.msra.mxu0 0.0
        %4295 = vmatprep.subr.mxu0 0.0
        %4296 = vmatpush1.msra.mxu0 0.0
        %4297 = vmatprep.subr.mxu0 0.0
        %4298 = vmatpush1.msra.mxu0 0.0
        %4299 = vmatprep.subr.mxu0 0.0
        %4300 = vmatpush1.msra.mxu0 0.0
        %4301 = vmatprep.subr.mxu0 0.0
        %4302 = vmatpush1.msra.mxu0 0.0
        %4303 = vmatprep.subr.mxu0 0.0
        %4304 = vmatpush1.msra.mxu0 0.0
        %4305 = vmatprep.subr.mxu0 0.0
        %4306 = vmatpush1.msra.mxu0 0.0
        %4307 = vmatprep.subr.mxu0 0.0
        %4308 = vmatpush1.msra.mxu0 0.0
        %4309 = vmatprep.subr.mxu0 0.0
        %4310 = vmatpush1.msra.mxu0 0.0
        %4311 = vmatprep.subr.mxu0 0.0
        %4312 = vmatpush1.msra.mxu0 0.0
        %4313 = vmatprep.subr.mxu0 0.0
        %4314 = vmatpush1.msra.mxu0 0.0
        %4315 = vmatprep.subr.mxu0 0.0
        %4316 = vmatpush1.msra.mxu0 0.0
        %4317 = vmatprep.subr.mxu0 0.0
        %4318 = vmatpush1.msra.mxu0 0.0
        %4319 = vmatprep.subr.mxu0 0.0
        %4320 = vmatpush1.msra.mxu0 0.0
        %4321 = vmatprep.subr.mxu0 0.0
        %4322 = vmatpush1.msra.mxu0 0.0
        %4323 = vmatprep.subr.mxu0 0.0
        %4324 = vmatpush1.msra.mxu0 0.0
        %4325 = vmatprep.subr.mxu0 0.0
        %4326 = vmatpush1.msra.mxu0 0.0
        %4327 = vmatprep.subr.mxu0 0.0
        %4328 = vmatpush1.msra.mxu0 0.0
        %4329 = vmatprep.subr.mxu0 0.0
        %4330 = vmatpush1.msra.mxu0 0.0
        %4331 = vmatprep.subr.mxu0 0.0
        %4332 = vmatpush1.msra.mxu0 0.0
        %4333 = vmatprep.subr.mxu0 0.0
        %4334 = vmatpush1.msra.mxu0 0.0
        %4335 = vmatprep.subr.mxu0 0.0
        %4336 = vmatpush1.msra.mxu0 0.0
        %4337 = vmatprep.subr.mxu0 0.0
        %4338 = vmatpush1.msra.mxu0 0.0
        %4339 = vmatprep.subr.mxu0 0.0
        %4340 = vmatpush1.msra.mxu0 0.0
        %4341 = vmatprep.subr.mxu0 0.0
        %4342 = vmatpush1.msra.mxu0 0.0
        %4343 = vmatprep.subr.mxu0 0.0
        %4344 = vmatpush1.msra.mxu0 0.0
        %4345 = vmatprep.mubr.f32.mxu0 0.0
        %4346 = vmatmul.mubr.f32.gmra.mrb[0].mxu0 %v4145
        %v4347 = vpop.f32.mrb[0].mxu0
        %v4348 = vadd.f32 0.0, %v4347
        %v4349 = vpop.f32.mrb[0].mxu0
        %v4350 = vadd.f32 0.0, %v4349
        %4351 = vmatprep.mubr.f32.mxu0 0.0
        %4352 = vmatmul.mubr.f32.gmra.mrb[0].mxu0 %v4148
        %v4353 = vpop.f32.mrb[0].mxu0
        %v4354 = vadd.f32 0.0, %v4353
        %v4355 = vpop.f32.mrb[0].mxu0
        %v4356 = vadd.f32 0.0, %v4355
        %4357 = vmatprep.mubr.f32.mxu0 0.0
        %4358 = vmatmul.mubr.f32.gmra.mrb[0].mxu0 %v4151
        %v4359 = vpop.f32.mrb[0].mxu0
        %v4360 = vadd.f32 0.0, %v4359
        %v4361 = vpop.f32.mrb[0].mxu0
        %v4362 = vadd.f32 0.0, %v4361
        %4363 = vmatprep.mubr.f32.mxu0 0.0
        %4364 = vmatmul.mubr.f32.gmra.mrb[0].mxu0 %v4154
        %v4365 = vpop.f32.mrb[0].mxu0
        %v4366 = vadd.f32 0.0, %v4365
        %v4367 = vpop.f32.mrb[0].mxu0
        %v4368 = vadd.f32 0.0, %v4367
        %4369 = vmatprep.mubr.f32.mxu0 0.0
        %4370 = vmatmul.mubr.f32.gmra.mrb[0].mxu0 %v4157
        %v4371 = vpop.f32.mrb[0].mxu0
        %v4372 = vadd.f32 0.0, %v4371
        %v4373 = vpop.f32.mrb[0].mxu0
        %v4374 = vadd.f32 0.0, %v4373
        %4375 = vmatprep.mubr.f32.mxu0 0.0
        %4376 = vmatmul.mubr.f32.gmra.mrb[0].mxu0 %v4160
        %v4377 = vpop.f32.mrb[0].mxu0
        %v4378 = vadd.f32 0.0, %v4377
        %v4379 = vpop.f32.mrb[0].mxu0
        %v4380 = vadd.f32 0.0, %v4379
        %4381 = vmatprep.mubr.f32.mxu0 0.0
        %4382 = vmatmul.mubr.f32.gmra.mrb[0].mxu0 %v4163
        %v4383 = vpop.f32.mrb[0].mxu0
        %v4384 = vadd.f32 0.0, %v4383
        %v4385 = vpop.f32.mrb[0].mxu0
        %v4386 = vadd.f32 0.0, %v4385
        %4387 = vmatprep.mubr.f32.mxu0 0.0
        %4388 = vmatmul.mubr.f32.gmra.mrb[0].mxu0 %v4166
        %v4389 = vpop.f32.mrb[0].mxu0
        %v4390 = vadd.f32 0.0, %v4389
        %v4391 = vpop.f32.mrb[0].mxu0
        %v4392 = vadd.f32 0.0, %v4391
        %4393 = vdwg.mxu0
        %4394 = vmatprep.subr.mxu0 %v4129
        %4395 = vmatpush1.msra.mxu0 %v4128
        %4396 = vmatprep.subr.mxu0 %v4135
        %4397 = vmatpush1.msra.mxu0 %v4134
        %4398 = vmatprep.subr.mxu0 0.0
        %4399 = vmatpush1.msra.mxu0 0.0
        %4400 = vmatprep.subr.mxu0 0.0
        %4401 = vmatpush1.msra.mxu0 0.0
        %4402 = vmatprep.subr.mxu0 0.0
        %4403 = vmatpush1.msra.mxu0 0.0
        %4404 = vmatprep.subr.mxu0 0.0
        %4405 = vmatpush1.msra.mxu0 0.0
        %4406 = vmatprep.subr.mxu0 0.0
        %4407 = vmatpush1.msra.mxu0 0.0
        %4408 = vmatprep.subr.mxu0 0.0
        %4409 = vmatpush1.msra.mxu0 0.0
        %4410 = vmatprep.subr.mxu0 0.0
        %4411 = vmatpush1.msra.mxu0 0.0
        %4412 = vmatprep.subr.mxu0 0.0
        %4413 = vmatpush1.msra.mxu0 0.0
        %4414 = vmatprep.subr.mxu0 0.0
        %4415 = vmatpush1.msra.mxu0 0.0
        %4416 = vmatprep.subr.mxu0 0.0
        %4417 = vmatpush1.msra.mxu0 0.0
        %4418 = vmatprep.subr.mxu0 0.0
        %4419 = vmatpush1.msra.mxu0 0.0
        %4420 = vmatprep.subr.mxu0 0.0
        %4421 = vmatpush1.msra.mxu0 0.0
        %4422 = vmatprep.subr.mxu0 0.0
        %4423 = vmatpush1.msra.mxu0 0.0
        %4424 = vmatprep.subr.mxu0 0.0
        %4425 = vmatpush1.msra.mxu0 0.0
        %4426 = vmatprep.subr.mxu0 0.0
        %4427 = vmatpush1.msra.mxu0 0.0
        %4428 = vmatprep.subr.mxu0 0.0
        %4429 = vmatpush1.msra.mxu0 0.0
        %4430 = vmatprep.subr.mxu0 0.0
        %4431 = vmatpush1.msra.mxu0 0.0
        %4432 = vmatprep.subr.mxu0 0.0
        %4433 = vmatpush1.msra.mxu0 0.0
        %4434 = vmatprep.subr.mxu0 0.0
        %4435 = vmatpush1.msra.mxu0 0.0
        %4436 = vmatprep.subr.mxu0 0.0
        %4437 = vmatpush1.msra.mxu0 0.0
        %4438 = vmatprep.subr.mxu0 0.0
        %4439 = vmatpush1.msra.mxu0 0.0
        %4440 = vmatprep.subr.mxu0 0.0
        %4441 = vmatpush1.msra.mxu0 0.0
        %4442 = vmatprep.subr.mxu0 0.0
        %4443 = vmatpush1.msra.mxu0 0.0
        %4444 = vmatprep.subr.mxu0 0.0
        %4445 = vmatpush1.msra.mxu0 0.0
        %4446 = vmatprep.subr.mxu0 0.0
        %4447 = vmatpush1.msra.mxu0 0.0
        %4448 = vmatprep.subr.mxu0 0.0
        %4449 = vmatpush1.msra.mxu0 0.0
        %4450 = vmatprep.subr.mxu0 0.0
        %4451 = vmatpush1.msra.mxu0 0.0
        %4452 = vmatprep.subr.mxu0 0.0
        %4453 = vmatpush1.msra.mxu0 0.0
        %4454 = vmatprep.subr.mxu0 0.0
        %4455 = vmatpush1.msra.mxu0 0.0
        %4456 = vmatprep.subr.mxu0 0.0
        %4457 = vmatpush1.msra.mxu0 0.0
        %4458 = vmatprep.mubr.f32.mxu0 0.0
        %4459 = vmatmul.mubr.f32.gmra.mrb[0].mxu0 %v4145
        %v4460 = vpop.f32.mrb[0].mxu0
        %v4461 = vadd.f32 0.0, %v4460
        %v4462 = vpop.f32.mrb[0].mxu0
        %v4463 = vadd.f32 0.0, %v4462
        %4464 = vmatprep.mubr.f32.mxu0 0.0
        %4465 = vmatmul.mubr.f32.gmra.mrb[0].mxu0 %v4148
        %v4466 = vpop.f32.mrb[0].mxu0
        %v4467 = vadd.f32 0.0, %v4466
        %v4468 = vpop.f32.mrb[0].mxu0
        %v4469 = vadd.f32 0.0, %v4468
        %4470 = vmatprep.mubr.f32.mxu0 0.0
        %4471 = vmatmul.mubr.f32.gmra.mrb[0].mxu0 %v4151
        %v4472 = vpop.f32.mrb[0].mxu0
        %v4473 = vadd.f32 0.0, %v4472
        %v4474 = vpop.f32.mrb[0].mxu0
        %v4475 = vadd.f32 0.0, %v4474
        %4476 = vmatprep.mubr.f32.mxu0 0.0
        %4477 = vmatmul.mubr.f32.gmra.mrb[0].mxu0 %v4154
        %v4478 = vpop.f32.mrb[0].mxu0
        %v4479 = vadd.f32 0.0, %v4478
        %v4480 = vpop.f32.mrb[0].mxu0
        %v4481 = vadd.f32 0.0, %v4480
        %4482 = vmatprep.mubr.f32.mxu0 0.0
        %4483 = vmatmul.mubr.f32.gmra.mrb[0].mxu0 %v4157
        %v4484 = vpop.f32.mrb[0].mxu0
        %v4485 = vadd.f32 0.0, %v4484
        %v4486 = vpop.f32.mrb[0].mxu0
        %v4487 = vadd.f32 0.0, %v4486
        %4488 = vmatprep.mubr.f32.mxu0 0.0
        %4489 = vmatmul.mubr.f32.gmra.mrb[0].mxu0 %v4160
        %v4490 = vpop.f32.mrb[0].mxu0
        %v4491 = vadd.f32 0.0, %v4490
        %v4492 = vpop.f32.mrb[0].mxu0
        %v4493 = vadd.f32 0.0, %v4492
        %4494 = vmatprep.mubr.f32.mxu0 0.0
        %4495 = vmatmul.mubr.f32.gmra.mrb[0].mxu0 %v4163
        %v4496 = vpop.f32.mrb[0].mxu0
        %v4497 = vadd.f32 0.0, %v4496
        %v4498 = vpop.f32.mrb[0].mxu0
        %v4499 = vadd.f32 0.0, %v4498
        %4500 = vmatprep.mubr.f32.mxu0 0.0
        %4501 = vmatmul.mubr.f32.gmra.mrb[0].mxu0 %v4166
        %v4502 = vpop.f32.mrb[0].mxu0
        %v4503 = vadd.f32 0.0, %v4502
        %v4504 = vpop.f32.mrb[0].mxu0
        %v4505 = vadd.f32 0.0, %v4504
        %4506 = vdwg.mxu0
        %v4507 = vadd.f32 %v4235, 0.0
        %v4508 = vadd.f32 %v4237, 0.0
        %v4509 = vadd.f32 %v4348, 0.0
        %v4510 = vadd.f32 %v4350, 0.0
        %v4511 = vadd.f32 %v4461, 0.0
        %v4512 = vadd.f32 %v4463, 0.0
        %v4513 = vadd.f32 %v4241, 0.0
        %v4514 = vadd.f32 %v4243, 0.0
        %v4515 = vadd.f32 %v4354, 0.0
        %v4516 = vadd.f32 %v4356, 0.0
        %v4517 = vadd.f32 %v4467, 0.0
        %v4518 = vadd.f32 %v4469, 0.0
        %v4519 = vadd.f32 %v4247, 0.0
        %v4520 = vadd.f32 %v4249, 0.0
        %v4521 = vadd.f32 %v4360, 0.0
        %v4522 = vadd.f32 %v4362, 0.0
        %v4523 = vadd.f32 %v4473, 0.0
        %v4524 = vadd.f32 %v4475, 0.0
        %v4525 = vadd.f32 %v4253, 0.0
        %v4526 = vadd.f32 %v4255, 0.0
        %v4527 = vadd.f32 %v4366, 0.0
        %v4528 = vadd.f32 %v4368, 0.0
        %v4529 = vadd.f32 %v4479, 0.0
        %v4530 = vadd.f32 %v4481, 0.0
        %v4531 = vld [vmem:[%s11] sm:$0xff]
        %v4532 = vld [vmem:[%s11 + $0x8] sm:$0xff]
        %v4533 = vld [vmem:[%s11 + $0x10] sm:$0xff]
        %v4534 = vld [vmem:[%s11 + $0x18] sm:$0xff]
        %4536 = vset.pattern.permute.xlu0 0
        %4537 = vperm.xlu0 %4536, %v4531
        %v4538 = vpop.permute.xlu0 %4537
        %4541 = vset.pattern.permute.xlu0 0
        %4542 = vperm.xlu0 %4541, %v4532
        %v4543 = vpop.permute.xlu0 %4542
        %4546 = vset.pattern.permute.xlu0 0
        %4547 = vperm.xlu0 %4546, %v4533
        %v4548 = vpop.permute.xlu0 %4547
        %4551 = vset.pattern.permute.xlu0 0
        %4552 = vperm.xlu0 %4551, %v4534
        %v4553 = vpop.permute.xlu0 %4552
        %v4555 = vadd.f32 %v4507, %v4538
        %v4556 = vadd.f32 %v4508, %v4538
        %v4557 = vadd.f32 %v4509, %v4538
        %v4558 = vadd.f32 %v4510, %v4538
        %v4559 = vadd.f32 %v4511, %v4538
        %v4560 = vadd.f32 %v4512, %v4538
        %v4561 = vadd.f32 %v4513, %v4543
        %v4562 = vadd.f32 %v4514, %v4543
        %v4563 = vadd.f32 %v4515, %v4543
        %v4564 = vadd.f32 %v4516, %v4543
        %v4565 = vadd.f32 %v4517, %v4543
        %v4566 = vadd.f32 %v4518, %v4543
        %v4567 = vadd.f32 %v4519, %v4548
        %v4568 = vadd.f32 %v4520, %v4548
        %v4569 = vadd.f32 %v4521, %v4548
        %v4570 = vadd.f32 %v4522, %v4548
        %v4571 = vadd.f32 %v4523, %v4548
        %v4572 = vadd.f32 %v4524, %v4548
        %v4573 = vadd.f32 %v4525, %v4553
        %v4574 = vadd.f32 %v4526, %v4553
        %v4575 = vadd.f32 %v4527, %v4553
        %v4576 = vadd.f32 %v4528, %v4553
        %v4577 = vadd.f32 %v4529, %v4553
        %v4578 = vadd.f32 %v4530, %v4553
        %v4579 = vld [vmem:[%s12] sm:$0xff]
        %v4580 = vld [vmem:[%s12 + $0x8] sm:$0xff]
        %v4581 = vld [vmem:[%s12 + $0x10] sm:$0xff]
        %v4582 = vld [vmem:[%s12 + $0x18] sm:$0xff]
        %4584 = vset.pattern.permute.xlu0 0
        %4585 = vperm.xlu0 %4584, %v4579
        %v4586 = vpop.permute.xlu0 %4585
        %4589 = vset.pattern.permute.xlu0 0
        %4590 = vperm.xlu0 %4589, %v4580
        %v4591 = vpop.permute.xlu0 %4590
        %4594 = vset.pattern.permute.xlu0 0
        %4595 = vperm.xlu0 %4594, %v4581
        %v4596 = vpop.permute.xlu0 %4595
        %4599 = vset.pattern.permute.xlu0 0
        %4600 = vperm.xlu0 %4599, %v4582
        %v4601 = vpop.permute.xlu0 %4600
        %v4603 = vadd.f32 %v4259, %v4586
        %v4604 = vadd.f32 %v4261, %v4586
        %v4605 = vadd.f32 %v4372, %v4586
        %v4606 = vadd.f32 %v4374, %v4586
        %v4607 = vadd.f32 %v4485, %v4586
        %v4608 = vadd.f32 %v4487, %v4586
        %v4609 = vadd.f32 %v4265, %v4591
        %v4610 = vadd.f32 %v4267, %v4591
        %v4611 = vadd.f32 %v4378, %v4591
        %v4612 = vadd.f32 %v4380, %v4591
        %v4613 = vadd.f32 %v4491, %v4591
        %v4614 = vadd.f32 %v4493, %v4591
        %v4615 = vadd.f32 %v4271, %v4596
        %v4616 = vadd.f32 %v4273, %v4596
        %v4617 = vadd.f32 %v4384, %v4596
        %v4618 = vadd.f32 %v4386, %v4596
        %v4619 = vadd.f32 %v4497, %v4596
        %v4620 = vadd.f32 %v4499, %v4596
        %v4621 = vadd.f32 %v4277, %v4601
        %v4622 = vadd.f32 %v4279, %v4601
        %v4623 = vadd.f32 %v4390, %v4601
        %v4624 = vadd.f32 %v4392, %v4601
        %v4625 = vadd.f32 %v4503, %v4601
        %v4626 = vadd.f32 %v4505, %v4601
        %v4627 = vadd.f32 %v4603, %v3381
        %v4628 = vadd.f32 %v4604, %v3383
        %v4629 = vadd.f32 %v4605, %v3470
        %v4630 = vadd.f32 %v4606, %v3472
        %v4631 = vadd.f32 %v4607, %v3559
        %v4632 = vadd.f32 %v4608, %v3561
        %v4633 = vadd.f32 %v4609, %v3387
        %v4634 = vadd.f32 %v4610, %v3389
        %v4635 = vadd.f32 %v4611, %v3476
        %v4636 = vadd.f32 %v4612, %v3478
        %v4637 = vadd.f32 %v4613, %v3565
        %v4638 = vadd.f32 %v4614, %v3567
        %v4639 = vadd.f32 %v4615, %v3393
        %v4640 = vadd.f32 %v4616, %v3395
        %v4641 = vadd.f32 %v4617, %v3482
        %v4642 = vadd.f32 %v4618, %v3484
        %v4643 = vadd.f32 %v4619, %v3571
        %v4644 = vadd.f32 %v4620, %v3573
        %v4645 = vadd.f32 %v4621, %v3399
        %v4646 = vadd.f32 %v4622, %v3401
        %v4647 = vadd.f32 %v4623, %v3488
        %v4648 = vadd.f32 %v4624, %v3490
        %v4649 = vadd.f32 %v4625, %v3577
        %v4650 = vadd.f32 %v4626, %v3579
        %v4651 = vmul.f32 %v4627, 0.70710677
        %v4652 = vmul.f32 %v4628, 0.70710677
        %v4653 = vmul.f32 %v4629, 0.70710677
        %v4654 = vmul.f32 %v4630, 0.70710677
        %v4655 = vmul.f32 %v4631, 0.70710677
        %v4656 = vmul.f32 %v4632, 0.70710677
        %v4657 = vmul.f32 %v4633, 0.70710677
        %v4658 = vmul.f32 %v4634, 0.70710677
        %v4659 = vmul.f32 %v4635, 0.70710677
        %v4660 = vmul.f32 %v4636, 0.70710677
        %v4661 = vmul.f32 %v4637, 0.70710677
        %v4662 = vmul.f32 %v4638, 0.70710677
        %v4663 = vmul.f32 %v4639, 0.70710677
        %v4664 = vmul.f32 %v4640, 0.70710677
        %v4665 = vmul.f32 %v4641, 0.70710677
        %v4666 = vmul.f32 %v4642, 0.70710677
        %v4667 = vmul.f32 %v4643, 0.70710677
        %v4668 = vmul.f32 %v4644, 0.70710677
        %v4669 = vmul.f32 %v4645, 0.70710677
        %v4670 = vmul.f32 %v4646, 0.70710677
        %v4671 = vmul.f32 %v4647, 0.70710677
        %v4672 = vmul.f32 %v4648, 0.70710677
        %v4673 = vmul.f32 %v4649, 0.70710677
        %v4674 = vmul.f32 %v4650, 0.70710677
        %vm4675 = vcmp.ge.s32.totalorder %v2574, 2
        %vm4676 = vcmp.ge.s32.totalorder %v2575, 2
        %vm4677 = vcmp.ge.s32.totalorder %v2576, 2
        %vm4678 = vcmp.ge.s32.totalorder %v2577, 2
        %vm4679 = vcmp.ge.s32.totalorder %v2578, 2
        %vm4680 = vcmp.ge.s32.totalorder %v2579, 2
        %4681 = vrot.lane.b32.xlu0 %v4651, 2
        %v4682 = vpop.permute.xlu0 %4681
        %4683 = vrot.lane.b32.xlu0 %v4657, 2
        %v4684 = vpop.permute.xlu0 %4683
        %4685 = vrot.lane.b32.xlu0 %v4663, 2
        %v4686 = vpop.permute.xlu0 %4685
        %4687 = vrot.lane.b32.xlu0 %v4669, 2
        %v4688 = vpop.permute.xlu0 %4687
        %4689 = vrot.lane.b32.xlu0 %v4652, 2
        %v4690 = vpop.permute.xlu0 %4689
        %4691 = vrot.lane.b32.xlu0 %v4658, 2
        %v4692 = vpop.permute.xlu0 %4691
        %4693 = vrot.lane.b32.xlu0 %v4664, 2
        %v4694 = vpop.permute.xlu0 %4693
        %4695 = vrot.lane.b32.xlu0 %v4670, 2
        %v4696 = vpop.permute.xlu0 %4695
        %4697 = vrot.lane.b32.xlu0 %v4653, 2
        %v4698 = vpop.permute.xlu0 %4697
        %4699 = vrot.lane.b32.xlu0 %v4659, 2
        %v4700 = vpop.permute.xlu0 %4699
        %4701 = vrot.lane.b32.xlu0 %v4665, 2
        %v4702 = vpop.permute.xlu0 %4701
        %4703 = vrot.lane.b32.xlu0 %v4671, 2
        %v4704 = vpop.permute.xlu0 %4703
        %4705 = vrot.lane.b32.xlu0 %v4654, 2
        %v4706 = vpop.permute.xlu0 %4705
        %4707 = vrot.lane.b32.xlu0 %v4660, 2
        %v4708 = vpop.permute.xlu0 %4707
        %4709 = vrot.lane.b32.xlu0 %v4666, 2
        %v4710 = vpop.permute.xlu0 %4709
        %4711 = vrot.lane.b32.xlu0 %v4672, 2
        %v4712 = vpop.permute.xlu0 %4711
        %4713 = vrot.lane.b32.xlu0 %v4655, 2
        %v4714 = vpop.permute.xlu0 %4713
        %4715 = vrot.lane.b32.xlu0 %v4661, 2
        %v4716 = vpop.permute.xlu0 %4715
        %4717 = vrot.lane.b32.xlu0 %v4667, 2
        %v4718 = vpop.permute.xlu0 %4717
        %4719 = vrot.lane.b32.xlu0 %v4673, 2
        %v4720 = vpop.permute.xlu0 %4719
        %4721 = vrot.lane.b32.xlu0 %v4656, 2
        %v4722 = vpop.permute.xlu0 %4721
        %4723 = vrot.lane.b32.xlu0 %v4662, 2
        %v4724 = vpop.permute.xlu0 %4723
        %4725 = vrot.lane.b32.xlu0 %v4668, 2
        %v4726 = vpop.permute.xlu0 %4725
        %4727 = vrot.lane.b32.xlu0 %v4674, 2
        %v4728 = vpop.permute.xlu0 %4727
        %vm4729 = vcmp.lt.s32.totalorder %v2574, 2
        %v4730 = vsel %vm4729, %v4714, %v4722
        %v4731 = vsel %vm4729, %v4716, %v4724
        %v4732 = vsel %vm4729, %v4718, %v4726
        %v4733 = vsel %vm4729, %v4720, %v4728
        %v4734 = vsel %vm4729, %v4706, %v4714
        %v4735 = vsel %vm4729, %v4708, %v4716
        %v4736 = vsel %vm4729, %v4710, %v4718
        %v4737 = vsel %vm4729, %v4712, %v4720
        %v4738 = vsel %vm4729, %v4698, %v4706
        %v4739 = vsel %vm4729, %v4700, %v4708
        %v4740 = vsel %vm4729, %v4702, %v4710
        %v4741 = vsel %vm4729, %v4704, %v4712
        %v4742 = vsel %vm4729, %v4690, %v4698
        %v4743 = vsel %vm4729, %v4692, %v4700
        %v4744 = vsel %vm4729, %v4694, %v4702
        %v4745 = vsel %vm4729, %v4696, %v4704
        %v4746 = vsel %vm4729, %v4682, %v4690
        %v4747 = vsel %vm4729, %v4684, %v4692
        %v4748 = vsel %vm4729, %v4686, %v4694
        %v4749 = vsel %vm4729, %v4688, %v4696
        %v4750 = vsel %vm4729, %v4722, %v4682
        %v4751 = vsel %vm4729, %v4724, %v4684
        %v4752 = vsel %vm4729, %v4726, %v4686
        %v4753 = vsel %vm4729, %v4728, %v4688
        %v4754 = vsel %vm4675, %v4750, 0.0
        %v4755 = vsel %vm4676, %v4746, 0.0
        %v4756 = vsel %vm4677, %v4742, 0.0
        %v4757 = vsel %vm4678, %v4738, 0.0
        %v4758 = vsel %vm4679, %v4734, 0.0
        %v4759 = vsel %vm4680, %v4730, 0.0
        %v4760 = vsel %vm4675, %v4751, 0.0
        %v4761 = vsel %vm4676, %v4747, 0.0
        %v4762 = vsel %vm4677, %v4743, 0.0
        %v4763 = vsel %vm4678, %v4739, 0.0
        %v4764 = vsel %vm4679, %v4735, 0.0
        %v4765 = vsel %vm4680, %v4731, 0.0
        %v4766 = vsel %vm4675, %v4752, 0.0
        %v4767 = vsel %vm4676, %v4748, 0.0
        %v4768 = vsel %vm4677, %v4744, 0.0
        %v4769 = vsel %vm4678, %v4740, 0.0
        %v4770 = vsel %vm4679, %v4736, 0.0
        %v4771 = vsel %vm4680, %v4732, 0.0
        %v4772 = vsel %vm4675, %v4753, 0.0
        %v4773 = vsel %vm4676, %v4749, 0.0
        %v4774 = vsel %vm4677, %v4745, 0.0
        %v4775 = vsel %vm4678, %v4741, 0.0
        %v4776 = vsel %vm4679, %v4737, 0.0
        %v4777 = vsel %vm4680, %v4733, 0.0
        %s4778 = scalar_lea.vmem %s8, 32
        %v4779 = vld [vmem:[%s4778] sm:$0xff]
        %v4780 = vld [vmem:[%s4778 + $0x8] sm:$0xff]
        %v4781 = vld [vmem:[%s4778 + $0x10] sm:$0xff]
        %v4782 = vld [vmem:[%s4778 + $0x18] sm:$0xff]
        %s4783 = scalar_lea.vmem %s9, 32
        %v4784 = vld [vmem:[%s4783] sm:$0xff]
        %v4785 = vld [vmem:[%s4783 + $0x8] sm:$0xff]
        %v4786 = vld [vmem:[%s4783 + $0x10] sm:$0xff]
        %v4787 = vld [vmem:[%s4783 + $0x18] sm:$0xff]
        %4789 = vset.pattern.permute.xlu0 0
        %4790 = vperm.xlu0 %4789, %v4784
        %v4791 = vpop.permute.xlu0 %4790
        %4794 = vset.pattern.permute.xlu0 0
        %4795 = vperm.xlu0 %4794, %v4785
        %v4796 = vpop.permute.xlu0 %4795
        %4799 = vset.pattern.permute.xlu0 0
        %4800 = vperm.xlu0 %4799, %v4786
        %v4801 = vpop.permute.xlu0 %4800
        %4804 = vset.pattern.permute.xlu0 0
        %4805 = vperm.xlu0 %4804, %v4787
        %v4806 = vpop.permute.xlu0 %4805
        %v4809 = vsel %vm3712, %v4779, 0
        %v4812 = vsel %vm3712, %v4780, 0
        %v4815 = vsel %vm3712, %v4781, 0
        %v4818 = vsel %vm3712, %v4782, 0
        %4820 = vmatprep.subr.mxu0 %v4755
        %4821 = vmatpush1.msra.mxu0 %v4754
        %4822 = vmatprep.subr.mxu0 %v4761
        %4823 = vmatpush1.msra.mxu0 %v4760
        %4824 = vmatprep.subr.mxu0 %v4767
        %4825 = vmatpush1.msra.mxu0 %v4766
        %4826 = vmatprep.subr.mxu0 %v4773
        %4827 = vmatpush1.msra.mxu0 %v4772
        %4828 = vmatprep.subr.mxu0 %v4652
        %4829 = vmatpush1.msra.mxu0 %v4651
        %4830 = vmatprep.subr.mxu0 %v4658
        %4831 = vmatpush1.msra.mxu0 %v4657
        %4832 = vmatprep.subr.mxu0 %v4664
        %4833 = vmatpush1.msra.mxu0 %v4663
        %4834 = vmatprep.subr.mxu0 %v4670
        %4835 = vmatpush1.msra.mxu0 %v4669
        %4836 = vmatprep.subr.mxu0 0.0
        %4837 = vmatpush1.msra.mxu0 0.0
        %4838 = vmatprep.subr.mxu0 0.0
        %4839 = vmatpush1.msra.mxu0 0.0
        %4840 = vmatprep.subr.mxu0 0.0
        %4841 = vmatpush1.msra.mxu0 0.0
        %4842 = vmatprep.subr.mxu0 0.0
        %4843 = vmatpush1.msra.mxu0 0.0
        %4844 = vmatprep.subr.mxu0 0.0
        %4845 = vmatpush1.msra.mxu0 0.0
        %4846 = vmatprep.subr.mxu0 0.0
        %4847 = vmatpush1.msra.mxu0 0.0
        %4848 = vmatprep.subr.mxu0 0.0
        %4849 = vmatpush1.msra.mxu0 0.0
        %4850 = vmatprep.subr.mxu0 0.0
        %4851 = vmatpush1.msra.mxu0 0.0
        %4852 = vmatprep.subr.mxu0 0.0
        %4853 = vmatpush1.msra.mxu0 0.0
        %4854 = vmatprep.subr.mxu0 0.0
        %4855 = vmatpush1.msra.mxu0 0.0
        %4856 = vmatprep.subr.mxu0 0.0
        %4857 = vmatpush1.msra.mxu0 0.0
        %4858 = vmatprep.subr.mxu0 0.0
        %4859 = vmatpush1.msra.mxu0 0.0
        %4860 = vmatprep.subr.mxu0 0.0
        %4861 = vmatpush1.msra.mxu0 0.0
        %4862 = vmatprep.subr.mxu0 0.0
        %4863 = vmatpush1.msra.mxu0 0.0
        %4864 = vmatprep.subr.mxu0 0.0
        %4865 = vmatpush1.msra.mxu0 0.0
        %4866 = vmatprep.subr.mxu0 0.0
        %4867 = vmatpush1.msra.mxu0 0.0
        %4868 = vmatprep.subr.mxu0 0.0
        %4869 = vmatpush1.msra.mxu0 0.0
        %4870 = vmatprep.subr.mxu0 0.0
        %4871 = vmatpush1.msra.mxu0 0.0
        %4872 = vmatprep.subr.mxu0 0.0
        %4873 = vmatpush1.msra.mxu0 0.0
        %4874 = vmatprep.subr.mxu0 0.0
        %4875 = vmatpush1.msra.mxu0 0.0
        %4876 = vmatprep.subr.mxu0 0.0
        %4877 = vmatpush1.msra.mxu0 0.0
        %4878 = vmatprep.subr.mxu0 0.0
        %4879 = vmatpush1.msra.mxu0 0.0
        %4880 = vmatprep.subr.mxu0 0.0
        %4881 = vmatpush1.msra.mxu0 0.0
        %4882 = vmatprep.subr.mxu0 0.0
        %4883 = vmatpush1.msra.mxu0 0.0
        %4884 = vmatprep.mubr.f32.mxu0 0.0
        %4885 = vmatmul.mubr.f32.gmra.mrb[0].mxu0 %v4809
        %v4886 = vpop.f32.mrb[0].mxu0
        %v4887 = vadd.f32 %v4791, %v4886
        %v4888 = vpop.f32.mrb[0].mxu0
        %v4889 = vadd.f32 %v4791, %v4888
        %4890 = vmatprep.mubr.f32.mxu0 0.0
        %4891 = vmatmul.mubr.f32.gmra.mrb[0].mxu0 %v4812
        %v4892 = vpop.f32.mrb[0].mxu0
        %v4893 = vadd.f32 %v4796, %v4892
        %v4894 = vpop.f32.mrb[0].mxu0
        %v4895 = vadd.f32 %v4796, %v4894
        %4896 = vmatprep.mubr.f32.mxu0 0.0
        %4897 = vmatmul.mubr.f32.gmra.mrb[0].mxu0 %v4815
        %v4898 = vpop.f32.mrb[0].mxu0
        %v4899 = vadd.f32 %v4801, %v4898
        %v4900 = vpop.f32.mrb[0].mxu0
        %v4901 = vadd.f32 %v4801, %v4900
        %4902 = vmatprep.mubr.f32.mxu0 0.0
        %4903 = vmatmul.mubr.f32.gmra.mrb[0].mxu0 %v4818
        %v4904 = vpop.f32.mrb[0].mxu0
        %v4905 = vadd.f32 %v4806, %v4904
        %v4906 = vpop.f32.mrb[0].mxu0
        %v4907 = vadd.f32 %v4806, %v4906
        %4908 = vdwg.mxu0
        %4909 = vmatprep.subr.mxu0 %v4757
        %4910 = vmatpush1.msra.mxu0 %v4756
        %4911 = vmatprep.subr.mxu0 %v4763
        %4912 = vmatpush1.msra.mxu0 %v4762
        %4913 = vmatprep.subr.mxu0 %v4769
        %4914 = vmatpush1.msra.mxu0 %v4768
        %4915 = vmatprep.subr.mxu0 %v4775
        %4916 = vmatpush1.msra.mxu0 %v4774
        %4917 = vmatprep.subr.mxu0 %v4654
        %4918 = vmatpush1.msra.mxu0 %v4653
        %4919 = vmatprep.subr.mxu0 %v4660
        %4920 = vmatpush1.msra.mxu0 %v4659
        %4921 = vmatprep.subr.mxu0 %v4666
        %4922 = vmatpush1.msra.mxu0 %v4665
        %4923 = vmatprep.subr.mxu0 %v4672
        %4924 = vmatpush1.msra.mxu0 %v4671
        %4925 = vmatprep.subr.mxu0 0.0
        %4926 = vmatpush1.msra.mxu0 0.0
        %4927 = vmatprep.subr.mxu0 0.0
        %4928 = vmatpush1.msra.mxu0 0.0
        %4929 = vmatprep.subr.mxu0 0.0
        %4930 = vmatpush1.msra.mxu0 0.0
        %4931 = vmatprep.subr.mxu0 0.0
        %4932 = vmatpush1.msra.mxu0 0.0
        %4933 = vmatprep.subr.mxu0 0.0
        %4934 = vmatpush1.msra.mxu0 0.0
        %4935 = vmatprep.subr.mxu0 0.0
        %4936 = vmatpush1.msra.mxu0 0.0
        %4937 = vmatprep.subr.mxu0 0.0
        %4938 = vmatpush1.msra.mxu0 0.0
        %4939 = vmatprep.subr.mxu0 0.0
        %4940 = vmatpush1.msra.mxu0 0.0
        %4941 = vmatprep.subr.mxu0 0.0
        %4942 = vmatpush1.msra.mxu0 0.0
        %4943 = vmatprep.subr.mxu0 0.0
        %4944 = vmatpush1.msra.mxu0 0.0
        %4945 = vmatprep.subr.mxu0 0.0
        %4946 = vmatpush1.msra.mxu0 0.0
        %4947 = vmatprep.subr.mxu0 0.0
        %4948 = vmatpush1.msra.mxu0 0.0
        %4949 = vmatprep.subr.mxu0 0.0
        %4950 = vmatpush1.msra.mxu0 0.0
        %4951 = vmatprep.subr.mxu0 0.0
        %4952 = vmatpush1.msra.mxu0 0.0
        %4953 = vmatprep.subr.mxu0 0.0
        %4954 = vmatpush1.msra.mxu0 0.0
        %4955 = vmatprep.subr.mxu0 0.0
        %4956 = vmatpush1.msra.mxu0 0.0
        %4957 = vmatprep.subr.mxu0 0.0
        %4958 = vmatpush1.msra.mxu0 0.0
        %4959 = vmatprep.subr.mxu0 0.0
        %4960 = vmatpush1.msra.mxu0 0.0
        %4961 = vmatprep.subr.mxu0 0.0
        %4962 = vmatpush1.msra.mxu0 0.0
        %4963 = vmatprep.subr.mxu0 0.0
        %4964 = vmatpush1.msra.mxu0 0.0
        %4965 = vmatprep.subr.mxu0 0.0
        %4966 = vmatpush1.msra.mxu0 0.0
        %4967 = vmatprep.subr.mxu0 0.0
        %4968 = vmatpush1.msra.mxu0 0.0
        %4969 = vmatprep.subr.mxu0 0.0
        %4970 = vmatpush1.msra.mxu0 0.0
        %4971 = vmatprep.subr.mxu0 0.0
        %4972 = vmatpush1.msra.mxu0 0.0
        %4973 = vmatprep.mubr.f32.mxu0 0.0
        %4974 = vmatmul.mubr.f32.gmra.mrb[0].mxu0 %v4809
        %v4975 = vpop.f32.mrb[0].mxu0
        %v4976 = vadd.f32 %v4791, %v4975
        %v4977 = vpop.f32.mrb[0].mxu0
        %v4978 = vadd.f32 %v4791, %v4977
        %4979 = vmatprep.mubr.f32.mxu0 0.0
        %4980 = vmatmul.mubr.f32.gmra.mrb[0].mxu0 %v4812
        %v4981 = vpop.f32.mrb[0].mxu0
        %v4982 = vadd.f32 %v4796, %v4981
        %v4983 = vpop.f32.mrb[0].mxu0
        %v4984 = vadd.f32 %v4796, %v4983
        %4985 = vmatprep.mubr.f32.mxu0 0.0
        %4986 = vmatmul.mubr.f32.gmra.mrb[0].mxu0 %v4815
        %v4987 = vpop.f32.mrb[0].mxu0
        %v4988 = vadd.f32 %v4801, %v4987
        %v4989 = vpop.f32.mrb[0].mxu0
        %v4990 = vadd.f32 %v4801, %v4989
        %4991 = vmatprep.mubr.f32.mxu0 0.0
        %4992 = vmatmul.mubr.f32.gmra.mrb[0].mxu0 %v4818
        %v4993 = vpop.f32.mrb[0].mxu0
        %v4994 = vadd.f32 %v4806, %v4993
        %v4995 = vpop.f32.mrb[0].mxu0
        %v4996 = vadd.f32 %v4806, %v4995
        %4997 = vdwg.mxu0
        %4998 = vmatprep.subr.mxu0 %v4759
        %4999 = vmatpush1.msra.mxu0 %v4758
        %5000 = vmatprep.subr.mxu0 %v4765
        %5001 = vmatpush1.msra.mxu0 %v4764
        %5002 = vmatprep.subr.mxu0 %v4771
        %5003 = vmatpush1.msra.mxu0 %v4770
        %5004 = vmatprep.subr.mxu0 %v4777
        %5005 = vmatpush1.msra.mxu0 %v4776
        %5006 = vmatprep.subr.mxu0 %v4656
        %5007 = vmatpush1.msra.mxu0 %v4655
        %5008 = vmatprep.subr.mxu0 %v4662
        %5009 = vmatpush1.msra.mxu0 %v4661
        %5010 = vmatprep.subr.mxu0 %v4668
        %5011 = vmatpush1.msra.mxu0 %v4667
        %5012 = vmatprep.subr.mxu0 %v4674
        %5013 = vmatpush1.msra.mxu0 %v4673
        %5014 = vmatprep.subr.mxu0 0.0
        %5015 = vmatpush1.msra.mxu0 0.0
        %5016 = vmatprep.subr.mxu0 0.0
        %5017 = vmatpush1.msra.mxu0 0.0
        %5018 = vmatprep.subr.mxu0 0.0
        %5019 = vmatpush1.msra.mxu0 0.0
        %5020 = vmatprep.subr.mxu0 0.0
        %5021 = vmatpush1.msra.mxu0 0.0
        %5022 = vmatprep.subr.mxu0 0.0
        %5023 = vmatpush1.msra.mxu0 0.0
        %5024 = vmatprep.subr.mxu0 0.0
        %5025 = vmatpush1.msra.mxu0 0.0
        %5026 = vmatprep.subr.mxu0 0.0
        %5027 = vmatpush1.msra.mxu0 0.0
        %5028 = vmatprep.subr.mxu0 0.0
        %5029 = vmatpush1.msra.mxu0 0.0
        %5030 = vmatprep.subr.mxu0 0.0
        %5031 = vmatpush1.msra.mxu0 0.0
        %5032 = vmatprep.subr.mxu0 0.0
        %5033 = vmatpush1.msra.mxu0 0.0
        %5034 = vmatprep.subr.mxu0 0.0
        %5035 = vmatpush1.msra.mxu0 0.0
        %5036 = vmatprep.subr.mxu0 0.0
        %5037 = vmatpush1.msra.mxu0 0.0
        %5038 = vmatprep.subr.mxu0 0.0
        %5039 = vmatpush1.msra.mxu0 0.0
        %5040 = vmatprep.subr.mxu0 0.0
        %5041 = vmatpush1.msra.mxu0 0.0
        %5042 = vmatprep.subr.mxu0 0.0
        %5043 = vmatpush1.msra.mxu0 0.0
        %5044 = vmatprep.subr.mxu0 0.0
        %5045 = vmatpush1.msra.mxu0 0.0
        %5046 = vmatprep.subr.mxu0 0.0
        %5047 = vmatpush1.msra.mxu0 0.0
        %5048 = vmatprep.subr.mxu0 0.0
        %5049 = vmatpush1.msra.mxu0 0.0
        %5050 = vmatprep.subr.mxu0 0.0
        %5051 = vmatpush1.msra.mxu0 0.0
        %5052 = vmatprep.subr.mxu0 0.0
        %5053 = vmatpush1.msra.mxu0 0.0
        %5054 = vmatprep.subr.mxu0 0.0
        %5055 = vmatpush1.msra.mxu0 0.0
        %5056 = vmatprep.subr.mxu0 0.0
        %5057 = vmatpush1.msra.mxu0 0.0
        %5058 = vmatprep.subr.mxu0 0.0
        %5059 = vmatpush1.msra.mxu0 0.0
        %5060 = vmatprep.subr.mxu0 0.0
        %5061 = vmatpush1.msra.mxu0 0.0
        %5062 = vmatprep.mubr.f32.mxu0 0.0
        %5063 = vmatmul.mubr.f32.gmra.mrb[0].mxu0 %v4809
        %v5064 = vpop.f32.mrb[0].mxu0
        %v5065 = vadd.f32 %v4791, %v5064
        %v5066 = vpop.f32.mrb[0].mxu0
        %v5067 = vadd.f32 %v4791, %v5066
        %5068 = vmatprep.mubr.f32.mxu0 0.0
        %5069 = vmatmul.mubr.f32.gmra.mrb[0].mxu0 %v4812
        %v5070 = vpop.f32.mrb[0].mxu0
        %v5071 = vadd.f32 %v4796, %v5070
        %v5072 = vpop.f32.mrb[0].mxu0
        %v5073 = vadd.f32 %v4796, %v5072
        %5074 = vmatprep.mubr.f32.mxu0 0.0
        %5075 = vmatmul.mubr.f32.gmra.mrb[0].mxu0 %v4815
        %v5076 = vpop.f32.mrb[0].mxu0
        %v5077 = vadd.f32 %v4801, %v5076
        %v5078 = vpop.f32.mrb[0].mxu0
        %v5079 = vadd.f32 %v4801, %v5078
        %5080 = vmatprep.mubr.f32.mxu0 0.0
        %5081 = vmatmul.mubr.f32.gmra.mrb[0].mxu0 %v4818
        %v5082 = vpop.f32.mrb[0].mxu0
        %v5083 = vadd.f32 %v4806, %v5082
        %v5084 = vpop.f32.mrb[0].mxu0
        %v5085 = vadd.f32 %v4806, %v5084
        %5086 = vdwg.mxu0
        %v5087 = vld [vmem:[#allocation2 + $0xc0] sm:$0xff]
        %v5088 = vld [vmem:[#allocation2 + $0xc8] sm:$0xff]
        %v5089 = vld [vmem:[#allocation2 + $0xd0] sm:$0xff]
        %v5090 = vld [vmem:[#allocation2 + $0xd8] sm:$0xff]
        %v5091 = vld [vmem:[#allocation2 + $0xe0] sm:$0xff]
        %v5092 = vld [vmem:[#allocation2 + $0xe8] sm:$0xff]
        %v5093 = vld [vmem:[#allocation2 + $0xf0] sm:$0xff]
        %v5094 = vld [vmem:[#allocation2 + $0xf8] sm:$0xff]
        %v5095 = vld [vmem:[#allocation2 + $0x100] sm:$0xff]
        %v5096 = vld [vmem:[#allocation2 + $0x108] sm:$0xff]
        %v5097 = vld [vmem:[#allocation2 + $0x110] sm:$0xff]
        %v5098 = vld [vmem:[#allocation2 + $0x118] sm:$0xff]
        %v5099 = vld [vmem:[#allocation2 + $0x120] sm:$0xff]
        %v5100 = vld [vmem:[#allocation2 + $0x128] sm:$0xff]
        %v5101 = vld [vmem:[#allocation2 + $0x130] sm:$0xff]
        %v5102 = vld [vmem:[#allocation2 + $0x138] sm:$0xff]
        %v5103 = vld [vmem:[#allocation2 + $0x140] sm:$0xff]
        %v5104 = vld [vmem:[#allocation2 + $0x148] sm:$0xff]
        %v5105 = vld [vmem:[#allocation2 + $0x150] sm:$0xff]
        %v5106 = vld [vmem:[#allocation2 + $0x158] sm:$0xff]
        %v5107 = vld [vmem:[#allocation2 + $0x160] sm:$0xff]
        %v5108 = vld [vmem:[#allocation2 + $0x168] sm:$0xff]
        %v5109 = vld [vmem:[#allocation2 + $0x170] sm:$0xff]
        %v5110 = vld [vmem:[#allocation2 + $0x178] sm:$0xff]
        %v5111 = vadd.f32 %v4887, %v5087
        %v5112 = vadd.f32 %v4889, %v5088
        %v5113 = vadd.f32 %v4976, %v5089
        %v5114 = vadd.f32 %v4978, %v5090
        %v5115 = vadd.f32 %v5065, %v5091
        %v5116 = vadd.f32 %v5067, %v5092
        %v5117 = vadd.f32 %v4893, %v5093
        %v5118 = vadd.f32 %v4895, %v5094
        %v5119 = vadd.f32 %v4982, %v5095
        %v5120 = vadd.f32 %v4984, %v5096
        %v5121 = vadd.f32 %v5071, %v5097
        %v5122 = vadd.f32 %v5073, %v5098
        %v5123 = vadd.f32 %v4899, %v5099
        %v5124 = vadd.f32 %v4901, %v5100
        %v5125 = vadd.f32 %v4988, %v5101
        %v5126 = vadd.f32 %v4990, %v5102
        %v5127 = vadd.f32 %v5077, %v5103
        %v5128 = vadd.f32 %v5079, %v5104
        %v5129 = vadd.f32 %v4905, %v5105
        %v5130 = vadd.f32 %v4907, %v5106
        %v5131 = vadd.f32 %v4994, %v5107
        %v5132 = vadd.f32 %v4996, %v5108
        %v5133 = vadd.f32 %v5083, %v5109
        %v5134 = vadd.f32 %v5085, %v5110
        %v5135 = vtanh.pop %v5111
        %v5136 = vtanh.pop %v5112
        %v5137 = vtanh.pop %v5113
        %v5138 = vtanh.pop %v5114
        %v5139 = vtanh.pop %v5115
        %v5140 = vtanh.pop %v5116
        %v5141 = vtanh.pop %v5117
        %v5142 = vtanh.pop %v5118
        %v5143 = vtanh.pop %v5119
        %v5144 = vtanh.pop %v5120
        %v5145 = vtanh.pop %v5121
        %v5146 = vtanh.pop %v5122
        %v5147 = vxor.u32 %v5123, 2147483648
        %v5148 = vxor.u32 %v5124, 2147483648
        %v5149 = vxor.u32 %v5125, 2147483648
        %v5150 = vxor.u32 %v5126, 2147483648
        %v5151 = vxor.u32 %v5127, 2147483648
        %v5152 = vxor.u32 %v5128, 2147483648
        %v5153 = vxor.u32 %v5129, 2147483648
        %v5154 = vxor.u32 %v5130, 2147483648
        %v5155 = vxor.u32 %v5131, 2147483648
        %v5156 = vxor.u32 %v5132, 2147483648
        %v5157 = vxor.u32 %v5133, 2147483648
        %v5158 = vxor.u32 %v5134, 2147483648
        %v5159 = vmul.f32 %v5147, 1.442695
        %v5160 = vpow.pop %v5159
        %v5161 = vmul.f32 %v5148, 1.442695
        %v5162 = vpow.pop %v5161
        %v5163 = vmul.f32 %v5149, 1.442695
        %v5164 = vpow.pop %v5163
        %v5165 = vmul.f32 %v5150, 1.442695
        %v5166 = vpow.pop %v5165
        %v5167 = vmul.f32 %v5151, 1.442695
        %v5168 = vpow.pop %v5167
        %v5169 = vmul.f32 %v5152, 1.442695
        %v5170 = vpow.pop %v5169
        %v5171 = vmul.f32 %v5153, 1.442695
        %v5172 = vpow.pop %v5171
        %v5173 = vmul.f32 %v5154, 1.442695
        %v5174 = vpow.pop %v5173
        %v5175 = vmul.f32 %v5155, 1.442695
        %v5176 = vpow.pop %v5175
        %v5177 = vmul.f32 %v5156, 1.442695
        %v5178 = vpow.pop %v5177
        %v5179 = vmul.f32 %v5157, 1.442695
        %v5180 = vpow.pop %v5179
        %v5181 = vmul.f32 %v5158, 1.442695
        %v5182 = vpow.pop %v5181
        %v5183 = vadd.f32 %v5160, 1.0
        %v5184 = vadd.f32 %v5162, 1.0
        %v5185 = vadd.f32 %v5164, 1.0
        %v5186 = vadd.f32 %v5166, 1.0
        %v5187 = vadd.f32 %v5168, 1.0
        %v5188 = vadd.f32 %v5170, 1.0
        %v5189 = vadd.f32 %v5172, 1.0
        %v5190 = vadd.f32 %v5174, 1.0
        %v5191 = vadd.f32 %v5176, 1.0
        %v5192 = vadd.f32 %v5178, 1.0
        %v5193 = vadd.f32 %v5180, 1.0
        %v5194 = vadd.f32 %v5182, 1.0
        %v5195 = vrcp.pop %v5183
        %v5196 = vmul.f32 1.0, %v5195
        %v5197 = vrcp.pop %v5184
        %v5198 = vmul.f32 1.0, %v5197
        %v5199 = vrcp.pop %v5185
        %v5200 = vmul.f32 1.0, %v5199
        %v5201 = vrcp.pop %v5186
        %v5202 = vmul.f32 1.0, %v5201
        %v5203 = vrcp.pop %v5187
        %v5204 = vmul.f32 1.0, %v5203
        %v5205 = vrcp.pop %v5188
        %v5206 = vmul.f32 1.0, %v5205
        %v5207 = vrcp.pop %v5189
        %v5208 = vmul.f32 1.0, %v5207
        %v5209 = vrcp.pop %v5190
        %v5210 = vmul.f32 1.0, %v5209
        %v5211 = vrcp.pop %v5191
        %v5212 = vmul.f32 1.0, %v5211
        %v5213 = vrcp.pop %v5192
        %v5214 = vmul.f32 1.0, %v5213
        %v5215 = vrcp.pop %v5193
        %v5216 = vmul.f32 1.0, %v5215
        %v5217 = vrcp.pop %v5194
        %v5218 = vmul.f32 1.0, %v5217
        %v5219 = vmul.f32 %v5135, %v5196
        %v5220 = vmul.f32 %v5136, %v5198
        %v5221 = vmul.f32 %v5137, %v5200
        %v5222 = vmul.f32 %v5138, %v5202
        %v5223 = vmul.f32 %v5139, %v5204
        %v5224 = vmul.f32 %v5140, %v5206
        %v5225 = vmul.f32 %v5141, %v5208
        %v5226 = vmul.f32 %v5142, %v5210
        %v5227 = vmul.f32 %v5143, %v5212
        %v5228 = vmul.f32 %v5144, %v5214
        %v5229 = vmul.f32 %v5145, %v5216
        %v5230 = vmul.f32 %v5146, %v5218
        %s5231 = scalar_lea.vmem %s10, 64
        %v5232 = vld [vmem:[%s5231] sm:$0xff]
        %v5233 = vld [vmem:[%s5231 + $0x8] sm:$0xff]
        %v5234 = vld [vmem:[%s5231 + $0x10] sm:$0xff]
        %v5235 = vld [vmem:[%s5231 + $0x18] sm:$0xff]
        %v5236 = vld [vmem:[%s5231 + $0x20] sm:$0xff]
        %v5237 = vld [vmem:[%s5231 + $0x28] sm:$0xff]
        %v5238 = vld [vmem:[%s5231 + $0x30] sm:$0xff]
        %v5239 = vld [vmem:[%s5231 + $0x38] sm:$0xff]
        %v5241 = vsel %vm1944, %v5232, 0
        %v5244 = vsel %vm1944, %v5233, 0
        %v5247 = vsel %vm1944, %v5234, 0
        %v5250 = vsel %vm1944, %v5235, 0
        %v5253 = vsel %vm1944, %v5236, 0
        %v5256 = vsel %vm1944, %v5237, 0
        %v5259 = vsel %vm1944, %v5238, 0
        %v5262 = vsel %vm1944, %v5239, 0
        %5264 = vmatprep.subr.mxu0 %v5220
        %5265 = vmatpush1.msra.mxu0 %v5219
        %5266 = vmatprep.subr.mxu0 %v5226
        %5267 = vmatpush1.msra.mxu0 %v5225
        %5268 = vmatprep.subr.mxu0 0.0
        %5269 = vmatpush1.msra.mxu0 0.0
        %5270 = vmatprep.subr.mxu0 0.0
        %5271 = vmatpush1.msra.mxu0 0.0
        %5272 = vmatprep.subr.mxu0 0.0
        %5273 = vmatpush1.msra.mxu0 0.0
        %5274 = vmatprep.subr.mxu0 0.0
        %5275 = vmatpush1.msra.mxu0 0.0
        %5276 = vmatprep.subr.mxu0 0.0
        %5277 = vmatpush1.msra.mxu0 0.0
        %5278 = vmatprep.subr.mxu0 0.0
        %5279 = vmatpush1.msra.mxu0 0.0
        %5280 = vmatprep.subr.mxu0 0.0
        %5281 = vmatpush1.msra.mxu0 0.0
        %5282 = vmatprep.subr.mxu0 0.0
        %5283 = vmatpush1.msra.mxu0 0.0
        %5284 = vmatprep.subr.mxu0 0.0
        %5285 = vmatpush1.msra.mxu0 0.0
        %5286 = vmatprep.subr.mxu0 0.0
        %5287 = vmatpush1.msra.mxu0 0.0
        %5288 = vmatprep.subr.mxu0 0.0
        %5289 = vmatpush1.msra.mxu0 0.0
        %5290 = vmatprep.subr.mxu0 0.0
        %5291 = vmatpush1.msra.mxu0 0.0
        %5292 = vmatprep.subr.mxu0 0.0
        %5293 = vmatpush1.msra.mxu0 0.0
        %5294 = vmatprep.subr.mxu0 0.0
        %5295 = vmatpush1.msra.mxu0 0.0
        %5296 = vmatprep.subr.mxu0 0.0
        %5297 = vmatpush1.msra.mxu0 0.0
        %5298 = vmatprep.subr.mxu0 0.0
        %5299 = vmatpush1.msra.mxu0 0.0
        %5300 = vmatprep.subr.mxu0 0.0
        %5301 = vmatpush1.msra.mxu0 0.0
        %5302 = vmatprep.subr.mxu0 0.0
        %5303 = vmatpush1.msra.mxu0 0.0
        %5304 = vmatprep.subr.mxu0 0.0
        %5305 = vmatpush1.msra.mxu0 0.0
        %5306 = vmatprep.subr.mxu0 0.0
        %5307 = vmatpush1.msra.mxu0 0.0
        %5308 = vmatprep.subr.mxu0 0.0
        %5309 = vmatpush1.msra.mxu0 0.0
        %5310 = vmatprep.subr.mxu0 0.0
        %5311 = vmatpush1.msra.mxu0 0.0
        %5312 = vmatprep.subr.mxu0 0.0
        %5313 = vmatpush1.msra.mxu0 0.0
        %5314 = vmatprep.subr.mxu0 0.0
        %5315 = vmatpush1.msra.mxu0 0.0
        %5316 = vmatprep.subr.mxu0 0.0
        %5317 = vmatpush1.msra.mxu0 0.0
        %5318 = vmatprep.subr.mxu0 0.0
        %5319 = vmatpush1.msra.mxu0 0.0
        %5320 = vmatprep.subr.mxu0 0.0
        %5321 = vmatpush1.msra.mxu0 0.0
        %5322 = vmatprep.subr.mxu0 0.0
        %5323 = vmatpush1.msra.mxu0 0.0
        %5324 = vmatprep.subr.mxu0 0.0
        %5325 = vmatpush1.msra.mxu0 0.0
        %5326 = vmatprep.subr.mxu0 0.0
        %5327 = vmatpush1.msra.mxu0 0.0
        %5328 = vmatprep.mubr.f32.mxu0 0.0
        %5329 = vmatmul.mubr.f32.gmra.mrb[0].mxu0 %v5241
        %v5330 = vpop.f32.mrb[0].mxu0
        %v5331 = vadd.f32 0.0, %v5330
        %v5332 = vpop.f32.mrb[0].mxu0
        %v5333 = vadd.f32 0.0, %v5332
        %5334 = vmatprep.mubr.f32.mxu0 0.0
        %5335 = vmatmul.mubr.f32.gmra.mrb[0].mxu0 %v5244
        %v5336 = vpop.f32.mrb[0].mxu0
        %v5337 = vadd.f32 0.0, %v5336
        %v5338 = vpop.f32.mrb[0].mxu0
        %v5339 = vadd.f32 0.0, %v5338
        %5340 = vmatprep.mubr.f32.mxu0 0.0
        %5341 = vmatmul.mubr.f32.gmra.mrb[0].mxu0 %v5247
        %v5342 = vpop.f32.mrb[0].mxu0
        %v5343 = vadd.f32 0.0, %v5342
        %v5344 = vpop.f32.mrb[0].mxu0
        %v5345 = vadd.f32 0.0, %v5344
        %5346 = vmatprep.mubr.f32.mxu0 0.0
        %5347 = vmatmul.mubr.f32.gmra.mrb[0].mxu0 %v5250
        %v5348 = vpop.f32.mrb[0].mxu0
        %v5349 = vadd.f32 0.0, %v5348
        %v5350 = vpop.f32.mrb[0].mxu0
        %v5351 = vadd.f32 0.0, %v5350
        %5352 = vmatprep.mubr.f32.mxu0 0.0
        %5353 = vmatmul.mubr.f32.gmra.mrb[0].mxu0 %v5253
        %v5354 = vpop.f32.mrb[0].mxu0
        %v5355 = vadd.f32 0.0, %v5354
        %v5356 = vpop.f32.mrb[0].mxu0
        %v5357 = vadd.f32 0.0, %v5356
        %5358 = vmatprep.mubr.f32.mxu0 0.0
        %5359 = vmatmul.mubr.f32.gmra.mrb[0].mxu0 %v5256
        %v5360 = vpop.f32.mrb[0].mxu0
        %v5361 = vadd.f32 0.0, %v5360
        %v5362 = vpop.f32.mrb[0].mxu0
        %v5363 = vadd.f32 0.0, %v5362
        %5364 = vmatprep.mubr.f32.mxu0 0.0
        %5365 = vmatmul.mubr.f32.gmra.mrb[0].mxu0 %v5259
        %v5366 = vpop.f32.mrb[0].mxu0
        %v5367 = vadd.f32 0.0, %v5366
        %v5368 = vpop.f32.mrb[0].mxu0
        %v5369 = vadd.f32 0.0, %v5368
        %5370 = vmatprep.mubr.f32.mxu0 0.0
        %5371 = vmatmul.mubr.f32.gmra.mrb[0].mxu0 %v5262
        %v5372 = vpop.f32.mrb[0].mxu0
        %v5373 = vadd.f32 0.0, %v5372
        %v5374 = vpop.f32.mrb[0].mxu0
        %v5375 = vadd.f32 0.0, %v5374
        %5376 = vdwg.mxu0
        %5377 = vmatprep.subr.mxu0 %v5222
        %5378 = vmatpush1.msra.mxu0 %v5221
        %5379 = vmatprep.subr.mxu0 %v5228
        %5380 = vmatpush1.msra.mxu0 %v5227
        %5381 = vmatprep.subr.mxu0 0.0
        %5382 = vmatpush1.msra.mxu0 0.0
        %5383 = vmatprep.subr.mxu0 0.0
        %5384 = vmatpush1.msra.mxu0 0.0
        %5385 = vmatprep.subr.mxu0 0.0
        %5386 = vmatpush1.msra.mxu0 0.0
        %5387 = vmatprep.subr.mxu0 0.0
        %5388 = vmatpush1.msra.mxu0 0.0
        %5389 = vmatprep.subr.mxu0 0.0
        %5390 = vmatpush1.msra.mxu0 0.0
        %5391 = vmatprep.subr.mxu0 0.0
        %5392 = vmatpush1.msra.mxu0 0.0
        %5393 = vmatprep.subr.mxu0 0.0
        %5394 = vmatpush1.msra.mxu0 0.0
        %5395 = vmatprep.subr.mxu0 0.0
        %5396 = vmatpush1.msra.mxu0 0.0
        %5397 = vmatprep.subr.mxu0 0.0
        %5398 = vmatpush1.msra.mxu0 0.0
        %5399 = vmatprep.subr.mxu0 0.0
        %5400 = vmatpush1.msra.mxu0 0.0
        %5401 = vmatprep.subr.mxu0 0.0
        %5402 = vmatpush1.msra.mxu0 0.0
        %5403 = vmatprep.subr.mxu0 0.0
        %5404 = vmatpush1.msra.mxu0 0.0
        %5405 = vmatprep.subr.mxu0 0.0
        %5406 = vmatpush1.msra.mxu0 0.0
        %5407 = vmatprep.subr.mxu0 0.0
        %5408 = vmatpush1.msra.mxu0 0.0
        %5409 = vmatprep.subr.mxu0 0.0
        %5410 = vmatpush1.msra.mxu0 0.0
        %5411 = vmatprep.subr.mxu0 0.0
        %5412 = vmatpush1.msra.mxu0 0.0
        %5413 = vmatprep.subr.mxu0 0.0
        %5414 = vmatpush1.msra.mxu0 0.0
        %5415 = vmatprep.subr.mxu0 0.0
        %5416 = vmatpush1.msra.mxu0 0.0
        %5417 = vmatprep.subr.mxu0 0.0
        %5418 = vmatpush1.msra.mxu0 0.0
        %5419 = vmatprep.subr.mxu0 0.0
        %5420 = vmatpush1.msra.mxu0 0.0
        %5421 = vmatprep.subr.mxu0 0.0
        %5422 = vmatpush1.msra.mxu0 0.0
        %5423 = vmatprep.subr.mxu0 0.0
        %5424 = vmatpush1.msra.mxu0 0.0
        %5425 = vmatprep.subr.mxu0 0.0
        %5426 = vmatpush1.msra.mxu0 0.0
        %5427 = vmatprep.subr.mxu0 0.0
        %5428 = vmatpush1.msra.mxu0 0.0
        %5429 = vmatprep.subr.mxu0 0.0
        %5430 = vmatpush1.msra.mxu0 0.0
        %5431 = vmatprep.subr.mxu0 0.0
        %5432 = vmatpush1.msra.mxu0 0.0
        %5433 = vmatprep.subr.mxu0 0.0
        %5434 = vmatpush1.msra.mxu0 0.0
        %5435 = vmatprep.subr.mxu0 0.0
        %5436 = vmatpush1.msra.mxu0 0.0
        %5437 = vmatprep.subr.mxu0 0.0
        %5438 = vmatpush1.msra.mxu0 0.0
        %5439 = vmatprep.subr.mxu0 0.0
        %5440 = vmatpush1.msra.mxu0 0.0
        %5441 = vmatprep.mubr.f32.mxu0 0.0
        %5442 = vmatmul.mubr.f32.gmra.mrb[0].mxu0 %v5241
        %v5443 = vpop.f32.mrb[0].mxu0
        %v5444 = vadd.f32 0.0, %v5443
        %v5445 = vpop.f32.mrb[0].mxu0
        %v5446 = vadd.f32 0.0, %v5445
        %5447 = vmatprep.mubr.f32.mxu0 0.0
        %5448 = vmatmul.mubr.f32.gmra.mrb[0].mxu0 %v5244
        %v5449 = vpop.f32.mrb[0].mxu0
        %v5450 = vadd.f32 0.0, %v5449
        %v5451 = vpop.f32.mrb[0].mxu0
        %v5452 = vadd.f32 0.0, %v5451
        %5453 = vmatprep.mubr.f32.mxu0 0.0
        %5454 = vmatmul.mubr.f32.gmra.mrb[0].mxu0 %v5247
        %v5455 = vpop.f32.mrb[0].mxu0
        %v5456 = vadd.f32 0.0, %v5455
        %v5457 = vpop.f32.mrb[0].mxu0
        %v5458 = vadd.f32 0.0, %v5457
        %5459 = vmatprep.mubr.f32.mxu0 0.0
        %5460 = vmatmul.mubr.f32.gmra.mrb[0].mxu0 %v5250
        %v5461 = vpop.f32.mrb[0].mxu0
        %v5462 = vadd.f32 0.0, %v5461
        %v5463 = vpop.f32.mrb[0].mxu0
        %v5464 = vadd.f32 0.0, %v5463
        %5465 = vmatprep.mubr.f32.mxu0 0.0
        %5466 = vmatmul.mubr.f32.gmra.mrb[0].mxu0 %v5253
        %v5467 = vpop.f32.mrb[0].mxu0
        %v5468 = vadd.f32 0.0, %v5467
        %v5469 = vpop.f32.mrb[0].mxu0
        %v5470 = vadd.f32 0.0, %v5469
        %5471 = vmatprep.mubr.f32.mxu0 0.0
        %5472 = vmatmul.mubr.f32.gmra.mrb[0].mxu0 %v5256
        %v5473 = vpop.f32.mrb[0].mxu0
        %v5474 = vadd.f32 0.0, %v5473
        %v5475 = vpop.f32.mrb[0].mxu0
        %v5476 = vadd.f32 0.0, %v5475
        %5477 = vmatprep.mubr.f32.mxu0 0.0
        %5478 = vmatmul.mubr.f32.gmra.mrb[0].mxu0 %v5259
        %v5479 = vpop.f32.mrb[0].mxu0
        %v5480 = vadd.f32 0.0, %v5479
        %v5481 = vpop.f32.mrb[0].mxu0
        %v5482 = vadd.f32 0.0, %v5481
        %5483 = vmatprep.mubr.f32.mxu0 0.0
        %5484 = vmatmul.mubr.f32.gmra.mrb[0].mxu0 %v5262
        %v5485 = vpop.f32.mrb[0].mxu0
        %v5486 = vadd.f32 0.0, %v5485
        %v5487 = vpop.f32.mrb[0].mxu0
        %v5488 = vadd.f32 0.0, %v5487
        %5489 = vdwg.mxu0
        %5490 = vmatprep.subr.mxu0 %v5224
        %5491 = vmatpush1.msra.mxu0 %v5223
        %5492 = vmatprep.subr.mxu0 %v5230
        %5493 = vmatpush1.msra.mxu0 %v5229
        %5494 = vmatprep.subr.mxu0 0.0
        %5495 = vmatpush1.msra.mxu0 0.0
        %5496 = vmatprep.subr.mxu0 0.0
        %5497 = vmatpush1.msra.mxu0 0.0
        %5498 = vmatprep.subr.mxu0 0.0
        %5499 = vmatpush1.msra.mxu0 0.0
        %5500 = vmatprep.subr.mxu0 0.0
        %5501 = vmatpush1.msra.mxu0 0.0
        %5502 = vmatprep.subr.mxu0 0.0
        %5503 = vmatpush1.msra.mxu0 0.0
        %5504 = vmatprep.subr.mxu0 0.0
        %5505 = vmatpush1.msra.mxu0 0.0
        %5506 = vmatprep.subr.mxu0 0.0
        %5507 = vmatpush1.msra.mxu0 0.0
        %5508 = vmatprep.subr.mxu0 0.0
        %5509 = vmatpush1.msra.mxu0 0.0
        %5510 = vmatprep.subr.mxu0 0.0
        %5511 = vmatpush1.msra.mxu0 0.0
        %5512 = vmatprep.subr.mxu0 0.0
        %5513 = vmatpush1.msra.mxu0 0.0
        %5514 = vmatprep.subr.mxu0 0.0
        %5515 = vmatpush1.msra.mxu0 0.0
        %5516 = vmatprep.subr.mxu0 0.0
        %5517 = vmatpush1.msra.mxu0 0.0
        %5518 = vmatprep.subr.mxu0 0.0
        %5519 = vmatpush1.msra.mxu0 0.0
        %5520 = vmatprep.subr.mxu0 0.0
        %5521 = vmatpush1.msra.mxu0 0.0
        %5522 = vmatprep.subr.mxu0 0.0
        %5523 = vmatpush1.msra.mxu0 0.0
        %5524 = vmatprep.subr.mxu0 0.0
        %5525 = vmatpush1.msra.mxu0 0.0
        %5526 = vmatprep.subr.mxu0 0.0
        %5527 = vmatpush1.msra.mxu0 0.0
        %5528 = vmatprep.subr.mxu0 0.0
        %5529 = vmatpush1.msra.mxu0 0.0
        %5530 = vmatprep.subr.mxu0 0.0
        %5531 = vmatpush1.msra.mxu0 0.0
        %5532 = vmatprep.subr.mxu0 0.0
        %5533 = vmatpush1.msra.mxu0 0.0
        %5534 = vmatprep.subr.mxu0 0.0
        %5535 = vmatpush1.msra.mxu0 0.0
        %5536 = vmatprep.subr.mxu0 0.0
        %5537 = vmatpush1.msra.mxu0 0.0
        %5538 = vmatprep.subr.mxu0 0.0
        %5539 = vmatpush1.msra.mxu0 0.0
        %5540 = vmatprep.subr.mxu0 0.0
        %5541 = vmatpush1.msra.mxu0 0.0
        %5542 = vmatprep.subr.mxu0 0.0
        %5543 = vmatpush1.msra.mxu0 0.0
        %5544 = vmatprep.subr.mxu0 0.0
        %5545 = vmatpush1.msra.mxu0 0.0
        %5546 = vmatprep.subr.mxu0 0.0
        %5547 = vmatpush1.msra.mxu0 0.0
        %5548 = vmatprep.subr.mxu0 0.0
        %5549 = vmatpush1.msra.mxu0 0.0
        %5550 = vmatprep.subr.mxu0 0.0
        %5551 = vmatpush1.msra.mxu0 0.0
        %5552 = vmatprep.subr.mxu0 0.0
        %5553 = vmatpush1.msra.mxu0 0.0
        %5554 = vmatprep.mubr.f32.mxu0 0.0
        %5555 = vmatmul.mubr.f32.gmra.mrb[0].mxu0 %v5241
        %v5556 = vpop.f32.mrb[0].mxu0
        %v5557 = vadd.f32 0.0, %v5556
        %v5558 = vpop.f32.mrb[0].mxu0
        %v5559 = vadd.f32 0.0, %v5558
        %5560 = vmatprep.mubr.f32.mxu0 0.0
        %5561 = vmatmul.mubr.f32.gmra.mrb[0].mxu0 %v5244
        %v5562 = vpop.f32.mrb[0].mxu0
        %v5563 = vadd.f32 0.0, %v5562
        %v5564 = vpop.f32.mrb[0].mxu0
        %v5565 = vadd.f32 0.0, %v5564
        %5566 = vmatprep.mubr.f32.mxu0 0.0
        %5567 = vmatmul.mubr.f32.gmra.mrb[0].mxu0 %v5247
        %v5568 = vpop.f32.mrb[0].mxu0
        %v5569 = vadd.f32 0.0, %v5568
        %v5570 = vpop.f32.mrb[0].mxu0
        %v5571 = vadd.f32 0.0, %v5570
        %5572 = vmatprep.mubr.f32.mxu0 0.0
        %5573 = vmatmul.mubr.f32.gmra.mrb[0].mxu0 %v5250
        %v5574 = vpop.f32.mrb[0].mxu0
        %v5575 = vadd.f32 0.0, %v5574
        %v5576 = vpop.f32.mrb[0].mxu0
        %v5577 = vadd.f32 0.0, %v5576
        %5578 = vmatprep.mubr.f32.mxu0 0.0
        %5579 = vmatmul.mubr.f32.gmra.mrb[0].mxu0 %v5253
        %v5580 = vpop.f32.mrb[0].mxu0
        %v5581 = vadd.f32 0.0, %v5580
        %v5582 = vpop.f32.mrb[0].mxu0
        %v5583 = vadd.f32 0.0, %v5582
        %5584 = vmatprep.mubr.f32.mxu0 0.0
        %5585 = vmatmul.mubr.f32.gmra.mrb[0].mxu0 %v5256
        %v5586 = vpop.f32.mrb[0].mxu0
        %v5587 = vadd.f32 0.0, %v5586
        %v5588 = vpop.f32.mrb[0].mxu0
        %v5589 = vadd.f32 0.0, %v5588
        %5590 = vmatprep.mubr.f32.mxu0 0.0
        %5591 = vmatmul.mubr.f32.gmra.mrb[0].mxu0 %v5259
        %v5592 = vpop.f32.mrb[0].mxu0
        %v5593 = vadd.f32 0.0, %v5592
        %v5594 = vpop.f32.mrb[0].mxu0
        %v5595 = vadd.f32 0.0, %v5594
        %5596 = vmatprep.mubr.f32.mxu0 0.0
        %5597 = vmatmul.mubr.f32.gmra.mrb[0].mxu0 %v5262
        %v5598 = vpop.f32.mrb[0].mxu0
        %v5599 = vadd.f32 0.0, %v5598
        %v5600 = vpop.f32.mrb[0].mxu0
        %v5601 = vadd.f32 0.0, %v5600
        %5602 = vdwg.mxu0
        %v5603 = vadd.f32 %v4555, %v5331
        %v5604 = vadd.f32 %v4556, %v5333
        %v5605 = vadd.f32 %v4557, %v5444
        %v5606 = vadd.f32 %v4558, %v5446
        %v5607 = vadd.f32 %v4559, %v5557
        %v5608 = vadd.f32 %v4560, %v5559
        %v5609 = vadd.f32 %v4561, %v5337
        %v5610 = vadd.f32 %v4562, %v5339
        %v5611 = vadd.f32 %v4563, %v5450
        %v5612 = vadd.f32 %v4564, %v5452
        %v5613 = vadd.f32 %v4565, %v5563
        %v5614 = vadd.f32 %v4566, %v5565
        %v5615 = vadd.f32 %v4567, %v5343
        %v5616 = vadd.f32 %v4568, %v5345
        %v5617 = vadd.f32 %v4569, %v5456
        %v5618 = vadd.f32 %v4570, %v5458
        %v5619 = vadd.f32 %v4571, %v5569
        %v5620 = vadd.f32 %v4572, %v5571
        %v5621 = vadd.f32 %v4573, %v5349
        %v5622 = vadd.f32 %v4574, %v5351
        %v5623 = vadd.f32 %v4575, %v5462
        %v5624 = vadd.f32 %v4576, %v5464
        %v5625 = vadd.f32 %v4577, %v5575
        %v5626 = vadd.f32 %v4578, %v5577
        %s5627 = scalar_lea.vmem %s11, 32
        %v5628 = vld [vmem:[%s5627] sm:$0xff]
        %v5629 = vld [vmem:[%s5627 + $0x8] sm:$0xff]
        %v5630 = vld [vmem:[%s5627 + $0x10] sm:$0xff]
        %v5631 = vld [vmem:[%s5627 + $0x18] sm:$0xff]
        %5633 = vset.pattern.permute.xlu0 0
        %5634 = vperm.xlu0 %5633, %v5628
        %v5635 = vpop.permute.xlu0 %5634
        %5638 = vset.pattern.permute.xlu0 0
        %5639 = vperm.xlu0 %5638, %v5629
        %v5640 = vpop.permute.xlu0 %5639
        %5643 = vset.pattern.permute.xlu0 0
        %5644 = vperm.xlu0 %5643, %v5630
        %v5645 = vpop.permute.xlu0 %5644
        %5648 = vset.pattern.permute.xlu0 0
        %5649 = vperm.xlu0 %5648, %v5631
        %v5650 = vpop.permute.xlu0 %5649
        %v5652 = vadd.f32 %v5603, %v5635
        %v5653 = vadd.f32 %v5604, %v5635
        %v5654 = vadd.f32 %v5605, %v5635
        %v5655 = vadd.f32 %v5606, %v5635
        %v5656 = vadd.f32 %v5607, %v5635
        %v5657 = vadd.f32 %v5608, %v5635
        %v5658 = vadd.f32 %v5609, %v5640
        %v5659 = vadd.f32 %v5610, %v5640
        %v5660 = vadd.f32 %v5611, %v5640
        %v5661 = vadd.f32 %v5612, %v5640
        %v5662 = vadd.f32 %v5613, %v5640
        %v5663 = vadd.f32 %v5614, %v5640
        %v5664 = vadd.f32 %v5615, %v5645
        %v5665 = vadd.f32 %v5616, %v5645
        %v5666 = vadd.f32 %v5617, %v5645
        %v5667 = vadd.f32 %v5618, %v5645
        %v5668 = vadd.f32 %v5619, %v5645
        %v5669 = vadd.f32 %v5620, %v5645
        %v5670 = vadd.f32 %v5621, %v5650
        %v5671 = vadd.f32 %v5622, %v5650
        %v5672 = vadd.f32 %v5623, %v5650
        %v5673 = vadd.f32 %v5624, %v5650
        %v5674 = vadd.f32 %v5625, %v5650
        %v5675 = vadd.f32 %v5626, %v5650
        %s5676 = scalar_lea.vmem %s12, 32
        %v5677 = vld [vmem:[%s5676] sm:$0xff]
        %v5678 = vld [vmem:[%s5676 + $0x8] sm:$0xff]
        %v5679 = vld [vmem:[%s5676 + $0x10] sm:$0xff]
        %v5680 = vld [vmem:[%s5676 + $0x18] sm:$0xff]
        %5682 = vset.pattern.permute.xlu0 0
        %5683 = vperm.xlu0 %5682, %v5677
        %v5684 = vpop.permute.xlu0 %5683
        %5687 = vset.pattern.permute.xlu0 0
        %5688 = vperm.xlu0 %5687, %v5678
        %v5689 = vpop.permute.xlu0 %5688
        %5692 = vset.pattern.permute.xlu0 0
        %5693 = vperm.xlu0 %5692, %v5679
        %v5694 = vpop.permute.xlu0 %5693
        %5697 = vset.pattern.permute.xlu0 0
        %5698 = vperm.xlu0 %5697, %v5680
        %v5699 = vpop.permute.xlu0 %5698
        %v5701 = vadd.f32 %v5355, %v5684
        %v5702 = vadd.f32 %v5357, %v5684
        %v5703 = vadd.f32 %v5468, %v5684
        %v5704 = vadd.f32 %v5470, %v5684
        %v5705 = vadd.f32 %v5581, %v5684
        %v5706 = vadd.f32 %v5583, %v5684
        %v5707 = vadd.f32 %v5361, %v5689
        %v5708 = vadd.f32 %v5363, %v5689
        %v5709 = vadd.f32 %v5474, %v5689
        %v5710 = vadd.f32 %v5476, %v5689
        %v5711 = vadd.f32 %v5587, %v5689
        %v5712 = vadd.f32 %v5589, %v5689
        %v5713 = vadd.f32 %v5367, %v5694
        %v5714 = vadd.f32 %v5369, %v5694
        %v5715 = vadd.f32 %v5480, %v5694
        %v5716 = vadd.f32 %v5482, %v5694
        %v5717 = vadd.f32 %v5593, %v5694
        %v5718 = vadd.f32 %v5595, %v5694
        %v5719 = vadd.f32 %v5373, %v5699
        %v5720 = vadd.f32 %v5375, %v5699
        %v5721 = vadd.f32 %v5486, %v5699
        %v5722 = vadd.f32 %v5488, %v5699
        %v5723 = vadd.f32 %v5599, %v5699
        %v5724 = vadd.f32 %v5601, %v5699
        %v5725 = vadd.f32 %v5701, %v4651
        %v5726 = vadd.f32 %v5702, %v4652
        %v5727 = vadd.f32 %v5703, %v4653
        %v5728 = vadd.f32 %v5704, %v4654
        %v5729 = vadd.f32 %v5705, %v4655
        %v5730 = vadd.f32 %v5706, %v4656
        %v5731 = vadd.f32 %v5707, %v4657
        %v5732 = vadd.f32 %v5708, %v4658
        %v5733 = vadd.f32 %v5709, %v4659
        %v5734 = vadd.f32 %v5710, %v4660
        %v5735 = vadd.f32 %v5711, %v4661
        %v5736 = vadd.f32 %v5712, %v4662
        %v5737 = vadd.f32 %v5713, %v4663
        %v5738 = vadd.f32 %v5714, %v4664
        %v5739 = vadd.f32 %v5715, %v4665
        %v5740 = vadd.f32 %v5716, %v4666
        %v5741 = vadd.f32 %v5717, %v4667
        %v5742 = vadd.f32 %v5718, %v4668
        %v5743 = vadd.f32 %v5719, %v4669
        %v5744 = vadd.f32 %v5720, %v4670
        %v5745 = vadd.f32 %v5721, %v4671
        %v5746 = vadd.f32 %v5722, %v4672
        %v5747 = vadd.f32 %v5723, %v4673
        %v5748 = vadd.f32 %v5724, %v4674
        %v5749 = vmul.f32 %v5725, 0.70710677
        %v5750 = vmul.f32 %v5726, 0.70710677
        %v5751 = vmul.f32 %v5727, 0.70710677
        %v5752 = vmul.f32 %v5728, 0.70710677
        %v5753 = vmul.f32 %v5729, 0.70710677
        %v5754 = vmul.f32 %v5730, 0.70710677
        %v5755 = vmul.f32 %v5731, 0.70710677
        %v5756 = vmul.f32 %v5732, 0.70710677
        %v5757 = vmul.f32 %v5733, 0.70710677
        %v5758 = vmul.f32 %v5734, 0.70710677
        %v5759 = vmul.f32 %v5735, 0.70710677
        %v5760 = vmul.f32 %v5736, 0.70710677
        %v5761 = vmul.f32 %v5737, 0.70710677
        %v5762 = vmul.f32 %v5738, 0.70710677
        %v5763 = vmul.f32 %v5739, 0.70710677
        %v5764 = vmul.f32 %v5740, 0.70710677
        %v5765 = vmul.f32 %v5741, 0.70710677
        %v5766 = vmul.f32 %v5742, 0.70710677
        %v5767 = vmul.f32 %v5743, 0.70710677
        %v5768 = vmul.f32 %v5744, 0.70710677
        %v5769 = vmul.f32 %v5745, 0.70710677
        %v5770 = vmul.f32 %v5746, 0.70710677
        %v5771 = vmul.f32 %v5747, 0.70710677
        %v5772 = vmul.f32 %v5748, 0.70710677
        %5773 = vrot.lane.b32.xlu0 %v5749, 1
        %v5774 = vpop.permute.xlu0 %5773
        %5775 = vrot.lane.b32.xlu0 %v5755, 1
        %v5776 = vpop.permute.xlu0 %5775
        %5777 = vrot.lane.b32.xlu0 %v5761, 1
        %v5778 = vpop.permute.xlu0 %5777
        %5779 = vrot.lane.b32.xlu0 %v5767, 1
        %v5780 = vpop.permute.xlu0 %5779
        %5781 = vrot.lane.b32.xlu0 %v5750, 1
        %v5782 = vpop.permute.xlu0 %5781
        %5783 = vrot.lane.b32.xlu0 %v5756, 1
        %v5784 = vpop.permute.xlu0 %5783
        %5785 = vrot.lane.b32.xlu0 %v5762, 1
        %v5786 = vpop.permute.xlu0 %5785
        %5787 = vrot.lane.b32.xlu0 %v5768, 1
        %v5788 = vpop.permute.xlu0 %5787
        %5789 = vrot.lane.b32.xlu0 %v5751, 1
        %v5790 = vpop.permute.xlu0 %5789
        %5791 = vrot.lane.b32.xlu0 %v5757, 1
        %v5792 = vpop.permute.xlu0 %5791
        %5793 = vrot.lane.b32.xlu0 %v5763, 1
        %v5794 = vpop.permute.xlu0 %5793
        %5795 = vrot.lane.b32.xlu0 %v5769, 1
        %v5796 = vpop.permute.xlu0 %5795
        %5797 = vrot.lane.b32.xlu0 %v5752, 1
        %v5798 = vpop.permute.xlu0 %5797
        %5799 = vrot.lane.b32.xlu0 %v5758, 1
        %v5800 = vpop.permute.xlu0 %5799
        %5801 = vrot.lane.b32.xlu0 %v5764, 1
        %v5802 = vpop.permute.xlu0 %5801
        %5803 = vrot.lane.b32.xlu0 %v5770, 1
        %v5804 = vpop.permute.xlu0 %5803
        %5805 = vrot.lane.b32.xlu0 %v5753, 1
        %v5806 = vpop.permute.xlu0 %5805
        %5807 = vrot.lane.b32.xlu0 %v5759, 1
        %v5808 = vpop.permute.xlu0 %5807
        %5809 = vrot.lane.b32.xlu0 %v5765, 1
        %v5810 = vpop.permute.xlu0 %5809
        %5811 = vrot.lane.b32.xlu0 %v5771, 1
        %v5812 = vpop.permute.xlu0 %5811
        %5813 = vrot.lane.b32.xlu0 %v5754, 1
        %v5814 = vpop.permute.xlu0 %5813
        %5815 = vrot.lane.b32.xlu0 %v5760, 1
        %v5816 = vpop.permute.xlu0 %5815
        %5817 = vrot.lane.b32.xlu0 %v5766, 1
        %v5818 = vpop.permute.xlu0 %5817
        %5819 = vrot.lane.b32.xlu0 %v5772, 1
        %v5820 = vpop.permute.xlu0 %5819
        %v5821 = vsel %vm3635, %v5806, %v5814
        %v5822 = vsel %vm3635, %v5808, %v5816
        %v5823 = vsel %vm3635, %v5810, %v5818
        %v5824 = vsel %vm3635, %v5812, %v5820
        %v5825 = vsel %vm3635, %v5798, %v5806
        %v5826 = vsel %vm3635, %v5800, %v5808
        %v5827 = vsel %vm3635, %v5802, %v5810
        %v5828 = vsel %vm3635, %v5804, %v5812
        %v5829 = vsel %vm3635, %v5790, %v5798
        %v5830 = vsel %vm3635, %v5792, %v5800
        %v5831 = vsel %vm3635, %v5794, %v5802
        %v5832 = vsel %vm3635, %v5796, %v5804
        %v5833 = vsel %vm3635, %v5782, %v5790
        %v5834 = vsel %vm3635, %v5784, %v5792
        %v5835 = vsel %vm3635, %v5786, %v5794
        %v5836 = vsel %vm3635, %v5788, %v5796
        %v5837 = vsel %vm3635, %v5774, %v5782
        %v5838 = vsel %vm3635, %v5776, %v5784
        %v5839 = vsel %vm3635, %v5778, %v5786
        %v5840 = vsel %vm3635, %v5780, %v5788
        %v5841 = vsel %vm3635, %v5814, %v5774
        %v5842 = vsel %vm3635, %v5816, %v5776
        %v5843 = vsel %vm3635, %v5818, %v5778
        %v5844 = vsel %vm3635, %v5820, %v5780
        %v5845 = vsel %vm3581, %v5841, 0.0
        %v5846 = vsel %vm3582, %v5837, 0.0
        %v5847 = vsel %vm3583, %v5833, 0.0
        %v5848 = vsel %vm3584, %v5829, 0.0
        %v5849 = vsel %vm3585, %v5825, 0.0
        %v5850 = vsel %vm3586, %v5821, 0.0
        %v5851 = vsel %vm3581, %v5842, 0.0
        %v5852 = vsel %vm3582, %v5838, 0.0
        %v5853 = vsel %vm3583, %v5834, 0.0
        %v5854 = vsel %vm3584, %v5830, 0.0
        %v5855 = vsel %vm3585, %v5826, 0.0
        %v5856 = vsel %vm3586, %v5822, 0.0
        %v5857 = vsel %vm3581, %v5843, 0.0
        %v5858 = vsel %vm3582, %v5839, 0.0
        %v5859 = vsel %vm3583, %v5835, 0.0
        %v5860 = vsel %vm3584, %v5831, 0.0
        %v5861 = vsel %vm3585, %v5827, 0.0
        %v5862 = vsel %vm3586, %v5823, 0.0
        %v5863 = vsel %vm3581, %v5844, 0.0
        %v5864 = vsel %vm3582, %v5840, 0.0
        %v5865 = vsel %vm3583, %v5836, 0.0
        %v5866 = vsel %vm3584, %v5832, 0.0
        %v5867 = vsel %vm3585, %v5828, 0.0
        %v5868 = vsel %vm3586, %v5824, 0.0
        %s5869 = scalar_lea.vmem %s8, 64
        %v5870 = vld [vmem:[%s5869] sm:$0xff]
        %v5871 = vld [vmem:[%s5869 + $0x8] sm:$0xff]
        %v5872 = vld [vmem:[%s5869 + $0x10] sm:$0xff]
        %v5873 = vld [vmem:[%s5869 + $0x18] sm:$0xff]
        %s5874 = scalar_lea.vmem %s9, 64
        %v5875 = vld [vmem:[%s5874] sm:$0xff]
        %v5876 = vld [vmem:[%s5874 + $0x8] sm:$0xff]
        %v5877 = vld [vmem:[%s5874 + $0x10] sm:$0xff]
        %v5878 = vld [vmem:[%s5874 + $0x18] sm:$0xff]
        %5880 = vset.pattern.permute.xlu0 0
        %5881 = vperm.xlu0 %5880, %v5875
        %v5882 = vpop.permute.xlu0 %5881
        %5885 = vset.pattern.permute.xlu0 0
        %5886 = vperm.xlu0 %5885, %v5876
        %v5887 = vpop.permute.xlu0 %5886
        %5890 = vset.pattern.permute.xlu0 0
        %5891 = vperm.xlu0 %5890, %v5877
        %v5892 = vpop.permute.xlu0 %5891
        %5895 = vset.pattern.permute.xlu0 0
        %5896 = vperm.xlu0 %5895, %v5878
        %v5897 = vpop.permute.xlu0 %5896
        %v5900 = vsel %vm3712, %v5870, 0
        %v5903 = vsel %vm3712, %v5871, 0
        %v5906 = vsel %vm3712, %v5872, 0
        %v5909 = vsel %vm3712, %v5873, 0
        %5911 = vmatprep.subr.mxu0 %v5846
        %5912 = vmatpush1.msra.mxu0 %v5845
        %5913 = vmatprep.subr.mxu0 %v5852
        %5914 = vmatpush1.msra.mxu0 %v5851
        %5915 = vmatprep.subr.mxu0 %v5858
        %5916 = vmatpush1.msra.mxu0 %v5857
        %5917 = vmatprep.subr.mxu0 %v5864
        %5918 = vmatpush1.msra.mxu0 %v5863
        %5919 = vmatprep.subr.mxu0 %v5750
        %5920 = vmatpush1.msra.mxu0 %v5749
        %5921 = vmatprep.subr.mxu0 %v5756
        %5922 = vmatpush1.msra.mxu0 %v5755
        %5923 = vmatprep.subr.mxu0 %v5762
        %5924 = vmatpush1.msra.mxu0 %v5761
        %5925 = vmatprep.subr.mxu0 %v5768
        %5926 = vmatpush1.msra.mxu0 %v5767
        %5927 = vmatprep.subr.mxu0 0.0
        %5928 = vmatpush1.msra.mxu0 0.0
        %5929 = vmatprep.subr.mxu0 0.0
        %5930 = vmatpush1.msra.mxu0 0.0
        %5931 = vmatprep.subr.mxu0 0.0
        %5932 = vmatpush1.msra.mxu0 0.0
        %5933 = vmatprep.subr.mxu0 0.0
        %5934 = vmatpush1.msra.mxu0 0.0
        %5935 = vmatprep.subr.mxu0 0.0
        %5936 = vmatpush1.msra.mxu0 0.0
        %5937 = vmatprep.subr.mxu0 0.0
        %5938 = vmatpush1.msra.mxu0 0.0
        %5939 = vmatprep.subr.mxu0 0.0
        %5940 = vmatpush1.msra.mxu0 0.0
        %5941 = vmatprep.subr.mxu0 0.0
        %5942 = vmatpush1.msra.mxu0 0.0
        %5943 = vmatprep.subr.mxu0 0.0
        %5944 = vmatpush1.msra.mxu0 0.0
        %5945 = vmatprep.subr.mxu0 0.0
        %5946 = vmatpush1.msra.mxu0 0.0
        %5947 = vmatprep.subr.mxu0 0.0
        %5948 = vmatpush1.msra.mxu0 0.0
        %5949 = vmatprep.subr.mxu0 0.0
        %5950 = vmatpush1.msra.mxu0 0.0
        %5951 = vmatprep.subr.mxu0 0.0
        %5952 = vmatpush1.msra.mxu0 0.0
        %5953 = vmatprep.subr.mxu0 0.0
        %5954 = vmatpush1.msra.mxu0 0.0
        %5955 = vmatprep.subr.mxu0 0.0
        %5956 = vmatpush1.msra.mxu0 0.0
        %5957 = vmatprep.subr.mxu0 0.0
        %5958 = vmatpush1.msra.mxu0 0.0
        %5959 = vmatprep.subr.mxu0 0.0
        %5960 = vmatpush1.msra.mxu0 0.0
        %5961 = vmatprep.subr.mxu0 0.0
        %5962 = vmatpush1.msra.mxu0 0.0
        %5963 = vmatprep.subr.mxu0 0.0
        %5964 = vmatpush1.msra.mxu0 0.0
        %5965 = vmatprep.subr.mxu0 0.0
        %5966 = vmatpush1.msra.mxu0 0.0
        %5967 = vmatprep.subr.mxu0 0.0
        %5968 = vmatpush1.msra.mxu0 0.0
        %5969 = vmatprep.subr.mxu0 0.0
        %5970 = vmatpush1.msra.mxu0 0.0
        %5971 = vmatprep.subr.mxu0 0.0
        %5972 = vmatpush1.msra.mxu0 0.0
        %5973 = vmatprep.subr.mxu0 0.0
        %5974 = vmatpush1.msra.mxu0 0.0
        %5975 = vmatprep.mubr.f32.mxu0 0.0
        %5976 = vmatmul.mubr.f32.gmra.mrb[0].mxu0 %v5900
        %v5977 = vpop.f32.mrb[0].mxu0
        %v5978 = vadd.f32 %v5882, %v5977
        %v5979 = vpop.f32.mrb[0].mxu0
        %v5980 = vadd.f32 %v5882, %v5979
        %5981 = vmatprep.mubr.f32.mxu0 0.0
        %5982 = vmatmul.mubr.f32.gmra.mrb[0].mxu0 %v5903
        %v5983 = vpop.f32.mrb[0].mxu0
        %v5984 = vadd.f32 %v5887, %v5983
        %v5985 = vpop.f32.mrb[0].mxu0
        %v5986 = vadd.f32 %v5887, %v5985
        %5987 = vmatprep.mubr.f32.mxu0 0.0
        %5988 = vmatmul.mubr.f32.gmra.mrb[0].mxu0 %v5906
        %v5989 = vpop.f32.mrb[0].mxu0
        %v5990 = vadd.f32 %v5892, %v5989
        %v5991 = vpop.f32.mrb[0].mxu0
        %v5992 = vadd.f32 %v5892, %v5991
        %5993 = vmatprep.mubr.f32.mxu0 0.0
        %5994 = vmatmul.mubr.f32.gmra.mrb[0].mxu0 %v5909
        %v5995 = vpop.f32.mrb[0].mxu0
        %v5996 = vadd.f32 %v5897, %v5995
        %v5997 = vpop.f32.mrb[0].mxu0
        %v5998 = vadd.f32 %v5897, %v5997
        %5999 = vdwg.mxu0
        %6000 = vmatprep.subr.mxu0 %v5848
        %6001 = vmatpush1.msra.mxu0 %v5847
        %6002 = vmatprep.subr.mxu0 %v5854
        %6003 = vmatpush1.msra.mxu0 %v5853
        %6004 = vmatprep.subr.mxu0 %v5860
        %6005 = vmatpush1.msra.mxu0 %v5859
        %6006 = vmatprep.subr.mxu0 %v5866
        %6007 = vmatpush1.msra.mxu0 %v5865
        %6008 = vmatprep.subr.mxu0 %v5752
        %6009 = vmatpush1.msra.mxu0 %v5751
        %6010 = vmatprep.subr.mxu0 %v5758
        %6011 = vmatpush1.msra.mxu0 %v5757
        %6012 = vmatprep.subr.mxu0 %v5764
        %6013 = vmatpush1.msra.mxu0 %v5763
        %6014 = vmatprep.subr.mxu0 %v5770
        %6015 = vmatpush1.msra.mxu0 %v5769
        %6016 = vmatprep.subr.mxu0 0.0
        %6017 = vmatpush1.msra.mxu0 0.0
        %6018 = vmatprep.subr.mxu0 0.0
        %6019 = vmatpush1.msra.mxu0 0.0
        %6020 = vmatprep.subr.mxu0 0.0
        %6021 = vmatpush1.msra.mxu0 0.0
        %6022 = vmatprep.subr.mxu0 0.0
        %6023 = vmatpush1.msra.mxu0 0.0
        %6024 = vmatprep.subr.mxu0 0.0
        %6025 = vmatpush1.msra.mxu0 0.0
        %6026 = vmatprep.subr.mxu0 0.0
        %6027 = vmatpush1.msra.mxu0 0.0
        %6028 = vmatprep.subr.mxu0 0.0
        %6029 = vmatpush1.msra.mxu0 0.0
        %6030 = vmatprep.subr.mxu0 0.0
        %6031 = vmatpush1.msra.mxu0 0.0
        %6032 = vmatprep.subr.mxu0 0.0
        %6033 = vmatpush1.msra.mxu0 0.0
        %6034 = vmatprep.subr.mxu0 0.0
        %6035 = vmatpush1.msra.mxu0 0.0
        %6036 = vmatprep.subr.mxu0 0.0
        %6037 = vmatpush1.msra.mxu0 0.0
        %6038 = vmatprep.subr.mxu0 0.0
        %6039 = vmatpush1.msra.mxu0 0.0
        %6040 = vmatprep.subr.mxu0 0.0
        %6041 = vmatpush1.msra.mxu0 0.0
        %6042 = vmatprep.subr.mxu0 0.0
        %6043 = vmatpush1.msra.mxu0 0.0
        %6044 = vmatprep.subr.mxu0 0.0
        %6045 = vmatpush1.msra.mxu0 0.0
        %6046 = vmatprep.subr.mxu0 0.0
        %6047 = vmatpush1.msra.mxu0 0.0
        %6048 = vmatprep.subr.mxu0 0.0
        %6049 = vmatpush1.msra.mxu0 0.0
        %6050 = vmatprep.subr.mxu0 0.0
        %6051 = vmatpush1.msra.mxu0 0.0
        %6052 = vmatprep.subr.mxu0 0.0
        %6053 = vmatpush1.msra.mxu0 0.0
        %6054 = vmatprep.subr.mxu0 0.0
        %6055 = vmatpush1.msra.mxu0 0.0
        %6056 = vmatprep.subr.mxu0 0.0
        %6057 = vmatpush1.msra.mxu0 0.0
        %6058 = vmatprep.subr.mxu0 0.0
        %6059 = vmatpush1.msra.mxu0 0.0
        %6060 = vmatprep.subr.mxu0 0.0
        %6061 = vmatpush1.msra.mxu0 0.0
        %6062 = vmatprep.subr.mxu0 0.0
        %6063 = vmatpush1.msra.mxu0 0.0
        %6064 = vmatprep.mubr.f32.mxu0 0.0
        %6065 = vmatmul.mubr.f32.gmra.mrb[0].mxu0 %v5900
        %v6066 = vpop.f32.mrb[0].mxu0
        %v6067 = vadd.f32 %v5882, %v6066
        %v6068 = vpop.f32.mrb[0].mxu0
        %v6069 = vadd.f32 %v5882, %v6068
        %6070 = vmatprep.mubr.f32.mxu0 0.0
        %6071 = vmatmul.mubr.f32.gmra.mrb[0].mxu0 %v5903
        %v6072 = vpop.f32.mrb[0].mxu0
        %v6073 = vadd.f32 %v5887, %v6072
        %v6074 = vpop.f32.mrb[0].mxu0
        %v6075 = vadd.f32 %v5887, %v6074
        %6076 = vmatprep.mubr.f32.mxu0 0.0
        %6077 = vmatmul.mubr.f32.gmra.mrb[0].mxu0 %v5906
        %v6078 = vpop.f32.mrb[0].mxu0
        %v6079 = vadd.f32 %v5892, %v6078
        %v6080 = vpop.f32.mrb[0].mxu0
        %v6081 = vadd.f32 %v5892, %v6080
        %6082 = vmatprep.mubr.f32.mxu0 0.0
        %6083 = vmatmul.mubr.f32.gmra.mrb[0].mxu0 %v5909
        %v6084 = vpop.f32.mrb[0].mxu0
        %v6085 = vadd.f32 %v5897, %v6084
        %v6086 = vpop.f32.mrb[0].mxu0
        %v6087 = vadd.f32 %v5897, %v6086
        %6088 = vdwg.mxu0
        %6089 = vmatprep.subr.mxu0 %v5850
        %6090 = vmatpush1.msra.mxu0 %v5849
        %6091 = vmatprep.subr.mxu0 %v5856
        %6092 = vmatpush1.msra.mxu0 %v5855
        %6093 = vmatprep.subr.mxu0 %v5862
        %6094 = vmatpush1.msra.mxu0 %v5861
        %6095 = vmatprep.subr.mxu0 %v5868
        %6096 = vmatpush1.msra.mxu0 %v5867
        %6097 = vmatprep.subr.mxu0 %v5754
        %6098 = vmatpush1.msra.mxu0 %v5753
        %6099 = vmatprep.subr.mxu0 %v5760
        %6100 = vmatpush1.msra.mxu0 %v5759
        %6101 = vmatprep.subr.mxu0 %v5766
        %6102 = vmatpush1.msra.mxu0 %v5765
        %6103 = vmatprep.subr.mxu0 %v5772
        %6104 = vmatpush1.msra.mxu0 %v5771
        %6105 = vmatprep.subr.mxu0 0.0
        %6106 = vmatpush1.msra.mxu0 0.0
        %6107 = vmatprep.subr.mxu0 0.0
        %6108 = vmatpush1.msra.mxu0 0.0
        %6109 = vmatprep.subr.mxu0 0.0
        %6110 = vmatpush1.msra.mxu0 0.0
        %6111 = vmatprep.subr.mxu0 0.0
        %6112 = vmatpush1.msra.mxu0 0.0
        %6113 = vmatprep.subr.mxu0 0.0
        %6114 = vmatpush1.msra.mxu0 0.0
        %6115 = vmatprep.subr.mxu0 0.0
        %6116 = vmatpush1.msra.mxu0 0.0
        %6117 = vmatprep.subr.mxu0 0.0
        %6118 = vmatpush1.msra.mxu0 0.0
        %6119 = vmatprep.subr.mxu0 0.0
        %6120 = vmatpush1.msra.mxu0 0.0
        %6121 = vmatprep.subr.mxu0 0.0
        %6122 = vmatpush1.msra.mxu0 0.0
        %6123 = vmatprep.subr.mxu0 0.0
        %6124 = vmatpush1.msra.mxu0 0.0
        %6125 = vmatprep.subr.mxu0 0.0
        %6126 = vmatpush1.msra.mxu0 0.0
        %6127 = vmatprep.subr.mxu0 0.0
        %6128 = vmatpush1.msra.mxu0 0.0
        %6129 = vmatprep.subr.mxu0 0.0
        %6130 = vmatpush1.msra.mxu0 0.0
        %6131 = vmatprep.subr.mxu0 0.0
        %6132 = vmatpush1.msra.mxu0 0.0
        %6133 = vmatprep.subr.mxu0 0.0
        %6134 = vmatpush1.msra.mxu0 0.0
        %6135 = vmatprep.subr.mxu0 0.0
        %6136 = vmatpush1.msra.mxu0 0.0
        %6137 = vmatprep.subr.mxu0 0.0
        %6138 = vmatpush1.msra.mxu0 0.0
        %6139 = vmatprep.subr.mxu0 0.0
        %6140 = vmatpush1.msra.mxu0 0.0
        %6141 = vmatprep.subr.mxu0 0.0
        %6142 = vmatpush1.msra.mxu0 0.0
        %6143 = vmatprep.subr.mxu0 0.0
        %6144 = vmatpush1.msra.mxu0 0.0
        %6145 = vmatprep.subr.mxu0 0.0
        %6146 = vmatpush1.msra.mxu0 0.0
        %6147 = vmatprep.subr.mxu0 0.0
        %6148 = vmatpush1.msra.mxu0 0.0
        %6149 = vmatprep.subr.mxu0 0.0
        %6150 = vmatpush1.msra.mxu0 0.0
        %6151 = vmatprep.subr.mxu0 0.0
        %6152 = vmatpush1.msra.mxu0 0.0
        %6153 = vmatprep.mubr.f32.mxu0 0.0
        %6154 = vmatmul.mubr.f32.gmra.mrb[0].mxu0 %v5900
        %v6155 = vpop.f32.mrb[0].mxu0
        %v6156 = vadd.f32 %v5882, %v6155
        %v6157 = vpop.f32.mrb[0].mxu0
        %v6158 = vadd.f32 %v5882, %v6157
        %6159 = vmatprep.mubr.f32.mxu0 0.0
        %6160 = vmatmul.mubr.f32.gmra.mrb[0].mxu0 %v5903
        %v6161 = vpop.f32.mrb[0].mxu0
        %v6162 = vadd.f32 %v5887, %v6161
        %v6163 = vpop.f32.mrb[0].mxu0
        %v6164 = vadd.f32 %v5887, %v6163
        %6165 = vmatprep.mubr.f32.mxu0 0.0
        %6166 = vmatmul.mubr.f32.gmra.mrb[0].mxu0 %v5906
        %v6167 = vpop.f32.mrb[0].mxu0
        %v6168 = vadd.f32 %v5892, %v6167
        %v6169 = vpop.f32.mrb[0].mxu0
        %v6170 = vadd.f32 %v5892, %v6169
        %6171 = vmatprep.mubr.f32.mxu0 0.0
        %6172 = vmatmul.mubr.f32.gmra.mrb[0].mxu0 %v5909
        %v6173 = vpop.f32.mrb[0].mxu0
        %v6174 = vadd.f32 %v5897, %v6173
        %v6175 = vpop.f32.mrb[0].mxu0
        %v6176 = vadd.f32 %v5897, %v6175
        %6177 = vdwg.mxu0
        %v6178 = vld [vmem:[#allocation2 + $0x180] sm:$0xff]
        %v6179 = vld [vmem:[#allocation2 + $0x188] sm:$0xff]
        %v6180 = vld [vmem:[#allocation2 + $0x190] sm:$0xff]
        %v6181 = vld [vmem:[#allocation2 + $0x198] sm:$0xff]
        %v6182 = vld [vmem:[#allocation2 + $0x1a0] sm:$0xff]
        %v6183 = vld [vmem:[#allocation2 + $0x1a8] sm:$0xff]
        %v6184 = vld [vmem:[#allocation2 + $0x1b0] sm:$0xff]
        %v6185 = vld [vmem:[#allocation2 + $0x1b8] sm:$0xff]
        %v6186 = vld [vmem:[#allocation2 + $0x1c0] sm:$0xff]
        %v6187 = vld [vmem:[#allocation2 + $0x1c8] sm:$0xff]
        %v6188 = vld [vmem:[#allocation2 + $0x1d0] sm:$0xff]
        %v6189 = vld [vmem:[#allocation2 + $0x1d8] sm:$0xff]
        %v6190 = vld [vmem:[#allocation2 + $0x1e0] sm:$0xff]
        %v6191 = vld [vmem:[#allocation2 + $0x1e8] sm:$0xff]
        %v6192 = vld [vmem:[#allocation2 + $0x1f0] sm:$0xff]
        %v6193 = vld [vmem:[#allocation2 + $0x1f8] sm:$0xff]
        %v6194 = vld [vmem:[#allocation2 + $0x200] sm:$0xff]
        %v6195 = vld [vmem:[#allocation2 + $0x208] sm:$0xff]
        %v6196 = vld [vmem:[#allocation2 + $0x210] sm:$0xff]
        %v6197 = vld [vmem:[#allocation2 + $0x218] sm:$0xff]
        %v6198 = vld [vmem:[#allocation2 + $0x220] sm:$0xff]
        %v6199 = vld [vmem:[#allocation2 + $0x228] sm:$0xff]
        %v6200 = vld [vmem:[#allocation2 + $0x230] sm:$0xff]
        %v6201 = vld [vmem:[#allocation2 + $0x238] sm:$0xff]
        %v6202 = vadd.f32 %v5978, %v6178
        %v6203 = vadd.f32 %v5980, %v6179
        %v6204 = vadd.f32 %v6067, %v6180
        %v6205 = vadd.f32 %v6069, %v6181
        %v6206 = vadd.f32 %v6156, %v6182
        %v6207 = vadd.f32 %v6158, %v6183
        %v6208 = vadd.f32 %v5984, %v6184
        %v6209 = vadd.f32 %v5986, %v6185
        %v6210 = vadd.f32 %v6073, %v6186
        %v6211 = vadd.f32 %v6075, %v6187
        %v6212 = vadd.f32 %v6162, %v6188
        %v6213 = vadd.f32 %v6164, %v6189
        %v6214 = vadd.f32 %v5990, %v6190
        %v6215 = vadd.f32 %v5992, %v6191
        %v6216 = vadd.f32 %v6079, %v6192
        %v6217 = vadd.f32 %v6081, %v6193
        %v6218 = vadd.f32 %v6168, %v6194
        %v6219 = vadd.f32 %v6170, %v6195
        %v6220 = vadd.f32 %v5996, %v6196
        %v6221 = vadd.f32 %v5998, %v6197
        %v6222 = vadd.f32 %v6085, %v6198
        %v6223 = vadd.f32 %v6087, %v6199
        %v6224 = vadd.f32 %v6174, %v6200
        %v6225 = vadd.f32 %v6176, %v6201
        %v6226 = vtanh.pop %v6202
        %v6227 = vtanh.pop %v6203
        %v6228 = vtanh.pop %v6204
        %v6229 = vtanh.pop %v6205
        %v6230 = vtanh.pop %v6206
        %v6231 = vtanh.pop %v6207
        %v6232 = vtanh.pop %v6208
        %v6233 = vtanh.pop %v6209
        %v6234 = vtanh.pop %v6210
        %v6235 = vtanh.pop %v6211
        %v6236 = vtanh.pop %v6212
        %v6237 = vtanh.pop %v6213
        %v6238 = vxor.u32 %v6214, 2147483648
        %v6239 = vxor.u32 %v6215, 2147483648
        %v6240 = vxor.u32 %v6216, 2147483648
        %v6241 = vxor.u32 %v6217, 2147483648
        %v6242 = vxor.u32 %v6218, 2147483648
        %v6243 = vxor.u32 %v6219, 2147483648
        %v6244 = vxor.u32 %v6220, 2147483648
        %v6245 = vxor.u32 %v6221, 2147483648
        %v6246 = vxor.u32 %v6222, 2147483648
        %v6247 = vxor.u32 %v6223, 2147483648
        %v6248 = vxor.u32 %v6224, 2147483648
        %v6249 = vxor.u32 %v6225, 2147483648
        %v6250 = vmul.f32 %v6238, 1.442695
        %v6251 = vpow.pop %v6250
        %v6252 = vmul.f32 %v6239, 1.442695
        %v6253 = vpow.pop %v6252
        %v6254 = vmul.f32 %v6240, 1.442695
        %v6255 = vpow.pop %v6254
        %v6256 = vmul.f32 %v6241, 1.442695
        %v6257 = vpow.pop %v6256
        %v6258 = vmul.f32 %v6242, 1.442695
        %v6259 = vpow.pop %v6258
        %v6260 = vmul.f32 %v6243, 1.442695
        %v6261 = vpow.pop %v6260
        %v6262 = vmul.f32 %v6244, 1.442695
        %v6263 = vpow.pop %v6262
        %v6264 = vmul.f32 %v6245, 1.442695
        %v6265 = vpow.pop %v6264
        %v6266 = vmul.f32 %v6246, 1.442695
        %v6267 = vpow.pop %v6266
        %v6268 = vmul.f32 %v6247, 1.442695
        %v6269 = vpow.pop %v6268
        %v6270 = vmul.f32 %v6248, 1.442695
        %v6271 = vpow.pop %v6270
        %v6272 = vmul.f32 %v6249, 1.442695
        %v6273 = vpow.pop %v6272
        %v6274 = vadd.f32 %v6251, 1.0
        %v6275 = vadd.f32 %v6253, 1.0
        %v6276 = vadd.f32 %v6255, 1.0
        %v6277 = vadd.f32 %v6257, 1.0
        %v6278 = vadd.f32 %v6259, 1.0
        %v6279 = vadd.f32 %v6261, 1.0
        %v6280 = vadd.f32 %v6263, 1.0
        %v6281 = vadd.f32 %v6265, 1.0
        %v6282 = vadd.f32 %v6267, 1.0
        %v6283 = vadd.f32 %v6269, 1.0
        %v6284 = vadd.f32 %v6271, 1.0
        %v6285 = vadd.f32 %v6273, 1.0
        %v6286 = vrcp.pop %v6274
        %v6287 = vmul.f32 1.0, %v6286
        %v6288 = vrcp.pop %v6275
        %v6289 = vmul.f32 1.0, %v6288
        %v6290 = vrcp.pop %v6276
        %v6291 = vmul.f32 1.0, %v6290
        %v6292 = vrcp.pop %v6277
        %v6293 = vmul.f32 1.0, %v6292
        %v6294 = vrcp.pop %v6278
        %v6295 = vmul.f32 1.0, %v6294
        %v6296 = vrcp.pop %v6279
        %v6297 = vmul.f32 1.0, %v6296
        %v6298 = vrcp.pop %v6280
        %v6299 = vmul.f32 1.0, %v6298
        %v6300 = vrcp.pop %v6281
        %v6301 = vmul.f32 1.0, %v6300
        %v6302 = vrcp.pop %v6282
        %v6303 = vmul.f32 1.0, %v6302
        %v6304 = vrcp.pop %v6283
        %v6305 = vmul.f32 1.0, %v6304
        %v6306 = vrcp.pop %v6284
        %v6307 = vmul.f32 1.0, %v6306
        %v6308 = vrcp.pop %v6285
        %v6309 = vmul.f32 1.0, %v6308
        %v6310 = vmul.f32 %v6226, %v6287
        %v6311 = vmul.f32 %v6227, %v6289
        %v6312 = vmul.f32 %v6228, %v6291
        %v6313 = vmul.f32 %v6229, %v6293
        %v6314 = vmul.f32 %v6230, %v6295
        %v6315 = vmul.f32 %v6231, %v6297
        %v6316 = vmul.f32 %v6232, %v6299
        %v6317 = vmul.f32 %v6233, %v6301
        %v6318 = vmul.f32 %v6234, %v6303
        %v6319 = vmul.f32 %v6235, %v6305
        %v6320 = vmul.f32 %v6236, %v6307
        %v6321 = vmul.f32 %v6237, %v6309
        %s6322 = scalar_lea.vmem %s10, 128
        %v6323 = vld [vmem:[%s6322] sm:$0xff]
        %v6324 = vld [vmem:[%s6322 + $0x8] sm:$0xff]
        %v6325 = vld [vmem:[%s6322 + $0x10] sm:$0xff]
        %v6326 = vld [vmem:[%s6322 + $0x18] sm:$0xff]
        %v6327 = vld [vmem:[%s6322 + $0x20] sm:$0xff]
        %v6328 = vld [vmem:[%s6322 + $0x28] sm:$0xff]
        %v6329 = vld [vmem:[%s6322 + $0x30] sm:$0xff]
        %v6330 = vld [vmem:[%s6322 + $0x38] sm:$0xff]
        %v6332 = vsel %vm1944, %v6323, 0
        %v6335 = vsel %vm1944, %v6324, 0
        %v6338 = vsel %vm1944, %v6325, 0
        %v6341 = vsel %vm1944, %v6326, 0
        %v6344 = vsel %vm1944, %v6327, 0
        %v6347 = vsel %vm1944, %v6328, 0
        %v6350 = vsel %vm1944, %v6329, 0
        %v6353 = vsel %vm1944, %v6330, 0
        %6355 = vmatprep.subr.mxu0 %v6311
        %6356 = vmatpush1.msra.mxu0 %v6310
        %6357 = vmatprep.subr.mxu0 %v6317
        %6358 = vmatpush1.msra.mxu0 %v6316
        %6359 = vmatprep.subr.mxu0 0.0
        %6360 = vmatpush1.msra.mxu0 0.0
        %6361 = vmatprep.subr.mxu0 0.0
        %6362 = vmatpush1.msra.mxu0 0.0
        %6363 = vmatprep.subr.mxu0 0.0
        %6364 = vmatpush1.msra.mxu0 0.0
        %6365 = vmatprep.subr.mxu0 0.0
        %6366 = vmatpush1.msra.mxu0 0.0
        %6367 = vmatprep.subr.mxu0 0.0
        %6368 = vmatpush1.msra.mxu0 0.0
        %6369 = vmatprep.subr.mxu0 0.0
        %6370 = vmatpush1.msra.mxu0 0.0
        %6371 = vmatprep.subr.mxu0 0.0
        %6372 = vmatpush1.msra.mxu0 0.0
        %6373 = vmatprep.subr.mxu0 0.0
        %6374 = vmatpush1.msra.mxu0 0.0
        %6375 = vmatprep.subr.mxu0 0.0
        %6376 = vmatpush1.msra.mxu0 0.0
        %6377 = vmatprep.subr.mxu0 0.0
        %6378 = vmatpush1.msra.mxu0 0.0
        %6379 = vmatprep.subr.mxu0 0.0
        %6380 = vmatpush1.msra.mxu0 0.0
        %6381 = vmatprep.subr.mxu0 0.0
        %6382 = vmatpush1.msra.mxu0 0.0
        %6383 = vmatprep.subr.mxu0 0.0
        %6384 = vmatpush1.msra.mxu0 0.0
        %6385 = vmatprep.subr.mxu0 0.0
        %6386 = vmatpush1.msra.mxu0 0.0
        %6387 = vmatprep.subr.mxu0 0.0
        %6388 = vmatpush1.msra.mxu0 0.0
        %6389 = vmatprep.subr.mxu0 0.0
        %6390 = vmatpush1.msra.mxu0 0.0
        %6391 = vmatprep.subr.mxu0 0.0
        %6392 = vmatpush1.msra.mxu0 0.0
        %6393 = vmatprep.subr.mxu0 0.0
        %6394 = vmatpush1.msra.mxu0 0.0
        %6395 = vmatprep.subr.mxu0 0.0
        %6396 = vmatpush1.msra.mxu0 0.0
        %6397 = vmatprep.subr.mxu0 0.0
        %6398 = vmatpush1.msra.mxu0 0.0
        %6399 = vmatprep.subr.mxu0 0.0
        %6400 = vmatpush1.msra.mxu0 0.0
        %6401 = vmatprep.subr.mxu0 0.0
        %6402 = vmatpush1.msra.mxu0 0.0
        %6403 = vmatprep.subr.mxu0 0.0
        %6404 = vmatpush1.msra.mxu0 0.0
        %6405 = vmatprep.subr.mxu0 0.0
        %6406 = vmatpush1.msra.mxu0 0.0
        %6407 = vmatprep.subr.mxu0 0.0
        %6408 = vmatpush1.msra.mxu0 0.0
        %6409 = vmatprep.subr.mxu0 0.0
        %6410 = vmatpush1.msra.mxu0 0.0
        %6411 = vmatprep.subr.mxu0 0.0
        %6412 = vmatpush1.msra.mxu0 0.0
        %6413 = vmatprep.subr.mxu0 0.0
        %6414 = vmatpush1.msra.mxu0 0.0
        %6415 = vmatprep.subr.mxu0 0.0
        %6416 = vmatpush1.msra.mxu0 0.0
        %6417 = vmatprep.subr.mxu0 0.0
        %6418 = vmatpush1.msra.mxu0 0.0
        %6419 = vmatprep.mubr.f32.mxu0 0.0
        %6420 = vmatmul.mubr.f32.gmra.mrb[0].mxu0 %v6332
        %v6421 = vpop.f32.mrb[0].mxu0
        %v6422 = vadd.f32 0.0, %v6421
        %v6423 = vpop.f32.mrb[0].mxu0
        %v6424 = vadd.f32 0.0, %v6423
        %6425 = vmatprep.mubr.f32.mxu0 0.0
        %6426 = vmatmul.mubr.f32.gmra.mrb[0].mxu0 %v6335
        %v6427 = vpop.f32.mrb[0].mxu0
        %v6428 = vadd.f32 0.0, %v6427
        %v6429 = vpop.f32.mrb[0].mxu0
        %v6430 = vadd.f32 0.0, %v6429
        %6431 = vmatprep.mubr.f32.mxu0 0.0
        %6432 = vmatmul.mubr.f32.gmra.mrb[0].mxu0 %v6338
        %v6433 = vpop.f32.mrb[0].mxu0
        %v6434 = vadd.f32 0.0, %v6433
        %v6435 = vpop.f32.mrb[0].mxu0
        %v6436 = vadd.f32 0.0, %v6435
        %6437 = vmatprep.mubr.f32.mxu0 0.0
        %6438 = vmatmul.mubr.f32.gmra.mrb[0].mxu0 %v6341
        %v6439 = vpop.f32.mrb[0].mxu0
        %v6440 = vadd.f32 0.0, %v6439
        %v6441 = vpop.f32.mrb[0].mxu0
        %v6442 = vadd.f32 0.0, %v6441
        %6443 = vmatprep.mubr.f32.mxu0 0.0
        %6444 = vmatmul.mubr.f32.gmra.mrb[0].mxu0 %v6344
        %v6445 = vpop.f32.mrb[0].mxu0
        %v6446 = vadd.f32 0.0, %v6445
        %v6447 = vpop.f32.mrb[0].mxu0
        %v6448 = vadd.f32 0.0, %v6447
        %6449 = vmatprep.mubr.f32.mxu0 0.0
        %6450 = vmatmul.mubr.f32.gmra.mrb[0].mxu0 %v6347
        %v6451 = vpop.f32.mrb[0].mxu0
        %v6452 = vadd.f32 0.0, %v6451
        %v6453 = vpop.f32.mrb[0].mxu0
        %v6454 = vadd.f32 0.0, %v6453
        %6455 = vmatprep.mubr.f32.mxu0 0.0
        %6456 = vmatmul.mubr.f32.gmra.mrb[0].mxu0 %v6350
        %v6457 = vpop.f32.mrb[0].mxu0
        %v6458 = vadd.f32 0.0, %v6457
        %v6459 = vpop.f32.mrb[0].mxu0
        %v6460 = vadd.f32 0.0, %v6459
        %6461 = vmatprep.mubr.f32.mxu0 0.0
        %6462 = vmatmul.mubr.f32.gmra.mrb[0].mxu0 %v6353
        %v6463 = vpop.f32.mrb[0].mxu0
        %v6464 = vadd.f32 0.0, %v6463
        %v6465 = vpop.f32.mrb[0].mxu0
        %v6466 = vadd.f32 0.0, %v6465
        %6467 = vdwg.mxu0
        %6468 = vmatprep.subr.mxu0 %v6313
        %6469 = vmatpush1.msra.mxu0 %v6312
        %6470 = vmatprep.subr.mxu0 %v6319
        %6471 = vmatpush1.msra.mxu0 %v6318
        %6472 = vmatprep.subr.mxu0 0.0
        %6473 = vmatpush1.msra.mxu0 0.0
        %6474 = vmatprep.subr.mxu0 0.0
        %6475 = vmatpush1.msra.mxu0 0.0
        %6476 = vmatprep.subr.mxu0 0.0
        %6477 = vmatpush1.msra.mxu0 0.0
        %6478 = vmatprep.subr.mxu0 0.0
        %6479 = vmatpush1.msra.mxu0 0.0
        %6480 = vmatprep.subr.mxu0 0.0
        %6481 = vmatpush1.msra.mxu0 0.0
        %6482 = vmatprep.subr.mxu0 0.0
        %6483 = vmatpush1.msra.mxu0 0.0
        %6484 = vmatprep.subr.mxu0 0.0
        %6485 = vmatpush1.msra.mxu0 0.0
        %6486 = vmatprep.subr.mxu0 0.0
        %6487 = vmatpush1.msra.mxu0 0.0
        %6488 = vmatprep.subr.mxu0 0.0
        %6489 = vmatpush1.msra.mxu0 0.0
        %6490 = vmatprep.subr.mxu0 0.0
        %6491 = vmatpush1.msra.mxu0 0.0
        %6492 = vmatprep.subr.mxu0 0.0
        %6493 = vmatpush1.msra.mxu0 0.0
        %6494 = vmatprep.subr.mxu0 0.0
        %6495 = vmatpush1.msra.mxu0 0.0
        %6496 = vmatprep.subr.mxu0 0.0
        %6497 = vmatpush1.msra.mxu0 0.0
        %6498 = vmatprep.subr.mxu0 0.0
        %6499 = vmatpush1.msra.mxu0 0.0
        %6500 = vmatprep.subr.mxu0 0.0
        %6501 = vmatpush1.msra.mxu0 0.0
        %6502 = vmatprep.subr.mxu0 0.0
        %6503 = vmatpush1.msra.mxu0 0.0
        %6504 = vmatprep.subr.mxu0 0.0
        %6505 = vmatpush1.msra.mxu0 0.0
        %6506 = vmatprep.subr.mxu0 0.0
        %6507 = vmatpush1.msra.mxu0 0.0
        %6508 = vmatprep.subr.mxu0 0.0
        %6509 = vmatpush1.msra.mxu0 0.0
        %6510 = vmatprep.subr.mxu0 0.0
        %6511 = vmatpush1.msra.mxu0 0.0
        %6512 = vmatprep.subr.mxu0 0.0
        %6513 = vmatpush1.msra.mxu0 0.0
        %6514 = vmatprep.subr.mxu0 0.0
        %6515 = vmatpush1.msra.mxu0 0.0
        %6516 = vmatprep.subr.mxu0 0.0
        %6517 = vmatpush1.msra.mxu0 0.0
        %6518 = vmatprep.subr.mxu0 0.0
        %6519 = vmatpush1.msra.mxu0 0.0
        %6520 = vmatprep.subr.mxu0 0.0
        %6521 = vmatpush1.msra.mxu0 0.0
        %6522 = vmatprep.subr.mxu0 0.0
        %6523 = vmatpush1.msra.mxu0 0.0
        %6524 = vmatprep.subr.mxu0 0.0
        %6525 = vmatpush1.msra.mxu0 0.0
        %6526 = vmatprep.subr.mxu0 0.0
        %6527 = vmatpush1.msra.mxu0 0.0
        %6528 = vmatprep.subr.mxu0 0.0
        %6529 = vmatpush1.msra.mxu0 0.0
        %6530 = vmatprep.subr.mxu0 0.0
        %6531 = vmatpush1.msra.mxu0 0.0
        %6532 = vmatprep.mubr.f32.mxu0 0.0
        %6533 = vmatmul.mubr.f32.gmra.mrb[0].mxu0 %v6332
        %v6534 = vpop.f32.mrb[0].mxu0
        %v6535 = vadd.f32 0.0, %v6534
        %v6536 = vpop.f32.mrb[0].mxu0
        %v6537 = vadd.f32 0.0, %v6536
        %6538 = vmatprep.mubr.f32.mxu0 0.0
        %6539 = vmatmul.mubr.f32.gmra.mrb[0].mxu0 %v6335
        %v6540 = vpop.f32.mrb[0].mxu0
        %v6541 = vadd.f32 0.0, %v6540
        %v6542 = vpop.f32.mrb[0].mxu0
        %v6543 = vadd.f32 0.0, %v6542
        %6544 = vmatprep.mubr.f32.mxu0 0.0
        %6545 = vmatmul.mubr.f32.gmra.mrb[0].mxu0 %v6338
        %v6546 = vpop.f32.mrb[0].mxu0
        %v6547 = vadd.f32 0.0, %v6546
        %v6548 = vpop.f32.mrb[0].mxu0
        %v6549 = vadd.f32 0.0, %v6548
        %6550 = vmatprep.mubr.f32.mxu0 0.0
        %6551 = vmatmul.mubr.f32.gmra.mrb[0].mxu0 %v6341
        %v6552 = vpop.f32.mrb[0].mxu0
        %v6553 = vadd.f32 0.0, %v6552
        %v6554 = vpop.f32.mrb[0].mxu0
        %v6555 = vadd.f32 0.0, %v6554
        %6556 = vmatprep.mubr.f32.mxu0 0.0
        %6557 = vmatmul.mubr.f32.gmra.mrb[0].mxu0 %v6344
        %v6558 = vpop.f32.mrb[0].mxu0
        %v6559 = vadd.f32 0.0, %v6558
        %v6560 = vpop.f32.mrb[0].mxu0
        %v6561 = vadd.f32 0.0, %v6560
        %6562 = vmatprep.mubr.f32.mxu0 0.0
        %6563 = vmatmul.mubr.f32.gmra.mrb[0].mxu0 %v6347
        %v6564 = vpop.f32.mrb[0].mxu0
        %v6565 = vadd.f32 0.0, %v6564
        %v6566 = vpop.f32.mrb[0].mxu0
        %v6567 = vadd.f32 0.0, %v6566
        %6568 = vmatprep.mubr.f32.mxu0 0.0
        %6569 = vmatmul.mubr.f32.gmra.mrb[0].mxu0 %v6350
        %v6570 = vpop.f32.mrb[0].mxu0
        %v6571 = vadd.f32 0.0, %v6570
        %v6572 = vpop.f32.mrb[0].mxu0
        %v6573 = vadd.f32 0.0, %v6572
        %6574 = vmatprep.mubr.f32.mxu0 0.0
        %6575 = vmatmul.mubr.f32.gmra.mrb[0].mxu0 %v6353
        %v6576 = vpop.f32.mrb[0].mxu0
        %v6577 = vadd.f32 0.0, %v6576
        %v6578 = vpop.f32.mrb[0].mxu0
        %v6579 = vadd.f32 0.0, %v6578
        %6580 = vdwg.mxu0
        %6581 = vmatprep.subr.mxu0 %v6315
        %6582 = vmatpush1.msra.mxu0 %v6314
        %6583 = vmatprep.subr.mxu0 %v6321
        %6584 = vmatpush1.msra.mxu0 %v6320
        %6585 = vmatprep.subr.mxu0 0.0
        %6586 = vmatpush1.msra.mxu0 0.0
        %6587 = vmatprep.subr.mxu0 0.0
        %6588 = vmatpush1.msra.mxu0 0.0
        %6589 = vmatprep.subr.mxu0 0.0
        %6590 = vmatpush1.msra.mxu0 0.0
        %6591 = vmatprep.subr.mxu0 0.0
        %6592 = vmatpush1.msra.mxu0 0.0
        %6593 = vmatprep.subr.mxu0 0.0
        %6594 = vmatpush1.msra.mxu0 0.0
        %6595 = vmatprep.subr.mxu0 0.0
        %6596 = vmatpush1.msra.mxu0 0.0
        %6597 = vmatprep.subr.mxu0 0.0
        %6598 = vmatpush1.msra.mxu0 0.0
        %6599 = vmatprep.subr.mxu0 0.0
        %6600 = vmatpush1.msra.mxu0 0.0
        %6601 = vmatprep.subr.mxu0 0.0
        %6602 = vmatpush1.msra.mxu0 0.0
        %6603 = vmatprep.subr.mxu0 0.0
        %6604 = vmatpush1.msra.mxu0 0.0
        %6605 = vmatprep.subr.mxu0 0.0
        %6606 = vmatpush1.msra.mxu0 0.0
        %6607 = vmatprep.subr.mxu0 0.0
        %6608 = vmatpush1.msra.mxu0 0.0
        %6609 = vmatprep.subr.mxu0 0.0
        %6610 = vmatpush1.msra.mxu0 0.0
        %6611 = vmatprep.subr.mxu0 0.0
        %6612 = vmatpush1.msra.mxu0 0.0
        %6613 = vmatprep.subr.mxu0 0.0
        %6614 = vmatpush1.msra.mxu0 0.0
        %6615 = vmatprep.subr.mxu0 0.0
        %6616 = vmatpush1.msra.mxu0 0.0
        %6617 = vmatprep.subr.mxu0 0.0
        %6618 = vmatpush1.msra.mxu0 0.0
        %6619 = vmatprep.subr.mxu0 0.0
        %6620 = vmatpush1.msra.mxu0 0.0
        %6621 = vmatprep.subr.mxu0 0.0
        %6622 = vmatpush1.msra.mxu0 0.0
        %6623 = vmatprep.subr.mxu0 0.0
        %6624 = vmatpush1.msra.mxu0 0.0
        %6625 = vmatprep.subr.mxu0 0.0
        %6626 = vmatpush1.msra.mxu0 0.0
        %6627 = vmatprep.subr.mxu0 0.0
        %6628 = vmatpush1.msra.mxu0 0.0
        %6629 = vmatprep.subr.mxu0 0.0
        %6630 = vmatpush1.msra.mxu0 0.0
        %6631 = vmatprep.subr.mxu0 0.0
        %6632 = vmatpush1.msra.mxu0 0.0
        %6633 = vmatprep.subr.mxu0 0.0
        %6634 = vmatpush1.msra.mxu0 0.0
        %6635 = vmatprep.subr.mxu0 0.0
        %6636 = vmatpush1.msra.mxu0 0.0
        %6637 = vmatprep.subr.mxu0 0.0
        %6638 = vmatpush1.msra.mxu0 0.0
        %6639 = vmatprep.subr.mxu0 0.0
        %6640 = vmatpush1.msra.mxu0 0.0
        %6641 = vmatprep.subr.mxu0 0.0
        %6642 = vmatpush1.msra.mxu0 0.0
        %6643 = vmatprep.subr.mxu0 0.0
        %6644 = vmatpush1.msra.mxu0 0.0
        %6645 = vmatprep.mubr.f32.mxu0 0.0
        %6646 = vmatmul.mubr.f32.gmra.mrb[0].mxu0 %v6332
        %v6647 = vpop.f32.mrb[0].mxu0
        %v6648 = vadd.f32 0.0, %v6647
        %v6649 = vpop.f32.mrb[0].mxu0
        %v6650 = vadd.f32 0.0, %v6649
        %6651 = vmatprep.mubr.f32.mxu0 0.0
        %6652 = vmatmul.mubr.f32.gmra.mrb[0].mxu0 %v6335
        %v6653 = vpop.f32.mrb[0].mxu0
        %v6654 = vadd.f32 0.0, %v6653
        %v6655 = vpop.f32.mrb[0].mxu0
        %v6656 = vadd.f32 0.0, %v6655
        %6657 = vmatprep.mubr.f32.mxu0 0.0
        %6658 = vmatmul.mubr.f32.gmra.mrb[0].mxu0 %v6338
        %v6659 = vpop.f32.mrb[0].mxu0
        %v6660 = vadd.f32 0.0, %v6659
        %v6661 = vpop.f32.mrb[0].mxu0
        %v6662 = vadd.f32 0.0, %v6661
        %6663 = vmatprep.mubr.f32.mxu0 0.0
        %6664 = vmatmul.mubr.f32.gmra.mrb[0].mxu0 %v6341
        %v6665 = vpop.f32.mrb[0].mxu0
        %v6666 = vadd.f32 0.0, %v6665
        %v6667 = vpop.f32.mrb[0].mxu0
        %v6668 = vadd.f32 0.0, %v6667
        %6669 = vmatprep.mubr.f32.mxu0 0.0
        %6670 = vmatmul.mubr.f32.gmra.mrb[0].mxu0 %v6344
        %v6671 = vpop.f32.mrb[0].mxu0
        %v6672 = vadd.f32 0.0, %v6671
        %v6673 = vpop.f32.mrb[0].mxu0
        %v6674 = vadd.f32 0.0, %v6673
        %6675 = vmatprep.mubr.f32.mxu0 0.0
        %6676 = vmatmul.mubr.f32.gmra.mrb[0].mxu0 %v6347
        %v6677 = vpop.f32.mrb[0].mxu0
        %v6678 = vadd.f32 0.0, %v6677
        %v6679 = vpop.f32.mrb[0].mxu0
        %v6680 = vadd.f32 0.0, %v6679
        %6681 = vmatprep.mubr.f32.mxu0 0.0
        %6682 = vmatmul.mubr.f32.gmra.mrb[0].mxu0 %v6350
        %v6683 = vpop.f32.mrb[0].mxu0
        %v6684 = vadd.f32 0.0, %v6683
        %v6685 = vpop.f32.mrb[0].mxu0
        %v6686 = vadd.f32 0.0, %v6685
        %6687 = vmatprep.mubr.f32.mxu0 0.0
        %6688 = vmatmul.mubr.f32.gmra.mrb[0].mxu0 %v6353
        %v6689 = vpop.f32.mrb[0].mxu0
        %v6690 = vadd.f32 0.0, %v6689
        %v6691 = vpop.f32.mrb[0].mxu0
        %v6692 = vadd.f32 0.0, %v6691
        %6693 = vdwg.mxu0
        %v6694 = vadd.f32 %v5652, %v6422
        %v6695 = vadd.f32 %v5653, %v6424
        %v6696 = vadd.f32 %v5654, %v6535
        %v6697 = vadd.f32 %v5655, %v6537
        %v6698 = vadd.f32 %v5656, %v6648
        %v6699 = vadd.f32 %v5657, %v6650
        %v6700 = vadd.f32 %v5658, %v6428
        %v6701 = vadd.f32 %v5659, %v6430
        %v6702 = vadd.f32 %v5660, %v6541
        %v6703 = vadd.f32 %v5661, %v6543
        %v6704 = vadd.f32 %v5662, %v6654
        %v6705 = vadd.f32 %v5663, %v6656
        %v6706 = vadd.f32 %v5664, %v6434
        %v6707 = vadd.f32 %v5665, %v6436
        %v6708 = vadd.f32 %v5666, %v6547
        %v6709 = vadd.f32 %v5667, %v6549
        %v6710 = vadd.f32 %v5668, %v6660
        %v6711 = vadd.f32 %v5669, %v6662
        %v6712 = vadd.f32 %v5670, %v6440
        %v6713 = vadd.f32 %v5671, %v6442
        %v6714 = vadd.f32 %v5672, %v6553
        %v6715 = vadd.f32 %v5673, %v6555
        %v6716 = vadd.f32 %v5674, %v6666
        %v6717 = vadd.f32 %v5675, %v6668
        %s6718 = scalar_lea.vmem %s11, 64
        %v6719 = vld [vmem:[%s6718] sm:$0xff]
        %v6720 = vld [vmem:[%s6718 + $0x8] sm:$0xff]
        %v6721 = vld [vmem:[%s6718 + $0x10] sm:$0xff]
        %v6722 = vld [vmem:[%s6718 + $0x18] sm:$0xff]
        %6724 = vset.pattern.permute.xlu0 0
        %6725 = vperm.xlu0 %6724, %v6719
        %v6726 = vpop.permute.xlu0 %6725
        %6729 = vset.pattern.permute.xlu0 0
        %6730 = vperm.xlu0 %6729, %v6720
        %v6731 = vpop.permute.xlu0 %6730
        %6734 = vset.pattern.permute.xlu0 0
        %6735 = vperm.xlu0 %6734, %v6721
        %v6736 = vpop.permute.xlu0 %6735
        %6739 = vset.pattern.permute.xlu0 0
        %6740 = vperm.xlu0 %6739, %v6722
        %v6741 = vpop.permute.xlu0 %6740
        %v6743 = vadd.f32 %v6694, %v6726
        %v6744 = vadd.f32 %v6695, %v6726
        %v6745 = vadd.f32 %v6696, %v6726
        %v6746 = vadd.f32 %v6697, %v6726
        %v6747 = vadd.f32 %v6698, %v6726
        %v6748 = vadd.f32 %v6699, %v6726
        %v6749 = vadd.f32 %v6700, %v6731
        %v6750 = vadd.f32 %v6701, %v6731
        %v6751 = vadd.f32 %v6702, %v6731
        %v6752 = vadd.f32 %v6703, %v6731
        %v6753 = vadd.f32 %v6704, %v6731
        %v6754 = vadd.f32 %v6705, %v6731
        %v6755 = vadd.f32 %v6706, %v6736
        %v6756 = vadd.f32 %v6707, %v6736
        %v6757 = vadd.f32 %v6708, %v6736
        %v6758 = vadd.f32 %v6709, %v6736
        %v6759 = vadd.f32 %v6710, %v6736
        %v6760 = vadd.f32 %v6711, %v6736
        %v6761 = vadd.f32 %v6712, %v6741
        %v6762 = vadd.f32 %v6713, %v6741
        %v6763 = vadd.f32 %v6714, %v6741
        %v6764 = vadd.f32 %v6715, %v6741
        %v6765 = vadd.f32 %v6716, %v6741
        %v6766 = vadd.f32 %v6717, %v6741
        %s6767 = scalar_lea.vmem %s12, 64
        %v6768 = vld [vmem:[%s6767] sm:$0xff]
        %v6769 = vld [vmem:[%s6767 + $0x8] sm:$0xff]
        %v6770 = vld [vmem:[%s6767 + $0x10] sm:$0xff]
        %v6771 = vld [vmem:[%s6767 + $0x18] sm:$0xff]
        %6773 = vset.pattern.permute.xlu0 0
        %6774 = vperm.xlu0 %6773, %v6768
        %v6775 = vpop.permute.xlu0 %6774
        %6778 = vset.pattern.permute.xlu0 0
        %6779 = vperm.xlu0 %6778, %v6769
        %v6780 = vpop.permute.xlu0 %6779
        %6783 = vset.pattern.permute.xlu0 0
        %6784 = vperm.xlu0 %6783, %v6770
        %v6785 = vpop.permute.xlu0 %6784
        %6788 = vset.pattern.permute.xlu0 0
        %6789 = vperm.xlu0 %6788, %v6771
        %v6790 = vpop.permute.xlu0 %6789
        %v6792 = vadd.f32 %v6446, %v6775
        %v6793 = vadd.f32 %v6448, %v6775
        %v6794 = vadd.f32 %v6559, %v6775
        %v6795 = vadd.f32 %v6561, %v6775
        %v6796 = vadd.f32 %v6672, %v6775
        %v6797 = vadd.f32 %v6674, %v6775
        %v6798 = vadd.f32 %v6452, %v6780
        %v6799 = vadd.f32 %v6454, %v6780
        %v6800 = vadd.f32 %v6565, %v6780
        %v6801 = vadd.f32 %v6567, %v6780
        %v6802 = vadd.f32 %v6678, %v6780
        %v6803 = vadd.f32 %v6680, %v6780
        %v6804 = vadd.f32 %v6458, %v6785
        %v6805 = vadd.f32 %v6460, %v6785
        %v6806 = vadd.f32 %v6571, %v6785
        %v6807 = vadd.f32 %v6573, %v6785
        %v6808 = vadd.f32 %v6684, %v6785
        %v6809 = vadd.f32 %v6686, %v6785
        %v6810 = vadd.f32 %v6464, %v6790
        %v6811 = vadd.f32 %v6466, %v6790
        %v6812 = vadd.f32 %v6577, %v6790
        %v6813 = vadd.f32 %v6579, %v6790
        %v6814 = vadd.f32 %v6690, %v6790
        %v6815 = vadd.f32 %v6692, %v6790
        %v6816 = vadd.f32 %v6792, %v5749
        %v6817 = vadd.f32 %v6793, %v5750
        %v6818 = vadd.f32 %v6794, %v5751
        %v6819 = vadd.f32 %v6795, %v5752
        %v6820 = vadd.f32 %v6796, %v5753
        %v6821 = vadd.f32 %v6797, %v5754
        %v6822 = vadd.f32 %v6798, %v5755
        %v6823 = vadd.f32 %v6799, %v5756
        %v6824 = vadd.f32 %v6800, %v5757
        %v6825 = vadd.f32 %v6801, %v5758
        %v6826 = vadd.f32 %v6802, %v5759
        %v6827 = vadd.f32 %v6803, %v5760
        %v6828 = vadd.f32 %v6804, %v5761
        %v6829 = vadd.f32 %v6805, %v5762
        %v6830 = vadd.f32 %v6806, %v5763
        %v6831 = vadd.f32 %v6807, %v5764
        %v6832 = vadd.f32 %v6808, %v5765
        %v6833 = vadd.f32 %v6809, %v5766
        %v6834 = vadd.f32 %v6810, %v5767
        %v6835 = vadd.f32 %v6811, %v5768
        %v6836 = vadd.f32 %v6812, %v5769
        %v6837 = vadd.f32 %v6813, %v5770
        %v6838 = vadd.f32 %v6814, %v5771
        %v6839 = vadd.f32 %v6815, %v5772
        %v6840 = vmul.f32 %v6816, 0.70710677
        %v6841 = vmul.f32 %v6817, 0.70710677
        %v6842 = vmul.f32 %v6818, 0.70710677
        %v6843 = vmul.f32 %v6819, 0.70710677
        %v6844 = vmul.f32 %v6820, 0.70710677
        %v6845 = vmul.f32 %v6821, 0.70710677
        %v6846 = vmul.f32 %v6822, 0.70710677
        %v6847 = vmul.f32 %v6823, 0.70710677
        %v6848 = vmul.f32 %v6824, 0.70710677
        %v6849 = vmul.f32 %v6825, 0.70710677
        %v6850 = vmul.f32 %v6826, 0.70710677
        %v6851 = vmul.f32 %v6827, 0.70710677
        %v6852 = vmul.f32 %v6828, 0.70710677
        %v6853 = vmul.f32 %v6829, 0.70710677
        %v6854 = vmul.f32 %v6830, 0.70710677
        %v6855 = vmul.f32 %v6831, 0.70710677
        %v6856 = vmul.f32 %v6832, 0.70710677
        %v6857 = vmul.f32 %v6833, 0.70710677
        %v6858 = vmul.f32 %v6834, 0.70710677
        %v6859 = vmul.f32 %v6835, 0.70710677
        %v6860 = vmul.f32 %v6836, 0.70710677
        %v6861 = vmul.f32 %v6837, 0.70710677
        %v6862 = vmul.f32 %v6838, 0.70710677
        %v6863 = vmul.f32 %v6839, 0.70710677
        %6864 = vrot.lane.b32.xlu0 %v6840, 2
        %v6865 = vpop.permute.xlu0 %6864
        %6866 = vrot.lane.b32.xlu0 %v6846, 2
        %v6867 = vpop.permute.xlu0 %6866
        %6868 = vrot.lane.b32.xlu0 %v6852, 2
        %v6869 = vpop.permute.xlu0 %6868
        %6870 = vrot.lane.b32.xlu0 %v6858, 2
        %v6871 = vpop.permute.xlu0 %6870
        %6872 = vrot.lane.b32.xlu0 %v6841, 2
        %v6873 = vpop.permute.xlu0 %6872
        %6874 = vrot.lane.b32.xlu0 %v6847, 2
        %v6875 = vpop.permute.xlu0 %6874
        %6876 = vrot.lane.b32.xlu0 %v6853, 2
        %v6877 = vpop.permute.xlu0 %6876
        %6878 = vrot.lane.b32.xlu0 %v6859, 2
        %v6879 = vpop.permute.xlu0 %6878
        %6880 = vrot.lane.b32.xlu0 %v6842, 2
        %v6881 = vpop.permute.xlu0 %6880
        %6882 = vrot.lane.b32.xlu0 %v6848, 2
        %v6883 = vpop.permute.xlu0 %6882
        %6884 = vrot.lane.b32.xlu0 %v6854, 2
        %v6885 = vpop.permute.xlu0 %6884
        %6886 = vrot.lane.b32.xlu0 %v6860, 2
        %v6887 = vpop.permute.xlu0 %6886
        %6888 = vrot.lane.b32.xlu0 %v6843, 2
        %v6889 = vpop.permute.xlu0 %6888
        %6890 = vrot.lane.b32.xlu0 %v6849, 2
        %v6891 = vpop.permute.xlu0 %6890
        %6892 = vrot.lane.b32.xlu0 %v6855, 2
        %v6893 = vpop.permute.xlu0 %6892
        %6894 = vrot.lane.b32.xlu0 %v6861, 2
        %v6895 = vpop.permute.xlu0 %6894
        %6896 = vrot.lane.b32.xlu0 %v6844, 2
        %v6897 = vpop.permute.xlu0 %6896
        %6898 = vrot.lane.b32.xlu0 %v6850, 2
        %v6899 = vpop.permute.xlu0 %6898
        %6900 = vrot.lane.b32.xlu0 %v6856, 2
        %v6901 = vpop.permute.xlu0 %6900
        %6902 = vrot.lane.b32.xlu0 %v6862, 2
        %v6903 = vpop.permute.xlu0 %6902
        %6904 = vrot.lane.b32.xlu0 %v6845, 2
        %v6905 = vpop.permute.xlu0 %6904
        %6906 = vrot.lane.b32.xlu0 %v6851, 2
        %v6907 = vpop.permute.xlu0 %6906
        %6908 = vrot.lane.b32.xlu0 %v6857, 2
        %v6909 = vpop.permute.xlu0 %6908
        %6910 = vrot.lane.b32.xlu0 %v6863, 2
        %v6911 = vpop.permute.xlu0 %6910
        %v6912 = vsel %vm4729, %v6897, %v6905
        %v6913 = vsel %vm4729, %v6899, %v6907
        %v6914 = vsel %vm4729, %v6901, %v6909
        %v6915 = vsel %vm4729, %v6903, %v6911
        %v6916 = vsel %vm4729, %v6889, %v6897
        %v6917 = vsel %vm4729, %v6891, %v6899
        %v6918 = vsel %vm4729, %v6893, %v6901
        %v6919 = vsel %vm4729, %v6895, %v6903
        %v6920 = vsel %vm4729, %v6881, %v6889
        %v6921 = vsel %vm4729, %v6883, %v6891
        %v6922 = vsel %vm4729, %v6885, %v6893
        %v6923 = vsel %vm4729, %v6887, %v6895
        %v6924 = vsel %vm4729, %v6873, %v6881
        %v6925 = vsel %vm4729, %v6875, %v6883
        %v6926 = vsel %vm4729, %v6877, %v6885
        %v6927 = vsel %vm4729, %v6879, %v6887
        %v6928 = vsel %vm4729, %v6865, %v6873
        %v6929 = vsel %vm4729, %v6867, %v6875
        %v6930 = vsel %vm4729, %v6869, %v6877
        %v6931 = vsel %vm4729, %v6871, %v6879
        %v6932 = vsel %vm4729, %v6905, %v6865
        %v6933 = vsel %vm4729, %v6907, %v6867
        %v6934 = vsel %vm4729, %v6909, %v6869
        %v6935 = vsel %vm4729, %v6911, %v6871
        %v6936 = vsel %vm4675, %v6932, 0.0
        %v6937 = vsel %vm4676, %v6928, 0.0
        %v6938 = vsel %vm4677, %v6924, 0.0
        %v6939 = vsel %vm4678, %v6920, 0.0
        %v6940 = vsel %vm4679, %v6916, 0.0
        %v6941 = vsel %vm4680, %v6912, 0.0
        %v6942 = vsel %vm4675, %v6933, 0.0
        %v6943 = vsel %vm4676, %v6929, 0.0
        %v6944 = vsel %vm4677, %v6925, 0.0
        %v6945 = vsel %vm4678, %v6921, 0.0
        %v6946 = vsel %vm4679, %v6917, 0.0
        %v6947 = vsel %vm4680, %v6913, 0.0
        %v6948 = vsel %vm4675, %v6934, 0.0
        %v6949 = vsel %vm4676, %v6930, 0.0
        %v6950 = vsel %vm4677, %v6926, 0.0
        %v6951 = vsel %vm4678, %v6922, 0.0
        %v6952 = vsel %vm4679, %v6918, 0.0
        %v6953 = vsel %vm4680, %v6914, 0.0
        %v6954 = vsel %vm4675, %v6935, 0.0
        %v6955 = vsel %vm4676, %v6931, 0.0
        %v6956 = vsel %vm4677, %v6927, 0.0
        %v6957 = vsel %vm4678, %v6923, 0.0
        %v6958 = vsel %vm4679, %v6919, 0.0
        %v6959 = vsel %vm4680, %v6915, 0.0
        %s6960 = scalar_lea.vmem %s8, 96
        %v6961 = vld [vmem:[%s6960] sm:$0xff]
        %v6962 = vld [vmem:[%s6960 + $0x8] sm:$0xff]
        %v6963 = vld [vmem:[%s6960 + $0x10] sm:$0xff]
        %v6964 = vld [vmem:[%s6960 + $0x18] sm:$0xff]
        %s6965 = scalar_lea.vmem %s9, 96
        %v6966 = vld [vmem:[%s6965] sm:$0xff]
        %v6967 = vld [vmem:[%s6965 + $0x8] sm:$0xff]
        %v6968 = vld [vmem:[%s6965 + $0x10] sm:$0xff]
        %v6969 = vld [vmem:[%s6965 + $0x18] sm:$0xff]
        %6971 = vset.pattern.permute.xlu0 0
        %6972 = vperm.xlu0 %6971, %v6966
        %v6973 = vpop.permute.xlu0 %6972
        %6976 = vset.pattern.permute.xlu0 0
        %6977 = vperm.xlu0 %6976, %v6967
        %v6978 = vpop.permute.xlu0 %6977
        %6981 = vset.pattern.permute.xlu0 0
        %6982 = vperm.xlu0 %6981, %v6968
        %v6983 = vpop.permute.xlu0 %6982
        %6986 = vset.pattern.permute.xlu0 0
        %6987 = vperm.xlu0 %6986, %v6969
        %v6988 = vpop.permute.xlu0 %6987
        %v6991 = vsel %vm3712, %v6961, 0
        %v6994 = vsel %vm3712, %v6962, 0
        %v6997 = vsel %vm3712, %v6963, 0
        %v7000 = vsel %vm3712, %v6964, 0
        %7002 = vmatprep.subr.mxu0 %v6937
        %7003 = vmatpush1.msra.mxu0 %v6936
        %7004 = vmatprep.subr.mxu0 %v6943
        %7005 = vmatpush1.msra.mxu0 %v6942
        %7006 = vmatprep.subr.mxu0 %v6949
        %7007 = vmatpush1.msra.mxu0 %v6948
        %7008 = vmatprep.subr.mxu0 %v6955
        %7009 = vmatpush1.msra.mxu0 %v6954
        %7010 = vmatprep.subr.mxu0 %v6841
        %7011 = vmatpush1.msra.mxu0 %v6840
        %7012 = vmatprep.subr.mxu0 %v6847
        %7013 = vmatpush1.msra.mxu0 %v6846
        %7014 = vmatprep.subr.mxu0 %v6853
        %7015 = vmatpush1.msra.mxu0 %v6852
        %7016 = vmatprep.subr.mxu0 %v6859
        %7017 = vmatpush1.msra.mxu0 %v6858
        %7018 = vmatprep.subr.mxu0 0.0
        %7019 = vmatpush1.msra.mxu0 0.0
        %7020 = vmatprep.subr.mxu0 0.0
        %7021 = vmatpush1.msra.mxu0 0.0
        %7022 = vmatprep.subr.mxu0 0.0
        %7023 = vmatpush1.msra.mxu0 0.0
        %7024 = vmatprep.subr.mxu0 0.0
        %7025 = vmatpush1.msra.mxu0 0.0
        %7026 = vmatprep.subr.mxu0 0.0
        %7027 = vmatpush1.msra.mxu0 0.0
        %7028 = vmatprep.subr.mxu0 0.0
        %7029 = vmatpush1.msra.mxu0 0.0
        %7030 = vmatprep.subr.mxu0 0.0
        %7031 = vmatpush1.msra.mxu0 0.0
        %7032 = vmatprep.subr.mxu0 0.0
        %7033 = vmatpush1.msra.mxu0 0.0
        %7034 = vmatprep.subr.mxu0 0.0
        %7035 = vmatpush1.msra.mxu0 0.0
        %7036 = vmatprep.subr.mxu0 0.0
        %7037 = vmatpush1.msra.mxu0 0.0
        %7038 = vmatprep.subr.mxu0 0.0
        %7039 = vmatpush1.msra.mxu0 0.0
        %7040 = vmatprep.subr.mxu0 0.0
        %7041 = vmatpush1.msra.mxu0 0.0
        %7042 = vmatprep.subr.mxu0 0.0
        %7043 = vmatpush1.msra.mxu0 0.0
        %7044 = vmatprep.subr.mxu0 0.0
        %7045 = vmatpush1.msra.mxu0 0.0
        %7046 = vmatprep.subr.mxu0 0.0
        %7047 = vmatpush1.msra.mxu0 0.0
        %7048 = vmatprep.subr.mxu0 0.0
        %7049 = vmatpush1.msra.mxu0 0.0
        %7050 = vmatprep.subr.mxu0 0.0
        %7051 = vmatpush1.msra.mxu0 0.0
        %7052 = vmatprep.subr.mxu0 0.0
        %7053 = vmatpush1.msra.mxu0 0.0
        %7054 = vmatprep.subr.mxu0 0.0
        %7055 = vmatpush1.msra.mxu0 0.0
        %7056 = vmatprep.subr.mxu0 0.0
        %7057 = vmatpush1.msra.mxu0 0.0
        %7058 = vmatprep.subr.mxu0 0.0
        %7059 = vmatpush1.msra.mxu0 0.0
        %7060 = vmatprep.subr.mxu0 0.0
        %7061 = vmatpush1.msra.mxu0 0.0
        %7062 = vmatprep.subr.mxu0 0.0
        %7063 = vmatpush1.msra.mxu0 0.0
        %7064 = vmatprep.subr.mxu0 0.0
        %7065 = vmatpush1.msra.mxu0 0.0
        %7066 = vmatprep.mubr.f32.mxu0 0.0
        %7067 = vmatmul.mubr.f32.gmra.mrb[0].mxu0 %v6991
        %v7068 = vpop.f32.mrb[0].mxu0
        %v7069 = vadd.f32 %v6973, %v7068
        %v7070 = vpop.f32.mrb[0].mxu0
        %v7071 = vadd.f32 %v6973, %v7070
        %7072 = vmatprep.mubr.f32.mxu0 0.0
        %7073 = vmatmul.mubr.f32.gmra.mrb[0].mxu0 %v6994
        %v7074 = vpop.f32.mrb[0].mxu0
        %v7075 = vadd.f32 %v6978, %v7074
        %v7076 = vpop.f32.mrb[0].mxu0
        %v7077 = vadd.f32 %v6978, %v7076
        %7078 = vmatprep.mubr.f32.mxu0 0.0
        %7079 = vmatmul.mubr.f32.gmra.mrb[0].mxu0 %v6997
        %v7080 = vpop.f32.mrb[0].mxu0
        %v7081 = vadd.f32 %v6983, %v7080
        %v7082 = vpop.f32.mrb[0].mxu0
        %v7083 = vadd.f32 %v6983, %v7082
        %7084 = vmatprep.mubr.f32.mxu0 0.0
        %7085 = vmatmul.mubr.f32.gmra.mrb[0].mxu0 %v7000
        %v7086 = vpop.f32.mrb[0].mxu0
        %v7087 = vadd.f32 %v6988, %v7086
        %v7088 = vpop.f32.mrb[0].mxu0
        %v7089 = vadd.f32 %v6988, %v7088
        %7090 = vdwg.mxu0
        %7091 = vmatprep.subr.mxu0 %v6939
        %7092 = vmatpush1.msra.mxu0 %v6938
        %7093 = vmatprep.subr.mxu0 %v6945
        %7094 = vmatpush1.msra.mxu0 %v6944
        %7095 = vmatprep.subr.mxu0 %v6951
        %7096 = vmatpush1.msra.mxu0 %v6950
        %7097 = vmatprep.subr.mxu0 %v6957
        %7098 = vmatpush1.msra.mxu0 %v6956
        %7099 = vmatprep.subr.mxu0 %v6843
        %7100 = vmatpush1.msra.mxu0 %v6842
        %7101 = vmatprep.subr.mxu0 %v6849
        %7102 = vmatpush1.msra.mxu0 %v6848
        %7103 = vmatprep.subr.mxu0 %v6855
        %7104 = vmatpush1.msra.mxu0 %v6854
        %7105 = vmatprep.subr.mxu0 %v6861
        %7106 = vmatpush1.msra.mxu0 %v6860
        %7107 = vmatprep.subr.mxu0 0.0
        %7108 = vmatpush1.msra.mxu0 0.0
        %7109 = vmatprep.subr.mxu0 0.0
        %7110 = vmatpush1.msra.mxu0 0.0
        %7111 = vmatprep.subr.mxu0 0.0
        %7112 = vmatpush1.msra.mxu0 0.0
        %7113 = vmatprep.subr.mxu0 0.0
        %7114 = vmatpush1.msra.mxu0 0.0
        %7115 = vmatprep.subr.mxu0 0.0
        %7116 = vmatpush1.msra.mxu0 0.0
        %7117 = vmatprep.subr.mxu0 0.0
        %7118 = vmatpush1.msra.mxu0 0.0
        %7119 = vmatprep.subr.mxu0 0.0
        %7120 = vmatpush1.msra.mxu0 0.0
        %7121 = vmatprep.subr.mxu0 0.0
        %7122 = vmatpush1.msra.mxu0 0.0
        %7123 = vmatprep.subr.mxu0 0.0
        %7124 = vmatpush1.msra.mxu0 0.0
        %7125 = vmatprep.subr.mxu0 0.0
        %7126 = vmatpush1.msra.mxu0 0.0
        %7127 = vmatprep.subr.mxu0 0.0
        %7128 = vmatpush1.msra.mxu0 0.0
        %7129 = vmatprep.subr.mxu0 0.0
        %7130 = vmatpush1.msra.mxu0 0.0
        %7131 = vmatprep.subr.mxu0 0.0
        %7132 = vmatpush1.msra.mxu0 0.0
        %7133 = vmatprep.subr.mxu0 0.0
        %7134 = vmatpush1.msra.mxu0 0.0
        %7135 = vmatprep.subr.mxu0 0.0
        %7136 = vmatpush1.msra.mxu0 0.0
        %7137 = vmatprep.subr.mxu0 0.0
        %7138 = vmatpush1.msra.mxu0 0.0
        %7139 = vmatprep.subr.mxu0 0.0
        %7140 = vmatpush1.msra.mxu0 0.0
        %7141 = vmatprep.subr.mxu0 0.0
        %7142 = vmatpush1.msra.mxu0 0.0
        %7143 = vmatprep.subr.mxu0 0.0
        %7144 = vmatpush1.msra.mxu0 0.0
        %7145 = vmatprep.subr.mxu0 0.0
        %7146 = vmatpush1.msra.mxu0 0.0
        %7147 = vmatprep.subr.mxu0 0.0
        %7148 = vmatpush1.msra.mxu0 0.0
        %7149 = vmatprep.subr.mxu0 0.0
        %7150 = vmatpush1.msra.mxu0 0.0
        %7151 = vmatprep.subr.mxu0 0.0
        %7152 = vmatpush1.msra.mxu0 0.0
        %7153 = vmatprep.subr.mxu0 0.0
        %7154 = vmatpush1.msra.mxu0 0.0
        %7155 = vmatprep.mubr.f32.mxu0 0.0
        %7156 = vmatmul.mubr.f32.gmra.mrb[0].mxu0 %v6991
        %v7157 = vpop.f32.mrb[0].mxu0
        %v7158 = vadd.f32 %v6973, %v7157
        %v7159 = vpop.f32.mrb[0].mxu0
        %v7160 = vadd.f32 %v6973, %v7159
        %7161 = vmatprep.mubr.f32.mxu0 0.0
        %7162 = vmatmul.mubr.f32.gmra.mrb[0].mxu0 %v6994
        %v7163 = vpop.f32.mrb[0].mxu0
        %v7164 = vadd.f32 %v6978, %v7163
        %v7165 = vpop.f32.mrb[0].mxu0
        %v7166 = vadd.f32 %v6978, %v7165
        %7167 = vmatprep.mubr.f32.mxu0 0.0
        %7168 = vmatmul.mubr.f32.gmra.mrb[0].mxu0 %v6997
        %v7169 = vpop.f32.mrb[0].mxu0
        %v7170 = vadd.f32 %v6983, %v7169
        %v7171 = vpop.f32.mrb[0].mxu0
        %v7172 = vadd.f32 %v6983, %v7171
        %7173 = vmatprep.mubr.f32.mxu0 0.0
        %7174 = vmatmul.mubr.f32.gmra.mrb[0].mxu0 %v7000
        %v7175 = vpop.f32.mrb[0].mxu0
        %v7176 = vadd.f32 %v6988, %v7175
        %v7177 = vpop.f32.mrb[0].mxu0
        %v7178 = vadd.f32 %v6988, %v7177
        %7179 = vdwg.mxu0
        %7180 = vmatprep.subr.mxu0 %v6941
        %7181 = vmatpush1.msra.mxu0 %v6940
        %7182 = vmatprep.subr.mxu0 %v6947
        %7183 = vmatpush1.msra.mxu0 %v6946
        %7184 = vmatprep.subr.mxu0 %v6953
        %7185 = vmatpush1.msra.mxu0 %v6952
        %7186 = vmatprep.subr.mxu0 %v6959
        %7187 = vmatpush1.msra.mxu0 %v6958
        %7188 = vmatprep.subr.mxu0 %v6845
        %7189 = vmatpush1.msra.mxu0 %v6844
        %7190 = vmatprep.subr.mxu0 %v6851
        %7191 = vmatpush1.msra.mxu0 %v6850
        %7192 = vmatprep.subr.mxu0 %v6857
        %7193 = vmatpush1.msra.mxu0 %v6856
        %7194 = vmatprep.subr.mxu0 %v6863
        %7195 = vmatpush1.msra.mxu0 %v6862
        %7196 = vmatprep.subr.mxu0 0.0
        %7197 = vmatpush1.msra.mxu0 0.0
        %7198 = vmatprep.subr.mxu0 0.0
        %7199 = vmatpush1.msra.mxu0 0.0
        %7200 = vmatprep.subr.mxu0 0.0
        %7201 = vmatpush1.msra.mxu0 0.0
        %7202 = vmatprep.subr.mxu0 0.0
        %7203 = vmatpush1.msra.mxu0 0.0
        %7204 = vmatprep.subr.mxu0 0.0
        %7205 = vmatpush1.msra.mxu0 0.0
        %7206 = vmatprep.subr.mxu0 0.0
        %7207 = vmatpush1.msra.mxu0 0.0
        %7208 = vmatprep.subr.mxu0 0.0
        %7209 = vmatpush1.msra.mxu0 0.0
        %7210 = vmatprep.subr.mxu0 0.0
        %7211 = vmatpush1.msra.mxu0 0.0
        %7212 = vmatprep.subr.mxu0 0.0
        %7213 = vmatpush1.msra.mxu0 0.0
        %7214 = vmatprep.subr.mxu0 0.0
        %7215 = vmatpush1.msra.mxu0 0.0
        %7216 = vmatprep.subr.mxu0 0.0
        %7217 = vmatpush1.msra.mxu0 0.0
        %7218 = vmatprep.subr.mxu0 0.0
        %7219 = vmatpush1.msra.mxu0 0.0
        %7220 = vmatprep.subr.mxu0 0.0
        %7221 = vmatpush1.msra.mxu0 0.0
        %7222 = vmatprep.subr.mxu0 0.0
        %7223 = vmatpush1.msra.mxu0 0.0
        %7224 = vmatprep.subr.mxu0 0.0
        %7225 = vmatpush1.msra.mxu0 0.0
        %7226 = vmatprep.subr.mxu0 0.0
        %7227 = vmatpush1.msra.mxu0 0.0
        %7228 = vmatprep.subr.mxu0 0.0
        %7229 = vmatpush1.msra.mxu0 0.0
        %7230 = vmatprep.subr.mxu0 0.0
        %7231 = vmatpush1.msra.mxu0 0.0
        %7232 = vmatprep.subr.mxu0 0.0
        %7233 = vmatpush1.msra.mxu0 0.0
        %7234 = vmatprep.subr.mxu0 0.0
        %7235 = vmatpush1.msra.mxu0 0.0
        %7236 = vmatprep.subr.mxu0 0.0
        %7237 = vmatpush1.msra.mxu0 0.0
        %7238 = vmatprep.subr.mxu0 0.0
        %7239 = vmatpush1.msra.mxu0 0.0
        %7240 = vmatprep.subr.mxu0 0.0
        %7241 = vmatpush1.msra.mxu0 0.0
        %7242 = vmatprep.subr.mxu0 0.0
        %7243 = vmatpush1.msra.mxu0 0.0
        %7244 = vmatprep.mubr.f32.mxu0 0.0
        %7245 = vmatmul.mubr.f32.gmra.mrb[0].mxu0 %v6991
        %v7246 = vpop.f32.mrb[0].mxu0
        %v7247 = vadd.f32 %v6973, %v7246
        %v7248 = vpop.f32.mrb[0].mxu0
        %v7249 = vadd.f32 %v6973, %v7248
        %7250 = vmatprep.mubr.f32.mxu0 0.0
        %7251 = vmatmul.mubr.f32.gmra.mrb[0].mxu0 %v6994
        %v7252 = vpop.f32.mrb[0].mxu0
        %v7253 = vadd.f32 %v6978, %v7252
        %v7254 = vpop.f32.mrb[0].mxu0
        %v7255 = vadd.f32 %v6978, %v7254
        %7256 = vmatprep.mubr.f32.mxu0 0.0
        %7257 = vmatmul.mubr.f32.gmra.mrb[0].mxu0 %v6997
        %v7258 = vpop.f32.mrb[0].mxu0
        %v7259 = vadd.f32 %v6983, %v7258
        %v7260 = vpop.f32.mrb[0].mxu0
        %v7261 = vadd.f32 %v6983, %v7260
        %7262 = vmatprep.mubr.f32.mxu0 0.0
        %7263 = vmatmul.mubr.f32.gmra.mrb[0].mxu0 %v7000
        %v7264 = vpop.f32.mrb[0].mxu0
        %v7265 = vadd.f32 %v6988, %v7264
        %v7266 = vpop.f32.mrb[0].mxu0
        %v7267 = vadd.f32 %v6988, %v7266
        %7268 = vdwg.mxu0
        %v7269 = vld [vmem:[#allocation2 + $0x240] sm:$0xff]
        %v7270 = vld [vmem:[#allocation2 + $0x248] sm:$0xff]
        %v7271 = vld [vmem:[#allocation2 + $0x250] sm:$0xff]
        %v7272 = vld [vmem:[#allocation2 + $0x258] sm:$0xff]
        %v7273 = vld [vmem:[#allocation2 + $0x260] sm:$0xff]
        %v7274 = vld [vmem:[#allocation2 + $0x268] sm:$0xff]
        %v7275 = vld [vmem:[#allocation2 + $0x270] sm:$0xff]
        %v7276 = vld [vmem:[#allocation2 + $0x278] sm:$0xff]
        %v7277 = vld [vmem:[#allocation2 + $0x280] sm:$0xff]
        %v7278 = vld [vmem:[#allocation2 + $0x288] sm:$0xff]
        %v7279 = vld [vmem:[#allocation2 + $0x290] sm:$0xff]
        %v7280 = vld [vmem:[#allocation2 + $0x298] sm:$0xff]
        %v7281 = vld [vmem:[#allocation2 + $0x2a0] sm:$0xff]
        %v7282 = vld [vmem:[#allocation2 + $0x2a8] sm:$0xff]
        %v7283 = vld [vmem:[#allocation2 + $0x2b0] sm:$0xff]
        %v7284 = vld [vmem:[#allocation2 + $0x2b8] sm:$0xff]
        %v7285 = vld [vmem:[#allocation2 + $0x2c0] sm:$0xff]
        %v7286 = vld [vmem:[#allocation2 + $0x2c8] sm:$0xff]
        %v7287 = vld [vmem:[#allocation2 + $0x2d0] sm:$0xff]
        %v7288 = vld [vmem:[#allocation2 + $0x2d8] sm:$0xff]
        %v7289 = vld [vmem:[#allocation2 + $0x2e0] sm:$0xff]
        %v7290 = vld [vmem:[#allocation2 + $0x2e8] sm:$0xff]
        %v7291 = vld [vmem:[#allocation2 + $0x2f0] sm:$0xff]
        %v7292 = vld [vmem:[#allocation2 + $0x2f8] sm:$0xff]
        %v7293 = vadd.f32 %v7069, %v7269
        %v7294 = vadd.f32 %v7071, %v7270
        %v7295 = vadd.f32 %v7158, %v7271
        %v7296 = vadd.f32 %v7160, %v7272
        %v7297 = vadd.f32 %v7247, %v7273
        %v7298 = vadd.f32 %v7249, %v7274
        %v7299 = vadd.f32 %v7075, %v7275
        %v7300 = vadd.f32 %v7077, %v7276
        %v7301 = vadd.f32 %v7164, %v7277
        %v7302 = vadd.f32 %v7166, %v7278
        %v7303 = vadd.f32 %v7253, %v7279
        %v7304 = vadd.f32 %v7255, %v7280
        %v7305 = vadd.f32 %v7081, %v7281
        %v7306 = vadd.f32 %v7083, %v7282
        %v7307 = vadd.f32 %v7170, %v7283
        %v7308 = vadd.f32 %v7172, %v7284
        %v7309 = vadd.f32 %v7259, %v7285
        %v7310 = vadd.f32 %v7261, %v7286
        %v7311 = vadd.f32 %v7087, %v7287
        %v7312 = vadd.f32 %v7089, %v7288
        %v7313 = vadd.f32 %v7176, %v7289
        %v7314 = vadd.f32 %v7178, %v7290
        %v7315 = vadd.f32 %v7265, %v7291
        %v7316 = vadd.f32 %v7267, %v7292
        %v7317 = vtanh.pop %v7293
        %v7318 = vtanh.pop %v7294
        %v7319 = vtanh.pop %v7295
        %v7320 = vtanh.pop %v7296
        %v7321 = vtanh.pop %v7297
        %v7322 = vtanh.pop %v7298
        %v7323 = vtanh.pop %v7299
        %v7324 = vtanh.pop %v7300
        %v7325 = vtanh.pop %v7301
        %v7326 = vtanh.pop %v7302
        %v7327 = vtanh.pop %v7303
        %v7328 = vtanh.pop %v7304
        %v7329 = vxor.u32 %v7305, 2147483648
        %v7330 = vxor.u32 %v7306, 2147483648
        %v7331 = vxor.u32 %v7307, 2147483648
        %v7332 = vxor.u32 %v7308, 2147483648
        %v7333 = vxor.u32 %v7309, 2147483648
        %v7334 = vxor.u32 %v7310, 2147483648
        %v7335 = vxor.u32 %v7311, 2147483648
        %v7336 = vxor.u32 %v7312, 2147483648
        %v7337 = vxor.u32 %v7313, 2147483648
        %v7338 = vxor.u32 %v7314, 2147483648
        %v7339 = vxor.u32 %v7315, 2147483648
        %v7340 = vxor.u32 %v7316, 2147483648
        %v7341 = vmul.f32 %v7329, 1.442695
        %v7342 = vpow.pop %v7341
        %v7343 = vmul.f32 %v7330, 1.442695
        %v7344 = vpow.pop %v7343
        %v7345 = vmul.f32 %v7331, 1.442695
        %v7346 = vpow.pop %v7345
        %v7347 = vmul.f32 %v7332, 1.442695
        %v7348 = vpow.pop %v7347
        %v7349 = vmul.f32 %v7333, 1.442695
        %v7350 = vpow.pop %v7349
        %v7351 = vmul.f32 %v7334, 1.442695
        %v7352 = vpow.pop %v7351
        %v7353 = vmul.f32 %v7335, 1.442695
        %v7354 = vpow.pop %v7353
        %v7355 = vmul.f32 %v7336, 1.442695
        %v7356 = vpow.pop %v7355
        %v7357 = vmul.f32 %v7337, 1.442695
        %v7358 = vpow.pop %v7357
        %v7359 = vmul.f32 %v7338, 1.442695
        %v7360 = vpow.pop %v7359
        %v7361 = vmul.f32 %v7339, 1.442695
        %v7362 = vpow.pop %v7361
        %v7363 = vmul.f32 %v7340, 1.442695
        %v7364 = vpow.pop %v7363
        %v7365 = vadd.f32 %v7342, 1.0
        %v7366 = vadd.f32 %v7344, 1.0
        %v7367 = vadd.f32 %v7346, 1.0
        %v7368 = vadd.f32 %v7348, 1.0
        %v7369 = vadd.f32 %v7350, 1.0
        %v7370 = vadd.f32 %v7352, 1.0
        %v7371 = vadd.f32 %v7354, 1.0
        %v7372 = vadd.f32 %v7356, 1.0
        %v7373 = vadd.f32 %v7358, 1.0
        %v7374 = vadd.f32 %v7360, 1.0
        %v7375 = vadd.f32 %v7362, 1.0
        %v7376 = vadd.f32 %v7364, 1.0
        %v7377 = vrcp.pop %v7365
        %v7378 = vmul.f32 1.0, %v7377
        %v7379 = vrcp.pop %v7366
        %v7380 = vmul.f32 1.0, %v7379
        %v7381 = vrcp.pop %v7367
        %v7382 = vmul.f32 1.0, %v7381
        %v7383 = vrcp.pop %v7368
        %v7384 = vmul.f32 1.0, %v7383
        %v7385 = vrcp.pop %v7369
        %v7386 = vmul.f32 1.0, %v7385
        %v7387 = vrcp.pop %v7370
        %v7388 = vmul.f32 1.0, %v7387
        %v7389 = vrcp.pop %v7371
        %v7390 = vmul.f32 1.0, %v7389
        %v7391 = vrcp.pop %v7372
        %v7392 = vmul.f32 1.0, %v7391
        %v7393 = vrcp.pop %v7373
        %v7394 = vmul.f32 1.0, %v7393
        %v7395 = vrcp.pop %v7374
        %v7396 = vmul.f32 1.0, %v7395
        %v7397 = vrcp.pop %v7375
        %v7398 = vmul.f32 1.0, %v7397
        %v7399 = vrcp.pop %v7376
        %v7400 = vmul.f32 1.0, %v7399
        %v7401 = vmul.f32 %v7317, %v7378
        %v7402 = vmul.f32 %v7318, %v7380
        %v7403 = vmul.f32 %v7319, %v7382
        %v7404 = vmul.f32 %v7320, %v7384
        %v7405 = vmul.f32 %v7321, %v7386
        %v7406 = vmul.f32 %v7322, %v7388
        %v7407 = vmul.f32 %v7323, %v7390
        %v7408 = vmul.f32 %v7324, %v7392
        %v7409 = vmul.f32 %v7325, %v7394
        %v7410 = vmul.f32 %v7326, %v7396
        %v7411 = vmul.f32 %v7327, %v7398
        %v7412 = vmul.f32 %v7328, %v7400
        %s7413 = scalar_lea.vmem %s10, 192
        %v7414 = vld [vmem:[%s7413] sm:$0xff]
        %v7415 = vld [vmem:[%s7413 + $0x8] sm:$0xff]
        %v7416 = vld [vmem:[%s7413 + $0x10] sm:$0xff]
        %v7417 = vld [vmem:[%s7413 + $0x18] sm:$0xff]
        %v7418 = vld [vmem:[%s7413 + $0x20] sm:$0xff]
        %v7419 = vld [vmem:[%s7413 + $0x28] sm:$0xff]
        %v7420 = vld [vmem:[%s7413 + $0x30] sm:$0xff]
        %v7421 = vld [vmem:[%s7413 + $0x38] sm:$0xff]
        %v7423 = vsel %vm1944, %v7414, 0
        %v7426 = vsel %vm1944, %v7415, 0
        %v7429 = vsel %vm1944, %v7416, 0
        %v7432 = vsel %vm1944, %v7417, 0
        %v7435 = vsel %vm1944, %v7418, 0
        %v7438 = vsel %vm1944, %v7419, 0
        %v7441 = vsel %vm1944, %v7420, 0
        %v7444 = vsel %vm1944, %v7421, 0
        %7446 = vmatprep.subr.mxu0 %v7402
        %7447 = vmatpush1.msra.mxu0 %v7401
        %7448 = vmatprep.subr.mxu0 %v7408
        %7449 = vmatpush1.msra.mxu0 %v7407
        %7450 = vmatprep.subr.mxu0 0.0
        %7451 = vmatpush1.msra.mxu0 0.0
        %7452 = vmatprep.subr.mxu0 0.0
        %7453 = vmatpush1.msra.mxu0 0.0
        %7454 = vmatprep.subr.mxu0 0.0
        %7455 = vmatpush1.msra.mxu0 0.0
        %7456 = vmatprep.subr.mxu0 0.0
        %7457 = vmatpush1.msra.mxu0 0.0
        %7458 = vmatprep.subr.mxu0 0.0
        %7459 = vmatpush1.msra.mxu0 0.0
        %7460 = vmatprep.subr.mxu0 0.0
        %7461 = vmatpush1.msra.mxu0 0.0
        %7462 = vmatprep.subr.mxu0 0.0
        %7463 = vmatpush1.msra.mxu0 0.0
        %7464 = vmatprep.subr.mxu0 0.0
        %7465 = vmatpush1.msra.mxu0 0.0
        %7466 = vmatprep.subr.mxu0 0.0
        %7467 = vmatpush1.msra.mxu0 0.0
        %7468 = vmatprep.subr.mxu0 0.0
        %7469 = vmatpush1.msra.mxu0 0.0
        %7470 = vmatprep.subr.mxu0 0.0
        %7471 = vmatpush1.msra.mxu0 0.0
        %7472 = vmatprep.subr.mxu0 0.0
        %7473 = vmatpush1.msra.mxu0 0.0
        %7474 = vmatprep.subr.mxu0 0.0
        %7475 = vmatpush1.msra.mxu0 0.0
        %7476 = vmatprep.subr.mxu0 0.0
        %7477 = vmatpush1.msra.mxu0 0.0
        %7478 = vmatprep.subr.mxu0 0.0
        %7479 = vmatpush1.msra.mxu0 0.0
        %7480 = vmatprep.subr.mxu0 0.0
        %7481 = vmatpush1.msra.mxu0 0.0
        %7482 = vmatprep.subr.mxu0 0.0
        %7483 = vmatpush1.msra.mxu0 0.0
        %7484 = vmatprep.subr.mxu0 0.0
        %7485 = vmatpush1.msra.mxu0 0.0
        %7486 = vmatprep.subr.mxu0 0.0
        %7487 = vmatpush1.msra.mxu0 0.0
        %7488 = vmatprep.subr.mxu0 0.0
        %7489 = vmatpush1.msra.mxu0 0.0
        %7490 = vmatprep.subr.mxu0 0.0
        %7491 = vmatpush1.msra.mxu0 0.0
        %7492 = vmatprep.subr.mxu0 0.0
        %7493 = vmatpush1.msra.mxu0 0.0
        %7494 = vmatprep.subr.mxu0 0.0
        %7495 = vmatpush1.msra.mxu0 0.0
        %7496 = vmatprep.subr.mxu0 0.0
        %7497 = vmatpush1.msra.mxu0 0.0
        %7498 = vmatprep.subr.mxu0 0.0
        %7499 = vmatpush1.msra.mxu0 0.0
        %7500 = vmatprep.subr.mxu0 0.0
        %7501 = vmatpush1.msra.mxu0 0.0
        %7502 = vmatprep.subr.mxu0 0.0
        %7503 = vmatpush1.msra.mxu0 0.0
        %7504 = vmatprep.subr.mxu0 0.0
        %7505 = vmatpush1.msra.mxu0 0.0
        %7506 = vmatprep.subr.mxu0 0.0
        %7507 = vmatpush1.msra.mxu0 0.0
        %7508 = vmatprep.subr.mxu0 0.0
        %7509 = vmatpush1.msra.mxu0 0.0
        %7510 = vmatprep.mubr.f32.mxu0 0.0
        %7511 = vmatmul.mubr.f32.gmra.mrb[0].mxu0 %v7423
        %v7512 = vpop.f32.mrb[0].mxu0
        %v7513 = vadd.f32 0.0, %v7512
        %v7514 = vpop.f32.mrb[0].mxu0
        %v7515 = vadd.f32 0.0, %v7514
        %7516 = vmatprep.mubr.f32.mxu0 0.0
        %7517 = vmatmul.mubr.f32.gmra.mrb[0].mxu0 %v7426
        %v7518 = vpop.f32.mrb[0].mxu0
        %v7519 = vadd.f32 0.0, %v7518
        %v7520 = vpop.f32.mrb[0].mxu0
        %v7521 = vadd.f32 0.0, %v7520
        %7522 = vmatprep.mubr.f32.mxu0 0.0
        %7523 = vmatmul.mubr.f32.gmra.mrb[0].mxu0 %v7429
        %v7524 = vpop.f32.mrb[0].mxu0
        %v7525 = vadd.f32 0.0, %v7524
        %v7526 = vpop.f32.mrb[0].mxu0
        %v7527 = vadd.f32 0.0, %v7526
        %7528 = vmatprep.mubr.f32.mxu0 0.0
        %7529 = vmatmul.mubr.f32.gmra.mrb[0].mxu0 %v7432
        %v7530 = vpop.f32.mrb[0].mxu0
        %v7531 = vadd.f32 0.0, %v7530
        %v7532 = vpop.f32.mrb[0].mxu0
        %v7533 = vadd.f32 0.0, %v7532
        %7534 = vmatprep.mubr.f32.mxu0 0.0
        %7535 = vmatmul.mubr.f32.gmra.mrb[0].mxu0 %v7435
        %v7536 = vpop.f32.mrb[0].mxu0
        %v7537 = vpop.f32.mrb[0].mxu0
        %7538 = vmatprep.mubr.f32.mxu0 0.0
        %7539 = vmatmul.mubr.f32.gmra.mrb[0].mxu0 %v7438
        %v7540 = vpop.f32.mrb[0].mxu0
        %v7541 = vpop.f32.mrb[0].mxu0
        %7542 = vmatprep.mubr.f32.mxu0 0.0
        %7543 = vmatmul.mubr.f32.gmra.mrb[0].mxu0 %v7441
        %v7544 = vpop.f32.mrb[0].mxu0
        %v7545 = vpop.f32.mrb[0].mxu0
        %7546 = vmatprep.mubr.f32.mxu0 0.0
        %7547 = vmatmul.mubr.f32.gmra.mrb[0].mxu0 %v7444
        %v7548 = vpop.f32.mrb[0].mxu0
        %v7549 = vpop.f32.mrb[0].mxu0
        %7550 = vdwg.mxu0
        %7551 = vmatprep.subr.mxu0 %v7404
        %7552 = vmatpush1.msra.mxu0 %v7403
        %7553 = vmatprep.subr.mxu0 %v7410
        %7554 = vmatpush1.msra.mxu0 %v7409
        %7555 = vmatprep.subr.mxu0 0.0
        %7556 = vmatpush1.msra.mxu0 0.0
        %7557 = vmatprep.subr.mxu0 0.0
        %7558 = vmatpush1.msra.mxu0 0.0
        %7559 = vmatprep.subr.mxu0 0.0
        %7560 = vmatpush1.msra.mxu0 0.0
        %7561 = vmatprep.subr.mxu0 0.0
        %7562 = vmatpush1.msra.mxu0 0.0
        %7563 = vmatprep.subr.mxu0 0.0
        %7564 = vmatpush1.msra.mxu0 0.0
        %7565 = vmatprep.subr.mxu0 0.0
        %7566 = vmatpush1.msra.mxu0 0.0
        %7567 = vmatprep.subr.mxu0 0.0
        %7568 = vmatpush1.msra.mxu0 0.0
        %7569 = vmatprep.subr.mxu0 0.0
        %7570 = vmatpush1.msra.mxu0 0.0
        %7571 = vmatprep.subr.mxu0 0.0
        %7572 = vmatpush1.msra.mxu0 0.0
        %7573 = vmatprep.subr.mxu0 0.0
        %7574 = vmatpush1.msra.mxu0 0.0
        %7575 = vmatprep.subr.mxu0 0.0
        %7576 = vmatpush1.msra.mxu0 0.0
        %7577 = vmatprep.subr.mxu0 0.0
        %7578 = vmatpush1.msra.mxu0 0.0
        %7579 = vmatprep.subr.mxu0 0.0
        %7580 = vmatpush1.msra.mxu0 0.0
        %7581 = vmatprep.subr.mxu0 0.0
        %7582 = vmatpush1.msra.mxu0 0.0
        %7583 = vmatprep.subr.mxu0 0.0
        %7584 = vmatpush1.msra.mxu0 0.0
        %7585 = vmatprep.subr.mxu0 0.0
        %7586 = vmatpush1.msra.mxu0 0.0
        %7587 = vmatprep.subr.mxu0 0.0
        %7588 = vmatpush1.msra.mxu0 0.0
        %7589 = vmatprep.subr.mxu0 0.0
        %7590 = vmatpush1.msra.mxu0 0.0
        %7591 = vmatprep.subr.mxu0 0.0
        %7592 = vmatpush1.msra.mxu0 0.0
        %7593 = vmatprep.subr.mxu0 0.0
        %7594 = vmatpush1.msra.mxu0 0.0
        %7595 = vmatprep.subr.mxu0 0.0
        %7596 = vmatpush1.msra.mxu0 0.0
        %7597 = vmatprep.subr.mxu0 0.0
        %7598 = vmatpush1.msra.mxu0 0.0
        %7599 = vmatprep.subr.mxu0 0.0
        %7600 = vmatpush1.msra.mxu0 0.0
        %7601 = vmatprep.subr.mxu0 0.0
        %7602 = vmatpush1.msra.mxu0 0.0
        %7603 = vmatprep.subr.mxu0 0.0
        %7604 = vmatpush1.msra.mxu0 0.0
        %7605 = vmatprep.subr.mxu0 0.0
        %7606 = vmatpush1.msra.mxu0 0.0
        %7607 = vmatprep.subr.mxu0 0.0
        %7608 = vmatpush1.msra.mxu0 0.0
        %7609 = vmatprep.subr.mxu0 0.0
        %7610 = vmatpush1.msra.mxu0 0.0
        %7611 = vmatprep.subr.mxu0 0.0
        %7612 = vmatpush1.msra.mxu0 0.0
        %7613 = vmatprep.subr.mxu0 0.0
        %7614 = vmatpush1.msra.mxu0 0.0
        %7615 = vmatprep.mubr.f32.mxu0 0.0
        %7616 = vmatmul.mubr.f32.gmra.mrb[0].mxu0 %v7423
        %v7617 = vpop.f32.mrb[0].mxu0
        %v7618 = vadd.f32 0.0, %v7617
        %v7619 = vpop.f32.mrb[0].mxu0
        %v7620 = vadd.f32 0.0, %v7619
        %7621 = vmatprep.mubr.f32.mxu0 0.0
        %7622 = vmatmul.mubr.f32.gmra.mrb[0].mxu0 %v7426
        %v7623 = vpop.f32.mrb[0].mxu0
        %v7624 = vadd.f32 0.0, %v7623
        %v7625 = vpop.f32.mrb[0].mxu0
        %v7626 = vadd.f32 0.0, %v7625
        %7627 = vmatprep.mubr.f32.mxu0 0.0
        %7628 = vmatmul.mubr.f32.gmra.mrb[0].mxu0 %v7429
        %v7629 = vpop.f32.mrb[0].mxu0
        %v7630 = vadd.f32 0.0, %v7629
        %v7631 = vpop.f32.mrb[0].mxu0
        %v7632 = vadd.f32 0.0, %v7631
        %7633 = vmatprep.mubr.f32.mxu0 0.0
        %7634 = vmatmul.mubr.f32.gmra.mrb[0].mxu0 %v7432
        %v7635 = vpop.f32.mrb[0].mxu0
        %v7636 = vadd.f32 0.0, %v7635
        %v7637 = vpop.f32.mrb[0].mxu0
        %v7638 = vadd.f32 0.0, %v7637
        %7639 = vmatprep.mubr.f32.mxu0 0.0
        %7640 = vmatmul.mubr.f32.gmra.mrb[0].mxu0 %v7435
        %v7641 = vpop.f32.mrb[0].mxu0
        %v7642 = vpop.f32.mrb[0].mxu0
        %7643 = vmatprep.mubr.f32.mxu0 0.0
        %7644 = vmatmul.mubr.f32.gmra.mrb[0].mxu0 %v7438
        %v7645 = vpop.f32.mrb[0].mxu0
        %v7646 = vpop.f32.mrb[0].mxu0
        %7647 = vmatprep.mubr.f32.mxu0 0.0
        %7648 = vmatmul.mubr.f32.gmra.mrb[0].mxu0 %v7441
        %v7649 = vpop.f32.mrb[0].mxu0
        %v7650 = vpop.f32.mrb[0].mxu0
        %7651 = vmatprep.mubr.f32.mxu0 0.0
        %7652 = vmatmul.mubr.f32.gmra.mrb[0].mxu0 %v7444
        %v7653 = vpop.f32.mrb[0].mxu0
        %v7654 = vpop.f32.mrb[0].mxu0
        %7655 = vdwg.mxu0
        %7656 = vmatprep.subr.mxu0 %v7406
        %7657 = vmatpush1.msra.mxu0 %v7405
        %7658 = vmatprep.subr.mxu0 %v7412
        %7659 = vmatpush1.msra.mxu0 %v7411
        %7660 = vmatprep.subr.mxu0 0.0
        %7661 = vmatpush1.msra.mxu0 0.0
        %7662 = vmatprep.subr.mxu0 0.0
        %7663 = vmatpush1.msra.mxu0 0.0
        %7664 = vmatprep.subr.mxu0 0.0
        %7665 = vmatpush1.msra.mxu0 0.0
        %7666 = vmatprep.subr.mxu0 0.0
        %7667 = vmatpush1.msra.mxu0 0.0
        %7668 = vmatprep.subr.mxu0 0.0
        %7669 = vmatpush1.msra.mxu0 0.0
        %7670 = vmatprep.subr.mxu0 0.0
        %7671 = vmatpush1.msra.mxu0 0.0
        %7672 = vmatprep.subr.mxu0 0.0
        %7673 = vmatpush1.msra.mxu0 0.0
        %7674 = vmatprep.subr.mxu0 0.0
        %7675 = vmatpush1.msra.mxu0 0.0
        %7676 = vmatprep.subr.mxu0 0.0
        %7677 = vmatpush1.msra.mxu0 0.0
        %7678 = vmatprep.subr.mxu0 0.0
        %7679 = vmatpush1.msra.mxu0 0.0
        %7680 = vmatprep.subr.mxu0 0.0
        %7681 = vmatpush1.msra.mxu0 0.0
        %7682 = vmatprep.subr.mxu0 0.0
        %7683 = vmatpush1.msra.mxu0 0.0
        %7684 = vmatprep.subr.mxu0 0.0
        %7685 = vmatpush1.msra.mxu0 0.0
        %7686 = vmatprep.subr.mxu0 0.0
        %7687 = vmatpush1.msra.mxu0 0.0
        %7688 = vmatprep.subr.mxu0 0.0
        %7689 = vmatpush1.msra.mxu0 0.0
        %7690 = vmatprep.subr.mxu0 0.0
        %7691 = vmatpush1.msra.mxu0 0.0
        %7692 = vmatprep.subr.mxu0 0.0
        %7693 = vmatpush1.msra.mxu0 0.0
        %7694 = vmatprep.subr.mxu0 0.0
        %7695 = vmatpush1.msra.mxu0 0.0
        %7696 = vmatprep.subr.mxu0 0.0
        %7697 = vmatpush1.msra.mxu0 0.0
        %7698 = vmatprep.subr.mxu0 0.0
        %7699 = vmatpush1.msra.mxu0 0.0
        %7700 = vmatprep.subr.mxu0 0.0
        %7701 = vmatpush1.msra.mxu0 0.0
        %7702 = vmatprep.subr.mxu0 0.0
        %7703 = vmatpush1.msra.mxu0 0.0
        %7704 = vmatprep.subr.mxu0 0.0
        %7705 = vmatpush1.msra.mxu0 0.0
        %7706 = vmatprep.subr.mxu0 0.0
        %7707 = vmatpush1.msra.mxu0 0.0
        %7708 = vmatprep.subr.mxu0 0.0
        %7709 = vmatpush1.msra.mxu0 0.0
        %7710 = vmatprep.subr.mxu0 0.0
        %7711 = vmatpush1.msra.mxu0 0.0
        %7712 = vmatprep.subr.mxu0 0.0
        %7713 = vmatpush1.msra.mxu0 0.0
        %7714 = vmatprep.subr.mxu0 0.0
        %7715 = vmatpush1.msra.mxu0 0.0
        %7716 = vmatprep.subr.mxu0 0.0
        %7717 = vmatpush1.msra.mxu0 0.0
        %7718 = vmatprep.subr.mxu0 0.0
        %7719 = vmatpush1.msra.mxu0 0.0
        %7720 = vmatprep.mubr.f32.mxu0 0.0
        %7721 = vmatmul.mubr.f32.gmra.mrb[0].mxu0 %v7423
        %v7722 = vpop.f32.mrb[0].mxu0
        %v7723 = vadd.f32 0.0, %v7722
        %v7724 = vpop.f32.mrb[0].mxu0
        %v7725 = vadd.f32 0.0, %v7724
        %7726 = vmatprep.mubr.f32.mxu0 0.0
        %7727 = vmatmul.mubr.f32.gmra.mrb[0].mxu0 %v7426
        %v7728 = vpop.f32.mrb[0].mxu0
        %v7729 = vadd.f32 0.0, %v7728
        %v7730 = vpop.f32.mrb[0].mxu0
        %v7731 = vadd.f32 0.0, %v7730
        %7732 = vmatprep.mubr.f32.mxu0 0.0
        %7733 = vmatmul.mubr.f32.gmra.mrb[0].mxu0 %v7429
        %v7734 = vpop.f32.mrb[0].mxu0
        %v7735 = vadd.f32 0.0, %v7734
        %v7736 = vpop.f32.mrb[0].mxu0
        %v7737 = vadd.f32 0.0, %v7736
        %7738 = vmatprep.mubr.f32.mxu0 0.0
        %7739 = vmatmul.mubr.f32.gmra.mrb[0].mxu0 %v7432
        %v7740 = vpop.f32.mrb[0].mxu0
        %v7741 = vadd.f32 0.0, %v7740
        %v7742 = vpop.f32.mrb[0].mxu0
        %v7743 = vadd.f32 0.0, %v7742
        %7744 = vmatprep.mubr.f32.mxu0 0.0
        %7745 = vmatmul.mubr.f32.gmra.mrb[0].mxu0 %v7435
        %v7746 = vpop.f32.mrb[0].mxu0
        %v7747 = vpop.f32.mrb[0].mxu0
        %7748 = vmatprep.mubr.f32.mxu0 0.0
        %7749 = vmatmul.mubr.f32.gmra.mrb[0].mxu0 %v7438
        %v7750 = vpop.f32.mrb[0].mxu0
        %v7751 = vpop.f32.mrb[0].mxu0
        %7752 = vmatprep.mubr.f32.mxu0 0.0
        %7753 = vmatmul.mubr.f32.gmra.mrb[0].mxu0 %v7441
        %v7754 = vpop.f32.mrb[0].mxu0
        %v7755 = vpop.f32.mrb[0].mxu0
        %7756 = vmatprep.mubr.f32.mxu0 0.0
        %7757 = vmatmul.mubr.f32.gmra.mrb[0].mxu0 %v7444
        %v7758 = vpop.f32.mrb[0].mxu0
        %v7759 = vpop.f32.mrb[0].mxu0
        %7760 = vdwg.mxu0
        %v7761 = vadd.f32 %v6743, %v7513
        %v7762 = vadd.f32 %v6744, %v7515
        %v7763 = vadd.f32 %v6745, %v7618
        %v7764 = vadd.f32 %v6746, %v7620
        %v7765 = vadd.f32 %v6747, %v7723
        %v7766 = vadd.f32 %v6748, %v7725
        %v7767 = vadd.f32 %v6749, %v7519
        %v7768 = vadd.f32 %v6750, %v7521
        %v7769 = vadd.f32 %v6751, %v7624
        %v7770 = vadd.f32 %v6752, %v7626
        %v7771 = vadd.f32 %v6753, %v7729
        %v7772 = vadd.f32 %v6754, %v7731
        %v7773 = vadd.f32 %v6755, %v7525
        %v7774 = vadd.f32 %v6756, %v7527
        %v7775 = vadd.f32 %v6757, %v7630
        %v7776 = vadd.f32 %v6758, %v7632
        %v7777 = vadd.f32 %v6759, %v7735
        %v7778 = vadd.f32 %v6760, %v7737
        %v7779 = vadd.f32 %v6761, %v7531
        %v7780 = vadd.f32 %v6762, %v7533
        %v7781 = vadd.f32 %v6763, %v7636
        %v7782 = vadd.f32 %v6764, %v7638
        %v7783 = vadd.f32 %v6765, %v7741
        %v7784 = vadd.f32 %v6766, %v7743
        %s7785 = scalar_lea.vmem %s11, 96
        %v7786 = vld [vmem:[%s7785] sm:$0xff]
        %v7787 = vld [vmem:[%s7785 + $0x8] sm:$0xff]
        %v7788 = vld [vmem:[%s7785 + $0x10] sm:$0xff]
        %v7789 = vld [vmem:[%s7785 + $0x18] sm:$0xff]
        %7791 = vset.pattern.permute.xlu0 0
        %7792 = vperm.xlu0 %7791, %v7786
        %v7793 = vpop.permute.xlu0 %7792
        %7796 = vset.pattern.permute.xlu0 0
        %7797 = vperm.xlu0 %7796, %v7787
        %v7798 = vpop.permute.xlu0 %7797
        %7801 = vset.pattern.permute.xlu0 0
        %7802 = vperm.xlu0 %7801, %v7788
        %v7803 = vpop.permute.xlu0 %7802
        %7806 = vset.pattern.permute.xlu0 0
        %7807 = vperm.xlu0 %7806, %v7789
        %v7808 = vpop.permute.xlu0 %7807
        %v7810 = vadd.f32 %v7761, %v7793
        %v7811 = vadd.f32 %v7762, %v7793
        %v7812 = vadd.f32 %v7763, %v7793
        %v7813 = vadd.f32 %v7764, %v7793
        %v7814 = vadd.f32 %v7765, %v7793
        %v7815 = vadd.f32 %v7766, %v7793
        %v7816 = vadd.f32 %v7767, %v7798
        %v7817 = vadd.f32 %v7768, %v7798
        %v7818 = vadd.f32 %v7769, %v7798
        %v7819 = vadd.f32 %v7770, %v7798
        %v7820 = vadd.f32 %v7771, %v7798
        %v7821 = vadd.f32 %v7772, %v7798
        %v7822 = vadd.f32 %v7773, %v7803
        %v7823 = vadd.f32 %v7774, %v7803
        %v7824 = vadd.f32 %v7775, %v7803
        %v7825 = vadd.f32 %v7776, %v7803
        %v7826 = vadd.f32 %v7777, %v7803
        %v7827 = vadd.f32 %v7778, %v7803
        %v7828 = vadd.f32 %v7779, %v7808
        %v7829 = vadd.f32 %v7780, %v7808
        %v7830 = vadd.f32 %v7781, %v7808
        %v7831 = vadd.f32 %v7782, %v7808
        %v7832 = vadd.f32 %v7783, %v7808
        %v7833 = vadd.f32 %v7784, %v7808
        %v7834 = vmul.f32 %v7810, 0.5
        %v7835 = vmul.f32 %v7811, 0.5
        %v7836 = vmul.f32 %v7812, 0.5
        %v7837 = vmul.f32 %v7813, 0.5
        %v7838 = vmul.f32 %v7814, 0.5
        %v7839 = vmul.f32 %v7815, 0.5
        %v7840 = vmul.f32 %v7816, 0.5
        %v7841 = vmul.f32 %v7817, 0.5
        %v7842 = vmul.f32 %v7818, 0.5
        %v7843 = vmul.f32 %v7819, 0.5
        %v7844 = vmul.f32 %v7820, 0.5
        %v7845 = vmul.f32 %v7821, 0.5
        %v7846 = vmul.f32 %v7822, 0.5
        %v7847 = vmul.f32 %v7823, 0.5
        %v7848 = vmul.f32 %v7824, 0.5
        %v7849 = vmul.f32 %v7825, 0.5
        %v7850 = vmul.f32 %v7826, 0.5
        %v7851 = vmul.f32 %v7827, 0.5
        %v7852 = vmul.f32 %v7828, 0.5
        %v7853 = vmul.f32 %v7829, 0.5
        %v7854 = vmul.f32 %v7830, 0.5
        %v7855 = vmul.f32 %v7831, 0.5
        %v7856 = vmul.f32 %v7832, 0.5
        %v7857 = vmul.f32 %v7833, 0.5
        %v7858 = vmax.f32 %v7834, 0.0
        %v7859 = vmax.f32 %v7835, 0.0
        %v7860 = vmax.f32 %v7836, 0.0
        %v7861 = vmax.f32 %v7837, 0.0
        %v7862 = vmax.f32 %v7838, 0.0
        %v7863 = vmax.f32 %v7839, 0.0
        %v7864 = vmax.f32 %v7840, 0.0
        %v7865 = vmax.f32 %v7841, 0.0
        %v7866 = vmax.f32 %v7842, 0.0
        %v7867 = vmax.f32 %v7843, 0.0
        %v7868 = vmax.f32 %v7844, 0.0
        %v7869 = vmax.f32 %v7845, 0.0
        %v7870 = vmax.f32 %v7846, 0.0
        %v7871 = vmax.f32 %v7847, 0.0
        %v7872 = vmax.f32 %v7848, 0.0
        %v7873 = vmax.f32 %v7849, 0.0
        %v7874 = vmax.f32 %v7850, 0.0
        %v7875 = vmax.f32 %v7851, 0.0
        %v7876 = vmax.f32 %v7852, 0.0
        %v7877 = vmax.f32 %v7853, 0.0
        %v7878 = vmax.f32 %v7854, 0.0
        %v7879 = vmax.f32 %v7855, 0.0
        %v7880 = vmax.f32 %v7856, 0.0
        %v7881 = vmax.f32 %v7857, 0.0
        %v7882 = vld [vmem:[%s13] sm:$0xff]
        %v7883 = vld [vmem:[%s13 + $0x8] sm:$0xff]
        %v7884 = vld [vmem:[%s13 + $0x10] sm:$0xff]
        %v7885 = vld [vmem:[%s13 + $0x18] sm:$0xff]
        %v7886 = vld [vmem:[%s14] sm:$0xff]
        %v7887 = vld [vmem:[%s14 + $0x8] sm:$0xff]
        %v7888 = vld [vmem:[%s14 + $0x10] sm:$0xff]
        %v7889 = vld [vmem:[%s14 + $0x18] sm:$0xff]
        %7891 = vset.pattern.permute.xlu0 0
        %7892 = vperm.xlu0 %7891, %v7886
        %v7893 = vpop.permute.xlu0 %7892
        %7896 = vset.pattern.permute.xlu0 0
        %7897 = vperm.xlu0 %7896, %v7887
        %v7898 = vpop.permute.xlu0 %7897
        %7901 = vset.pattern.permute.xlu0 0
        %7902 = vperm.xlu0 %7901, %v7888
        %v7903 = vpop.permute.xlu0 %7902
        %7906 = vset.pattern.permute.xlu0 0
        %7907 = vperm.xlu0 %7906, %v7889
        %v7908 = vpop.permute.xlu0 %7907
        %vm7910 = vcmask 261120
        %v7912 = vsel %vm7910, %v7882, 0
        %v7915 = vsel %vm7910, %v7883, 0
        %v7918 = vsel %vm7910, %v7884, 0
        %v7921 = vsel %vm7910, %v7885, 0
        %7923 = vmatprep.subr.mxu0 %v7859
        %7924 = vmatpush1.msra.mxu0 %v7858
        %7925 = vmatprep.subr.mxu0 %v7865
        %7926 = vmatpush1.msra.mxu0 %v7864
        %7927 = vmatprep.subr.mxu0 %v7871
        %7928 = vmatpush1.msra.mxu0 %v7870
        %7929 = vmatprep.subr.mxu0 %v7877
        %7930 = vmatpush1.msra.mxu0 %v7876
        %7931 = vmatprep.subr.mxu0 0.0
        %7932 = vmatpush1.msra.mxu0 0.0
        %7933 = vmatprep.subr.mxu0 0.0
        %7934 = vmatpush1.msra.mxu0 0.0
        %7935 = vmatprep.subr.mxu0 0.0
        %7936 = vmatpush1.msra.mxu0 0.0
        %7937 = vmatprep.subr.mxu0 0.0
        %7938 = vmatpush1.msra.mxu0 0.0
        %7939 = vmatprep.subr.mxu0 0.0
        %7940 = vmatpush1.msra.mxu0 0.0
        %7941 = vmatprep.subr.mxu0 0.0
        %7942 = vmatpush1.msra.mxu0 0.0
        %7943 = vmatprep.subr.mxu0 0.0
        %7944 = vmatpush1.msra.mxu0 0.0
        %7945 = vmatprep.subr.mxu0 0.0
        %7946 = vmatpush1.msra.mxu0 0.0
        %7947 = vmatprep.subr.mxu0 0.0
        %7948 = vmatpush1.msra.mxu0 0.0
        %7949 = vmatprep.subr.mxu0 0.0
        %7950 = vmatpush1.msra.mxu0 0.0
        %7951 = vmatprep.subr.mxu0 0.0
        %7952 = vmatpush1.msra.mxu0 0.0
        %7953 = vmatprep.subr.mxu0 0.0
        %7954 = vmatpush1.msra.mxu0 0.0
        %7955 = vmatprep.subr.mxu0 0.0
        %7956 = vmatpush1.msra.mxu0 0.0
        %7957 = vmatprep.subr.mxu0 0.0
        %7958 = vmatpush1.msra.mxu0 0.0
        %7959 = vmatprep.subr.mxu0 0.0
        %7960 = vmatpush1.msra.mxu0 0.0
        %7961 = vmatprep.subr.mxu0 0.0
        %7962 = vmatpush1.msra.mxu0 0.0
        %7963 = vmatprep.subr.mxu0 0.0
        %7964 = vmatpush1.msra.mxu0 0.0
        %7965 = vmatprep.subr.mxu0 0.0
        %7966 = vmatpush1.msra.mxu0 0.0
        %7967 = vmatprep.subr.mxu0 0.0
        %7968 = vmatpush1.msra.mxu0 0.0
        %7969 = vmatprep.subr.mxu0 0.0
        %7970 = vmatpush1.msra.mxu0 0.0
        %7971 = vmatprep.subr.mxu0 0.0
        %7972 = vmatpush1.msra.mxu0 0.0
        %7973 = vmatprep.subr.mxu0 0.0
        %7974 = vmatpush1.msra.mxu0 0.0
        %7975 = vmatprep.subr.mxu0 0.0
        %7976 = vmatpush1.msra.mxu0 0.0
        %7977 = vmatprep.subr.mxu0 0.0
        %7978 = vmatpush1.msra.mxu0 0.0
        %7979 = vmatprep.subr.mxu0 0.0
        %7980 = vmatpush1.msra.mxu0 0.0
        %7981 = vmatprep.subr.mxu0 0.0
        %7982 = vmatpush1.msra.mxu0 0.0
        %7983 = vmatprep.subr.mxu0 0.0
        %7984 = vmatpush1.msra.mxu0 0.0
        %7985 = vmatprep.subr.mxu0 0.0
        %7986 = vmatpush1.msra.mxu0 0.0
        %7987 = vmatprep.mubr.f32.mxu0 0.0
        %7988 = vmatmul.mubr.f32.gmra.mrb[0].mxu0 %v7912
        %v7989 = vpop.f32.mrb[0].mxu0
        %v7990 = vadd.f32 %v7893, %v7989
        %v7991 = vpop.f32.mrb[0].mxu0
        %v7992 = vadd.f32 %v7893, %v7991
        %7993 = vmatprep.mubr.f32.mxu0 0.0
        %7994 = vmatmul.mubr.f32.gmra.mrb[0].mxu0 %v7915
        %v7995 = vpop.f32.mrb[0].mxu0
        %v7996 = vadd.f32 %v7898, %v7995
        %v7997 = vpop.f32.mrb[0].mxu0
        %v7998 = vadd.f32 %v7898, %v7997
        %7999 = vmatprep.mubr.f32.mxu0 0.0
        %8000 = vmatmul.mubr.f32.gmra.mrb[0].mxu0 %v7918
        %v8001 = vpop.f32.mrb[0].mxu0
        %v8002 = vadd.f32 %v7903, %v8001
        %v8003 = vpop.f32.mrb[0].mxu0
        %v8004 = vadd.f32 %v7903, %v8003
        %8005 = vmatprep.mubr.f32.mxu0 0.0
        %8006 = vmatmul.mubr.f32.gmra.mrb[0].mxu0 %v7921
        %v8007 = vpop.f32.mrb[0].mxu0
        %v8008 = vadd.f32 %v7908, %v8007
        %v8009 = vpop.f32.mrb[0].mxu0
        %v8010 = vadd.f32 %v7908, %v8009
        %8011 = vdwg.mxu0
        %8012 = vmatprep.subr.mxu0 %v7861
        %8013 = vmatpush1.msra.mxu0 %v7860
        %8014 = vmatprep.subr.mxu0 %v7867
        %8015 = vmatpush1.msra.mxu0 %v7866
        %8016 = vmatprep.subr.mxu0 %v7873
        %8017 = vmatpush1.msra.mxu0 %v7872
        %8018 = vmatprep.subr.mxu0 %v7879
        %8019 = vmatpush1.msra.mxu0 %v7878
        %8020 = vmatprep.subr.mxu0 0.0
        %8021 = vmatpush1.msra.mxu0 0.0
        %8022 = vmatprep.subr.mxu0 0.0
        %8023 = vmatpush1.msra.mxu0 0.0
        %8024 = vmatprep.subr.mxu0 0.0
        %8025 = vmatpush1.msra.mxu0 0.0
        %8026 = vmatprep.subr.mxu0 0.0
        %8027 = vmatpush1.msra.mxu0 0.0
        %8028 = vmatprep.subr.mxu0 0.0
        %8029 = vmatpush1.msra.mxu0 0.0
        %8030 = vmatprep.subr.mxu0 0.0
        %8031 = vmatpush1.msra.mxu0 0.0
        %8032 = vmatprep.subr.mxu0 0.0
        %8033 = vmatpush1.msra.mxu0 0.0
        %8034 = vmatprep.subr.mxu0 0.0
        %8035 = vmatpush1.msra.mxu0 0.0
        %8036 = vmatprep.subr.mxu0 0.0
        %8037 = vmatpush1.msra.mxu0 0.0
        %8038 = vmatprep.subr.mxu0 0.0
        %8039 = vmatpush1.msra.mxu0 0.0
        %8040 = vmatprep.subr.mxu0 0.0
        %8041 = vmatpush1.msra.mxu0 0.0
        %8042 = vmatprep.subr.mxu0 0.0
        %8043 = vmatpush1.msra.mxu0 0.0
        %8044 = vmatprep.subr.mxu0 0.0
        %8045 = vmatpush1.msra.mxu0 0.0
        %8046 = vmatprep.subr.mxu0 0.0
        %8047 = vmatpush1.msra.mxu0 0.0
        %8048 = vmatprep.subr.mxu0 0.0
        %8049 = vmatpush1.msra.mxu0 0.0
        %8050 = vmatprep.subr.mxu0 0.0
        %8051 = vmatpush1.msra.mxu0 0.0
        %8052 = vmatprep.subr.mxu0 0.0
        %8053 = vmatpush1.msra.mxu0 0.0
        %8054 = vmatprep.subr.mxu0 0.0
        %8055 = vmatpush1.msra.mxu0 0.0
        %8056 = vmatprep.subr.mxu0 0.0
        %8057 = vmatpush1.msra.mxu0 0.0
        %8058 = vmatprep.subr.mxu0 0.0
        %8059 = vmatpush1.msra.mxu0 0.0
        %8060 = vmatprep.subr.mxu0 0.0
        %8061 = vmatpush1.msra.mxu0 0.0
        %8062 = vmatprep.subr.mxu0 0.0
        %8063 = vmatpush1.msra.mxu0 0.0
        %8064 = vmatprep.subr.mxu0 0.0
        %8065 = vmatpush1.msra.mxu0 0.0
        %8066 = vmatprep.subr.mxu0 0.0
        %8067 = vmatpush1.msra.mxu0 0.0
        %8068 = vmatprep.subr.mxu0 0.0
        %8069 = vmatpush1.msra.mxu0 0.0
        %8070 = vmatprep.subr.mxu0 0.0
        %8071 = vmatpush1.msra.mxu0 0.0
        %8072 = vmatprep.subr.mxu0 0.0
        %8073 = vmatpush1.msra.mxu0 0.0
        %8074 = vmatprep.subr.mxu0 0.0
        %8075 = vmatpush1.msra.mxu0 0.0
        %8076 = vmatprep.mubr.f32.mxu0 0.0
        %8077 = vmatmul.mubr.f32.gmra.mrb[0].mxu0 %v7912
        %v8078 = vpop.f32.mrb[0].mxu0
        %v8079 = vadd.f32 %v7893, %v8078
        %v8080 = vpop.f32.mrb[0].mxu0
        %v8081 = vadd.f32 %v7893, %v8080
        %8082 = vmatprep.mubr.f32.mxu0 0.0
        %8083 = vmatmul.mubr.f32.gmra.mrb[0].mxu0 %v7915
        %v8084 = vpop.f32.mrb[0].mxu0
        %v8085 = vadd.f32 %v7898, %v8084
        %v8086 = vpop.f32.mrb[0].mxu0
        %v8087 = vadd.f32 %v7898, %v8086
        %8088 = vmatprep.mubr.f32.mxu0 0.0
        %8089 = vmatmul.mubr.f32.gmra.mrb[0].mxu0 %v7918
        %v8090 = vpop.f32.mrb[0].mxu0
        %v8091 = vadd.f32 %v7903, %v8090
        %v8092 = vpop.f32.mrb[0].mxu0
        %v8093 = vadd.f32 %v7903, %v8092
        %8094 = vmatprep.mubr.f32.mxu0 0.0
        %8095 = vmatmul.mubr.f32.gmra.mrb[0].mxu0 %v7921
        %v8096 = vpop.f32.mrb[0].mxu0
        %v8097 = vadd.f32 %v7908, %v8096
        %v8098 = vpop.f32.mrb[0].mxu0
        %v8099 = vadd.f32 %v7908, %v8098
        %8100 = vdwg.mxu0
        %8101 = vmatprep.subr.mxu0 %v7863
        %8102 = vmatpush1.msra.mxu0 %v7862
        %8103 = vmatprep.subr.mxu0 %v7869
        %8104 = vmatpush1.msra.mxu0 %v7868
        %8105 = vmatprep.subr.mxu0 %v7875
        %8106 = vmatpush1.msra.mxu0 %v7874
        %8107 = vmatprep.subr.mxu0 %v7881
        %8108 = vmatpush1.msra.mxu0 %v7880
        %8109 = vmatprep.subr.mxu0 0.0
        %8110 = vmatpush1.msra.mxu0 0.0
        %8111 = vmatprep.subr.mxu0 0.0
        %8112 = vmatpush1.msra.mxu0 0.0
        %8113 = vmatprep.subr.mxu0 0.0
        %8114 = vmatpush1.msra.mxu0 0.0
        %8115 = vmatprep.subr.mxu0 0.0
        %8116 = vmatpush1.msra.mxu0 0.0
        %8117 = vmatprep.subr.mxu0 0.0
        %8118 = vmatpush1.msra.mxu0 0.0
        %8119 = vmatprep.subr.mxu0 0.0
        %8120 = vmatpush1.msra.mxu0 0.0
        %8121 = vmatprep.subr.mxu0 0.0
        %8122 = vmatpush1.msra.mxu0 0.0
        %8123 = vmatprep.subr.mxu0 0.0
        %8124 = vmatpush1.msra.mxu0 0.0
        %8125 = vmatprep.subr.mxu0 0.0
        %8126 = vmatpush1.msra.mxu0 0.0
        %8127 = vmatprep.subr.mxu0 0.0
        %8128 = vmatpush1.msra.mxu0 0.0
        %8129 = vmatprep.subr.mxu0 0.0
        %8130 = vmatpush1.msra.mxu0 0.0
        %8131 = vmatprep.subr.mxu0 0.0
        %8132 = vmatpush1.msra.mxu0 0.0
        %8133 = vmatprep.subr.mxu0 0.0
        %8134 = vmatpush1.msra.mxu0 0.0
        %8135 = vmatprep.subr.mxu0 0.0
        %8136 = vmatpush1.msra.mxu0 0.0
        %8137 = vmatprep.subr.mxu0 0.0
        %8138 = vmatpush1.msra.mxu0 0.0
        %8139 = vmatprep.subr.mxu0 0.0
        %8140 = vmatpush1.msra.mxu0 0.0
        %8141 = vmatprep.subr.mxu0 0.0
        %8142 = vmatpush1.msra.mxu0 0.0
        %8143 = vmatprep.subr.mxu0 0.0
        %8144 = vmatpush1.msra.mxu0 0.0
        %8145 = vmatprep.subr.mxu0 0.0
        %8146 = vmatpush1.msra.mxu0 0.0
        %8147 = vmatprep.subr.mxu0 0.0
        %8148 = vmatpush1.msra.mxu0 0.0
        %8149 = vmatprep.subr.mxu0 0.0
        %8150 = vmatpush1.msra.mxu0 0.0
        %8151 = vmatprep.subr.mxu0 0.0
        %8152 = vmatpush1.msra.mxu0 0.0
        %8153 = vmatprep.subr.mxu0 0.0
        %8154 = vmatpush1.msra.mxu0 0.0
        %8155 = vmatprep.subr.mxu0 0.0
        %8156 = vmatpush1.msra.mxu0 0.0
        %8157 = vmatprep.subr.mxu0 0.0
        %8158 = vmatpush1.msra.mxu0 0.0
        %8159 = vmatprep.subr.mxu0 0.0
        %8160 = vmatpush1.msra.mxu0 0.0
        %8161 = vmatprep.subr.mxu0 0.0
        %8162 = vmatpush1.msra.mxu0 0.0
        %8163 = vmatprep.subr.mxu0 0.0
        %8164 = vmatpush1.msra.mxu0 0.0
        %8165 = vmatprep.mubr.f32.mxu0 0.0
        %8166 = vmatmul.mubr.f32.gmra.mrb[0].mxu0 %v7912
        %v8167 = vpop.f32.mrb[0].mxu0
        %v8168 = vadd.f32 %v7893, %v8167
        %v8169 = vpop.f32.mrb[0].mxu0
        %v8170 = vadd.f32 %v7893, %v8169
        %8171 = vmatprep.mubr.f32.mxu0 0.0
        %8172 = vmatmul.mubr.f32.gmra.mrb[0].mxu0 %v7915
        %v8173 = vpop.f32.mrb[0].mxu0
        %v8174 = vadd.f32 %v7898, %v8173
        %v8175 = vpop.f32.mrb[0].mxu0
        %v8176 = vadd.f32 %v7898, %v8175
        %8177 = vmatprep.mubr.f32.mxu0 0.0
        %8178 = vmatmul.mubr.f32.gmra.mrb[0].mxu0 %v7918
        %v8179 = vpop.f32.mrb[0].mxu0
        %v8180 = vadd.f32 %v7903, %v8179
        %v8181 = vpop.f32.mrb[0].mxu0
        %v8182 = vadd.f32 %v7903, %v8181
        %8183 = vmatprep.mubr.f32.mxu0 0.0
        %8184 = vmatmul.mubr.f32.gmra.mrb[0].mxu0 %v7921
        %v8185 = vpop.f32.mrb[0].mxu0
        %v8186 = vadd.f32 %v7908, %v8185
        %v8187 = vpop.f32.mrb[0].mxu0
        %v8188 = vadd.f32 %v7908, %v8187
        %8189 = vdwg.mxu0
        %v8190 = vmax.f32 %v7990, 0.0
        %v8191 = vmax.f32 %v7992, 0.0
        %v8192 = vmax.f32 %v8079, 0.0
        %v8193 = vmax.f32 %v8081, 0.0
        %v8194 = vmax.f32 %v8168, 0.0
        %v8195 = vmax.f32 %v8170, 0.0
        %v8196 = vmax.f32 %v7996, 0.0
        %v8197 = vmax.f32 %v7998, 0.0
        %v8198 = vmax.f32 %v8085, 0.0
        %v8199 = vmax.f32 %v8087, 0.0
        %v8200 = vmax.f32 %v8174, 0.0
        %v8201 = vmax.f32 %v8176, 0.0
        %v8202 = vmax.f32 %v8002, 0.0
        %v8203 = vmax.f32 %v8004, 0.0
        %v8204 = vmax.f32 %v8091, 0.0
        %v8205 = vmax.f32 %v8093, 0.0
        %v8206 = vmax.f32 %v8180, 0.0
        %v8207 = vmax.f32 %v8182, 0.0
        %v8208 = vmax.f32 %v8008, 0.0
        %v8209 = vmax.f32 %v8010, 0.0
        %v8210 = vmax.f32 %v8097, 0.0
        %v8211 = vmax.f32 %v8099, 0.0
        %v8212 = vmax.f32 %v8186, 0.0
        %v8213 = vmax.f32 %v8188, 0.0
        %v8214 = vld [vmem:[%s15] sm:$0xff]
        %v8215 = vld [vmem:[%s15 + $0x8] sm:$0xff]
        %v8216 = vld [vmem:[%s16] sm:$0xff]
        %v8217 = vld [vmem:[%s16 + $0x8] sm:$0xff]
        %8219 = vset.pattern.permute.xlu0 0
        %8220 = vperm.xlu0 %8219, %v8216
        %v8221 = vpop.permute.xlu0 %8220
        %8224 = vset.pattern.permute.xlu0 0
        %8225 = vperm.xlu0 %8224, %v8217
        %v8226 = vpop.permute.xlu0 %8225
        %v8229 = vsel %vm7910, %v8214, 0
        %v8232 = vsel %vm7910, %v8215, 0
        %8234 = vmatprep.subr.mxu0 %v8191
        %8235 = vmatpush1.msra.mxu0 %v8190
        %8236 = vmatprep.subr.mxu0 %v8197
        %8237 = vmatpush1.msra.mxu0 %v8196
        %8238 = vmatprep.subr.mxu0 %v8203
        %8239 = vmatpush1.msra.mxu0 %v8202
        %8240 = vmatprep.subr.mxu0 %v8209
        %8241 = vmatpush1.msra.mxu0 %v8208
        %8242 = vmatprep.subr.mxu0 0.0
        %8243 = vmatpush1.msra.mxu0 0.0
        %8244 = vmatprep.subr.mxu0 0.0
        %8245 = vmatpush1.msra.mxu0 0.0
        %8246 = vmatprep.subr.mxu0 0.0
        %8247 = vmatpush1.msra.mxu0 0.0
        %8248 = vmatprep.subr.mxu0 0.0
        %8249 = vmatpush1.msra.mxu0 0.0
        %8250 = vmatprep.subr.mxu0 0.0
        %8251 = vmatpush1.msra.mxu0 0.0
        %8252 = vmatprep.subr.mxu0 0.0
        %8253 = vmatpush1.msra.mxu0 0.0
        %8254 = vmatprep.subr.mxu0 0.0
        %8255 = vmatpush1.msra.mxu0 0.0
        %8256 = vmatprep.subr.mxu0 0.0
        %8257 = vmatpush1.msra.mxu0 0.0
        %8258 = vmatprep.subr.mxu0 0.0
        %8259 = vmatpush1.msra.mxu0 0.0
        %8260 = vmatprep.subr.mxu0 0.0
        %8261 = vmatpush1.msra.mxu0 0.0
        %8262 = vmatprep.subr.mxu0 0.0
        %8263 = vmatpush1.msra.mxu0 0.0
        %8264 = vmatprep.subr.mxu0 0.0
        %8265 = vmatpush1.msra.mxu0 0.0
        %8266 = vmatprep.subr.mxu0 0.0
        %8267 = vmatpush1.msra.mxu0 0.0
        %8268 = vmatprep.subr.mxu0 0.0
        %8269 = vmatpush1.msra.mxu0 0.0
        %8270 = vmatprep.subr.mxu0 0.0
        %8271 = vmatpush1.msra.mxu0 0.0
        %8272 = vmatprep.subr.mxu0 0.0
        %8273 = vmatpush1.msra.mxu0 0.0
        %8274 = vmatprep.subr.mxu0 0.0
        %8275 = vmatpush1.msra.mxu0 0.0
        %8276 = vmatprep.subr.mxu0 0.0
        %8277 = vmatpush1.msra.mxu0 0.0
        %8278 = vmatprep.subr.mxu0 0.0
        %8279 = vmatpush1.msra.mxu0 0.0
        %8280 = vmatprep.subr.mxu0 0.0
        %8281 = vmatpush1.msra.mxu0 0.0
        %8282 = vmatprep.subr.mxu0 0.0
        %8283 = vmatpush1.msra.mxu0 0.0
        %8284 = vmatprep.subr.mxu0 0.0
        %8285 = vmatpush1.msra.mxu0 0.0
        %8286 = vmatprep.subr.mxu0 0.0
        %8287 = vmatpush1.msra.mxu0 0.0
        %8288 = vmatprep.subr.mxu0 0.0
        %8289 = vmatpush1.msra.mxu0 0.0
        %8290 = vmatprep.subr.mxu0 0.0
        %8291 = vmatpush1.msra.mxu0 0.0
        %8292 = vmatprep.subr.mxu0 0.0
        %8293 = vmatpush1.msra.mxu0 0.0
        %8294 = vmatprep.subr.mxu0 0.0
        %8295 = vmatpush1.msra.mxu0 0.0
        %8296 = vmatprep.subr.mxu0 0.0
        %8297 = vmatpush1.msra.mxu0 0.0
        %8298 = vmatprep.mubr.f32.mxu0 0.0
        %8299 = vmatmul.mubr.f32.gmra.mrb[0].mxu0 %v8229
        %v8300 = vpop.f32.mrb[0].mxu0
        %v8301 = vadd.f32 %v8221, %v8300
        %v8302 = vpop.f32.mrb[0].mxu0
        %v8303 = vadd.f32 %v8221, %v8302
        %8304 = vmatprep.mubr.f32.mxu0 0.0
        %8305 = vmatmul.mubr.f32.gmra.mrb[0].mxu0 %v8232
        %v8306 = vpop.f32.mrb[0].mxu0
        %v8307 = vadd.f32 %v8226, %v8306
        %v8308 = vpop.f32.mrb[0].mxu0
        %v8309 = vadd.f32 %v8226, %v8308
        %8310 = vdwg.mxu0
        %8311 = vmatprep.subr.mxu0 %v8193
        %8312 = vmatpush1.msra.mxu0 %v8192
        %8313 = vmatprep.subr.mxu0 %v8199
        %8314 = vmatpush1.msra.mxu0 %v8198
        %8315 = vmatprep.subr.mxu0 %v8205
        %8316 = vmatpush1.msra.mxu0 %v8204
        %8317 = vmatprep.subr.mxu0 %v8211
        %8318 = vmatpush1.msra.mxu0 %v8210
        %8319 = vmatprep.subr.mxu0 0.0
        %8320 = vmatpush1.msra.mxu0 0.0
        %8321 = vmatprep.subr.mxu0 0.0
        %8322 = vmatpush1.msra.mxu0 0.0
        %8323 = vmatprep.subr.mxu0 0.0
        %8324 = vmatpush1.msra.mxu0 0.0
        %8325 = vmatprep.subr.mxu0 0.0
        %8326 = vmatpush1.msra.mxu0 0.0
        %8327 = vmatprep.subr.mxu0 0.0
        %8328 = vmatpush1.msra.mxu0 0.0
        %8329 = vmatprep.subr.mxu0 0.0
        %8330 = vmatpush1.msra.mxu0 0.0
        %8331 = vmatprep.subr.mxu0 0.0
        %8332 = vmatpush1.msra.mxu0 0.0
        %8333 = vmatprep.subr.mxu0 0.0
        %8334 = vmatpush1.msra.mxu0 0.0
        %8335 = vmatprep.subr.mxu0 0.0
        %8336 = vmatpush1.msra.mxu0 0.0
        %8337 = vmatprep.subr.mxu0 0.0
        %8338 = vmatpush1.msra.mxu0 0.0
        %8339 = vmatprep.subr.mxu0 0.0
        %8340 = vmatpush1.msra.mxu0 0.0
        %8341 = vmatprep.subr.mxu0 0.0
        %8342 = vmatpush1.msra.mxu0 0.0
        %8343 = vmatprep.subr.mxu0 0.0
        %8344 = vmatpush1.msra.mxu0 0.0
        %8345 = vmatprep.subr.mxu0 0.0
        %8346 = vmatpush1.msra.mxu0 0.0
        %8347 = vmatprep.subr.mxu0 0.0
        %8348 = vmatpush1.msra.mxu0 0.0
        %8349 = vmatprep.subr.mxu0 0.0
        %8350 = vmatpush1.msra.mxu0 0.0
        %8351 = vmatprep.subr.mxu0 0.0
        %8352 = vmatpush1.msra.mxu0 0.0
        %8353 = vmatprep.subr.mxu0 0.0
        %8354 = vmatpush1.msra.mxu0 0.0
        %8355 = vmatprep.subr.mxu0 0.0
        %8356 = vmatpush1.msra.mxu0 0.0
        %8357 = vmatprep.subr.mxu0 0.0
        %8358 = vmatpush1.msra.mxu0 0.0
        %8359 = vmatprep.subr.mxu0 0.0
        %8360 = vmatpush1.msra.mxu0 0.0
        %8361 = vmatprep.subr.mxu0 0.0
        %8362 = vmatpush1.msra.mxu0 0.0
        %8363 = vmatprep.subr.mxu0 0.0
        %8364 = vmatpush1.msra.mxu0 0.0
        %8365 = vmatprep.subr.mxu0 0.0
        %8366 = vmatpush1.msra.mxu0 0.0
        %8367 = vmatprep.subr.mxu0 0.0
        %8368 = vmatpush1.msra.mxu0 0.0
        %8369 = vmatprep.subr.mxu0 0.0
        %8370 = vmatpush1.msra.mxu0 0.0
        %8371 = vmatprep.subr.mxu0 0.0
        %8372 = vmatpush1.msra.mxu0 0.0
        %8373 = vmatprep.subr.mxu0 0.0
        %8374 = vmatpush1.msra.mxu0 0.0
        %8375 = vmatprep.mubr.f32.mxu0 0.0
        %8376 = vmatmul.mubr.f32.gmra.mrb[0].mxu0 %v8229
        %v8377 = vpop.f32.mrb[0].mxu0
        %v8378 = vadd.f32 %v8221, %v8377
        %v8379 = vpop.f32.mrb[0].mxu0
        %v8380 = vadd.f32 %v8221, %v8379
        %8381 = vmatprep.mubr.f32.mxu0 0.0
        %8382 = vmatmul.mubr.f32.gmra.mrb[0].mxu0 %v8232
        %v8383 = vpop.f32.mrb[0].mxu0
        %v8384 = vadd.f32 %v8226, %v8383
        %v8385 = vpop.f32.mrb[0].mxu0
        %v8386 = vadd.f32 %v8226, %v8385
        %8387 = vdwg.mxu0
        %8388 = vmatprep.subr.mxu0 %v8195
        %8389 = vmatpush1.msra.mxu0 %v8194
        %8390 = vmatprep.subr.mxu0 %v8201
        %8391 = vmatpush1.msra.mxu0 %v8200
        %8392 = vmatprep.subr.mxu0 %v8207
        %8393 = vmatpush1.msra.mxu0 %v8206
        %8394 = vmatprep.subr.mxu0 %v8213
        %8395 = vmatpush1.msra.mxu0 %v8212
        %8396 = vmatprep.subr.mxu0 0.0
        %8397 = vmatpush1.msra.mxu0 0.0
        %8398 = vmatprep.subr.mxu0 0.0
        %8399 = vmatpush1.msra.mxu0 0.0
        %8400 = vmatprep.subr.mxu0 0.0
        %8401 = vmatpush1.msra.mxu0 0.0
        %8402 = vmatprep.subr.mxu0 0.0
        %8403 = vmatpush1.msra.mxu0 0.0
        %8404 = vmatprep.subr.mxu0 0.0
        %8405 = vmatpush1.msra.mxu0 0.0
        %8406 = vmatprep.subr.mxu0 0.0
        %8407 = vmatpush1.msra.mxu0 0.0
        %8408 = vmatprep.subr.mxu0 0.0
        %8409 = vmatpush1.msra.mxu0 0.0
        %8410 = vmatprep.subr.mxu0 0.0
        %8411 = vmatpush1.msra.mxu0 0.0
        %8412 = vmatprep.subr.mxu0 0.0
        %8413 = vmatpush1.msra.mxu0 0.0
        %8414 = vmatprep.subr.mxu0 0.0
        %8415 = vmatpush1.msra.mxu0 0.0
        %8416 = vmatprep.subr.mxu0 0.0
        %8417 = vmatpush1.msra.mxu0 0.0
        %8418 = vmatprep.subr.mxu0 0.0
        %8419 = vmatpush1.msra.mxu0 0.0
        %8420 = vmatprep.subr.mxu0 0.0
        %8421 = vmatpush1.msra.mxu0 0.0
        %8422 = vmatprep.subr.mxu0 0.0
        %8423 = vmatpush1.msra.mxu0 0.0
        %8424 = vmatprep.subr.mxu0 0.0
        %8425 = vmatpush1.msra.mxu0 0.0
        %8426 = vmatprep.subr.mxu0 0.0
        %8427 = vmatpush1.msra.mxu0 0.0
        %8428 = vmatprep.subr.mxu0 0.0
        %8429 = vmatpush1.msra.mxu0 0.0
        %8430 = vmatprep.subr.mxu0 0.0
        %8431 = vmatpush1.msra.mxu0 0.0
        %8432 = vmatprep.subr.mxu0 0.0
        %8433 = vmatpush1.msra.mxu0 0.0
        %8434 = vmatprep.subr.mxu0 0.0
        %8435 = vmatpush1.msra.mxu0 0.0
        %8436 = vmatprep.subr.mxu0 0.0
        %8437 = vmatpush1.msra.mxu0 0.0
        %8438 = vmatprep.subr.mxu0 0.0
        %8439 = vmatpush1.msra.mxu0 0.0
        %8440 = vmatprep.subr.mxu0 0.0
        %8441 = vmatpush1.msra.mxu0 0.0
        %8442 = vmatprep.subr.mxu0 0.0
        %8443 = vmatpush1.msra.mxu0 0.0
        %8444 = vmatprep.subr.mxu0 0.0
        %8445 = vmatpush1.msra.mxu0 0.0
        %8446 = vmatprep.subr.mxu0 0.0
        %8447 = vmatpush1.msra.mxu0 0.0
        %8448 = vmatprep.subr.mxu0 0.0
        %8449 = vmatpush1.msra.mxu0 0.0
        %8450 = vmatprep.subr.mxu0 0.0
        %8451 = vmatpush1.msra.mxu0 0.0
        %8452 = vmatprep.mubr.f32.mxu0 0.0
        %8453 = vmatmul.mubr.f32.gmra.mrb[0].mxu0 %v8229
        %v8454 = vpop.f32.mrb[0].mxu0
        %v8455 = vadd.f32 %v8221, %v8454
        %v8456 = vpop.f32.mrb[0].mxu0
        %v8457 = vadd.f32 %v8221, %v8456
        %8458 = vmatprep.mubr.f32.mxu0 0.0
        %8459 = vmatmul.mubr.f32.gmra.mrb[0].mxu0 %v8232
        %v8460 = vpop.f32.mrb[0].mxu0
        %v8461 = vadd.f32 %v8226, %v8460
        %v8462 = vpop.f32.mrb[0].mxu0
        %v8463 = vadd.f32 %v8226, %v8462
        %8464 = vdwg.mxu0
        %8465 = vst [vmem:[%s571] sm:$0xff] %v8301
        %8466 = vst [vmem:[%s571 + $0x8] sm:$0xff] %v8303
        %8467 = vst [vmem:[%s571 + $0x10] sm:$0xff] %v8378
        %8468 = vst [vmem:[%s571 + $0x18] sm:$0xff] %v8380
        %8469 = vst [vmem:[%s571 + $0x20] sm:$0xff] %v8455
        %8470 = vst [vmem:[%s571 + $0x28] sm:$0xff] %v8457
        %8471 = vst [vmem:[%s571 + $0x30] sm:$0xff] %v8307
        %8472 = vst [vmem:[%s571 + $0x38] sm:$0xff] %v8309
        %8473 = vst [vmem:[%s571 + $0x40] sm:$0xff] %v8384
        %8474 = vst [vmem:[%s571 + $0x48] sm:$0xff] %v8386
        %8475 = vst [vmem:[%s571 + $0x50] sm:$0xff] %v8461
        %8476 = vst [vmem:[%s571 + $0x58] sm:$0xff] %v8463
        %s8477 = sand.u32 %s411, 1
        %s8478 = scalar_lea.sflag [#allocation4], %s8477
        %s8479 = sand.u32 %s411, 1
        %s8480 = smul.addr %s8479, 96
        %s8481 = scalar_lea.vmem [#allocation3], %s8480
        // Predicated region
        $region89: #{wavenet_decoder_forward.1} parent=87 // pred_check
          %p8482 = pneg %p421
        $region90: #{wavenet_decoder_forward.1} parent=87 // pred_check_branch
          %8484 = sbr.rel (%p8482) target = $region92
        $region91: #{wavenet_decoder_forward.1} parent=87 // pred_region
          %s8486 = ssub.s32 1536, 1536
          %8487 = vsyncadd %s8478, %s8486
          %s8488 = smul.addr %s31, 12
          %s8489 = smul.addr %s8488, 128
          %s8490 = scalar_lea.hbm %s17, %s8489
          %s8491 = sshll.u32 %s8481, 4
          %s8492 = int_to_ptr.vmem [resolvable:$true] %s8491
          %8497 = dma.vmem_to_hbm [thread:$0]  %s8492, 1536, %s8490, %s8478, 768, 768, 48
        $region92: #{wavenet_decoder_forward.1} parent=87 // pred_fallthru
          _
      $region88: #{wavenet_decoder_forward.1} parent=5 // pred_fallthru
        _
      %p8498 = scmp.le.s32.totalorder 2, %s26
      // Predicated region
      $region93: #{wavenet_decoder_forward.1} parent=5 // pred_check
        %p8499 = pneg %p8498
      $region94: #{wavenet_decoder_forward.1} parent=5 // pred_check_branch
        %8501 = sbr.rel (%p8499) target = $region96
      $region95: #{wavenet_decoder_forward.1} parent=5 // pred_region
        %s8502 = ssub.s32 %s26, 2
        // Predicated region
        $region97: #{wavenet_decoder_forward.1} parent=95 // pred_check
          %p8503 = pneg %p427
        $region98: #{wavenet_decoder_forward.1} parent=95 // pred_check_branch
          %8505 = sbr.rel (%p8503) target = $region100
        $region99: #{wavenet_decoder_forward.1} parent=95 // pred_region
          %s8506 = sand.u32 %s412, 1
          %s8507 = scalar_lea.sflag [#allocation4], %s8506
          %s8508 = sand.u32 %s412, 1
          %s8509 = smul.addr %s8508, 96
          %s8510 = scalar_lea.vmem [#allocation3], %s8509
          %8511 = dma.done %s8507, 1536
        $region100: #{wavenet_decoder_forward.1} parent=95 // pred_fallthru
          _
      $region96: #{wavenet_decoder_forward.1} parent=5 // pred_fallthru
        _
    $region6: #{wavenet_decoder_forward.1} parent=1 // loop_footer
      %s30 = sadd.s32 1, %s26
    $region7: #{wavenet_decoder_forward.1} parent=1 // loop_footer_branch
      %25 = sbr.rel target = $region3
    $region8: #{wavenet_decoder_forward.1} parent=1 // loop_exit
      _
    %8512 = vsyncpa [#allocation4], 1
    %s8513 = scalar_lea.sflag [#allocation4], 1
    %8514 = vsyncpa %s8513, 1

</llo_original>
